<compile_context>
chip_gen: v6e
topology: v6e:2x2x1
jax: 0.10.0
libtpu: 0.0.40
codegen_flags: <defaults>
</compile_context>

<pallas_src>
import functools
import math

import jax
import jax.numpy as jnp
from jax.experimental import pallas as pl
from jax.experimental.pallas import tpu as pltpu


def _sigmoid(x):
    return 1.0 / (1.0 + jnp.exp(-x))


# =============================================================================
# Fused forward kernel
# =============================================================================
def _make_fused_kernel(*, n_s, n_d, b, m, l, d, ablation):
    bm = b * m          # metapath sequences per path type
    bt = 3 * bm         # LSTM batch rows: [ps(bm) | pd(bm) | id(bm)]
    n_seq = 3 * b       # encoder sequences: [ps(b) | pd(b) | id(b)]
    h = d               # LSTM hidden size == feature dim
    inv_sqrt_d = 1.0 / math.sqrt(d)

    def kernel(xs_ref, xd_ref,
               oh_s_ref, oh_d_ref, bias_ref, summat_ref,
               ln_w_ref, ln_b_ref, wk_ref, wv_ref,
               bq11_ref, bq12_ref, bq21_ref, bq22_ref, bq10_ref, bq20_ref,
               wih_ref, whh_ref, bl_ref,
               inw_ref, inb_ref, outw_ref, outb_ref,
               ln1w_ref, ln1b_ref, l1w_ref, l1b_ref, l2w_ref, l2b_ref,
               ln2w_ref, ln2b_ref,
               ft_s_ref, ft_d_ref):
        f32 = jnp.float32

        def layer_norm(y, w, bias):
            mu = jnp.mean(y, axis=-1, keepdims=True)
            var = jnp.mean((y - mu) ** 2, axis=-1, keepdims=True)
            return (y - mu) * jax.lax.rsqrt(var + 1e-5) * w + bias

        # ------------------------------------------------------------------
        # ESGtransform: softmax_one attention over the node sets (s and d).
        # ------------------------------------------------------------------
        def esg_nodes(x, bq1_t, bq2_t, bq0_row):
            x_ESG = jnp.where(x[:, 5:14] <= 0.0, 1e-10, x[:, 5:14])
            x_esg = jnp.where(x[:, 14:23] <= 0.0, 1e-10, x[:, 14:23])
            x_feat = layer_norm(x[:, 0:d], ln_w_ref[...], ln_b_ref[...])
            x_k = jnp.dot(x_feat, wk_ref[...], preferred_element_type=f32)
            x_v = jnp.dot(x_feat, wv_ref[...], preferred_element_type=f32)
            x_q = (bq0_row
                   + jnp.dot(x_esg, bq1_t, preferred_element_type=f32)
                   + jnp.dot(x_ESG * x_esg, bq2_t, preferred_element_type=f32))
            # q @ k.T / sqrt(d): contract the feature dims directly (no explicit k.T).
            s = jax.lax.dot_general(x_q, x_k, (((1,), (1,)), ((), ())),
                                    preferred_element_type=f32) * inv_sqrt_d
            # softmax_one exactly as the reference defines it:
            #   shift by the row max, then divide by (1 + sum(exp(shifted))).
            mx = jnp.max(s, axis=1, keepdims=True)
            e = jnp.exp(s - mx)
            attn = e * pl.reciprocal(1.0 + jnp.sum(e, axis=1, keepdims=True), approx=True)
            out = jnp.dot(attn, x_v, preferred_element_type=f32)
            if ablation:
                return out
            return out + x_feat

        s_nodes = esg_nodes(xs_ref[...], bq11_ref[...], bq12_ref[...], bq10_ref[...])  # [n_s, d]
        d_nodes = esg_nodes(xd_ref[...], bq21_ref[...], bq22_ref[...], bq20_ref[...])  # [n_d, d]

        # ------------------------------------------------------------------
        # AggLSTM: in-kernel metapath gather (one-hot matmuls, time-major) and an
        # unrolled LSTM.  All input projections are computed in one matmul up
        # front; only h @ W_hh remains on the recurrent critical path.
        # ------------------------------------------------------------------
        x_all = (jnp.dot(oh_s_ref[...], s_nodes, preferred_element_type=f32)
                 + jnp.dot(oh_d_ref[...], d_nodes, preferred_element_type=f32))      # [l*bt, d]
        xg_all = jnp.dot(x_all, wih_ref[...], preferred_element_type=f32) + bl_ref[...]  # [l*bt, 4h]

        whh = whh_ref[...]                                                            # [h, 4h]
        h_t = jnp.zeros((bt, h), f32)
        c_t = jnp.zeros((bt, h), f32)
        for t in range(l):                                     # statically unrolled (L constant)
            gates = xg_all[t * bt:(t + 1) * bt, :] + jnp.dot(
                h_t, whh, preferred_element_type=f32)          # [bt, 4h], gate order i,f,g,o
            i_g = _sigmoid(gates[:, 0:h])
            f_g = _sigmoid(gates[:, h:2 * h])
            g_g = jnp.tanh(gates[:, 2 * h:3 * h])
            o_g = _sigmoid(gates[:, 3 * h:4 * h])
            c_t = f_g * c_t + i_g * g_g
            h_t = o_g * jnp.tanh(c_t)
        # the reference uses the final *cell* state:  _, (_, out) = self.lstm(x)
        x_flat = c_t                                           # [bt, d]; rows = (path, b, m)

        # ------------------------------------------------------------------
        # TransformerEncoderLayer (post-LN, nhead=d => head_dim=1, scale=1, ReLU
        # FFN), batched over all sequences via an additive block mask, then the
        # per-sequence sum over the M metapaths.
        # Dropouts (inside the layer and after the encoder) are identities.
        # ------------------------------------------------------------------
        qkv = jnp.dot(x_flat, inw_ref[...], preferred_element_type=f32) + inb_ref[...]  # [bt, 3d]
        qf = qkv[:, 0:d]
        kf = qkv[:, d:2 * d]
        vf = qkv[:, 2 * d:3 * d]
        # head_dim = 1  =>  score[i, j, head] = q[i, head] * k[j, head]
        sc = qf[:, None, :] * kf[None, :, :] + bias_ref[...]   # [bt, bt, d]; cross-seq = -1e30
        mx = jnp.max(sc, axis=1, keepdims=True)
        ex = jnp.exp(sc - mx)
        attn = ex * pl.reciprocal(jnp.sum(ex, axis=1, keepdims=True), approx=True)
        heads = jnp.sum(attn * vf[None, :, :], axis=1)         # [bt, d] == concat(heads)
        sa = jnp.dot(heads, outw_ref[...], preferred_element_type=f32) + outb_ref[...]
        x1 = layer_norm(x_flat + sa, ln1w_ref[...], ln1b_ref[...])                     # [bt, d]

        ffh = jnp.maximum(
            jnp.dot(x1, l1w_ref[...], preferred_element_type=f32) + l1b_ref[...], 0.0)  # [bt, dff]
        # lin2 weight stays lane-dense [d, dff]; contract over dff.
        ff = jax.lax.dot_general(ffh, l2w_ref[...], (((1,), (1,)), ((), ())),
                                 preferred_element_type=f32) + l2b_ref[...]             # [bt, d]
        x2 = layer_norm(x1 + ff, ln2w_ref[...], ln2b_ref[...])                          # [bt, d]

        # per-sequence sum over the M metapaths (summation matrix -> [3b, d])
        summed = jnp.dot(summat_ref[...], x2, preferred_element_type=f32)
        # ft_s = cat(o_ps, o_is); ft_d = cat(o_pd, o_id).  The reference overwrites
        # out_is with the id-path LSTM result, so o_is == o_id.
        ft_s_ref[0:b, :] = summed[0:b, :]
        ft_s_ref[b:2 * b, :] = summed[2 * b:3 * b, :]
        ft_d_ref[0:b, :] = summed[b:2 * b, :]
        ft_d_ref[b:2 * b, :] = summed[2 * b:3 * b, :]

    return kernel


# =============================================================================
# Forward wrapper (single jit; single pallas_call inside)
# =============================================================================
@functools.partial(jax.jit, static_argnames=("ablation",))
def metapath_attention_forward(xs, xd, metapath, params, ablation=False):
    pe, plstm, pen = params["esg"], params["lstm"], params["enc"]
    n_s = xs.shape[0]
    n_d = xd.shape[0]
    d = pe["w_k"].shape[0]
    mp_ps, mp_pd, _mp_is, mp_id = metapath     # is-path is dead in the reference (overwritten)
    b, m, l = mp_ps.shape
    bm, bt, n_seq = b * m, 3 * b * m, 3 * b

    # ---- tiny, kernel-independent host-side constants (fused into the same jit) ----
    # combined, time-major metapath indices; d-sourced entries offset by n_s
    mp_all = jnp.concatenate(
        [mp_ps.reshape(bm, l).astype(jnp.int32),
         mp_pd.reshape(bm, l).astype(jnp.int32) + n_s,
         mp_id.reshape(bm, l).astype(jnp.int32) + n_s], axis=0)            # [bt, l]
    mp_tm = mp_all.T.reshape(l * bt)                                        # row = t*bt + seq_slot
    oh_s = jax.nn.one_hot(mp_tm, n_s, dtype=jnp.float32)                    # zero rows for d-entries
    oh_d = jax.nn.one_hot(mp_tm - n_s, n_d, dtype=jnp.float32)              # zero rows for s-entries
    seq_ids = jnp.arange(bt, dtype=jnp.int32) // m
    attn_bias = jnp.where(seq_ids[:, None] == seq_ids[None, :], 0.0, -1e30)
    attn_bias = attn_bias[:, :, None].astype(jnp.float32)                   # [bt, bt, 1]
    sum_mat = (jnp.arange(n_seq, dtype=jnp.int32)[:, None]
               == seq_ids[None, :]).astype(jnp.float32)                     # [3b, bt]

    def row(v):
        return v.reshape(1, -1)

    args = (
        xs.astype(jnp.float32), xd.astype(jnp.float32),
        oh_s, oh_d, attn_bias, sum_mat,
        row(pe["ln_w"]), row(pe["ln_b"]), pe["w_k"].T, pe["w_v"].T,
        pe["bq11"].T, pe["bq12"].T, pe["bq21"].T, pe["bq22"].T,
        jnp.broadcast_to(pe["beta_q10"].reshape(1, 1), (1, d)),
        jnp.broadcast_to(pe["beta_q20"].reshape(1, 1), (1, d)),
        plstm["w_ih"].T, plstm["w_hh"].T, row(plstm["b_ih"] + plstm["b_hh"]),
        pen["in_proj_w"].T, row(pen["in_proj_b"]),
        pen["out_proj_w"].T, row(pen["out_proj_b"]),
        row(pen["ln1_w"]), row(pen["ln1_b"]),
        pen["lin1_w"].T, row(pen["lin1_b"]),
        pen["lin2_w"], row(pen["lin2_b"]),          # lin2 kept lane-dense: [d, dff]
        row(pen["ln2_w"]), row(pen["ln2_b"]),
    )
    in_specs = [pl.BlockSpec(a.shape, lambda i, _nd=a.ndim: (0,) * _nd) for a in args]
    out_shape = (jax.ShapeDtypeStruct((2 * b, d), jnp.float32),
                 jax.ShapeDtypeStruct((2 * b, d), jnp.float32))
    out_specs = (pl.BlockSpec((2 * b, d), lambda i: (0, 0)),
                 pl.BlockSpec((2 * b, d), lambda i: (0, 0)))

    kernel = _make_fused_kernel(n_s=n_s, n_d=n_d, b=b, m=m, l=l, d=d, ablation=ablation)
    ft_s, ft_d = pl.pallas_call(
        kernel,
        grid=(1,),
        in_specs=in_specs,
        out_specs=out_specs,
        out_shape=out_shape,
        compiler_params=pltpu.CompilerParams(dimension_semantics=("arbitrary",)),
    )(*args)
    return ft_s, ft_d


# =============================================================================
# Deterministic parameter initialization (shapes from the module __init__)
# =============================================================================
def _xavier_normal(key, shape):
    fan_out, fan_in = shape
    std = math.sqrt(2.0 / (fan_in + fan_out))
    return std * jax.random.normal(key, shape, dtype=jnp.float32)


def init_params(key, d=5, nesg=9, dff=2048):
    ks = iter(jax.random.split(key, 32))
    esg = dict(
        beta_q10=jnp.zeros((1,), jnp.float32),
        beta_q20=jnp.zeros((1,), jnp.float32),
        bq11=_xavier_normal(next(ks), (d, nesg)),
        bq12=_xavier_normal(next(ks), (d, nesg)),
        bq21=_xavier_normal(next(ks), (d, nesg)),
        bq22=_xavier_normal(next(ks), (d, nesg)),
        w_k=_xavier_normal(next(ks), (d, d)),
        w_v=_xavier_normal(next(ks), (d, d)),
        ln_w=jnp.ones((d,), jnp.float32),
        ln_b=jnp.zeros((d,), jnp.float32),
    )
    h = d
    bound = 1.0 / math.sqrt(h)

    def uni(k, shape):
        return jax.random.uniform(k, shape, jnp.float32, -bound, bound)

    lstm = dict(
        w_ih=uni(next(ks), (4 * h, d)),
        w_hh=uni(next(ks), (4 * h, h)),
        b_ih=uni(next(ks), (4 * h,)),
        b_hh=uni(next(ks), (4 * h,)),
    )
    enc = dict(
        in_proj_w=_xavier_normal(next(ks), (3 * d, d)),
        in_proj_b=jnp.zeros((3 * d,), jnp.float32),
        out_proj_w=_xavier_normal(next(ks), (d, d)),
        out_proj_b=jnp.zeros((d,), jnp.float32),
        lin1_w=_xavier_normal(next(ks), (dff, d)),
        lin1_b=jnp.zeros((dff,), jnp.float32),
        lin2_w=_xavier_normal(next(ks), (d, dff)),
        lin2_b=jnp.zeros((d,), jnp.float32),
        ln1_w=jnp.ones((d,), jnp.float32),
        ln1_b=jnp.zeros((d,), jnp.float32),
        ln2_w=jnp.ones((d,), jnp.float32),
        ln2_b=jnp.zeros((d,), jnp.float32),
    )
    return dict(esg=esg, lstm=lstm, enc=enc)


if __name__ == "__main__":
    key = jax.random.PRNGKey(0)
    k_params, k_xs, k_xd, k0, k1, k2, k3 = jax.random.split(key, 7)

    N_s, N_d = 12, 10          # number of source / destination nodes
    B, M, L = 2, 3, 4          # metapath batch, paths per node, path length
    FEAT = 23                  # 5 features + 9 ESG + 9 esg columns

    params = init_params(k_params)
    xs = jax.random.normal(k_xs, (N_s, FEAT), dtype=jnp.float32)
    xd = jax.random.normal(k_xd, (N_d, FEAT), dtype=jnp.float32)
    metapath = (
        jax.random.randint(k0, (B, M, L), 0, N_s),   # ps -> indices into s
        jax.random.randint(k1, (B, M, L), 0, N_d),   # pd -> indices into d
        jax.random.randint(k2, (B, M, L), 0, N_s),   # is -> indices into s (dead in the reference)
        jax.random.randint(k3, (B, M, L), 0, N_d),   # id -> indices into d
    )

    ft_s, ft_d = metapath_attention_forward(xs, xd, metapath, params)
    jax.block_until_ready((ft_s, ft_d))
    assert ft_s.shape == (2 * B, 5) and ft_d.shape == (2 * B, 5)
    assert bool(jnp.all(jnp.isfinite(ft_s))) and bool(jnp.all(jnp.isfinite(ft_d)))
    print("KERNEL_OK")
</pallas_src>

<mosaic_0001>
module attributes {stable_mosaic.version = 11 : i64} {
  func.func @kernel(%arg0: i32, %arg1: memref<12x23xf32, #tpu.memory_space<vmem>>, %arg2: memref<10x23xf32, #tpu.memory_space<vmem>>, %arg3: memref<72x12xf32, #tpu.memory_space<vmem>>, %arg4: memref<72x10xf32, #tpu.memory_space<vmem>>, %arg5: memref<18x18x1xf32, #tpu.memory_space<vmem>>, %arg6: memref<6x18xf32, #tpu.memory_space<vmem>>, %arg7: memref<1x5xf32, #tpu.memory_space<vmem>>, %arg8: memref<1x5xf32, #tpu.memory_space<vmem>>, %arg9: memref<5x5xf32, #tpu.memory_space<vmem>>, %arg10: memref<5x5xf32, #tpu.memory_space<vmem>>, %arg11: memref<9x5xf32, #tpu.memory_space<vmem>>, %arg12: memref<9x5xf32, #tpu.memory_space<vmem>>, %arg13: memref<9x5xf32, #tpu.memory_space<vmem>>, %arg14: memref<9x5xf32, #tpu.memory_space<vmem>>, %arg15: memref<1x5xf32, #tpu.memory_space<vmem>>, %arg16: memref<1x5xf32, #tpu.memory_space<vmem>>, %arg17: memref<5x20xf32, #tpu.memory_space<vmem>>, %arg18: memref<5x20xf32, #tpu.memory_space<vmem>>, %arg19: memref<1x20xf32, #tpu.memory_space<vmem>>, %arg20: memref<5x15xf32, #tpu.memory_space<vmem>>, %arg21: memref<1x15xf32, #tpu.memory_space<vmem>>, %arg22: memref<5x5xf32, #tpu.memory_space<vmem>>, %arg23: memref<1x5xf32, #tpu.memory_space<vmem>>, %arg24: memref<1x5xf32, #tpu.memory_space<vmem>>, %arg25: memref<1x5xf32, #tpu.memory_space<vmem>>, %arg26: memref<5x2048xf32, #tpu.memory_space<vmem>>, %arg27: memref<1x2048xf32, #tpu.memory_space<vmem>>, %arg28: memref<5x2048xf32, #tpu.memory_space<vmem>>, %arg29: memref<1x5xf32, #tpu.memory_space<vmem>>, %arg30: memref<1x5xf32, #tpu.memory_space<vmem>>, %arg31: memref<1x5xf32, #tpu.memory_space<vmem>>, %arg32: memref<4x5xf32, #tpu.memory_space<vmem>>, %arg33: memref<4x5xf32, #tpu.memory_space<vmem>>) attributes {dimension_semantics = [#tpu.dimension_semantics<arbitrary>], iteration_bounds = array<i64: 1>, scalar_prefetch = 0 : i64, scratch_operands = 0 : i64, tpu.core_type = #tpu.core_type<tc>, window_params = [{pipeline_mode = #tpu.pipeline_mode<synchronous>, transform_indices = @transform_0, window_bounds = array<i64: 12, 23>}, {pipeline_mode = #tpu.pipeline_mode<synchronous>, transform_indices = @transform_1, window_bounds = array<i64: 10, 23>}, {pipeline_mode = #tpu.pipeline_mode<synchronous>, transform_indices = @transform_2, window_bounds = array<i64: 72, 12>}, {pipeline_mode = #tpu.pipeline_mode<synchronous>, transform_indices = @transform_3, window_bounds = array<i64: 72, 10>}, {pipeline_mode = #tpu.pipeline_mode<synchronous>, transform_indices = @transform_4, window_bounds = array<i64: 18, 18, 1>}, {pipeline_mode = #tpu.pipeline_mode<synchronous>, transform_indices = @transform_5, window_bounds = array<i64: 6, 18>}, {pipeline_mode = #tpu.pipeline_mode<synchronous>, transform_indices = @transform_6, window_bounds = array<i64: 1, 5>}, {pipeline_mode = #tpu.pipeline_mode<synchronous>, transform_indices = @transform_7, window_bounds = array<i64: 1, 5>}, {pipeline_mode = #tpu.pipeline_mode<synchronous>, transform_indices = @transform_8, window_bounds = array<i64: 5, 5>}, {pipeline_mode = #tpu.pipeline_mode<synchronous>, transform_indices = @transform_9, window_bounds = array<i64: 5, 5>}, {pipeline_mode = #tpu.pipeline_mode<synchronous>, transform_indices = @transform_10, window_bounds = array<i64: 9, 5>}, {pipeline_mode = #tpu.pipeline_mode<synchronous>, transform_indices = @transform_11, window_bounds = array<i64: 9, 5>}, {pipeline_mode = #tpu.pipeline_mode<synchronous>, transform_indices = @transform_12, window_bounds = array<i64: 9, 5>}, {pipeline_mode = #tpu.pipeline_mode<synchronous>, transform_indices = @transform_13, window_bounds = array<i64: 9, 5>}, {pipeline_mode = #tpu.pipeline_mode<synchronous>, transform_indices = @transform_14, window_bounds = array<i64: 1, 5>}, {pipeline_mode = #tpu.pipeline_mode<synchronous>, transform_indices = @transform_15, window_bounds = array<i64: 1, 5>}, {pipeline_mode = #tpu.pipeline_mode<synchronous>, transform_indices = @transform_16, window_bounds = array<i64: 5, 20>}, {pipeline_mode = #tpu.pipeline_mode<synchronous>, transform_indices = @transform_17, window_bounds = array<i64: 5, 20>}, {pipeline_mode = #tpu.pipeline_mode<synchronous>, transform_indices = @transform_18, window_bounds = array<i64: 1, 20>}, {pipeline_mode = #tpu.pipeline_mode<synchronous>, transform_indices = @transform_19, window_bounds = array<i64: 5, 15>}, {pipeline_mode = #tpu.pipeline_mode<synchronous>, transform_indices = @transform_20, window_bounds = array<i64: 1, 15>}, {pipeline_mode = #tpu.pipeline_mode<synchronous>, transform_indices = @transform_21, window_bounds = array<i64: 5, 5>}, {pipeline_mode = #tpu.pipeline_mode<synchronous>, transform_indices = @transform_22, window_bounds = array<i64: 1, 5>}, {pipeline_mode = #tpu.pipeline_mode<synchronous>, transform_indices = @transform_23, window_bounds = array<i64: 1, 5>}, {pipeline_mode = #tpu.pipeline_mode<synchronous>, transform_indices = @transform_24, window_bounds = array<i64: 1, 5>}, {pipeline_mode = #tpu.pipeline_mode<synchronous>, transform_indices = @transform_25, window_bounds = array<i64: 5, 2048>}, {pipeline_mode = #tpu.pipeline_mode<synchronous>, transform_indices = @transform_26, window_bounds = array<i64: 1, 2048>}, {pipeline_mode = #tpu.pipeline_mode<synchronous>, transform_indices = @transform_27, window_bounds = array<i64: 5, 2048>}, {pipeline_mode = #tpu.pipeline_mode<synchronous>, transform_indices = @transform_28, window_bounds = array<i64: 1, 5>}, {pipeline_mode = #tpu.pipeline_mode<synchronous>, transform_indices = @transform_29, window_bounds = array<i64: 1, 5>}, {pipeline_mode = #tpu.pipeline_mode<synchronous>, transform_indices = @transform_30, window_bounds = array<i64: 1, 5>}, {pipeline_mode = #tpu.pipeline_mode<synchronous>, transform_indices = @transform_31, window_bounds = array<i64: 4, 5>}, {pipeline_mode = #tpu.pipeline_mode<synchronous>, transform_indices = @transform_32, window_bounds = array<i64: 4, 5>}]} {
    %c0 = arith.constant 0 : index
    %c0_0 = arith.constant 0 : index
    %0 = vector.load %arg1[%c0, %c0_0] : memref<12x23xf32, #tpu.memory_space<vmem>>, vector<12x23xf32>
    %c0_1 = arith.constant 0 : index
    %c0_2 = arith.constant 0 : index
    %1 = vector.load %arg11[%c0_1, %c0_2] : memref<9x5xf32, #tpu.memory_space<vmem>>, vector<9x5xf32>
    %c0_3 = arith.constant 0 : index
    %c0_4 = arith.constant 0 : index
    %2 = vector.load %arg12[%c0_3, %c0_4] : memref<9x5xf32, #tpu.memory_space<vmem>>, vector<9x5xf32>
    %c0_5 = arith.constant 0 : index
    %c0_6 = arith.constant 0 : index
    %3 = vector.load %arg15[%c0_5, %c0_6] : memref<1x5xf32, #tpu.memory_space<vmem>>, vector<1x5xf32>
    %4 = vector.extract_strided_slice %0 {offsets = [0, 5], sizes = [12, 9], strides = [1, 1]} : vector<12x23xf32> to vector<12x9xf32>
    %cst = arith.constant 0.000000e+00 : f32
    %5 = vector.broadcast %cst : f32 to vector<12x9xf32>
    %6 = arith.cmpf ole, %4, %5 : vector<12x9xf32>
    %7 = vector.extract_strided_slice %0 {offsets = [0, 5], sizes = [12, 9], strides = [1, 1]} : vector<12x23xf32> to vector<12x9xf32>
    %cst_7 = arith.constant 1.000000e-10 : f32
    %8 = vector.broadcast %cst_7 : f32 to vector<12x9xf32>
    %9 = arith.select %6, %8, %7 : vector<12x9xi1>, vector<12x9xf32>
    %10 = vector.extract_strided_slice %0 {offsets = [0, 14], sizes = [12, 9], strides = [1, 1]} : vector<12x23xf32> to vector<12x9xf32>
    %cst_8 = arith.constant 0.000000e+00 : f32
    %11 = vector.broadcast %cst_8 : f32 to vector<12x9xf32>
    %12 = arith.cmpf ole, %10, %11 : vector<12x9xf32>
    %13 = vector.extract_strided_slice %0 {offsets = [0, 14], sizes = [12, 9], strides = [1, 1]} : vector<12x23xf32> to vector<12x9xf32>
    %cst_9 = arith.constant 1.000000e-10 : f32
    %14 = vector.broadcast %cst_9 : f32 to vector<12x9xf32>
    %15 = arith.select %12, %14, %13 : vector<12x9xi1>, vector<12x9xf32>
    %16 = vector.extract_strided_slice %0 {offsets = [0, 0], sizes = [12, 5], strides = [1, 1]} : vector<12x23xf32> to vector<12x5xf32>
    %c0_10 = arith.constant 0 : index
    %c0_11 = arith.constant 0 : index
    %17 = vector.load %arg7[%c0_10, %c0_11] : memref<1x5xf32, #tpu.memory_space<vmem>>, vector<1x5xf32>
    %c0_12 = arith.constant 0 : index
    %c0_13 = arith.constant 0 : index
    %18 = vector.load %arg8[%c0_12, %c0_13] : memref<1x5xf32, #tpu.memory_space<vmem>>, vector<1x5xf32>
    %cst_14 = arith.constant dense<0.000000e+00> : vector<12xf32>
    %19 = vector.multi_reduction <add>, %16, %cst_14 [1] : vector<12x5xf32> to vector<12xf32>
    %20 = vector.shape_cast %19 : vector<12xf32> to vector<12x1xf32>
    %cst_15 = arith.constant 5.000000e+00 : f32
    %21 = vector.broadcast %cst_15 : f32 to vector<12x1xf32>
    %22 = arith.divf %20, %21 : vector<12x1xf32>
    %23 = vector.broadcast %22 : vector<12x1xf32> to vector<12x5xf32>
    %24 = arith.subf %16, %23 : vector<12x5xf32>
    %25 = arith.mulf %24, %24 : vector<12x5xf32>
    %cst_16 = arith.constant dense<0.000000e+00> : vector<12xf32>
    %26 = vector.multi_reduction <add>, %25, %cst_16 [1] : vector<12x5xf32> to vector<12xf32>
    %27 = vector.shape_cast %26 : vector<12xf32> to vector<12x1xf32>
    %cst_17 = arith.constant 5.000000e+00 : f32
    %28 = vector.broadcast %cst_17 : f32 to vector<12x1xf32>
    %29 = arith.divf %27, %28 : vector<12x1xf32>
    %30 = vector.broadcast %22 : vector<12x1xf32> to vector<12x5xf32>
    %31 = arith.subf %16, %30 : vector<12x5xf32>
    %cst_18 = arith.constant 9.99999974E-6 : f32
    %32 = vector.broadcast %cst_18 : f32 to vector<12x1xf32>
    %33 = arith.addf %29, %32 : vector<12x1xf32>
    %34 = math.rsqrt %33 : vector<12x1xf32>
    %35 = vector.broadcast %34 : vector<12x1xf32> to vector<12x5xf32>
    %36 = arith.mulf %31, %35 : vector<12x5xf32>
    %37 = vector.broadcast %17 : vector<1x5xf32> to vector<12x5xf32>
    %38 = arith.mulf %36, %37 : vector<12x5xf32>
    %39 = vector.broadcast %18 : vector<1x5xf32> to vector<12x5xf32>
    %40 = arith.addf %38, %39 : vector<12x5xf32>
    %c0_19 = arith.constant 0 : index
    %c0_20 = arith.constant 0 : index
    %41 = vector.load %arg9[%c0_19, %c0_20] : memref<5x5xf32, #tpu.memory_space<vmem>>, vector<5x5xf32>
    %cst_21 = arith.constant dense<0.000000e+00> : vector<12x5xf32>
    %42 = tpu.matmul %40, %41, %cst_21 {dimension_numbers = #tpu.dot_dimension_numbers<[1], [0], [0], [1], [0, 0, 1, 1], [], []>} : vector<12x5xf32>, vector<5x5xf32>, vector<12x5xf32> -> vector<12x5xf32>
    %c0_22 = arith.constant 0 : index
    %c0_23 = arith.constant 0 : index
    %43 = vector.load %arg10[%c0_22, %c0_23] : memref<5x5xf32, #tpu.memory_space<vmem>>, vector<5x5xf32>
    %cst_24 = arith.constant dense<0.000000e+00> : vector<12x5xf32>
    %44 = tpu.matmul %40, %43, %cst_24 {dimension_numbers = #tpu.dot_dimension_numbers<[1], [0], [0], [1], [0, 0, 1, 1], [], []>} : vector<12x5xf32>, vector<5x5xf32>, vector<12x5xf32> -> vector<12x5xf32>
    %cst_25 = arith.constant dense<0.000000e+00> : vector<12x5xf32>
    %45 = tpu.matmul %15, %1, %cst_25 {dimension_numbers = #tpu.dot_dimension_numbers<[1], [0], [0], [1], [0, 0, 1, 1], [], []>} : vector<12x9xf32>, vector<9x5xf32>, vector<12x5xf32> -> vector<12x5xf32>
    %46 = vector.broadcast %3 : vector<1x5xf32> to vector<12x5xf32>
    %47 = arith.addf %46, %45 : vector<12x5xf32>
    %48 = arith.mulf %9, %15 : vector<12x9xf32>
    %cst_26 = arith.constant dense<0.000000e+00> : vector<12x5xf32>
    %49 = tpu.matmul %48, %2, %cst_26 {dimension_numbers = #tpu.dot_dimension_numbers<[1], [0], [0], [1], [0, 0, 1, 1], [], []>} : vector<12x9xf32>, vector<9x5xf32>, vector<12x5xf32> -> vector<12x5xf32>
    %50 = arith.addf %47, %49 : vector<12x5xf32>
    %cst_27 = arith.constant dense<0.000000e+00> : vector<12x12xf32>
    %51 = tpu.matmul %50, %42, %cst_27 {dimension_numbers = #tpu.dot_dimension_numbers<[1], [1], [0], [0], [0, 0, 1, 0], [], []>} : vector<12x5xf32>, vector<12x5xf32>, vector<12x12xf32> -> vector<12x12xf32>
    %cst_28 = arith.constant 0.44721359 : f32
    %52 = vector.broadcast %cst_28 : f32 to vector<12x12xf32>
    %53 = arith.mulf %51, %52 : vector<12x12xf32>
    %cst_29 = arith.constant dense<0xFF800000> : vector<12xf32>
    %54 = vector.multi_reduction <maximumf>, %53, %cst_29 [1] : vector<12x12xf32> to vector<12xf32>
    %55 = vector.shape_cast %54 : vector<12xf32> to vector<12x1xf32>
    %56 = vector.broadcast %55 : vector<12x1xf32> to vector<12x12xf32>
    %57 = arith.subf %53, %56 : vector<12x12xf32>
    %58 = math.exp %57 : vector<12x12xf32>
    %cst_30 = arith.constant dense<0.000000e+00> : vector<12xf32>
    %59 = vector.multi_reduction <add>, %58, %cst_30 [1] : vector<12x12xf32> to vector<12xf32>
    %60 = vector.shape_cast %59 : vector<12xf32> to vector<12x1xf32>
    %cst_31 = arith.constant 1.000000e+00 : f32
    %61 = vector.broadcast %cst_31 : f32 to vector<12x1xf32>
    %62 = arith.addf %61, %60 : vector<12x1xf32>
    %63 = tpu.reciprocal %62 {approx = true} : vector<12x1xf32> -> vector<12x1xf32>
    %64 = vector.broadcast %63 : vector<12x1xf32> to vector<12x12xf32>
    %65 = arith.mulf %58, %64 : vector<12x12xf32>
    %cst_32 = arith.constant dense<0.000000e+00> : vector<12x5xf32>
    %66 = tpu.matmul %65, %44, %cst_32 {dimension_numbers = #tpu.dot_dimension_numbers<[1], [0], [0], [1], [0, 0, 1, 1], [], []>} : vector<12x12xf32>, vector<12x5xf32>, vector<12x5xf32> -> vector<12x5xf32>
    %67 = arith.addf %66, %40 : vector<12x5xf32>
    %c0_33 = arith.constant 0 : index
    %c0_34 = arith.constant 0 : index
    %68 = vector.load %arg2[%c0_33, %c0_34] : memref<10x23xf32, #tpu.memory_space<vmem>>, vector<10x23xf32>
    %c0_35 = arith.constant 0 : index
    %c0_36 = arith.constant 0 : index
    %69 = vector.load %arg13[%c0_35, %c0_36] : memref<9x5xf32, #tpu.memory_space<vmem>>, vector<9x5xf32>
    %c0_37 = arith.constant 0 : index
    %c0_38 = arith.constant 0 : index
    %70 = vector.load %arg14[%c0_37, %c0_38] : memref<9x5xf32, #tpu.memory_space<vmem>>, vector<9x5xf32>
    %c0_39 = arith.constant 0 : index
    %c0_40 = arith.constant 0 : index
    %71 = vector.load %arg16[%c0_39, %c0_40] : memref<1x5xf32, #tpu.memory_space<vmem>>, vector<1x5xf32>
    %72 = vector.extract_strided_slice %68 {offsets = [0, 5], sizes = [10, 9], strides = [1, 1]} : vector<10x23xf32> to vector<10x9xf32>
    %cst_41 = arith.constant 0.000000e+00 : f32
    %73 = vector.broadcast %cst_41 : f32 to vector<10x9xf32>
    %74 = arith.cmpf ole, %72, %73 : vector<10x9xf32>
    %75 = vector.extract_strided_slice %68 {offsets = [0, 5], sizes = [10, 9], strides = [1, 1]} : vector<10x23xf32> to vector<10x9xf32>
    %cst_42 = arith.constant 1.000000e-10 : f32
    %76 = vector.broadcast %cst_42 : f32 to vector<10x9xf32>
    %77 = arith.select %74, %76, %75 : vector<10x9xi1>, vector<10x9xf32>
    %78 = vector.extract_strided_slice %68 {offsets = [0, 14], sizes = [10, 9], strides = [1, 1]} : vector<10x23xf32> to vector<10x9xf32>
    %cst_43 = arith.constant 0.000000e+00 : f32
    %79 = vector.broadcast %cst_43 : f32 to vector<10x9xf32>
    %80 = arith.cmpf ole, %78, %79 : vector<10x9xf32>
    %81 = vector.extract_strided_slice %68 {offsets = [0, 14], sizes = [10, 9], strides = [1, 1]} : vector<10x23xf32> to vector<10x9xf32>
    %cst_44 = arith.constant 1.000000e-10 : f32
    %82 = vector.broadcast %cst_44 : f32 to vector<10x9xf32>
    %83 = arith.select %80, %82, %81 : vector<10x9xi1>, vector<10x9xf32>
    %84 = vector.extract_strided_slice %68 {offsets = [0, 0], sizes = [10, 5], strides = [1, 1]} : vector<10x23xf32> to vector<10x5xf32>
    %c0_45 = arith.constant 0 : index
    %c0_46 = arith.constant 0 : index
    %85 = vector.load %arg7[%c0_45, %c0_46] : memref<1x5xf32, #tpu.memory_space<vmem>>, vector<1x5xf32>
    %c0_47 = arith.constant 0 : index
    %c0_48 = arith.constant 0 : index
    %86 = vector.load %arg8[%c0_47, %c0_48] : memref<1x5xf32, #tpu.memory_space<vmem>>, vector<1x5xf32>
    %cst_49 = arith.constant dense<0.000000e+00> : vector<10xf32>
    %87 = vector.multi_reduction <add>, %84, %cst_49 [1] : vector<10x5xf32> to vector<10xf32>
    %88 = vector.shape_cast %87 : vector<10xf32> to vector<10x1xf32>
    %cst_50 = arith.constant 5.000000e+00 : f32
    %89 = vector.broadcast %cst_50 : f32 to vector<10x1xf32>
    %90 = arith.divf %88, %89 : vector<10x1xf32>
    %91 = vector.broadcast %90 : vector<10x1xf32> to vector<10x5xf32>
    %92 = arith.subf %84, %91 : vector<10x5xf32>
    %93 = arith.mulf %92, %92 : vector<10x5xf32>
    %cst_51 = arith.constant dense<0.000000e+00> : vector<10xf32>
    %94 = vector.multi_reduction <add>, %93, %cst_51 [1] : vector<10x5xf32> to vector<10xf32>
    %95 = vector.shape_cast %94 : vector<10xf32> to vector<10x1xf32>
    %cst_52 = arith.constant 5.000000e+00 : f32
    %96 = vector.broadcast %cst_52 : f32 to vector<10x1xf32>
    %97 = arith.divf %95, %96 : vector<10x1xf32>
    %98 = vector.broadcast %90 : vector<10x1xf32> to vector<10x5xf32>
    %99 = arith.subf %84, %98 : vector<10x5xf32>
    %cst_53 = arith.constant 9.99999974E-6 : f32
    %100 = vector.broadcast %cst_53 : f32 to vector<10x1xf32>
    %101 = arith.addf %97, %100 : vector<10x1xf32>
    %102 = math.rsqrt %101 : vector<10x1xf32>
    %103 = vector.broadcast %102 : vector<10x1xf32> to vector<10x5xf32>
    %104 = arith.mulf %99, %103 : vector<10x5xf32>
    %105 = vector.broadcast %85 : vector<1x5xf32> to vector<10x5xf32>
    %106 = arith.mulf %104, %105 : vector<10x5xf32>
    %107 = vector.broadcast %86 : vector<1x5xf32> to vector<10x5xf32>
    %108 = arith.addf %106, %107 : vector<10x5xf32>
    %c0_54 = arith.constant 0 : index
    %c0_55 = arith.constant 0 : index
    %109 = vector.load %arg9[%c0_54, %c0_55] : memref<5x5xf32, #tpu.memory_space<vmem>>, vector<5x5xf32>
    %cst_56 = arith.constant dense<0.000000e+00> : vector<10x5xf32>
    %110 = tpu.matmul %108, %109, %cst_56 {dimension_numbers = #tpu.dot_dimension_numbers<[1], [0], [0], [1], [0, 0, 1, 1], [], []>} : vector<10x5xf32>, vector<5x5xf32>, vector<10x5xf32> -> vector<10x5xf32>
    %c0_57 = arith.constant 0 : index
    %c0_58 = arith.constant 0 : index
    %111 = vector.load %arg10[%c0_57, %c0_58] : memref<5x5xf32, #tpu.memory_space<vmem>>, vector<5x5xf32>
    %cst_59 = arith.constant dense<0.000000e+00> : vector<10x5xf32>
    %112 = tpu.matmul %108, %111, %cst_59 {dimension_numbers = #tpu.dot_dimension_numbers<[1], [0], [0], [1], [0, 0, 1, 1], [], []>} : vector<10x5xf32>, vector<5x5xf32>, vector<10x5xf32> -> vector<10x5xf32>
    %cst_60 = arith.constant dense<0.000000e+00> : vector<10x5xf32>
    %113 = tpu.matmul %83, %69, %cst_60 {dimension_numbers = #tpu.dot_dimension_numbers<[1], [0], [0], [1], [0, 0, 1, 1], [], []>} : vector<10x9xf32>, vector<9x5xf32>, vector<10x5xf32> -> vector<10x5xf32>
    %114 = vector.broadcast %71 : vector<1x5xf32> to vector<10x5xf32>
    %115 = arith.addf %114, %113 : vector<10x5xf32>
    %116 = arith.mulf %77, %83 : vector<10x9xf32>
    %cst_61 = arith.constant dense<0.000000e+00> : vector<10x5xf32>
    %117 = tpu.matmul %116, %70, %cst_61 {dimension_numbers = #tpu.dot_dimension_numbers<[1], [0], [0], [1], [0, 0, 1, 1], [], []>} : vector<10x9xf32>, vector<9x5xf32>, vector<10x5xf32> -> vector<10x5xf32>
    %118 = arith.addf %115, %117 : vector<10x5xf32>
    %cst_62 = arith.constant dense<0.000000e+00> : vector<10x10xf32>
    %119 = tpu.matmul %118, %110, %cst_62 {dimension_numbers = #tpu.dot_dimension_numbers<[1], [1], [0], [0], [0, 0, 1, 0], [], []>} : vector<10x5xf32>, vector<10x5xf32>, vector<10x10xf32> -> vector<10x10xf32>
    %cst_63 = arith.constant 0.44721359 : f32
    %120 = vector.broadcast %cst_63 : f32 to vector<10x10xf32>
    %121 = arith.mulf %119, %120 : vector<10x10xf32>
    %cst_64 = arith.constant dense<0xFF800000> : vector<10xf32>
    %122 = vector.multi_reduction <maximumf>, %121, %cst_64 [1] : vector<10x10xf32> to vector<10xf32>
    %123 = vector.shape_cast %122 : vector<10xf32> to vector<10x1xf32>
    %124 = vector.broadcast %123 : vector<10x1xf32> to vector<10x10xf32>
    %125 = arith.subf %121, %124 : vector<10x10xf32>
    %126 = math.exp %125 : vector<10x10xf32>
    %cst_65 = arith.constant dense<0.000000e+00> : vector<10xf32>
    %127 = vector.multi_reduction <add>, %126, %cst_65 [1] : vector<10x10xf32> to vector<10xf32>
    %128 = vector.shape_cast %127 : vector<10xf32> to vector<10x1xf32>
    %cst_66 = arith.constant 1.000000e+00 : f32
    %129 = vector.broadcast %cst_66 : f32 to vector<10x1xf32>
    %130 = arith.addf %129, %128 : vector<10x1xf32>
    %131 = tpu.reciprocal %130 {approx = true} : vector<10x1xf32> -> vector<10x1xf32>
    %132 = vector.broadcast %131 : vector<10x1xf32> to vector<10x10xf32>
    %133 = arith.mulf %126, %132 : vector<10x10xf32>
    %cst_67 = arith.constant dense<0.000000e+00> : vector<10x5xf32>
    %134 = tpu.matmul %133, %112, %cst_67 {dimension_numbers = #tpu.dot_dimension_numbers<[1], [0], [0], [1], [0, 0, 1, 1], [], []>} : vector<10x10xf32>, vector<10x5xf32>, vector<10x5xf32> -> vector<10x5xf32>
    %135 = arith.addf %134, %108 : vector<10x5xf32>
    %c0_68 = arith.constant 0 : index
    %c0_69 = arith.constant 0 : index
    %136 = vector.load %arg3[%c0_68, %c0_69] : memref<72x12xf32, #tpu.memory_space<vmem>>, vector<72x12xf32>
    %cst_70 = arith.constant dense<0.000000e+00> : vector<72x5xf32>
    %137 = tpu.matmul %136, %67, %cst_70 {dimension_numbers = #tpu.dot_dimension_numbers<[1], [0], [0], [1], [0, 0, 1, 1], [], []>} : vector<72x12xf32>, vector<12x5xf32>, vector<72x5xf32> -> vector<72x5xf32>
    %c0_71 = arith.constant 0 : index
    %c0_72 = arith.constant 0 : index
    %138 = vector.load %arg4[%c0_71, %c0_72] : memref<72x10xf32, #tpu.memory_space<vmem>>, vector<72x10xf32>
    %cst_73 = arith.constant dense<0.000000e+00> : vector<72x5xf32>
    %139 = tpu.matmul %138, %135, %cst_73 {dimension_numbers = #tpu.dot_dimension_numbers<[1], [0], [0], [1], [0, 0, 1, 1], [], []>} : vector<72x10xf32>, vector<10x5xf32>, vector<72x5xf32> -> vector<72x5xf32>
    %140 = arith.addf %137, %139 : vector<72x5xf32>
    %c0_74 = arith.constant 0 : index
    %c0_75 = arith.constant 0 : index
    %141 = vector.load %arg17[%c0_74, %c0_75] : memref<5x20xf32, #tpu.memory_space<vmem>>, vector<5x20xf32>
    %cst_76 = arith.constant dense<0.000000e+00> : vector<72x20xf32>
    %142 = tpu.matmul %140, %141, %cst_76 {dimension_numbers = #tpu.dot_dimension_numbers<[1], [0], [0], [1], [0, 0, 1, 1], [], []>} : vector<72x5xf32>, vector<5x20xf32>, vector<72x20xf32> -> vector<72x20xf32>
    %c0_77 = arith.constant 0 : index
    %c0_78 = arith.constant 0 : index
    %143 = vector.load %arg19[%c0_77, %c0_78] : memref<1x20xf32, #tpu.memory_space<vmem>>, vector<1x20xf32>
    %144 = vector.broadcast %143 : vector<1x20xf32> to vector<72x20xf32>
    %145 = arith.addf %142, %144 : vector<72x20xf32>
    %c0_79 = arith.constant 0 : index
    %c0_80 = arith.constant 0 : index
    %146 = vector.load %arg18[%c0_79, %c0_80] : memref<5x20xf32, #tpu.memory_space<vmem>>, vector<5x20xf32>
    %cst_81 = arith.constant 0.000000e+00 : f32
    %147 = vector.broadcast %cst_81 : f32 to vector<18x5xf32>
    %cst_82 = arith.constant 0.000000e+00 : f32
    %148 = vector.broadcast %cst_82 : f32 to vector<18x5xf32>
    %149 = vector.extract_strided_slice %145 {offsets = [0, 0], sizes = [18, 20], strides = [1, 1]} : vector<72x20xf32> to vector<18x20xf32>
    %cst_83 = arith.constant dense<0.000000e+00> : vector<18x20xf32>
    %150 = tpu.matmul %147, %146, %cst_83 {dimension_numbers = #tpu.dot_dimension_numbers<[1], [0], [0], [1], [0, 0, 1, 1], [], []>} : vector<18x5xf32>, vector<5x20xf32>, vector<18x20xf32> -> vector<18x20xf32>
    %151 = arith.addf %149, %150 : vector<18x20xf32>
    %152 = vector.extract_strided_slice %151 {offsets = [0, 0], sizes = [18, 5], strides = [1, 1]} : vector<18x20xf32> to vector<18x5xf32>
    %cst_84 = arith.constant 0.000000e+00 : f32
    %153 = vector.broadcast %cst_84 : f32 to vector<18x5xf32>
    %154 = arith.subf %153, %152 : vector<18x5xf32>
    %155 = math.exp %154 : vector<18x5xf32>
    %cst_85 = arith.constant 1.000000e+00 : f32
    %156 = vector.broadcast %cst_85 : f32 to vector<18x5xf32>
    %157 = arith.addf %156, %155 : vector<18x5xf32>
    %cst_86 = arith.constant 1.000000e+00 : f32
    %158 = vector.broadcast %cst_86 : f32 to vector<18x5xf32>
    %159 = arith.divf %158, %157 : vector<18x5xf32>
    %160 = vector.extract_strided_slice %151 {offsets = [0, 5], sizes = [18, 5], strides = [1, 1]} : vector<18x20xf32> to vector<18x5xf32>
    %cst_87 = arith.constant 0.000000e+00 : f32
    %161 = vector.broadcast %cst_87 : f32 to vector<18x5xf32>
    %162 = arith.subf %161, %160 : vector<18x5xf32>
    %163 = math.exp %162 : vector<18x5xf32>
    %cst_88 = arith.constant 1.000000e+00 : f32
    %164 = vector.broadcast %cst_88 : f32 to vector<18x5xf32>
    %165 = arith.addf %164, %163 : vector<18x5xf32>
    %cst_89 = arith.constant 1.000000e+00 : f32
    %166 = vector.broadcast %cst_89 : f32 to vector<18x5xf32>
    %167 = arith.divf %166, %165 : vector<18x5xf32>
    %168 = vector.extract_strided_slice %151 {offsets = [0, 10], sizes = [18, 5], strides = [1, 1]} : vector<18x20xf32> to vector<18x5xf32>
    %169 = math.tanh %168 : vector<18x5xf32>
    %170 = vector.extract_strided_slice %151 {offsets = [0, 15], sizes = [18, 5], strides = [1, 1]} : vector<18x20xf32> to vector<18x5xf32>
    %cst_90 = arith.constant 0.000000e+00 : f32
    %171 = vector.broadcast %cst_90 : f32 to vector<18x5xf32>
    %172 = arith.subf %171, %170 : vector<18x5xf32>
    %173 = math.exp %172 : vector<18x5xf32>
    %cst_91 = arith.constant 1.000000e+00 : f32
    %174 = vector.broadcast %cst_91 : f32 to vector<18x5xf32>
    %175 = arith.addf %174, %173 : vector<18x5xf32>
    %cst_92 = arith.constant 1.000000e+00 : f32
    %176 = vector.broadcast %cst_92 : f32 to vector<18x5xf32>
    %177 = arith.divf %176, %175 : vector<18x5xf32>
    %178 = arith.mulf %167, %148 : vector<18x5xf32>
    %179 = arith.mulf %159, %169 : vector<18x5xf32>
    %180 = arith.addf %178, %179 : vector<18x5xf32>
    %181 = math.tanh %180 : vector<18x5xf32>
    %182 = arith.mulf %177, %181 : vector<18x5xf32>
    %183 = vector.extract_strided_slice %145 {offsets = [18, 0], sizes = [18, 20], strides = [1, 1]} : vector<72x20xf32> to vector<18x20xf32>
    %cst_93 = arith.constant dense<0.000000e+00> : vector<18x20xf32>
    %184 = tpu.matmul %182, %146, %cst_93 {dimension_numbers = #tpu.dot_dimension_numbers<[1], [0], [0], [1], [0, 0, 1, 1], [], []>} : vector<18x5xf32>, vector<5x20xf32>, vector<18x20xf32> -> vector<18x20xf32>
    %185 = arith.addf %183, %184 : vector<18x20xf32>
    %186 = vector.extract_strided_slice %185 {offsets = [0, 0], sizes = [18, 5], strides = [1, 1]} : vector<18x20xf32> to vector<18x5xf32>
    %cst_94 = arith.constant 0.000000e+00 : f32
    %187 = vector.broadcast %cst_94 : f32 to vector<18x5xf32>
    %188 = arith.subf %187, %186 : vector<18x5xf32>
    %189 = math.exp %188 : vector<18x5xf32>
    %cst_95 = arith.constant 1.000000e+00 : f32
    %190 = vector.broadcast %cst_95 : f32 to vector<18x5xf32>
    %191 = arith.addf %190, %189 : vector<18x5xf32>
    %cst_96 = arith.constant 1.000000e+00 : f32
    %192 = vector.broadcast %cst_96 : f32 to vector<18x5xf32>
    %193 = arith.divf %192, %191 : vector<18x5xf32>
    %194 = vector.extract_strided_slice %185 {offsets = [0, 5], sizes = [18, 5], strides = [1, 1]} : vector<18x20xf32> to vector<18x5xf32>
    %cst_97 = arith.constant 0.000000e+00 : f32
    %195 = vector.broadcast %cst_97 : f32 to vector<18x5xf32>
    %196 = arith.subf %195, %194 : vector<18x5xf32>
    %197 = math.exp %196 : vector<18x5xf32>
    %cst_98 = arith.constant 1.000000e+00 : f32
    %198 = vector.broadcast %cst_98 : f32 to vector<18x5xf32>
    %199 = arith.addf %198, %197 : vector<18x5xf32>
    %cst_99 = arith.constant 1.000000e+00 : f32
    %200 = vector.broadcast %cst_99 : f32 to vector<18x5xf32>
    %201 = arith.divf %200, %199 : vector<18x5xf32>
    %202 = vector.extract_strided_slice %185 {offsets = [0, 10], sizes = [18, 5], strides = [1, 1]} : vector<18x20xf32> to vector<18x5xf32>
    %203 = math.tanh %202 : vector<18x5xf32>
    %204 = vector.extract_strided_slice %185 {offsets = [0, 15], sizes = [18, 5], strides = [1, 1]} : vector<18x20xf32> to vector<18x5xf32>
    %cst_100 = arith.constant 0.000000e+00 : f32
    %205 = vector.broadcast %cst_100 : f32 to vector<18x5xf32>
    %206 = arith.subf %205, %204 : vector<18x5xf32>
    %207 = math.exp %206 : vector<18x5xf32>
    %cst_101 = arith.constant 1.000000e+00 : f32
    %208 = vector.broadcast %cst_101 : f32 to vector<18x5xf32>
    %209 = arith.addf %208, %207 : vector<18x5xf32>
    %cst_102 = arith.constant 1.000000e+00 : f32
    %210 = vector.broadcast %cst_102 : f32 to vector<18x5xf32>
    %211 = arith.divf %210, %209 : vector<18x5xf32>
    %212 = arith.mulf %201, %180 : vector<18x5xf32>
    %213 = arith.mulf %193, %203 : vector<18x5xf32>
    %214 = arith.addf %212, %213 : vector<18x5xf32>
    %215 = math.tanh %214 : vector<18x5xf32>
    %216 = arith.mulf %211, %215 : vector<18x5xf32>
    %217 = vector.extract_strided_slice %145 {offsets = [36, 0], sizes = [18, 20], strides = [1, 1]} : vector<72x20xf32> to vector<18x20xf32>
    %cst_103 = arith.constant dense<0.000000e+00> : vector<18x20xf32>
    %218 = tpu.matmul %216, %146, %cst_103 {dimension_numbers = #tpu.dot_dimension_numbers<[1], [0], [0], [1], [0, 0, 1, 1], [], []>} : vector<18x5xf32>, vector<5x20xf32>, vector<18x20xf32> -> vector<18x20xf32>
    %219 = arith.addf %217, %218 : vector<18x20xf32>
    %220 = vector.extract_strided_slice %219 {offsets = [0, 0], sizes = [18, 5], strides = [1, 1]} : vector<18x20xf32> to vector<18x5xf32>
    %cst_104 = arith.constant 0.000000e+00 : f32
    %221 = vector.broadcast %cst_104 : f32 to vector<18x5xf32>
    %222 = arith.subf %221, %220 : vector<18x5xf32>
    %223 = math.exp %222 : vector<18x5xf32>
    %cst_105 = arith.constant 1.000000e+00 : f32
    %224 = vector.broadcast %cst_105 : f32 to vector<18x5xf32>
    %225 = arith.addf %224, %223 : vector<18x5xf32>
    %cst_106 = arith.constant 1.000000e+00 : f32
    %226 = vector.broadcast %cst_106 : f32 to vector<18x5xf32>
    %227 = arith.divf %226, %225 : vector<18x5xf32>
    %228 = vector.extract_strided_slice %219 {offsets = [0, 5], sizes = [18, 5], strides = [1, 1]} : vector<18x20xf32> to vector<18x5xf32>
    %cst_107 = arith.constant 0.000000e+00 : f32
    %229 = vector.broadcast %cst_107 : f32 to vector<18x5xf32>
    %230 = arith.subf %229, %228 : vector<18x5xf32>
    %231 = math.exp %230 : vector<18x5xf32>
    %cst_108 = arith.constant 1.000000e+00 : f32
    %232 = vector.broadcast %cst_108 : f32 to vector<18x5xf32>
    %233 = arith.addf %232, %231 : vector<18x5xf32>
    %cst_109 = arith.constant 1.000000e+00 : f32
    %234 = vector.broadcast %cst_109 : f32 to vector<18x5xf32>
    %235 = arith.divf %234, %233 : vector<18x5xf32>
    %236 = vector.extract_strided_slice %219 {offsets = [0, 10], sizes = [18, 5], strides = [1, 1]} : vector<18x20xf32> to vector<18x5xf32>
    %237 = math.tanh %236 : vector<18x5xf32>
    %238 = vector.extract_strided_slice %219 {offsets = [0, 15], sizes = [18, 5], strides = [1, 1]} : vector<18x20xf32> to vector<18x5xf32>
    %cst_110 = arith.constant 0.000000e+00 : f32
    %239 = vector.broadcast %cst_110 : f32 to vector<18x5xf32>
    %240 = arith.subf %239, %238 : vector<18x5xf32>
    %241 = math.exp %240 : vector<18x5xf32>
    %cst_111 = arith.constant 1.000000e+00 : f32
    %242 = vector.broadcast %cst_111 : f32 to vector<18x5xf32>
    %243 = arith.addf %242, %241 : vector<18x5xf32>
    %cst_112 = arith.constant 1.000000e+00 : f32
    %244 = vector.broadcast %cst_112 : f32 to vector<18x5xf32>
    %245 = arith.divf %244, %243 : vector<18x5xf32>
    %246 = arith.mulf %235, %214 : vector<18x5xf32>
    %247 = arith.mulf %227, %237 : vector<18x5xf32>
    %248 = arith.addf %246, %247 : vector<18x5xf32>
    %249 = math.tanh %248 : vector<18x5xf32>
    %250 = arith.mulf %245, %249 : vector<18x5xf32>
    %251 = vector.extract_strided_slice %145 {offsets = [54, 0], sizes = [18, 20], strides = [1, 1]} : vector<72x20xf32> to vector<18x20xf32>
    %cst_113 = arith.constant dense<0.000000e+00> : vector<18x20xf32>
    %252 = tpu.matmul %250, %146, %cst_113 {dimension_numbers = #tpu.dot_dimension_numbers<[1], [0], [0], [1], [0, 0, 1, 1], [], []>} : vector<18x5xf32>, vector<5x20xf32>, vector<18x20xf32> -> vector<18x20xf32>
    %253 = arith.addf %251, %252 : vector<18x20xf32>
    %254 = vector.extract_strided_slice %253 {offsets = [0, 0], sizes = [18, 5], strides = [1, 1]} : vector<18x20xf32> to vector<18x5xf32>
    %cst_114 = arith.constant 0.000000e+00 : f32
    %255 = vector.broadcast %cst_114 : f32 to vector<18x5xf32>
    %256 = arith.subf %255, %254 : vector<18x5xf32>
    %257 = math.exp %256 : vector<18x5xf32>
    %cst_115 = arith.constant 1.000000e+00 : f32
    %258 = vector.broadcast %cst_115 : f32 to vector<18x5xf32>
    %259 = arith.addf %258, %257 : vector<18x5xf32>
    %cst_116 = arith.constant 1.000000e+00 : f32
    %260 = vector.broadcast %cst_116 : f32 to vector<18x5xf32>
    %261 = arith.divf %260, %259 : vector<18x5xf32>
    %262 = vector.extract_strided_slice %253 {offsets = [0, 5], sizes = [18, 5], strides = [1, 1]} : vector<18x20xf32> to vector<18x5xf32>
    %cst_117 = arith.constant 0.000000e+00 : f32
    %263 = vector.broadcast %cst_117 : f32 to vector<18x5xf32>
    %264 = arith.subf %263, %262 : vector<18x5xf32>
    %265 = math.exp %264 : vector<18x5xf32>
    %cst_118 = arith.constant 1.000000e+00 : f32
    %266 = vector.broadcast %cst_118 : f32 to vector<18x5xf32>
    %267 = arith.addf %266, %265 : vector<18x5xf32>
    %cst_119 = arith.constant 1.000000e+00 : f32
    %268 = vector.broadcast %cst_119 : f32 to vector<18x5xf32>
    %269 = arith.divf %268, %267 : vector<18x5xf32>
    %270 = vector.extract_strided_slice %253 {offsets = [0, 10], sizes = [18, 5], strides = [1, 1]} : vector<18x20xf32> to vector<18x5xf32>
    %271 = math.tanh %270 : vector<18x5xf32>
    %272 = arith.mulf %269, %248 : vector<18x5xf32>
    %273 = arith.mulf %261, %271 : vector<18x5xf32>
    %274 = arith.addf %272, %273 : vector<18x5xf32>
    %c0_120 = arith.constant 0 : index
    %c0_121 = arith.constant 0 : index
    %275 = vector.load %arg20[%c0_120, %c0_121] : memref<5x15xf32, #tpu.memory_space<vmem>>, vector<5x15xf32>
    %cst_122 = arith.constant dense<0.000000e+00> : vector<18x15xf32>
    %276 = tpu.matmul %274, %275, %cst_122 {dimension_numbers = #tpu.dot_dimension_numbers<[1], [0], [0], [1], [0, 0, 1, 1], [], []>} : vector<18x5xf32>, vector<5x15xf32>, vector<18x15xf32> -> vector<18x15xf32>
    %c0_123 = arith.constant 0 : index
    %c0_124 = arith.constant 0 : index
    %277 = vector.load %arg21[%c0_123, %c0_124] : memref<1x15xf32, #tpu.memory_space<vmem>>, vector<1x15xf32>
    %278 = vector.broadcast %277 : vector<1x15xf32> to vector<18x15xf32>
    %279 = arith.addf %276, %278 : vector<18x15xf32>
    %280 = vector.extract_strided_slice %279 {offsets = [0, 0], sizes = [18, 5], strides = [1, 1]} : vector<18x15xf32> to vector<18x5xf32>
    %281 = vector.extract_strided_slice %279 {offsets = [0, 5], sizes = [18, 5], strides = [1, 1]} : vector<18x15xf32> to vector<18x5xf32>
    %282 = vector.extract_strided_slice %279 {offsets = [0, 10], sizes = [18, 5], strides = [1, 1]} : vector<18x15xf32> to vector<18x5xf32>
    %283 = vector.shape_cast %280 : vector<18x5xf32> to vector<18x1x5xf32>
    %284 = vector.shape_cast %281 : vector<18x5xf32> to vector<1x18x5xf32>
    %285 = vector.broadcast %283 : vector<18x1x5xf32> to vector<18x18x5xf32>
    %286 = vector.broadcast %284 : vector<1x18x5xf32> to vector<18x18x5xf32>
    %287 = arith.mulf %285, %286 : vector<18x18x5xf32>
    %c0_125 = arith.constant 0 : index
    %c0_126 = arith.constant 0 : index
    %c0_127 = arith.constant 0 : index
    %288 = vector.load %arg5[%c0_125, %c0_126, %c0_127] : memref<18x18x1xf32, #tpu.memory_space<vmem>>, vector<18x18x1xf32>
    %289 = vector.broadcast %288 : vector<18x18x1xf32> to vector<18x18x5xf32>
    %290 = arith.addf %287, %289 : vector<18x18x5xf32>
    %cst_128 = arith.constant dense<0xFF800000> : vector<18x5xf32>
    %291 = vector.multi_reduction <maximumf>, %290, %cst_128 [1] : vector<18x18x5xf32> to vector<18x5xf32>
    %292 = vector.shape_cast %291 : vector<18x5xf32> to vector<18x1x5xf32>
    %293 = vector.broadcast %292 : vector<18x1x5xf32> to vector<18x18x5xf32>
    %294 = arith.subf %290, %293 : vector<18x18x5xf32>
    %295 = math.exp %294 : vector<18x18x5xf32>
    %cst_129 = arith.constant dense<0.000000e+00> : vector<18x5xf32>
    %296 = vector.multi_reduction <add>, %295, %cst_129 [1] : vector<18x18x5xf32> to vector<18x5xf32>
    %297 = vector.shape_cast %296 : vector<18x5xf32> to vector<18x1x5xf32>
    %298 = tpu.reciprocal %297 {approx = true} : vector<18x1x5xf32> -> vector<18x1x5xf32>
    %299 = vector.broadcast %298 : vector<18x1x5xf32> to vector<18x18x5xf32>
    %300 = arith.mulf %295, %299 : vector<18x18x5xf32>
    %301 = vector.shape_cast %282 : vector<18x5xf32> to vector<1x18x5xf32>
    %302 = vector.broadcast %301 : vector<1x18x5xf32> to vector<18x18x5xf32>
    %303 = arith.mulf %300, %302 : vector<18x18x5xf32>
    %cst_130 = arith.constant dense<0.000000e+00> : vector<18x5xf32>
    %304 = vector.multi_reduction <add>, %303, %cst_130 [1] : vector<18x18x5xf32> to vector<18x5xf32>
    %c0_131 = arith.constant 0 : index
    %c0_132 = arith.constant 0 : index
    %305 = vector.load %arg22[%c0_131, %c0_132] : memref<5x5xf32, #tpu.memory_space<vmem>>, vector<5x5xf32>
    %cst_133 = arith.constant dense<0.000000e+00> : vector<18x5xf32>
    %306 = tpu.matmul %304, %305, %cst_133 {dimension_numbers = #tpu.dot_dimension_numbers<[1], [0], [0], [1], [0, 0, 1, 1], [], []>} : vector<18x5xf32>, vector<5x5xf32>, vector<18x5xf32> -> vector<18x5xf32>
    %c0_134 = arith.constant 0 : index
    %c0_135 = arith.constant 0 : index
    %307 = vector.load %arg23[%c0_134, %c0_135] : memref<1x5xf32, #tpu.memory_space<vmem>>, vector<1x5xf32>
    %308 = vector.broadcast %307 : vector<1x5xf32> to vector<18x5xf32>
    %309 = arith.addf %306, %308 : vector<18x5xf32>
    %310 = arith.addf %274, %309 : vector<18x5xf32>
    %c0_136 = arith.constant 0 : index
    %c0_137 = arith.constant 0 : index
    %311 = vector.load %arg24[%c0_136, %c0_137] : memref<1x5xf32, #tpu.memory_space<vmem>>, vector<1x5xf32>
    %c0_138 = arith.constant 0 : index
    %c0_139 = arith.constant 0 : index
    %312 = vector.load %arg25[%c0_138, %c0_139] : memref<1x5xf32, #tpu.memory_space<vmem>>, vector<1x5xf32>
    %cst_140 = arith.constant dense<0.000000e+00> : vector<18xf32>
    %313 = vector.multi_reduction <add>, %310, %cst_140 [1] : vector<18x5xf32> to vector<18xf32>
    %314 = vector.shape_cast %313 : vector<18xf32> to vector<18x1xf32>
    %cst_141 = arith.constant 5.000000e+00 : f32
    %315 = vector.broadcast %cst_141 : f32 to vector<18x1xf32>
    %316 = arith.divf %314, %315 : vector<18x1xf32>
    %317 = vector.broadcast %316 : vector<18x1xf32> to vector<18x5xf32>
    %318 = arith.subf %310, %317 : vector<18x5xf32>
    %319 = arith.mulf %318, %318 : vector<18x5xf32>
    %cst_142 = arith.constant dense<0.000000e+00> : vector<18xf32>
    %320 = vector.multi_reduction <add>, %319, %cst_142 [1] : vector<18x5xf32> to vector<18xf32>
    %321 = vector.shape_cast %320 : vector<18xf32> to vector<18x1xf32>
    %cst_143 = arith.constant 5.000000e+00 : f32
    %322 = vector.broadcast %cst_143 : f32 to vector<18x1xf32>
    %323 = arith.divf %321, %322 : vector<18x1xf32>
    %324 = vector.broadcast %316 : vector<18x1xf32> to vector<18x5xf32>
    %325 = arith.subf %310, %324 : vector<18x5xf32>
    %cst_144 = arith.constant 9.99999974E-6 : f32
    %326 = vector.broadcast %cst_144 : f32 to vector<18x1xf32>
    %327 = arith.addf %323, %326 : vector<18x1xf32>
    %328 = math.rsqrt %327 : vector<18x1xf32>
    %329 = vector.broadcast %328 : vector<18x1xf32> to vector<18x5xf32>
    %330 = arith.mulf %325, %329 : vector<18x5xf32>
    %331 = vector.broadcast %311 : vector<1x5xf32> to vector<18x5xf32>
    %332 = arith.mulf %330, %331 : vector<18x5xf32>
    %333 = vector.broadcast %312 : vector<1x5xf32> to vector<18x5xf32>
    %334 = arith.addf %332, %333 : vector<18x5xf32>
    %c0_145 = arith.constant 0 : index
    %c0_146 = arith.constant 0 : index
    %335 = vector.load %arg26[%c0_145, %c0_146] : memref<5x2048xf32, #tpu.memory_space<vmem>>, vector<5x2048xf32>
    %cst_147 = arith.constant dense<0.000000e+00> : vector<18x2048xf32>
    %336 = tpu.matmul %334, %335, %cst_147 {dimension_numbers = #tpu.dot_dimension_numbers<[1], [0], [0], [1], [0, 0, 1, 1], [], []>} : vector<18x5xf32>, vector<5x2048xf32>, vector<18x2048xf32> -> vector<18x2048xf32>
    %c0_148 = arith.constant 0 : index
    %c0_149 = arith.constant 0 : index
    %337 = vector.load %arg27[%c0_148, %c0_149] : memref<1x2048xf32, #tpu.memory_space<vmem>>, vector<1x2048xf32>
    %338 = vector.broadcast %337 : vector<1x2048xf32> to vector<18x2048xf32>
    %339 = arith.addf %336, %338 : vector<18x2048xf32>
    %cst_150 = arith.constant 0.000000e+00 : f32
    %340 = vector.broadcast %cst_150 : f32 to vector<18x2048xf32>
    %341 = arith.maximumf %339, %340 : vector<18x2048xf32>
    %c0_151 = arith.constant 0 : index
    %c0_152 = arith.constant 0 : index
    %342 = vector.load %arg28[%c0_151, %c0_152] : memref<5x2048xf32, #tpu.memory_space<vmem>>, vector<5x2048xf32>
    %cst_153 = arith.constant dense<0.000000e+00> : vector<18x5xf32>
    %343 = tpu.matmul %341, %342, %cst_153 {dimension_numbers = #tpu.dot_dimension_numbers<[1], [1], [0], [0], [0, 0, 1, 0], [], []>} : vector<18x2048xf32>, vector<5x2048xf32>, vector<18x5xf32> -> vector<18x5xf32>
    %c0_154 = arith.constant 0 : index
    %c0_155 = arith.constant 0 : index
    %344 = vector.load %arg29[%c0_154, %c0_155] : memref<1x5xf32, #tpu.memory_space<vmem>>, vector<1x5xf32>
    %345 = vector.broadcast %344 : vector<1x5xf32> to vector<18x5xf32>
    %346 = arith.addf %343, %345 : vector<18x5xf32>
    %347 = arith.addf %334, %346 : vector<18x5xf32>
    %c0_156 = arith.constant 0 : index
    %c0_157 = arith.constant 0 : index
    %348 = vector.load %arg30[%c0_156, %c0_157] : memref<1x5xf32, #tpu.memory_space<vmem>>, vector<1x5xf32>
    %c0_158 = arith.constant 0 : index
    %c0_159 = arith.constant 0 : index
    %349 = vector.load %arg31[%c0_158, %c0_159] : memref<1x5xf32, #tpu.memory_space<vmem>>, vector<1x5xf32>
    %cst_160 = arith.constant dense<0.000000e+00> : vector<18xf32>
    %350 = vector.multi_reduction <add>, %347, %cst_160 [1] : vector<18x5xf32> to vector<18xf32>
    %351 = vector.shape_cast %350 : vector<18xf32> to vector<18x1xf32>
    %cst_161 = arith.constant 5.000000e+00 : f32
    %352 = vector.broadcast %cst_161 : f32 to vector<18x1xf32>
    %353 = arith.divf %351, %352 : vector<18x1xf32>
    %354 = vector.broadcast %353 : vector<18x1xf32> to vector<18x5xf32>
    %355 = arith.subf %347, %354 : vector<18x5xf32>
    %356 = arith.mulf %355, %355 : vector<18x5xf32>
    %cst_162 = arith.constant dense<0.000000e+00> : vector<18xf32>
    %357 = vector.multi_reduction <add>, %356, %cst_162 [1] : vector<18x5xf32> to vector<18xf32>
    %358 = vector.shape_cast %357 : vector<18xf32> to vector<18x1xf32>
    %cst_163 = arith.constant 5.000000e+00 : f32
    %359 = vector.broadcast %cst_163 : f32 to vector<18x1xf32>
    %360 = arith.divf %358, %359 : vector<18x1xf32>
    %361 = vector.broadcast %353 : vector<18x1xf32> to vector<18x5xf32>
    %362 = arith.subf %347, %361 : vector<18x5xf32>
    %cst_164 = arith.constant 9.99999974E-6 : f32
    %363 = vector.broadcast %cst_164 : f32 to vector<18x1xf32>
    %364 = arith.addf %360, %363 : vector<18x1xf32>
    %365 = math.rsqrt %364 : vector<18x1xf32>
    %366 = vector.broadcast %365 : vector<18x1xf32> to vector<18x5xf32>
    %367 = arith.mulf %362, %366 : vector<18x5xf32>
    %368 = vector.broadcast %348 : vector<1x5xf32> to vector<18x5xf32>
    %369 = arith.mulf %367, %368 : vector<18x5xf32>
    %370 = vector.broadcast %349 : vector<1x5xf32> to vector<18x5xf32>
    %371 = arith.addf %369, %370 : vector<18x5xf32>
    %c0_165 = arith.constant 0 : index
    %c0_166 = arith.constant 0 : index
    %372 = vector.load %arg6[%c0_165, %c0_166] : memref<6x18xf32, #tpu.memory_space<vmem>>, vector<6x18xf32>
    %cst_167 = arith.constant dense<0.000000e+00> : vector<6x5xf32>
    %373 = tpu.matmul %372, %371, %cst_167 {dimension_numbers = #tpu.dot_dimension_numbers<[1], [0], [0], [1], [0, 0, 1, 1], [], []>} : vector<6x18xf32>, vector<18x5xf32>, vector<6x5xf32> -> vector<6x5xf32>
    %374 = vector.extract_strided_slice %373 {offsets = [0, 0], sizes = [2, 5], strides = [1, 1]} : vector<6x5xf32> to vector<2x5xf32>
    %c0_168 = arith.constant 0 : index
    %c0_169 = arith.constant 0 : index
    %375 = vector.load %arg32[%c0_168, %c0_169] : memref<4x5xf32, #tpu.memory_space<vmem>>, vector<2x5xf32>
    tpu.vector_store %arg32[%c0_168, %c0_169], %374 {strides = array<i32>} : memref<4x5xf32, #tpu.memory_space<vmem>>, vector<2x5xf32>,
    %376 = vector.extract_strided_slice %373 {offsets = [4, 0], sizes = [2, 5], strides = [1, 1]} : vector<6x5xf32> to vector<2x5xf32>
    %c2 = arith.constant 2 : index
    %c0_170 = arith.constant 0 : index
    %377 = vector.load %arg32[%c2, %c0_170] : memref<4x5xf32, #tpu.memory_space<vmem>>, vector<2x5xf32>
    tpu.vector_store %arg32[%c2, %c0_170], %376 {strides = array<i32>} : memref<4x5xf32, #tpu.memory_space<vmem>>, vector<2x5xf32>,
    %378 = vector.extract_strided_slice %373 {offsets = [2, 0], sizes = [2, 5], strides = [1, 1]} : vector<6x5xf32> to vector<2x5xf32>
    %c0_171 = arith.constant 0 : index
    %c0_172 = arith.constant 0 : index
    %379 = vector.load %arg33[%c0_171, %c0_172] : memref<4x5xf32, #tpu.memory_space<vmem>>, vector<2x5xf32>
    tpu.vector_store %arg33[%c0_171, %c0_172], %378 {strides = array<i32>} : memref<4x5xf32, #tpu.memory_space<vmem>>, vector<2x5xf32>,
    %380 = vector.extract_strided_slice %373 {offsets = [4, 0], sizes = [2, 5], strides = [1, 1]} : vector<6x5xf32> to vector<2x5xf32>
    %c2_173 = arith.constant 2 : index
    %c0_174 = arith.constant 0 : index
    %381 = vector.load %arg33[%c2_173, %c0_174] : memref<4x5xf32, #tpu.memory_space<vmem>>, vector<2x5xf32>
    tpu.vector_store %arg33[%c2_173, %c0_174], %380 {strides = array<i32>} : memref<4x5xf32, #tpu.memory_space<vmem>>, vector<2x5xf32>,
    return
  }
  func.func @transform_0(%arg0: i32) -> (i32, i32) {
    %c0_i32 = arith.constant 0 : i32
    %c0_i32_0 = arith.constant 0 : i32
    %c0_i32_1 = arith.constant 0 : i32
    return %c0_i32, %c0_i32_0 : i32, i32
  }
  func.func @transform_1(%arg0: i32) -> (i32, i32) {
    %c0_i32 = arith.constant 0 : i32
    %c0_i32_0 = arith.constant 0 : i32
    %c0_i32_1 = arith.constant 0 : i32
    return %c0_i32, %c0_i32_0 : i32, i32
  }
  func.func @transform_2(%arg0: i32) -> (i32, i32) {
    %c0_i32 = arith.constant 0 : i32
    %c0_i32_0 = arith.constant 0 : i32
    %c0_i32_1 = arith.constant 0 : i32
    return %c0_i32, %c0_i32_0 : i32, i32
  }
  func.func @transform_3(%arg0: i32) -> (i32, i32) {
    %c0_i32 = arith.constant 0 : i32
    %c0_i32_0 = arith.constant 0 : i32
    %c0_i32_1 = arith.constant 0 : i32
    return %c0_i32, %c0_i32_0 : i32, i32
  }
  func.func @transform_4(%arg0: i32) -> (i32, i32, i32) {
    %c0_i32 = arith.constant 0 : i32
    %c0_i32_0 = arith.constant 0 : i32
    %c0_i32_1 = arith.constant 0 : i32
    %c0_i32_2 = arith.constant 0 : i32
    return %c0_i32, %c0_i32_0, %c0_i32_1 : i32, i32, i32
  }
  func.func @transform_5(%arg0: i32) -> (i32, i32) {
    %c0_i32 = arith.constant 0 : i32
    %c0_i32_0 = arith.constant 0 : i32
    %c0_i32_1 = arith.constant 0 : i32
    return %c0_i32, %c0_i32_0 : i32, i32
  }
  func.func @transform_6(%arg0: i32) -> (i32, i32) {
    %c0_i32 = arith.constant 0 : i32
    %c0_i32_0 = arith.constant 0 : i32
    %c0_i32_1 = arith.constant 0 : i32
    return %c0_i32, %c0_i32_0 : i32, i32
  }
  func.func @transform_7(%arg0: i32) -> (i32, i32) {
    %c0_i32 = arith.constant 0 : i32
    %c0_i32_0 = arith.constant 0 : i32
    %c0_i32_1 = arith.constant 0 : i32
    return %c0_i32, %c0_i32_0 : i32, i32
  }
  func.func @transform_8(%arg0: i32) -> (i32, i32) {
    %c0_i32 = arith.constant 0 : i32
    %c0_i32_0 = arith.constant 0 : i32
    %c0_i32_1 = arith.constant 0 : i32
    return %c0_i32, %c0_i32_0 : i32, i32
  }
  func.func @transform_9(%arg0: i32) -> (i32, i32) {
    %c0_i32 = arith.constant 0 : i32
    %c0_i32_0 = arith.constant 0 : i32
    %c0_i32_1 = arith.constant 0 : i32
    return %c0_i32, %c0_i32_0 : i32, i32
  }
  func.func @transform_10(%arg0: i32) -> (i32, i32) {
    %c0_i32 = arith.constant 0 : i32
    %c0_i32_0 = arith.constant 0 : i32
    %c0_i32_1 = arith.constant 0 : i32
    return %c0_i32, %c0_i32_0 : i32, i32
  }
  func.func @transform_11(%arg0: i32) -> (i32, i32) {
    %c0_i32 = arith.constant 0 : i32
    %c0_i32_0 = arith.constant 0 : i32
    %c0_i32_1 = arith.constant 0 : i32
    return %c0_i32, %c0_i32_0 : i32, i32
  }
  func.func @transform_12(%arg0: i32) -> (i32, i32) {
    %c0_i32 = arith.constant 0 : i32
    %c0_i32_0 = arith.constant 0 : i32
    %c0_i32_1 = arith.constant 0 : i32
    return %c0_i32, %c0_i32_0 : i32, i32
  }
  func.func @transform_13(%arg0: i32) -> (i32, i32) {
    %c0_i32 = arith.constant 0 : i32
    %c0_i32_0 = arith.constant 0 : i32
    %c0_i32_1 = arith.constant 0 : i32
    return %c0_i32, %c0_i32_0 : i32, i32
  }
  func.func @transform_14(%arg0: i32) -> (i32, i32) {
    %c0_i32 = arith.constant 0 : i32
    %c0_i32_0 = arith.constant 0 : i32
    %c0_i32_1 = arith.constant 0 : i32
    return %c0_i32, %c0_i32_0 : i32, i32
  }
  func.func @transform_15(%arg0: i32) -> (i32, i32) {
    %c0_i32 = arith.constant 0 : i32
    %c0_i32_0 = arith.constant 0 : i32
    %c0_i32_1 = arith.constant 0 : i32
    return %c0_i32, %c0_i32_0 : i32, i32
  }
  func.func @transform_16(%arg0: i32) -> (i32, i32) {
    %c0_i32 = arith.constant 0 : i32
    %c0_i32_0 = arith.constant 0 : i32
    %c0_i32_1 = arith.constant 0 : i32
    return %c0_i32, %c0_i32_0 : i32, i32
  }
  func.func @transform_17(%arg0: i32) -> (i32, i32) {
    %c0_i32 = arith.constant 0 : i32
    %c0_i32_0 = arith.constant 0 : i32
    %c0_i32_1 = arith.constant 0 : i32
    return %c0_i32, %c0_i32_0 : i32, i32
  }
  func.func @transform_18(%arg0: i32) -> (i32, i32) {
    %c0_i32 = arith.constant 0 : i32
    %c0_i32_0 = arith.constant 0 : i32
    %c0_i32_1 = arith.constant 0 : i32
    return %c0_i32, %c0_i32_0 : i32, i32
  }
  func.func @transform_19(%arg0: i32) -> (i32, i32) {
    %c0_i32 = arith.constant 0 : i32
    %c0_i32_0 = arith.constant 0 : i32
    %c0_i32_1 = arith.constant 0 : i32
    return %c0_i32, %c0_i32_0 : i32, i32
  }
  func.func @transform_20(%arg0: i32) -> (i32, i32) {
    %c0_i32 = arith.constant 0 : i32
    %c0_i32_0 = arith.constant 0 : i32
    %c0_i32_1 = arith.constant 0 : i32
    return %c0_i32, %c0_i32_0 : i32, i32
  }
  func.func @transform_21(%arg0: i32) -> (i32, i32) {
    %c0_i32 = arith.constant 0 : i32
    %c0_i32_0 = arith.constant 0 : i32
    %c0_i32_1 = arith.constant 0 : i32
    return %c0_i32, %c0_i32_0 : i32, i32
  }
  func.func @transform_22(%arg0: i32) -> (i32, i32) {
    %c0_i32 = arith.constant 0 : i32
    %c0_i32_0 = arith.constant 0 : i32
    %c0_i32_1 = arith.constant 0 : i32
    return %c0_i32, %c0_i32_0 : i32, i32
  }
  func.func @transform_23(%arg0: i32) -> (i32, i32) {
    %c0_i32 = arith.constant 0 : i32
    %c0_i32_0 = arith.constant 0 : i32
    %c0_i32_1 = arith.constant 0 : i32
    return %c0_i32, %c0_i32_0 : i32, i32
  }
  func.func @transform_24(%arg0: i32) -> (i32, i32) {
    %c0_i32 = arith.constant 0 : i32
    %c0_i32_0 = arith.constant 0 : i32
    %c0_i32_1 = arith.constant 0 : i32
    return %c0_i32, %c0_i32_0 : i32, i32
  }
  func.func @transform_25(%arg0: i32) -> (i32, i32) {
    %c0_i32 = arith.constant 0 : i32
    %c0_i32_0 = arith.constant 0 : i32
    %c0_i32_1 = arith.constant 0 : i32
    return %c0_i32, %c0_i32_0 : i32, i32
  }
  func.func @transform_26(%arg0: i32) -> (i32, i32) {
    %c0_i32 = arith.constant 0 : i32
    %c0_i32_0 = arith.constant 0 : i32
    %c0_i32_1 = arith.constant 0 : i32
    return %c0_i32, %c0_i32_0 : i32, i32
  }
  func.func @transform_27(%arg0: i32) -> (i32, i32) {
    %c0_i32 = arith.constant 0 : i32
    %c0_i32_0 = arith.constant 0 : i32
    %c0_i32_1 = arith.constant 0 : i32
    return %c0_i32, %c0_i32_0 : i32, i32
  }
  func.func @transform_28(%arg0: i32) -> (i32, i32) {
    %c0_i32 = arith.constant 0 : i32
    %c0_i32_0 = arith.constant 0 : i32
    %c0_i32_1 = arith.constant 0 : i32
    return %c0_i32, %c0_i32_0 : i32, i32
  }
  func.func @transform_29(%arg0: i32) -> (i32, i32) {
    %c0_i32 = arith.constant 0 : i32
    %c0_i32_0 = arith.constant 0 : i32
    %c0_i32_1 = arith.constant 0 : i32
    return %c0_i32, %c0_i32_0 : i32, i32
  }
  func.func @transform_30(%arg0: i32) -> (i32, i32) {
    %c0_i32 = arith.constant 0 : i32
    %c0_i32_0 = arith.constant 0 : i32
    %c0_i32_1 = arith.constant 0 : i32
    return %c0_i32, %c0_i32_0 : i32, i32
  }
  func.func @transform_31(%arg0: i32) -> (i32, i32) {
    %c0_i32 = arith.constant 0 : i32
    %c0_i32_0 = arith.constant 0 : i32
    %c0_i32_1 = arith.constant 0 : i32
    return %c0_i32, %c0_i32_0 : i32, i32
  }
  func.func @transform_32(%arg0: i32) -> (i32, i32) {
    %c0_i32 = arith.constant 0 : i32
    %c0_i32_0 = arith.constant 0 : i32
    %c0_i32_1 = arith.constant 0 : i32
    return %c0_i32, %c0_i32_0 : i32, i32
  }
}

</mosaic_0001>

<llo_original>
// kernel: eq.1
$region0: #{eq.1}
  %s0 = inlined_call_operand.vmem [shape: s32[4,18], index: 0, kind: input, shape index: {}]
  %s1 = inlined_call_operand.vmem [shape: s32[72], index: 1, kind: output, shape index: {}]
  $region1: #{eq.1} parent=0
    #allocation0 [shape = 'u8[4096]{0}', space=vmem, size = 0x1000, scoped, tag = 'scoped mem for output reshape']
    #allocation1 [shape = 'u8[4096]{0}', space=vmem, size = 0x1000, scoped, tag = 'scoped mem for input reshape']
    %s3 = sshll.u32 1, 4
    %s4 = ssub.s32 %s3, 1
    %v5 = vld [vmem:[%s0] sm:%s4]
    %6 = vst [vmem:[#allocation1] sm:%s4] %v5
    %v7 = vld [vmem:[#allocation1] sm:$0x1]
    %vm8 = vcmask 146432
    %9 = vst.msk [vmem:[#allocation0] sm:$0x1] %vm8, %v7
    %s10 = scalar_lea.vmem [#allocation1], 3
    %v11 = vld [vmem:[%s10] sm:$0x1]
    %12 = vrot.lane.b32.xlu0 %v11, 54
    %v13 = vpop.permute.xlu0 %12
    %vm14 = vcmask 589232
    %15 = vst.msk [vmem:[#allocation0] sm:$0x1] %vm14, %v13
    %s16 = scalar_lea.vmem [#allocation1], 2
    %v17 = vld [vmem:[%s16] sm:$0x1]
    %18 = vrot.lane.b32.xlu0 %v17, 36
    %v19 = vpop.permute.xlu0 %18
    %vm20 = vcmask 441632
    %21 = vst.msk [vmem:[#allocation0] sm:$0x1] %vm20, %v19
    %s22 = scalar_lea.vmem [#allocation1], 1
    %v23 = vld [vmem:[%s22] sm:$0x1]
    %24 = vrot.lane.b32.xlu0 %v23, 18
    %v25 = vpop.permute.xlu0 %24
    %vm26 = vcmask 294032
    %27 = vst.msk [vmem:[#allocation0] sm:$0x1] %vm26, %v25
    %s29 = sshll.u32 1, 1
    %s30 = ssub.s32 %s29, 1
    %v32 = vld [vmem:[#allocation0] sm:%s30]
    %s33 = sshll.u32 1, 1
    %s34 = ssub.s32 %s33, 1
    %35 = vst [vmem:[%s1] sm:%s34] %v32

// kernel: metapath_attention_forward.1
$region0: #{metapath_attention_forward.1}
  #allocation0 [shape = 'u32[]', space=smem, size = 0x4, offset = 0x4, fixed_abs, tag = 'smem constant byte address 0x4 - core index']
  #allocation1 [shape = 'u32[144,128]{1,0:T(1,128)}', space=vmem, size = 0x12000, scoped, tag = 'internal scratch']
  %s0 = inlined_call_operand.smem [shape: u32[33], index: -1, kind: input, shape index: {}]
  %s1 = sld [smem:[%s0]]
  %s2 = scalar_lea.smem %s0, 1
  %s3 = sld [smem:[%s2]]
  %s4 = scalar_lea.smem %s0, 2
  %s5 = sld [smem:[%s4]]
  %s6 = scalar_lea.smem %s0, 3
  %s7 = sld [smem:[%s6]]
  %s8 = scalar_lea.smem %s0, 4
  %s9 = sld [smem:[%s8]]
  %s10 = scalar_lea.smem %s0, 5
  %s11 = sld [smem:[%s10]]
  %s12 = scalar_lea.smem %s0, 6
  %s13 = sld [smem:[%s12]]
  %s14 = scalar_lea.smem %s0, 7
  %s15 = sld [smem:[%s14]]
  %s16 = scalar_lea.smem %s0, 8
  %s17 = sld [smem:[%s16]]
  %s18 = scalar_lea.smem %s0, 9
  %s19 = sld [smem:[%s18]]
  %s20 = scalar_lea.smem %s0, 10
  %s21 = sld [smem:[%s20]]
  %s22 = scalar_lea.smem %s0, 11
  %s23 = sld [smem:[%s22]]
  %s24 = scalar_lea.smem %s0, 12
  %s25 = sld [smem:[%s24]]
  %s26 = scalar_lea.smem %s0, 13
  %s27 = sld [smem:[%s26]]
  %s28 = scalar_lea.smem %s0, 14
  %s29 = sld [smem:[%s28]]
  %s30 = scalar_lea.smem %s0, 15
  %s31 = sld [smem:[%s30]]
  %s32 = scalar_lea.smem %s0, 16
  %s33 = sld [smem:[%s32]]
  %s34 = scalar_lea.smem %s0, 17
  %s35 = sld [smem:[%s34]]
  %s36 = scalar_lea.smem %s0, 18
  %s37 = sld [smem:[%s36]]
  %s38 = scalar_lea.smem %s0, 19
  %s39 = sld [smem:[%s38]]
  %s40 = scalar_lea.smem %s0, 20
  %s41 = sld [smem:[%s40]]
  %s42 = scalar_lea.smem %s0, 21
  %s43 = sld [smem:[%s42]]
  %s44 = scalar_lea.smem %s0, 22
  %s45 = sld [smem:[%s44]]
  %s46 = scalar_lea.smem %s0, 23
  %s47 = sld [smem:[%s46]]
  %s48 = scalar_lea.smem %s0, 24
  %s49 = sld [smem:[%s48]]
  %s50 = scalar_lea.smem %s0, 25
  %s51 = sld [smem:[%s50]]
  %s52 = scalar_lea.smem %s0, 26
  %s53 = sld [smem:[%s52]]
  %s54 = scalar_lea.smem %s0, 27
  %s55 = sld [smem:[%s54]]
  %s56 = scalar_lea.smem %s0, 28
  %s57 = sld [smem:[%s56]]
  %s58 = scalar_lea.smem %s0, 29
  %s59 = sld [smem:[%s58]]
  %s60 = scalar_lea.smem %s0, 30
  %s61 = sld [smem:[%s60]]
  %s62 = scalar_lea.smem %s0, 31
  %s63 = sld [smem:[%s62]]
  %s64 = scalar_lea.smem %s0, 32
  %s65 = sld [smem:[%s64]]
  %66 = xla_tuple %s63, %s65
  %s67 = sld [smem:[#allocation0]]
  $region142: #{metapath_attention_forward.1} parent=0
    _
  %s69 = ssub.s32 1, %s67
  %s70 = scalar_select 0, %s69, %s67
  $region1: #{metapath_attention_forward.1} parent=0
    #allocation2 [shape = 'u8[2048]{0}', space=vmem, size = 0x800, scoped, tag = 'output window, operand 0, single buffered']
    #allocation3 [shape = 's32[1]{0}', space=sflag, size = 0x4, scoped, tag = 'scoped memory for metapath_attention_forward.1']
    #allocation4 [shape = 'u8[2048]{0}', space=vmem, size = 0x800, scoped, tag = 'output window, operand 1, single buffered']
    #allocation5 [shape = 's32[1]{0}', space=sflag, size = 0x4, scoped, tag = 'scoped memory for metapath_attention_forward.1']
    %71 = vsyncpa [#allocation3], 0
    %72 = vsyncpa [#allocation5], 0
    // Predicated region
    $region2: #{metapath_attention_forward.1} parent=1 // pred_check
      _
    $region3: #{metapath_attention_forward.1} parent=1 // pred_check_branch
      %74 = sbr.rel (0) target = $region5
    $region4: #{metapath_attention_forward.1} parent=1 // pred_region
      _
    $region5: #{metapath_attention_forward.1} parent=1 // pred_fallthru
      _
    // Predicated region
    $region6: #{metapath_attention_forward.1} parent=1 // pred_check
      _
    $region7: #{metapath_attention_forward.1} parent=1 // pred_check_branch
      %76 = sbr.rel (0) target = $region9
    $region8: #{metapath_attention_forward.1} parent=1 // pred_region
      _
    $region9: #{metapath_attention_forward.1} parent=1 // pred_fallthru
      _
    // Predicated region
    $region10: #{metapath_attention_forward.1} parent=1 // pred_check
      _
    $region11: #{metapath_attention_forward.1} parent=1 // pred_check_branch
      %78 = sbr.rel (0) target = $region13
    $region12: #{metapath_attention_forward.1} parent=1 // pred_region
      _
    $region13: #{metapath_attention_forward.1} parent=1 // pred_fallthru
      _
    // Predicated region
    $region14: #{metapath_attention_forward.1} parent=1 // pred_check
      _
    $region15: #{metapath_attention_forward.1} parent=1 // pred_check_branch
      %80 = sbr.rel (0) target = $region17
    $region16: #{metapath_attention_forward.1} parent=1 // pred_region
      _
    $region17: #{metapath_attention_forward.1} parent=1 // pred_fallthru
      _
    // Predicated region
    $region18: #{metapath_attention_forward.1} parent=1 // pred_check
      _
    $region19: #{metapath_attention_forward.1} parent=1 // pred_check_branch
      %82 = sbr.rel (0) target = $region21
    $region20: #{metapath_attention_forward.1} parent=1 // pred_region
      _
    $region21: #{metapath_attention_forward.1} parent=1 // pred_fallthru
      _
    // Predicated region
    $region22: #{metapath_attention_forward.1} parent=1 // pred_check
      _
    $region23: #{metapath_attention_forward.1} parent=1 // pred_check_branch
      %84 = sbr.rel (0) target = $region25
    $region24: #{metapath_attention_forward.1} parent=1 // pred_region
      _
    $region25: #{metapath_attention_forward.1} parent=1 // pred_fallthru
      _
    // Predicated region
    $region26: #{metapath_attention_forward.1} parent=1 // pred_check
      _
    $region27: #{metapath_attention_forward.1} parent=1 // pred_check_branch
      %86 = sbr.rel (0) target = $region29
    $region28: #{metapath_attention_forward.1} parent=1 // pred_region
      _
    $region29: #{metapath_attention_forward.1} parent=1 // pred_fallthru
      _
    // Predicated region
    $region30: #{metapath_attention_forward.1} parent=1 // pred_check
      _
    $region31: #{metapath_attention_forward.1} parent=1 // pred_check_branch
      %88 = sbr.rel (0) target = $region33
    $region32: #{metapath_attention_forward.1} parent=1 // pred_region
      _
    $region33: #{metapath_attention_forward.1} parent=1 // pred_fallthru
      _
    // Predicated region
    $region34: #{metapath_attention_forward.1} parent=1 // pred_check
      _
    $region35: #{metapath_attention_forward.1} parent=1 // pred_check_branch
      %90 = sbr.rel (0) target = $region37
    $region36: #{metapath_attention_forward.1} parent=1 // pred_region
      _
    $region37: #{metapath_attention_forward.1} parent=1 // pred_fallthru
      _
    // Predicated region
    $region38: #{metapath_attention_forward.1} parent=1 // pred_check
      _
    $region39: #{metapath_attention_forward.1} parent=1 // pred_check_branch
      %92 = sbr.rel (0) target = $region41
    $region40: #{metapath_attention_forward.1} parent=1 // pred_region
      _
    $region41: #{metapath_attention_forward.1} parent=1 // pred_fallthru
      _
    // Predicated region
    $region42: #{metapath_attention_forward.1} parent=1 // pred_check
      _
    $region43: #{metapath_attention_forward.1} parent=1 // pred_check_branch
      %94 = sbr.rel (0) target = $region45
    $region44: #{metapath_attention_forward.1} parent=1 // pred_region
      _
    $region45: #{metapath_attention_forward.1} parent=1 // pred_fallthru
      _
    // Predicated region
    $region46: #{metapath_attention_forward.1} parent=1 // pred_check
      _
    $region47: #{metapath_attention_forward.1} parent=1 // pred_check_branch
      %96 = sbr.rel (0) target = $region49
    $region48: #{metapath_attention_forward.1} parent=1 // pred_region
      _
    $region49: #{metapath_attention_forward.1} parent=1 // pred_fallthru
      _
    // Predicated region
    $region50: #{metapath_attention_forward.1} parent=1 // pred_check
      _
    $region51: #{metapath_attention_forward.1} parent=1 // pred_check_branch
      %98 = sbr.rel (0) target = $region53
    $region52: #{metapath_attention_forward.1} parent=1 // pred_region
      _
    $region53: #{metapath_attention_forward.1} parent=1 // pred_fallthru
      _
    // Predicated region
    $region54: #{metapath_attention_forward.1} parent=1 // pred_check
      _
    $region55: #{metapath_attention_forward.1} parent=1 // pred_check_branch
      %100 = sbr.rel (0) target = $region57
    $region56: #{metapath_attention_forward.1} parent=1 // pred_region
      _
    $region57: #{metapath_attention_forward.1} parent=1 // pred_fallthru
      _
    // Predicated region
    $region58: #{metapath_attention_forward.1} parent=1 // pred_check
      _
    $region59: #{metapath_attention_forward.1} parent=1 // pred_check_branch
      %102 = sbr.rel (0) target = $region61
    $region60: #{metapath_attention_forward.1} parent=1 // pred_region
      _
    $region61: #{metapath_attention_forward.1} parent=1 // pred_fallthru
      _
    // Predicated region
    $region62: #{metapath_attention_forward.1} parent=1 // pred_check
      _
    $region63: #{metapath_attention_forward.1} parent=1 // pred_check_branch
      %104 = sbr.rel (0) target = $region65
    $region64: #{metapath_attention_forward.1} parent=1 // pred_region
      _
    $region65: #{metapath_attention_forward.1} parent=1 // pred_fallthru
      _
    // Predicated region
    $region66: #{metapath_attention_forward.1} parent=1 // pred_check
      _
    $region67: #{metapath_attention_forward.1} parent=1 // pred_check_branch
      %106 = sbr.rel (0) target = $region69
    $region68: #{metapath_attention_forward.1} parent=1 // pred_region
      _
    $region69: #{metapath_attention_forward.1} parent=1 // pred_fallthru
      _
    // Predicated region
    $region70: #{metapath_attention_forward.1} parent=1 // pred_check
      _
    $region71: #{metapath_attention_forward.1} parent=1 // pred_check_branch
      %108 = sbr.rel (0) target = $region73
    $region72: #{metapath_attention_forward.1} parent=1 // pred_region
      _
    $region73: #{metapath_attention_forward.1} parent=1 // pred_fallthru
      _
    // Predicated region
    $region74: #{metapath_attention_forward.1} parent=1 // pred_check
      _
    $region75: #{metapath_attention_forward.1} parent=1 // pred_check_branch
      %110 = sbr.rel (0) target = $region77
    $region76: #{metapath_attention_forward.1} parent=1 // pred_region
      _
    $region77: #{metapath_attention_forward.1} parent=1 // pred_fallthru
      _
    // Predicated region
    $region78: #{metapath_attention_forward.1} parent=1 // pred_check
      _
    $region79: #{metapath_attention_forward.1} parent=1 // pred_check_branch
      %112 = sbr.rel (0) target = $region81
    $region80: #{metapath_attention_forward.1} parent=1 // pred_region
      _
    $region81: #{metapath_attention_forward.1} parent=1 // pred_fallthru
      _
    // Predicated region
    $region82: #{metapath_attention_forward.1} parent=1 // pred_check
      _
    $region83: #{metapath_attention_forward.1} parent=1 // pred_check_branch
      %114 = sbr.rel (0) target = $region85
    $region84: #{metapath_attention_forward.1} parent=1 // pred_region
      _
    $region85: #{metapath_attention_forward.1} parent=1 // pred_fallthru
      _
    // Predicated region
    $region86: #{metapath_attention_forward.1} parent=1 // pred_check
      _
    $region87: #{metapath_attention_forward.1} parent=1 // pred_check_branch
      %116 = sbr.rel (0) target = $region89
    $region88: #{metapath_attention_forward.1} parent=1 // pred_region
      _
    $region89: #{metapath_attention_forward.1} parent=1 // pred_fallthru
      _
    // Predicated region
    $region90: #{metapath_attention_forward.1} parent=1 // pred_check
      _
    $region91: #{metapath_attention_forward.1} parent=1 // pred_check_branch
      %118 = sbr.rel (0) target = $region93
    $region92: #{metapath_attention_forward.1} parent=1 // pred_region
      _
    $region93: #{metapath_attention_forward.1} parent=1 // pred_fallthru
      _
    // Predicated region
    $region94: #{metapath_attention_forward.1} parent=1 // pred_check
      _
    $region95: #{metapath_attention_forward.1} parent=1 // pred_check_branch
      %120 = sbr.rel (0) target = $region97
    $region96: #{metapath_attention_forward.1} parent=1 // pred_region
      _
    $region97: #{metapath_attention_forward.1} parent=1 // pred_fallthru
      _
    // Predicated region
    $region98: #{metapath_attention_forward.1} parent=1 // pred_check
      _
    $region99: #{metapath_attention_forward.1} parent=1 // pred_check_branch
      %122 = sbr.rel (0) target = $region101
    $region100: #{metapath_attention_forward.1} parent=1 // pred_region
      _
    $region101: #{metapath_attention_forward.1} parent=1 // pred_fallthru
      _
    // Predicated region
    $region102: #{metapath_attention_forward.1} parent=1 // pred_check
      _
    $region103: #{metapath_attention_forward.1} parent=1 // pred_check_branch
      %124 = sbr.rel (0) target = $region105
    $region104: #{metapath_attention_forward.1} parent=1 // pred_region
      _
    $region105: #{metapath_attention_forward.1} parent=1 // pred_fallthru
      _
    // Predicated region
    $region106: #{metapath_attention_forward.1} parent=1 // pred_check
      _
    $region107: #{metapath_attention_forward.1} parent=1 // pred_check_branch
      %126 = sbr.rel (0) target = $region109
    $region108: #{metapath_attention_forward.1} parent=1 // pred_region
      _
    $region109: #{metapath_attention_forward.1} parent=1 // pred_fallthru
      _
    // Predicated region
    $region110: #{metapath_attention_forward.1} parent=1 // pred_check
      _
    $region111: #{metapath_attention_forward.1} parent=1 // pred_check_branch
      %128 = sbr.rel (0) target = $region113
    $region112: #{metapath_attention_forward.1} parent=1 // pred_region
      _
    $region113: #{metapath_attention_forward.1} parent=1 // pred_fallthru
      _
    // Predicated region
    $region114: #{metapath_attention_forward.1} parent=1 // pred_check
      _
    $region115: #{metapath_attention_forward.1} parent=1 // pred_check_branch
      %130 = sbr.rel (0) target = $region117
    $region116: #{metapath_attention_forward.1} parent=1 // pred_region
      _
    $region117: #{metapath_attention_forward.1} parent=1 // pred_fallthru
      _
    // Predicated region
    $region118: #{metapath_attention_forward.1} parent=1 // pred_check
      _
    $region119: #{metapath_attention_forward.1} parent=1 // pred_check_branch
      %132 = sbr.rel (0) target = $region121
    $region120: #{metapath_attention_forward.1} parent=1 // pred_region
      _
    $region121: #{metapath_attention_forward.1} parent=1 // pred_fallthru
      _
    // Predicated region
    $region122: #{metapath_attention_forward.1} parent=1 // pred_check
      _
    $region123: #{metapath_attention_forward.1} parent=1 // pred_check_branch
      %134 = sbr.rel (0) target = $region125
    $region124: #{metapath_attention_forward.1} parent=1 // pred_region
      _
    $region125: #{metapath_attention_forward.1} parent=1 // pred_fallthru
      _
    %v135 = vld [vmem:[%s1] sm:$0xff]
    %v136 = vld [vmem:[%s1 + $0x8] sm:$0xf]
    %v137 = vld [vmem:[%s21] sm:$0xff]
    %v138 = vld [vmem:[%s21 + $0x8] sm:$0x1]
    %v139 = vld [vmem:[%s23] sm:$0xff]
    %v140 = vld [vmem:[%s23 + $0x8] sm:$0x1]
    %v141 = vld [vmem:[%s29] sm:$0x1]
    %vm142 = vcmp.le.f32.partialorder %v135, 0.0
    %vm143 = vcmp.le.f32.partialorder %v136, 0.0
    %v144 = vsel %vm142, 1e-10, %v135
    %v145 = vsel %vm143, 1e-10, %v136
    %v146 = vld [vmem:[%s13] sm:$0x1]
    %v147 = vld [vmem:[%s15] sm:$0x1]
    %vm148 = vcmask 39936
    %v149 = vsel %vm148, %v135, 0.0
    %150 = vadd.xlane.f32.xlu0 %v149
    %v151 = vpop.xlane.xlu0 %150
    %vm152 = vcmask 35840
    %v153 = vsel %vm152, %v136, 0.0
    %154 = vadd.xlane.f32.xlu0 %v153
    %v155 = vpop.xlane.xlu0 %154
    %v156 = vrcp.pop 5.0
    %v157 = vmul.f32 %v151, %v156
    %v158 = vmul.f32 %v155, %v156
    %v159 = vsub.f32 %v135, %v157
    %v160 = vsub.f32 %v136, %v158
    %v161 = vmul.f32 %v159, %v159
    %v162 = vmul.f32 %v160, %v160
    %v163 = vsel %vm148, %v161, 0.0
    %164 = vadd.xlane.f32.xlu0 %v163
    %v165 = vpop.xlane.xlu0 %164
    %v166 = vsel %vm152, %v162, 0.0
    %167 = vadd.xlane.f32.xlu0 %v166
    %v168 = vpop.xlane.xlu0 %167
    %v169 = vmul.f32 %v165, %v156
    %v170 = vmul.f32 %v168, %v156
    %v171 = vadd.f32 %v169, 1e-05
    %v172 = vadd.f32 %v170, 1e-05
    %v173 = vrsqrt.pop %v171
    %v174 = vrsqrt.pop %v172
    %v175 = vmul.f32 %v159, %v173
    %v176 = vmul.f32 %v160, %v174
    %v178 = vlaneseq
    %v179 = vshrl.u32 %v178, 7
    %v180 = vsub.s32 0, %v179
    %v181 = vrot.slane %v146, %v180
    %v183 = vmul.f32 %v175, %v181
    %v184 = vmul.f32 %v176, %v181
    %v186 = vlaneseq
    %v187 = vshrl.u32 %v186, 7
    %v188 = vsub.s32 0, %v187
    %v189 = vrot.slane %v147, %v188
    %v191 = vadd.f32 %v183, %v189
    %v192 = vadd.f32 %v184, %v189
    %v193 = vld [vmem:[%s17] sm:$0x1f]
    %v195 = vsel %vm148, %v191, 0
    %v198 = vsel %vm148, %v192, 0
    %vm200 = vcmask 1044480
    %v202 = vsel %vm200, %v193, 0
    %204 = vmatprep.subr.mxu0 0.0
    %205 = vmatpush1.msra.mxu0 0.0
    %206 = vmatprep.subr.mxu0 0.0
    %207 = vmatpush1.msra.mxu0 0.0
    %208 = vmatprep.subr.mxu0 0.0
    %209 = vmatpush1.msra.mxu0 0.0
    %210 = vmatprep.subr.mxu0 0.0
    %211 = vmatpush1.msra.mxu0 0.0
    %212 = vmatprep.subr.mxu0 0.0
    %213 = vmatpush1.msra.mxu0 0.0
    %214 = vmatprep.subr.mxu0 0.0
    %215 = vmatpush1.msra.mxu0 0.0
    %216 = vmatprep.subr.mxu0 0.0
    %217 = vmatpush1.msra.mxu0 0.0
    %218 = vmatprep.subr.mxu0 0.0
    %219 = vmatpush1.msra.mxu0 0.0
    %220 = vmatprep.subr.mxu0 0.0
    %221 = vmatpush1.msra.mxu0 0.0
    %222 = vmatprep.subr.mxu0 0.0
    %223 = vmatpush1.msra.mxu0 0.0
    %224 = vmatprep.subr.mxu0 0.0
    %225 = vmatpush1.msra.mxu0 0.0
    %226 = vmatprep.subr.mxu0 0.0
    %227 = vmatpush1.msra.mxu0 0.0
    %228 = vmatprep.subr.mxu0 0.0
    %229 = vmatpush1.msra.mxu0 0.0
    %230 = vmatprep.subr.mxu0 0.0
    %231 = vmatpush1.msra.mxu0 0.0
    %232 = vmatprep.subr.mxu0 0.0
    %233 = vmatpush1.msra.mxu0 0.0
    %234 = vmatprep.subr.mxu0 0.0
    %235 = vmatpush1.msra.mxu0 %v202
    %236 = vmatprep.subr.mxu0 0.0
    %237 = vmatpush2.msra.mxu0 0.0
    %238 = vmatprep.subr.mxu0 0.0
    %239 = vmatpush2.msra.mxu0 0.0
    %240 = vmatprep.subr.mxu0 0.0
    %241 = vmatpush2.msra.mxu0 0.0
    %242 = vmatprep.subr.mxu0 0.0
    %243 = vmatpush2.msra.mxu0 0.0
    %244 = vmatprep.subr.mxu0 0.0
    %245 = vmatpush2.msra.mxu0 0.0
    %246 = vmatprep.subr.mxu0 0.0
    %247 = vmatpush2.msra.mxu0 0.0
    %248 = vmatprep.subr.mxu0 0.0
    %249 = vmatpush2.msra.mxu0 0.0
    %250 = vmatprep.subr.mxu0 0.0
    %251 = vmatpush2.msra.mxu0 0.0
    %252 = vmatprep.subr.mxu0 0.0
    %253 = vmatpush2.msra.mxu0 0.0
    %254 = vmatprep.subr.mxu0 0.0
    %255 = vmatpush2.msra.mxu0 0.0
    %256 = vmatprep.subr.mxu0 0.0
    %257 = vmatpush2.msra.mxu0 0.0
    %258 = vmatprep.subr.mxu0 0.0
    %259 = vmatpush2.msra.mxu0 0.0
    %260 = vmatprep.subr.mxu0 0.0
    %261 = vmatpush2.msra.mxu0 0.0
    %262 = vmatprep.subr.mxu0 0.0
    %263 = vmatpush2.msra.mxu0 0.0
    %264 = vmatprep.subr.mxu0 0.0
    %265 = vmatpush2.msra.mxu0 0.0
    %266 = vmatprep.subr.mxu0 0.0
    %267 = vmatpush2.msra.mxu0 0.0
    %268 = vmatprep.mubr.f32.mxu0 0.0
    %269 = vmatmul.mubr.f32.gmra.mxu0 %v195
    %v270 = vpop.f32.mrf.mxu0
    %v271 = vadd.f32 0.0, %v270
    %v272 = vpop.f32.mrf.mxu0
    %273 = vmatprep.mubr.f32.mxu0 0.0
    %274 = vmatmul.mubr.f32.gmra.mxu0 %v198
    %v275 = vpop.f32.mrf.mxu0
    %v276 = vadd.f32 0.0, %v275
    %v277 = vpop.f32.mrf.mxu0
    %278 = vdwg.mxu0
    %v279 = vld [vmem:[%s19] sm:$0x1f]
    %v281 = vsel %vm200, %v279, 0
    %283 = vmatprep.subr.mxu0 0.0
    %284 = vmatpush1.msra.mxu0 0.0
    %285 = vmatprep.subr.mxu0 0.0
    %286 = vmatpush1.msra.mxu0 0.0
    %287 = vmatprep.subr.mxu0 0.0
    %288 = vmatpush1.msra.mxu0 0.0
    %289 = vmatprep.subr.mxu0 0.0
    %290 = vmatpush1.msra.mxu0 0.0
    %291 = vmatprep.subr.mxu0 0.0
    %292 = vmatpush1.msra.mxu0 0.0
    %293 = vmatprep.subr.mxu0 0.0
    %294 = vmatpush1.msra.mxu0 0.0
    %295 = vmatprep.subr.mxu0 0.0
    %296 = vmatpush1.msra.mxu0 0.0
    %297 = vmatprep.subr.mxu0 0.0
    %298 = vmatpush1.msra.mxu0 0.0
    %299 = vmatprep.subr.mxu0 0.0
    %300 = vmatpush1.msra.mxu0 0.0
    %301 = vmatprep.subr.mxu0 0.0
    %302 = vmatpush1.msra.mxu0 0.0
    %303 = vmatprep.subr.mxu0 0.0
    %304 = vmatpush1.msra.mxu0 0.0
    %305 = vmatprep.subr.mxu0 0.0
    %306 = vmatpush1.msra.mxu0 0.0
    %307 = vmatprep.subr.mxu0 0.0
    %308 = vmatpush1.msra.mxu0 0.0
    %309 = vmatprep.subr.mxu0 0.0
    %310 = vmatpush1.msra.mxu0 0.0
    %311 = vmatprep.subr.mxu0 0.0
    %312 = vmatpush1.msra.mxu0 0.0
    %313 = vmatprep.subr.mxu0 0.0
    %314 = vmatpush1.msra.mxu0 %v281
    %315 = vmatprep.subr.mxu0 0.0
    %316 = vmatpush2.msra.mxu0 0.0
    %317 = vmatprep.subr.mxu0 0.0
    %318 = vmatpush2.msra.mxu0 0.0
    %319 = vmatprep.subr.mxu0 0.0
    %320 = vmatpush2.msra.mxu0 0.0
    %321 = vmatprep.subr.mxu0 0.0
    %322 = vmatpush2.msra.mxu0 0.0
    %323 = vmatprep.subr.mxu0 0.0
    %324 = vmatpush2.msra.mxu0 0.0
    %325 = vmatprep.subr.mxu0 0.0
    %326 = vmatpush2.msra.mxu0 0.0
    %327 = vmatprep.subr.mxu0 0.0
    %328 = vmatpush2.msra.mxu0 0.0
    %329 = vmatprep.subr.mxu0 0.0
    %330 = vmatpush2.msra.mxu0 0.0
    %331 = vmatprep.subr.mxu0 0.0
    %332 = vmatpush2.msra.mxu0 0.0
    %333 = vmatprep.subr.mxu0 0.0
    %334 = vmatpush2.msra.mxu0 0.0
    %335 = vmatprep.subr.mxu0 0.0
    %336 = vmatpush2.msra.mxu0 0.0
    %337 = vmatprep.subr.mxu0 0.0
    %338 = vmatpush2.msra.mxu0 0.0
    %339 = vmatprep.subr.mxu0 0.0
    %340 = vmatpush2.msra.mxu0 0.0
    %341 = vmatprep.subr.mxu0 0.0
    %342 = vmatpush2.msra.mxu0 0.0
    %343 = vmatprep.subr.mxu0 0.0
    %344 = vmatpush2.msra.mxu0 0.0
    %345 = vmatprep.subr.mxu0 0.0
    %346 = vmatpush2.msra.mxu0 0.0
    %347 = vmatprep.mubr.f32.mxu0 0.0
    %348 = vmatmul.mubr.f32.gmra.mxu0 %v195
    %v349 = vpop.f32.mrf.mxu0
    %v350 = vadd.f32 0.0, %v349
    %v351 = vpop.f32.mrf.mxu0
    %352 = vmatprep.mubr.f32.mxu0 0.0
    %353 = vmatmul.mubr.f32.gmra.mxu0 %v198
    %v354 = vpop.f32.mrf.mxu0
    %v355 = vadd.f32 0.0, %v354
    %v356 = vpop.f32.mrf.mxu0
    %357 = vdwg.mxu0
    %360 = vrot.lane.b32.xlu0 %v144, 114
    %v361 = vpop.permute.xlu0 %360
    %362 = vrot.lane.b32.xlu0 %v145, 114
    %v363 = vpop.permute.xlu0 %362
    %vm364 = vcmask 72704
    %v365 = vsel %vm364, %v361, 0
    %v367 = vsel %vm364, %v363, 0
    %vm369 = vcmask 1040384
    %v371 = vsel %vm369, %v138, 0
    %373 = vmatprep.subr.mxu0 0.0
    %374 = vmatpush1.msra.mxu0 0.0
    %375 = vmatprep.subr.mxu0 0.0
    %376 = vmatpush1.msra.mxu0 0.0
    %377 = vmatprep.subr.mxu0 0.0
    %378 = vmatpush1.msra.mxu0 0.0
    %379 = vmatprep.subr.mxu0 0.0
    %380 = vmatpush1.msra.mxu0 0.0
    %381 = vmatprep.subr.mxu0 0.0
    %382 = vmatpush1.msra.mxu0 0.0
    %383 = vmatprep.subr.mxu0 0.0
    %384 = vmatpush1.msra.mxu0 0.0
    %385 = vmatprep.subr.mxu0 0.0
    %386 = vmatpush1.msra.mxu0 0.0
    %387 = vmatprep.subr.mxu0 0.0
    %388 = vmatpush1.msra.mxu0 0.0
    %389 = vmatprep.subr.mxu0 0.0
    %390 = vmatpush1.msra.mxu0 0.0
    %391 = vmatprep.subr.mxu0 0.0
    %392 = vmatpush1.msra.mxu0 0.0
    %393 = vmatprep.subr.mxu0 0.0
    %394 = vmatpush1.msra.mxu0 0.0
    %395 = vmatprep.subr.mxu0 0.0
    %396 = vmatpush1.msra.mxu0 0.0
    %397 = vmatprep.subr.mxu0 0.0
    %398 = vmatpush1.msra.mxu0 0.0
    %399 = vmatprep.subr.mxu0 0.0
    %400 = vmatpush1.msra.mxu0 0.0
    %401 = vmatprep.subr.mxu0 0.0
    %402 = vmatpush1.msra.mxu0 %v371
    %403 = vmatprep.subr.mxu0 0.0
    %404 = vmatpush1.msra.mxu0 %v137
    %405 = vmatprep.subr.mxu0 0.0
    %406 = vmatpush2.msra.mxu0 0.0
    %407 = vmatprep.subr.mxu0 0.0
    %408 = vmatpush2.msra.mxu0 0.0
    %409 = vmatprep.subr.mxu0 0.0
    %410 = vmatpush2.msra.mxu0 0.0
    %411 = vmatprep.subr.mxu0 0.0
    %412 = vmatpush2.msra.mxu0 0.0
    %413 = vmatprep.subr.mxu0 0.0
    %414 = vmatpush2.msra.mxu0 0.0
    %415 = vmatprep.subr.mxu0 0.0
    %416 = vmatpush2.msra.mxu0 0.0
    %417 = vmatprep.subr.mxu0 0.0
    %418 = vmatpush2.msra.mxu0 0.0
    %419 = vmatprep.subr.mxu0 0.0
    %420 = vmatpush2.msra.mxu0 0.0
    %421 = vmatprep.subr.mxu0 0.0
    %422 = vmatpush2.msra.mxu0 0.0
    %423 = vmatprep.subr.mxu0 0.0
    %424 = vmatpush2.msra.mxu0 0.0
    %425 = vmatprep.subr.mxu0 0.0
    %426 = vmatpush2.msra.mxu0 0.0
    %427 = vmatprep.subr.mxu0 0.0
    %428 = vmatpush2.msra.mxu0 0.0
    %429 = vmatprep.subr.mxu0 0.0
    %430 = vmatpush2.msra.mxu0 0.0
    %431 = vmatprep.subr.mxu0 0.0
    %432 = vmatpush2.msra.mxu0 0.0
    %433 = vmatprep.subr.mxu0 0.0
    %434 = vmatpush2.msra.mxu0 0.0
    %435 = vmatprep.subr.mxu0 0.0
    %436 = vmatpush2.msra.mxu0 0.0
    %437 = vmatprep.mubr.f32.mxu0 0.0
    %438 = vmatmul.mubr.f32.gmra.mxu0 %v365
    %v439 = vpop.f32.mrf.mxu0
    %v440 = vadd.f32 0.0, %v439
    %v441 = vpop.f32.mrf.mxu0
    %442 = vmatprep.mubr.f32.mxu0 0.0
    %443 = vmatmul.mubr.f32.gmra.mxu0 %v367
    %v444 = vpop.f32.mrf.mxu0
    %v445 = vadd.f32 0.0, %v444
    %v446 = vpop.f32.mrf.mxu0
    %447 = vdwg.mxu0
    %v449 = vlaneseq
    %v450 = vshrl.u32 %v449, 7
    %v451 = vsub.s32 0, %v450
    %v452 = vrot.slane %v141, %v451
    %v454 = vadd.f32 %v452, %v440
    %v455 = vadd.f32 %v452, %v445
    %456 = vrot.lane.b32.xlu0 %v144, 119
    %v457 = vpop.permute.xlu0 %456
    %458 = vrot.lane.b32.xlu0 %v145, 119
    %v459 = vpop.permute.xlu0 %458
    %v462 = vmul.f32 %v144, %v457
    %v463 = vmul.f32 %v145, %v459
    %466 = vrot.lane.b32.xlu0 %v462, 123
    %v467 = vpop.permute.xlu0 %466
    %468 = vrot.lane.b32.xlu0 %v463, 123
    %v469 = vpop.permute.xlu0 %468
    %v470 = vsel %vm364, %v467, 0
    %v472 = vsel %vm364, %v469, 0
    %v475 = vsel %vm369, %v140, 0
    %477 = vmatprep.subr.mxu0 0.0
    %478 = vmatpush1.msra.mxu0 0.0
    %479 = vmatprep.subr.mxu0 0.0
    %480 = vmatpush1.msra.mxu0 0.0
    %481 = vmatprep.subr.mxu0 0.0
    %482 = vmatpush1.msra.mxu0 0.0
    %483 = vmatprep.subr.mxu0 0.0
    %484 = vmatpush1.msra.mxu0 0.0
    %485 = vmatprep.subr.mxu0 0.0
    %486 = vmatpush1.msra.mxu0 0.0
    %487 = vmatprep.subr.mxu0 0.0
    %488 = vmatpush1.msra.mxu0 0.0
    %489 = vmatprep.subr.mxu0 0.0
    %490 = vmatpush1.msra.mxu0 0.0
    %491 = vmatprep.subr.mxu0 0.0
    %492 = vmatpush1.msra.mxu0 0.0
    %493 = vmatprep.subr.mxu0 0.0
    %494 = vmatpush1.msra.mxu0 0.0
    %495 = vmatprep.subr.mxu0 0.0
    %496 = vmatpush1.msra.mxu0 0.0
    %497 = vmatprep.subr.mxu0 0.0
    %498 = vmatpush1.msra.mxu0 0.0
    %499 = vmatprep.subr.mxu0 0.0
    %500 = vmatpush1.msra.mxu0 0.0
    %501 = vmatprep.subr.mxu0 0.0
    %502 = vmatpush1.msra.mxu0 0.0
    %503 = vmatprep.subr.mxu0 0.0
    %504 = vmatpush1.msra.mxu0 0.0
    %505 = vmatprep.subr.mxu0 0.0
    %506 = vmatpush1.msra.mxu0 %v475
    %507 = vmatprep.subr.mxu0 0.0
    %508 = vmatpush1.msra.mxu0 %v139
    %509 = vmatprep.subr.mxu0 0.0
    %510 = vmatpush2.msra.mxu0 0.0
    %511 = vmatprep.subr.mxu0 0.0
    %512 = vmatpush2.msra.mxu0 0.0
    %513 = vmatprep.subr.mxu0 0.0
    %514 = vmatpush2.msra.mxu0 0.0
    %515 = vmatprep.subr.mxu0 0.0
    %516 = vmatpush2.msra.mxu0 0.0
    %517 = vmatprep.subr.mxu0 0.0
    %518 = vmatpush2.msra.mxu0 0.0
    %519 = vmatprep.subr.mxu0 0.0
    %520 = vmatpush2.msra.mxu0 0.0
    %521 = vmatprep.subr.mxu0 0.0
    %522 = vmatpush2.msra.mxu0 0.0
    %523 = vmatprep.subr.mxu0 0.0
    %524 = vmatpush2.msra.mxu0 0.0
    %525 = vmatprep.subr.mxu0 0.0
    %526 = vmatpush2.msra.mxu0 0.0
    %527 = vmatprep.subr.mxu0 0.0
    %528 = vmatpush2.msra.mxu0 0.0
    %529 = vmatprep.subr.mxu0 0.0
    %530 = vmatpush2.msra.mxu0 0.0
    %531 = vmatprep.subr.mxu0 0.0
    %532 = vmatpush2.msra.mxu0 0.0
    %533 = vmatprep.subr.mxu0 0.0
    %534 = vmatpush2.msra.mxu0 0.0
    %535 = vmatprep.subr.mxu0 0.0
    %536 = vmatpush2.msra.mxu0 0.0
    %537 = vmatprep.subr.mxu0 0.0
    %538 = vmatpush2.msra.mxu0 0.0
    %539 = vmatprep.subr.mxu0 0.0
    %540 = vmatpush2.msra.mxu0 0.0
    %541 = vmatprep.mubr.f32.mxu0 0.0
    %542 = vmatmul.mubr.f32.gmra.mxu0 %v470
    %v543 = vpop.f32.mrf.mxu0
    %v544 = vadd.f32 0.0, %v543
    %v545 = vpop.f32.mrf.mxu0
    %546 = vmatprep.mubr.f32.mxu0 0.0
    %547 = vmatmul.mubr.f32.gmra.mxu0 %v472
    %v548 = vpop.f32.mrf.mxu0
    %v549 = vadd.f32 0.0, %v548
    %v550 = vpop.f32.mrf.mxu0
    %551 = vdwg.mxu0
    %v552 = vadd.f32 %v454, %v544
    %v553 = vadd.f32 %v455, %v549
    %v555 = vsel %vm148, %v552, 0
    %v558 = vsel %vm148, %v553, 0
    %v561 = vsel %vm148, %v271, 0
    %v564 = vsel %vm148, %v276, 0
    %566 = vmatprep.subr.mxu0 0.0
    %567 = vmatpush1.xpose.msra.mxu0 0.0
    %568 = vmatprep.subr.mxu0 0.0
    %569 = vmatpush1.xpose.msra.mxu0 0.0
    %570 = vmatprep.subr.mxu0 0.0
    %571 = vmatpush1.xpose.msra.mxu0 0.0
    %572 = vmatprep.subr.mxu0 0.0
    %573 = vmatpush1.xpose.msra.mxu0 0.0
    %574 = vmatprep.subr.mxu0 0.0
    %575 = vmatpush1.xpose.msra.mxu0 0.0
    %576 = vmatprep.subr.mxu0 0.0
    %577 = vmatpush1.xpose.msra.mxu0 0.0
    %578 = vmatprep.subr.mxu0 0.0
    %579 = vmatpush1.xpose.msra.mxu0 0.0
    %580 = vmatprep.subr.mxu0 0.0
    %581 = vmatpush1.xpose.msra.mxu0 0.0
    %582 = vmatprep.subr.mxu0 0.0
    %583 = vmatpush1.xpose.msra.mxu0 0.0
    %584 = vmatprep.subr.mxu0 0.0
    %585 = vmatpush1.xpose.msra.mxu0 0.0
    %586 = vmatprep.subr.mxu0 0.0
    %587 = vmatpush1.xpose.msra.mxu0 0.0
    %588 = vmatprep.subr.mxu0 0.0
    %589 = vmatpush1.xpose.msra.mxu0 0.0
    %590 = vmatprep.subr.mxu0 0.0
    %591 = vmatpush1.xpose.msra.mxu0 0.0
    %592 = vmatprep.subr.mxu0 0.0
    %593 = vmatpush1.xpose.msra.mxu0 0.0
    %594 = vmatprep.subr.mxu0 0.0
    %595 = vmatpush1.xpose.msra.mxu0 %v564
    %596 = vmatprep.subr.mxu0 0.0
    %597 = vmatpush1.xpose.msra.mxu0 %v561
    %598 = vmatprep.subr.mxu0 0.0
    %599 = vmatpush2.xpose.msra.mxu0 0.0
    %600 = vmatprep.subr.mxu0 0.0
    %601 = vmatpush2.xpose.msra.mxu0 0.0
    %602 = vmatprep.subr.mxu0 0.0
    %603 = vmatpush2.xpose.msra.mxu0 0.0
    %604 = vmatprep.subr.mxu0 0.0
    %605 = vmatpush2.xpose.msra.mxu0 0.0
    %606 = vmatprep.subr.mxu0 0.0
    %607 = vmatpush2.xpose.msra.mxu0 0.0
    %608 = vmatprep.subr.mxu0 0.0
    %609 = vmatpush2.xpose.msra.mxu0 0.0
    %610 = vmatprep.subr.mxu0 0.0
    %611 = vmatpush2.xpose.msra.mxu0 0.0
    %612 = vmatprep.subr.mxu0 0.0
    %613 = vmatpush2.xpose.msra.mxu0 0.0
    %614 = vmatprep.subr.mxu0 0.0
    %615 = vmatpush2.xpose.msra.mxu0 0.0
    %616 = vmatprep.subr.mxu0 0.0
    %617 = vmatpush2.xpose.msra.mxu0 0.0
    %618 = vmatprep.subr.mxu0 0.0
    %619 = vmatpush2.xpose.msra.mxu0 0.0
    %620 = vmatprep.subr.mxu0 0.0
    %621 = vmatpush2.xpose.msra.mxu0 0.0
    %622 = vmatprep.subr.mxu0 0.0
    %623 = vmatpush2.xpose.msra.mxu0 0.0
    %624 = vmatprep.subr.mxu0 0.0
    %625 = vmatpush2.xpose.msra.mxu0 0.0
    %626 = vmatprep.subr.mxu0 0.0
    %627 = vmatpush2.xpose.msra.mxu0 0.0
    %628 = vmatprep.subr.mxu0 0.0
    %629 = vmatpush2.xpose.msra.mxu0 0.0
    %630 = vmatprep.mubr.f32.mxu0 0.0
    %631 = vmatmul.mubr.f32.gmra.mxu0 %v555
    %v632 = vpop.f32.mrf.mxu0
    %v633 = vadd.f32 0.0, %v632
    %v634 = vpop.f32.mrf.mxu0
    %635 = vmatprep.mubr.f32.mxu0 0.0
    %636 = vmatmul.mubr.f32.gmra.mxu0 %v558
    %v637 = vpop.f32.mrf.mxu0
    %v638 = vadd.f32 0.0, %v637
    %v639 = vpop.f32.mrf.mxu0
    %640 = vdwg.mxu0
    %v641 = vmul.f32 %v633, 0.4472136
    %v642 = vmul.f32 %v638, 0.4472136
    %vm643 = vcmask 97280
    %v644 = vsel %vm643, %v641, -inf
    %645 = vmax.xlane.f32.xlu0 %v644
    %v646 = vpop.xlane.xlu0 %645
    %vm647 = vcmask 93184
    %v648 = vsel %vm647, %v642, -inf
    %649 = vmax.xlane.f32.xlu0 %v648
    %v650 = vpop.xlane.xlu0 %649
    %v651 = vsub.f32 %v641, %v646
    %v652 = vsub.f32 %v642, %v650
    %v653 = vmul.f32 %v651, 1.442695
    %v654 = vpow.pop %v653
    %v655 = vmul.f32 %v652, 1.442695
    %v656 = vpow.pop %v655
    %v657 = vsel %vm643, %v654, 0.0
    %658 = vadd.xlane.f32.xlu0 %v657
    %v659 = vpop.xlane.xlu0 %658
    %v660 = vsel %vm647, %v656, 0.0
    %661 = vadd.xlane.f32.xlu0 %v660
    %v662 = vpop.xlane.xlu0 %661
    %v663 = vadd.f32 %v659, 1.0
    %v664 = vadd.f32 %v662, 1.0
    %v665 = vrcp.pop %v663
    %v666 = vrcp.pop %v664
    %v667 = vmul.f32 %v654, %v665
    %v668 = vmul.f32 %v656, %v666
    %v670 = vsel %vm643, %v667, 0
    %v673 = vsel %vm643, %v668, 0
    %vm675 = vcmask 1043456
    %v677 = vsel %vm675, %v355, 0
    %679 = vmatprep.subr.mxu0 0.0
    %680 = vmatpush1.msra.mxu0 0.0
    %681 = vmatprep.subr.mxu0 0.0
    %682 = vmatpush1.msra.mxu0 0.0
    %683 = vmatprep.subr.mxu0 0.0
    %684 = vmatpush1.msra.mxu0 0.0
    %685 = vmatprep.subr.mxu0 0.0
    %686 = vmatpush1.msra.mxu0 0.0
    %687 = vmatprep.subr.mxu0 0.0
    %688 = vmatpush1.msra.mxu0 0.0
    %689 = vmatprep.subr.mxu0 0.0
    %690 = vmatpush1.msra.mxu0 0.0
    %691 = vmatprep.subr.mxu0 0.0
    %692 = vmatpush1.msra.mxu0 0.0
    %693 = vmatprep.subr.mxu0 0.0
    %694 = vmatpush1.msra.mxu0 0.0
    %695 = vmatprep.subr.mxu0 0.0
    %696 = vmatpush1.msra.mxu0 0.0
    %697 = vmatprep.subr.mxu0 0.0
    %698 = vmatpush1.msra.mxu0 0.0
    %699 = vmatprep.subr.mxu0 0.0
    %700 = vmatpush1.msra.mxu0 0.0
    %701 = vmatprep.subr.mxu0 0.0
    %702 = vmatpush1.msra.mxu0 0.0
    %703 = vmatprep.subr.mxu0 0.0
    %704 = vmatpush1.msra.mxu0 0.0
    %705 = vmatprep.subr.mxu0 0.0
    %706 = vmatpush1.msra.mxu0 0.0
    %707 = vmatprep.subr.mxu0 0.0
    %708 = vmatpush1.msra.mxu0 %v677
    %709 = vmatprep.subr.mxu0 0.0
    %710 = vmatpush1.msra.mxu0 %v350
    %711 = vmatprep.subr.mxu0 0.0
    %712 = vmatpush2.msra.mxu0 0.0
    %713 = vmatprep.subr.mxu0 0.0
    %714 = vmatpush2.msra.mxu0 0.0
    %715 = vmatprep.subr.mxu0 0.0
    %716 = vmatpush2.msra.mxu0 0.0
    %717 = vmatprep.subr.mxu0 0.0
    %718 = vmatpush2.msra.mxu0 0.0
    %719 = vmatprep.subr.mxu0 0.0
    %720 = vmatpush2.msra.mxu0 0.0
    %721 = vmatprep.subr.mxu0 0.0
    %722 = vmatpush2.msra.mxu0 0.0
    %723 = vmatprep.subr.mxu0 0.0
    %724 = vmatpush2.msra.mxu0 0.0
    %725 = vmatprep.subr.mxu0 0.0
    %726 = vmatpush2.msra.mxu0 0.0
    %727 = vmatprep.subr.mxu0 0.0
    %728 = vmatpush2.msra.mxu0 0.0
    %729 = vmatprep.subr.mxu0 0.0
    %730 = vmatpush2.msra.mxu0 0.0
    %731 = vmatprep.subr.mxu0 0.0
    %732 = vmatpush2.msra.mxu0 0.0
    %733 = vmatprep.subr.mxu0 0.0
    %734 = vmatpush2.msra.mxu0 0.0
    %735 = vmatprep.subr.mxu0 0.0
    %736 = vmatpush2.msra.mxu0 0.0
    %737 = vmatprep.subr.mxu0 0.0
    %738 = vmatpush2.msra.mxu0 0.0
    %739 = vmatprep.subr.mxu0 0.0
    %740 = vmatpush2.msra.mxu0 0.0
    %741 = vmatprep.subr.mxu0 0.0
    %742 = vmatpush2.msra.mxu0 0.0
    %743 = vmatprep.mubr.f32.mxu0 0.0
    %744 = vmatmul.mubr.f32.gmra.mxu0 %v670
    %v745 = vpop.f32.mrf.mxu0
    %v746 = vadd.f32 %v191, %v745
    %v747 = vpop.f32.mrf.mxu0
    %748 = vmatprep.mubr.f32.mxu0 0.0
    %749 = vmatmul.mubr.f32.gmra.mxu0 %v673
    %v750 = vpop.f32.mrf.mxu0
    %v751 = vadd.f32 %v192, %v750
    %v752 = vpop.f32.mrf.mxu0
    %753 = vdwg.mxu0
    %v754 = vld [vmem:[%s3] sm:$0xff]
    %v755 = vld [vmem:[%s3 + $0x8] sm:$0x3]
    %v756 = vld [vmem:[%s25] sm:$0xff]
    %v757 = vld [vmem:[%s25 + $0x8] sm:$0x1]
    %v758 = vld [vmem:[%s27] sm:$0xff]
    %v759 = vld [vmem:[%s27 + $0x8] sm:$0x1]
    %v760 = vld [vmem:[%s31] sm:$0x1]
    %vm761 = vcmp.le.f32.partialorder %v754, 0.0
    %vm762 = vcmp.le.f32.partialorder %v755, 0.0
    %v763 = vsel %vm761, 1e-10, %v754
    %v764 = vsel %vm762, 1e-10, %v755
    %v765 = vsel %vm148, %v754, 0.0
    %766 = vadd.xlane.f32.xlu0 %v765
    %v767 = vpop.xlane.xlu0 %766
    %vm768 = vcmask 33792
    %v769 = vsel %vm768, %v755, 0.0
    %770 = vadd.xlane.f32.xlu0 %v769
    %v771 = vpop.xlane.xlu0 %770
    %v772 = vmul.f32 %v767, %v156
    %v773 = vmul.f32 %v771, %v156
    %v774 = vsub.f32 %v754, %v772
    %v775 = vsub.f32 %v755, %v773
    %v776 = vmul.f32 %v774, %v774
    %v777 = vmul.f32 %v775, %v775
    %v778 = vsel %vm148, %v776, 0.0
    %779 = vadd.xlane.f32.xlu0 %v778
    %v780 = vpop.xlane.xlu0 %779
    %v781 = vsel %vm768, %v777, 0.0
    %782 = vadd.xlane.f32.xlu0 %v781
    %v783 = vpop.xlane.xlu0 %782
    %v784 = vmul.f32 %v780, %v156
    %v785 = vmul.f32 %v783, %v156
    %v786 = vadd.f32 %v784, 1e-05
    %v787 = vadd.f32 %v785, 1e-05
    %v788 = vrsqrt.pop %v786
    %v789 = vrsqrt.pop %v787
    %v790 = vmul.f32 %v774, %v788
    %v791 = vmul.f32 %v775, %v789
    %v792 = vmul.f32 %v790, %v181
    %v793 = vmul.f32 %v791, %v181
    %v794 = vadd.f32 %v792, %v189
    %v795 = vadd.f32 %v793, %v189
    %v797 = vsel %vm148, %v794, 0
    %v800 = vsel %vm148, %v795, 0
    %802 = vmatprep.subr.mxu0 0.0
    %803 = vmatpush1.msra.mxu0 0.0
    %804 = vmatprep.subr.mxu0 0.0
    %805 = vmatpush1.msra.mxu0 0.0
    %806 = vmatprep.subr.mxu0 0.0
    %807 = vmatpush1.msra.mxu0 0.0
    %808 = vmatprep.subr.mxu0 0.0
    %809 = vmatpush1.msra.mxu0 0.0
    %810 = vmatprep.subr.mxu0 0.0
    %811 = vmatpush1.msra.mxu0 0.0
    %812 = vmatprep.subr.mxu0 0.0
    %813 = vmatpush1.msra.mxu0 0.0
    %814 = vmatprep.subr.mxu0 0.0
    %815 = vmatpush1.msra.mxu0 0.0
    %816 = vmatprep.subr.mxu0 0.0
    %817 = vmatpush1.msra.mxu0 0.0
    %818 = vmatprep.subr.mxu0 0.0
    %819 = vmatpush1.msra.mxu0 0.0
    %820 = vmatprep.subr.mxu0 0.0
    %821 = vmatpush1.msra.mxu0 0.0
    %822 = vmatprep.subr.mxu0 0.0
    %823 = vmatpush1.msra.mxu0 0.0
    %824 = vmatprep.subr.mxu0 0.0
    %825 = vmatpush1.msra.mxu0 0.0
    %826 = vmatprep.subr.mxu0 0.0
    %827 = vmatpush1.msra.mxu0 0.0
    %828 = vmatprep.subr.mxu0 0.0
    %829 = vmatpush1.msra.mxu0 0.0
    %830 = vmatprep.subr.mxu0 0.0
    %831 = vmatpush1.msra.mxu0 0.0
    %832 = vmatprep.subr.mxu0 0.0
    %833 = vmatpush1.msra.mxu0 %v202
    %834 = vmatprep.subr.mxu0 0.0
    %835 = vmatpush2.msra.mxu0 0.0
    %836 = vmatprep.subr.mxu0 0.0
    %837 = vmatpush2.msra.mxu0 0.0
    %838 = vmatprep.subr.mxu0 0.0
    %839 = vmatpush2.msra.mxu0 0.0
    %840 = vmatprep.subr.mxu0 0.0
    %841 = vmatpush2.msra.mxu0 0.0
    %842 = vmatprep.subr.mxu0 0.0
    %843 = vmatpush2.msra.mxu0 0.0
    %844 = vmatprep.subr.mxu0 0.0
    %845 = vmatpush2.msra.mxu0 0.0
    %846 = vmatprep.subr.mxu0 0.0
    %847 = vmatpush2.msra.mxu0 0.0
    %848 = vmatprep.subr.mxu0 0.0
    %849 = vmatpush2.msra.mxu0 0.0
    %850 = vmatprep.subr.mxu0 0.0
    %851 = vmatpush2.msra.mxu0 0.0
    %852 = vmatprep.subr.mxu0 0.0
    %853 = vmatpush2.msra.mxu0 0.0
    %854 = vmatprep.subr.mxu0 0.0
    %855 = vmatpush2.msra.mxu0 0.0
    %856 = vmatprep.subr.mxu0 0.0
    %857 = vmatpush2.msra.mxu0 0.0
    %858 = vmatprep.subr.mxu0 0.0
    %859 = vmatpush2.msra.mxu0 0.0
    %860 = vmatprep.subr.mxu0 0.0
    %861 = vmatpush2.msra.mxu0 0.0
    %862 = vmatprep.subr.mxu0 0.0
    %863 = vmatpush2.msra.mxu0 0.0
    %864 = vmatprep.subr.mxu0 0.0
    %865 = vmatpush2.msra.mxu0 0.0
    %866 = vmatprep.mubr.f32.mxu0 0.0
    %867 = vmatmul.mubr.f32.gmra.mxu0 %v797
    %v868 = vpop.f32.mrf.mxu0
    %v869 = vadd.f32 0.0, %v868
    %v870 = vpop.f32.mrf.mxu0
    %871 = vmatprep.mubr.f32.mxu0 0.0
    %872 = vmatmul.mubr.f32.gmra.mxu0 %v800
    %v873 = vpop.f32.mrf.mxu0
    %v874 = vadd.f32 0.0, %v873
    %v875 = vpop.f32.mrf.mxu0
    %876 = vdwg.mxu0
    %877 = vmatprep.subr.mxu0 0.0
    %878 = vmatpush1.msra.mxu0 0.0
    %879 = vmatprep.subr.mxu0 0.0
    %880 = vmatpush1.msra.mxu0 0.0
    %881 = vmatprep.subr.mxu0 0.0
    %882 = vmatpush1.msra.mxu0 0.0
    %883 = vmatprep.subr.mxu0 0.0
    %884 = vmatpush1.msra.mxu0 0.0
    %885 = vmatprep.subr.mxu0 0.0
    %886 = vmatpush1.msra.mxu0 0.0
    %887 = vmatprep.subr.mxu0 0.0
    %888 = vmatpush1.msra.mxu0 0.0
    %889 = vmatprep.subr.mxu0 0.0
    %890 = vmatpush1.msra.mxu0 0.0
    %891 = vmatprep.subr.mxu0 0.0
    %892 = vmatpush1.msra.mxu0 0.0
    %893 = vmatprep.subr.mxu0 0.0
    %894 = vmatpush1.msra.mxu0 0.0
    %895 = vmatprep.subr.mxu0 0.0
    %896 = vmatpush1.msra.mxu0 0.0
    %897 = vmatprep.subr.mxu0 0.0
    %898 = vmatpush1.msra.mxu0 0.0
    %899 = vmatprep.subr.mxu0 0.0
    %900 = vmatpush1.msra.mxu0 0.0
    %901 = vmatprep.subr.mxu0 0.0
    %902 = vmatpush1.msra.mxu0 0.0
    %903 = vmatprep.subr.mxu0 0.0
    %904 = vmatpush1.msra.mxu0 0.0
    %905 = vmatprep.subr.mxu0 0.0
    %906 = vmatpush1.msra.mxu0 0.0
    %907 = vmatprep.subr.mxu0 0.0
    %908 = vmatpush1.msra.mxu0 %v281
    %909 = vmatprep.subr.mxu0 0.0
    %910 = vmatpush2.msra.mxu0 0.0
    %911 = vmatprep.subr.mxu0 0.0
    %912 = vmatpush2.msra.mxu0 0.0
    %913 = vmatprep.subr.mxu0 0.0
    %914 = vmatpush2.msra.mxu0 0.0
    %915 = vmatprep.subr.mxu0 0.0
    %916 = vmatpush2.msra.mxu0 0.0
    %917 = vmatprep.subr.mxu0 0.0
    %918 = vmatpush2.msra.mxu0 0.0
    %919 = vmatprep.subr.mxu0 0.0
    %920 = vmatpush2.msra.mxu0 0.0
    %921 = vmatprep.subr.mxu0 0.0
    %922 = vmatpush2.msra.mxu0 0.0
    %923 = vmatprep.subr.mxu0 0.0
    %924 = vmatpush2.msra.mxu0 0.0
    %925 = vmatprep.subr.mxu0 0.0
    %926 = vmatpush2.msra.mxu0 0.0
    %927 = vmatprep.subr.mxu0 0.0
    %928 = vmatpush2.msra.mxu0 0.0
    %929 = vmatprep.subr.mxu0 0.0
    %930 = vmatpush2.msra.mxu0 0.0
    %931 = vmatprep.subr.mxu0 0.0
    %932 = vmatpush2.msra.mxu0 0.0
    %933 = vmatprep.subr.mxu0 0.0
    %934 = vmatpush2.msra.mxu0 0.0
    %935 = vmatprep.subr.mxu0 0.0
    %936 = vmatpush2.msra.mxu0 0.0
    %937 = vmatprep.subr.mxu0 0.0
    %938 = vmatpush2.msra.mxu0 0.0
    %939 = vmatprep.subr.mxu0 0.0
    %940 = vmatpush2.msra.mxu0 0.0
    %941 = vmatprep.mubr.f32.mxu0 0.0
    %942 = vmatmul.mubr.f32.gmra.mxu0 %v797
    %v943 = vpop.f32.mrf.mxu0
    %v944 = vadd.f32 0.0, %v943
    %v945 = vpop.f32.mrf.mxu0
    %946 = vmatprep.mubr.f32.mxu0 0.0
    %947 = vmatmul.mubr.f32.gmra.mxu0 %v800
    %v948 = vpop.f32.mrf.mxu0
    %v949 = vadd.f32 0.0, %v948
    %v950 = vpop.f32.mrf.mxu0
    %951 = vdwg.mxu0
    %954 = vrot.lane.b32.xlu0 %v763, 114
    %v955 = vpop.permute.xlu0 %954
    %956 = vrot.lane.b32.xlu0 %v764, 114
    %v957 = vpop.permute.xlu0 %956
    %v958 = vsel %vm364, %v955, 0
    %v960 = vsel %vm364, %v957, 0
    %v963 = vsel %vm369, %v757, 0
    %965 = vmatprep.subr.mxu0 0.0
    %966 = vmatpush1.msra.mxu0 0.0
    %967 = vmatprep.subr.mxu0 0.0
    %968 = vmatpush1.msra.mxu0 0.0
    %969 = vmatprep.subr.mxu0 0.0
    %970 = vmatpush1.msra.mxu0 0.0
    %971 = vmatprep.subr.mxu0 0.0
    %972 = vmatpush1.msra.mxu0 0.0
    %973 = vmatprep.subr.mxu0 0.0
    %974 = vmatpush1.msra.mxu0 0.0
    %975 = vmatprep.subr.mxu0 0.0
    %976 = vmatpush1.msra.mxu0 0.0
    %977 = vmatprep.subr.mxu0 0.0
    %978 = vmatpush1.msra.mxu0 0.0
    %979 = vmatprep.subr.mxu0 0.0
    %980 = vmatpush1.msra.mxu0 0.0
    %981 = vmatprep.subr.mxu0 0.0
    %982 = vmatpush1.msra.mxu0 0.0
    %983 = vmatprep.subr.mxu0 0.0
    %984 = vmatpush1.msra.mxu0 0.0
    %985 = vmatprep.subr.mxu0 0.0
    %986 = vmatpush1.msra.mxu0 0.0
    %987 = vmatprep.subr.mxu0 0.0
    %988 = vmatpush1.msra.mxu0 0.0
    %989 = vmatprep.subr.mxu0 0.0
    %990 = vmatpush1.msra.mxu0 0.0
    %991 = vmatprep.subr.mxu0 0.0
    %992 = vmatpush1.msra.mxu0 0.0
    %993 = vmatprep.subr.mxu0 0.0
    %994 = vmatpush1.msra.mxu0 %v963
    %995 = vmatprep.subr.mxu0 0.0
    %996 = vmatpush1.msra.mxu0 %v756
    %997 = vmatprep.subr.mxu0 0.0
    %998 = vmatpush2.msra.mxu0 0.0
    %999 = vmatprep.subr.mxu0 0.0
    %1000 = vmatpush2.msra.mxu0 0.0
    %1001 = vmatprep.subr.mxu0 0.0
    %1002 = vmatpush2.msra.mxu0 0.0
    %1003 = vmatprep.subr.mxu0 0.0
    %1004 = vmatpush2.msra.mxu0 0.0
    %1005 = vmatprep.subr.mxu0 0.0
    %1006 = vmatpush2.msra.mxu0 0.0
    %1007 = vmatprep.subr.mxu0 0.0
    %1008 = vmatpush2.msra.mxu0 0.0
    %1009 = vmatprep.subr.mxu0 0.0
    %1010 = vmatpush2.msra.mxu0 0.0
    %1011 = vmatprep.subr.mxu0 0.0
    %1012 = vmatpush2.msra.mxu0 0.0
    %1013 = vmatprep.subr.mxu0 0.0
    %1014 = vmatpush2.msra.mxu0 0.0
    %1015 = vmatprep.subr.mxu0 0.0
    %1016 = vmatpush2.msra.mxu0 0.0
    %1017 = vmatprep.subr.mxu0 0.0
    %1018 = vmatpush2.msra.mxu0 0.0
    %1019 = vmatprep.subr.mxu0 0.0
    %1020 = vmatpush2.msra.mxu0 0.0
    %1021 = vmatprep.subr.mxu0 0.0
    %1022 = vmatpush2.msra.mxu0 0.0
    %1023 = vmatprep.subr.mxu0 0.0
    %1024 = vmatpush2.msra.mxu0 0.0
    %1025 = vmatprep.subr.mxu0 0.0
    %1026 = vmatpush2.msra.mxu0 0.0
    %1027 = vmatprep.subr.mxu0 0.0
    %1028 = vmatpush2.msra.mxu0 0.0
    %1029 = vmatprep.mubr.f32.mxu0 0.0
    %1030 = vmatmul.mubr.f32.gmra.mxu0 %v958
    %v1031 = vpop.f32.mrf.mxu0
    %v1032 = vadd.f32 0.0, %v1031
    %v1033 = vpop.f32.mrf.mxu0
    %1034 = vmatprep.mubr.f32.mxu0 0.0
    %1035 = vmatmul.mubr.f32.gmra.mxu0 %v960
    %v1036 = vpop.f32.mrf.mxu0
    %v1037 = vadd.f32 0.0, %v1036
    %v1038 = vpop.f32.mrf.mxu0
    %1039 = vdwg.mxu0
    %v1041 = vlaneseq
    %v1042 = vshrl.u32 %v1041, 7
    %v1043 = vsub.s32 0, %v1042
    %v1044 = vrot.slane %v760, %v1043
    %v1046 = vadd.f32 %v1044, %v1032
    %v1047 = vadd.f32 %v1044, %v1037
    %1048 = vrot.lane.b32.xlu0 %v763, 119
    %v1049 = vpop.permute.xlu0 %1048
    %1050 = vrot.lane.b32.xlu0 %v764, 119
    %v1051 = vpop.permute.xlu0 %1050
    %v1054 = vmul.f32 %v763, %v1049
    %v1055 = vmul.f32 %v764, %v1051
    %1058 = vrot.lane.b32.xlu0 %v1054, 123
    %v1059 = vpop.permute.xlu0 %1058
    %1060 = vrot.lane.b32.xlu0 %v1055, 123
    %v1061 = vpop.permute.xlu0 %1060
    %v1062 = vsel %vm364, %v1059, 0
    %v1064 = vsel %vm364, %v1061, 0
    %v1067 = vsel %vm369, %v759, 0
    %1069 = vmatprep.subr.mxu0 0.0
    %1070 = vmatpush1.msra.mxu0 0.0
    %1071 = vmatprep.subr.mxu0 0.0
    %1072 = vmatpush1.msra.mxu0 0.0
    %1073 = vmatprep.subr.mxu0 0.0
    %1074 = vmatpush1.msra.mxu0 0.0
    %1075 = vmatprep.subr.mxu0 0.0
    %1076 = vmatpush1.msra.mxu0 0.0
    %1077 = vmatprep.subr.mxu0 0.0
    %1078 = vmatpush1.msra.mxu0 0.0
    %1079 = vmatprep.subr.mxu0 0.0
    %1080 = vmatpush1.msra.mxu0 0.0
    %1081 = vmatprep.subr.mxu0 0.0
    %1082 = vmatpush1.msra.mxu0 0.0
    %1083 = vmatprep.subr.mxu0 0.0
    %1084 = vmatpush1.msra.mxu0 0.0
    %1085 = vmatprep.subr.mxu0 0.0
    %1086 = vmatpush1.msra.mxu0 0.0
    %1087 = vmatprep.subr.mxu0 0.0
    %1088 = vmatpush1.msra.mxu0 0.0
    %1089 = vmatprep.subr.mxu0 0.0
    %1090 = vmatpush1.msra.mxu0 0.0
    %1091 = vmatprep.subr.mxu0 0.0
    %1092 = vmatpush1.msra.mxu0 0.0
    %1093 = vmatprep.subr.mxu0 0.0
    %1094 = vmatpush1.msra.mxu0 0.0
    %1095 = vmatprep.subr.mxu0 0.0
    %1096 = vmatpush1.msra.mxu0 0.0
    %1097 = vmatprep.subr.mxu0 0.0
    %1098 = vmatpush1.msra.mxu0 %v1067
    %1099 = vmatprep.subr.mxu0 0.0
    %1100 = vmatpush1.msra.mxu0 %v758
    %1101 = vmatprep.subr.mxu0 0.0
    %1102 = vmatpush2.msra.mxu0 0.0
    %1103 = vmatprep.subr.mxu0 0.0
    %1104 = vmatpush2.msra.mxu0 0.0
    %1105 = vmatprep.subr.mxu0 0.0
    %1106 = vmatpush2.msra.mxu0 0.0
    %1107 = vmatprep.subr.mxu0 0.0
    %1108 = vmatpush2.msra.mxu0 0.0
    %1109 = vmatprep.subr.mxu0 0.0
    %1110 = vmatpush2.msra.mxu0 0.0
    %1111 = vmatprep.subr.mxu0 0.0
    %1112 = vmatpush2.msra.mxu0 0.0
    %1113 = vmatprep.subr.mxu0 0.0
    %1114 = vmatpush2.msra.mxu0 0.0
    %1115 = vmatprep.subr.mxu0 0.0
    %1116 = vmatpush2.msra.mxu0 0.0
    %1117 = vmatprep.subr.mxu0 0.0
    %1118 = vmatpush2.msra.mxu0 0.0
    %1119 = vmatprep.subr.mxu0 0.0
    %1120 = vmatpush2.msra.mxu0 0.0
    %1121 = vmatprep.subr.mxu0 0.0
    %1122 = vmatpush2.msra.mxu0 0.0
    %1123 = vmatprep.subr.mxu0 0.0
    %1124 = vmatpush2.msra.mxu0 0.0
    %1125 = vmatprep.subr.mxu0 0.0
    %1126 = vmatpush2.msra.mxu0 0.0
    %1127 = vmatprep.subr.mxu0 0.0
    %1128 = vmatpush2.msra.mxu0 0.0
    %1129 = vmatprep.subr.mxu0 0.0
    %1130 = vmatpush2.msra.mxu0 0.0
    %1131 = vmatprep.subr.mxu0 0.0
    %1132 = vmatpush2.msra.mxu0 0.0
    %1133 = vmatprep.mubr.f32.mxu0 0.0
    %1134 = vmatmul.mubr.f32.gmra.mxu0 %v1062
    %v1135 = vpop.f32.mrf.mxu0
    %v1136 = vadd.f32 0.0, %v1135
    %v1137 = vpop.f32.mrf.mxu0
    %1138 = vmatprep.mubr.f32.mxu0 0.0
    %1139 = vmatmul.mubr.f32.gmra.mxu0 %v1064
    %v1140 = vpop.f32.mrf.mxu0
    %v1141 = vadd.f32 0.0, %v1140
    %v1142 = vpop.f32.mrf.mxu0
    %1143 = vdwg.mxu0
    %v1144 = vadd.f32 %v1046, %v1136
    %v1145 = vadd.f32 %v1047, %v1141
    %v1147 = vsel %vm148, %v1144, 0
    %v1150 = vsel %vm148, %v1145, 0
    %v1153 = vsel %vm148, %v869, 0
    %v1156 = vsel %vm148, %v874, 0
    %1158 = vmatprep.subr.mxu0 0.0
    %1159 = vmatpush1.xpose.msra.mxu0 0.0
    %1160 = vmatprep.subr.mxu0 0.0
    %1161 = vmatpush1.xpose.msra.mxu0 0.0
    %1162 = vmatprep.subr.mxu0 0.0
    %1163 = vmatpush1.xpose.msra.mxu0 0.0
    %1164 = vmatprep.subr.mxu0 0.0
    %1165 = vmatpush1.xpose.msra.mxu0 0.0
    %1166 = vmatprep.subr.mxu0 0.0
    %1167 = vmatpush1.xpose.msra.mxu0 0.0
    %1168 = vmatprep.subr.mxu0 0.0
    %1169 = vmatpush1.xpose.msra.mxu0 0.0
    %1170 = vmatprep.subr.mxu0 0.0
    %1171 = vmatpush1.xpose.msra.mxu0 0.0
    %1172 = vmatprep.subr.mxu0 0.0
    %1173 = vmatpush1.xpose.msra.mxu0 0.0
    %1174 = vmatprep.subr.mxu0 0.0
    %1175 = vmatpush1.xpose.msra.mxu0 0.0
    %1176 = vmatprep.subr.mxu0 0.0
    %1177 = vmatpush1.xpose.msra.mxu0 0.0
    %1178 = vmatprep.subr.mxu0 0.0
    %1179 = vmatpush1.xpose.msra.mxu0 0.0
    %1180 = vmatprep.subr.mxu0 0.0
    %1181 = vmatpush1.xpose.msra.mxu0 0.0
    %1182 = vmatprep.subr.mxu0 0.0
    %1183 = vmatpush1.xpose.msra.mxu0 0.0
    %1184 = vmatprep.subr.mxu0 0.0
    %1185 = vmatpush1.xpose.msra.mxu0 0.0
    %1186 = vmatprep.subr.mxu0 0.0
    %1187 = vmatpush1.xpose.msra.mxu0 %v1156
    %1188 = vmatprep.subr.mxu0 0.0
    %1189 = vmatpush1.xpose.msra.mxu0 %v1153
    %1190 = vmatprep.subr.mxu0 0.0
    %1191 = vmatpush2.xpose.msra.mxu0 0.0
    %1192 = vmatprep.subr.mxu0 0.0
    %1193 = vmatpush2.xpose.msra.mxu0 0.0
    %1194 = vmatprep.subr.mxu0 0.0
    %1195 = vmatpush2.xpose.msra.mxu0 0.0
    %1196 = vmatprep.subr.mxu0 0.0
    %1197 = vmatpush2.xpose.msra.mxu0 0.0
    %1198 = vmatprep.subr.mxu0 0.0
    %1199 = vmatpush2.xpose.msra.mxu0 0.0
    %1200 = vmatprep.subr.mxu0 0.0
    %1201 = vmatpush2.xpose.msra.mxu0 0.0
    %1202 = vmatprep.subr.mxu0 0.0
    %1203 = vmatpush2.xpose.msra.mxu0 0.0
    %1204 = vmatprep.subr.mxu0 0.0
    %1205 = vmatpush2.xpose.msra.mxu0 0.0
    %1206 = vmatprep.subr.mxu0 0.0
    %1207 = vmatpush2.xpose.msra.mxu0 0.0
    %1208 = vmatprep.subr.mxu0 0.0
    %1209 = vmatpush2.xpose.msra.mxu0 0.0
    %1210 = vmatprep.subr.mxu0 0.0
    %1211 = vmatpush2.xpose.msra.mxu0 0.0
    %1212 = vmatprep.subr.mxu0 0.0
    %1213 = vmatpush2.xpose.msra.mxu0 0.0
    %1214 = vmatprep.subr.mxu0 0.0
    %1215 = vmatpush2.xpose.msra.mxu0 0.0
    %1216 = vmatprep.subr.mxu0 0.0
    %1217 = vmatpush2.xpose.msra.mxu0 0.0
    %1218 = vmatprep.subr.mxu0 0.0
    %1219 = vmatpush2.xpose.msra.mxu0 0.0
    %1220 = vmatprep.subr.mxu0 0.0
    %1221 = vmatpush2.xpose.msra.mxu0 0.0
    %1222 = vmatprep.mubr.f32.mxu0 0.0
    %1223 = vmatmul.mubr.f32.gmra.mxu0 %v1147
    %v1224 = vpop.f32.mrf.mxu0
    %v1225 = vadd.f32 0.0, %v1224
    %v1226 = vpop.f32.mrf.mxu0
    %1227 = vmatprep.mubr.f32.mxu0 0.0
    %1228 = vmatmul.mubr.f32.gmra.mxu0 %v1150
    %v1229 = vpop.f32.mrf.mxu0
    %v1230 = vadd.f32 0.0, %v1229
    %v1231 = vpop.f32.mrf.mxu0
    %1232 = vdwg.mxu0
    %v1233 = vmul.f32 %v1225, 0.4472136
    %v1234 = vmul.f32 %v1230, 0.4472136
    %vm1235 = vcmask 80896
    %v1236 = vsel %vm1235, %v1233, -inf
    %1237 = vmax.xlane.f32.xlu0 %v1236
    %v1238 = vpop.xlane.xlu0 %1237
    %vm1239 = vcmask 74752
    %v1240 = vsel %vm1239, %v1234, -inf
    %1241 = vmax.xlane.f32.xlu0 %v1240
    %v1242 = vpop.xlane.xlu0 %1241
    %v1243 = vsub.f32 %v1233, %v1238
    %v1244 = vsub.f32 %v1234, %v1242
    %v1245 = vmul.f32 %v1243, 1.442695
    %v1246 = vpow.pop %v1245
    %v1247 = vmul.f32 %v1244, 1.442695
    %v1248 = vpow.pop %v1247
    %v1249 = vsel %vm1235, %v1246, 0.0
    %1250 = vadd.xlane.f32.xlu0 %v1249
    %v1251 = vpop.xlane.xlu0 %1250
    %v1252 = vsel %vm1239, %v1248, 0.0
    %1253 = vadd.xlane.f32.xlu0 %v1252
    %v1254 = vpop.xlane.xlu0 %1253
    %v1255 = vadd.f32 %v1251, 1.0
    %v1256 = vadd.f32 %v1254, 1.0
    %v1257 = vrcp.pop %v1255
    %v1258 = vrcp.pop %v1256
    %v1259 = vmul.f32 %v1246, %v1257
    %v1260 = vmul.f32 %v1248, %v1258
    %v1262 = vsel %vm1235, %v1259, 0
    %v1265 = vsel %vm1235, %v1260, 0
    %vm1267 = vcmask 1041408
    %v1269 = vsel %vm1267, %v949, 0
    %1271 = vmatprep.subr.mxu0 0.0
    %1272 = vmatpush1.msra.mxu0 0.0
    %1273 = vmatprep.subr.mxu0 0.0
    %1274 = vmatpush1.msra.mxu0 0.0
    %1275 = vmatprep.subr.mxu0 0.0
    %1276 = vmatpush1.msra.mxu0 0.0
    %1277 = vmatprep.subr.mxu0 0.0
    %1278 = vmatpush1.msra.mxu0 0.0
    %1279 = vmatprep.subr.mxu0 0.0
    %1280 = vmatpush1.msra.mxu0 0.0
    %1281 = vmatprep.subr.mxu0 0.0
    %1282 = vmatpush1.msra.mxu0 0.0
    %1283 = vmatprep.subr.mxu0 0.0
    %1284 = vmatpush1.msra.mxu0 0.0
    %1285 = vmatprep.subr.mxu0 0.0
    %1286 = vmatpush1.msra.mxu0 0.0
    %1287 = vmatprep.subr.mxu0 0.0
    %1288 = vmatpush1.msra.mxu0 0.0
    %1289 = vmatprep.subr.mxu0 0.0
    %1290 = vmatpush1.msra.mxu0 0.0
    %1291 = vmatprep.subr.mxu0 0.0
    %1292 = vmatpush1.msra.mxu0 0.0
    %1293 = vmatprep.subr.mxu0 0.0
    %1294 = vmatpush1.msra.mxu0 0.0
    %1295 = vmatprep.subr.mxu0 0.0
    %1296 = vmatpush1.msra.mxu0 0.0
    %1297 = vmatprep.subr.mxu0 0.0
    %1298 = vmatpush1.msra.mxu0 0.0
    %1299 = vmatprep.subr.mxu0 0.0
    %1300 = vmatpush1.msra.mxu0 %v1269
    %1301 = vmatprep.subr.mxu0 0.0
    %1302 = vmatpush1.msra.mxu0 %v944
    %1303 = vmatprep.subr.mxu0 0.0
    %1304 = vmatpush2.msra.mxu0 0.0
    %1305 = vmatprep.subr.mxu0 0.0
    %1306 = vmatpush2.msra.mxu0 0.0
    %1307 = vmatprep.subr.mxu0 0.0
    %1308 = vmatpush2.msra.mxu0 0.0
    %1309 = vmatprep.subr.mxu0 0.0
    %1310 = vmatpush2.msra.mxu0 0.0
    %1311 = vmatprep.subr.mxu0 0.0
    %1312 = vmatpush2.msra.mxu0 0.0
    %1313 = vmatprep.subr.mxu0 0.0
    %1314 = vmatpush2.msra.mxu0 0.0
    %1315 = vmatprep.subr.mxu0 0.0
    %1316 = vmatpush2.msra.mxu0 0.0
    %1317 = vmatprep.subr.mxu0 0.0
    %1318 = vmatpush2.msra.mxu0 0.0
    %1319 = vmatprep.subr.mxu0 0.0
    %1320 = vmatpush2.msra.mxu0 0.0
    %1321 = vmatprep.subr.mxu0 0.0
    %1322 = vmatpush2.msra.mxu0 0.0
    %1323 = vmatprep.subr.mxu0 0.0
    %1324 = vmatpush2.msra.mxu0 0.0
    %1325 = vmatprep.subr.mxu0 0.0
    %1326 = vmatpush2.msra.mxu0 0.0
    %1327 = vmatprep.subr.mxu0 0.0
    %1328 = vmatpush2.msra.mxu0 0.0
    %1329 = vmatprep.subr.mxu0 0.0
    %1330 = vmatpush2.msra.mxu0 0.0
    %1331 = vmatprep.subr.mxu0 0.0
    %1332 = vmatpush2.msra.mxu0 0.0
    %1333 = vmatprep.subr.mxu0 0.0
    %1334 = vmatpush2.msra.mxu0 0.0
    %1335 = vmatprep.mubr.f32.mxu0 0.0
    %1336 = vmatmul.mubr.f32.gmra.mxu0 %v1262
    %v1337 = vpop.f32.mrf.mxu0
    %v1338 = vadd.f32 %v794, %v1337
    %v1339 = vpop.f32.mrf.mxu0
    %1340 = vmatprep.mubr.f32.mxu0 0.0
    %1341 = vmatmul.mubr.f32.gmra.mxu0 %v1265
    %v1342 = vpop.f32.mrf.mxu0
    %v1343 = vadd.f32 %v795, %v1342
    %v1344 = vpop.f32.mrf.mxu0
    %1345 = vdwg.mxu0
    %v1346 = vld [vmem:[%s5] sm:$0xff]
    %v1347 = vld [vmem:[%s5 + $0x8] sm:$0xff]
    %v1348 = vld [vmem:[%s5 + $0x10] sm:$0xff]
    %v1349 = vld [vmem:[%s5 + $0x18] sm:$0xff]
    %v1350 = vld [vmem:[%s5 + $0x20] sm:$0xff]
    %v1351 = vld [vmem:[%s5 + $0x28] sm:$0xff]
    %v1352 = vld [vmem:[%s5 + $0x30] sm:$0xff]
    %v1353 = vld [vmem:[%s5 + $0x38] sm:$0xff]
    %v1354 = vld [vmem:[%s5 + $0x40] sm:$0xff]
    %v1355 = vld [vmem:[%s7] sm:$0xff]
    %v1356 = vld [vmem:[%s7 + $0x8] sm:$0xff]
    %v1357 = vld [vmem:[%s7 + $0x10] sm:$0xff]
    %v1358 = vld [vmem:[%s7 + $0x18] sm:$0xff]
    %v1359 = vld [vmem:[%s7 + $0x20] sm:$0xff]
    %v1360 = vld [vmem:[%s7 + $0x28] sm:$0xff]
    %v1361 = vld [vmem:[%s7 + $0x30] sm:$0xff]
    %v1362 = vld [vmem:[%s7 + $0x38] sm:$0xff]
    %v1363 = vld [vmem:[%s7 + $0x40] sm:$0xff]
    %v1365 = vsel %vm1235, %v1355, 0
    %v1368 = vsel %vm1235, %v1356, 0
    %v1371 = vsel %vm1235, %v1357, 0
    %v1374 = vsel %vm1235, %v1358, 0
    %v1377 = vsel %vm1235, %v1359, 0
    %v1380 = vsel %vm1235, %v1360, 0
    %v1383 = vsel %vm1235, %v1361, 0
    %v1386 = vsel %vm1235, %v1362, 0
    %v1389 = vsel %vm1235, %v1363, 0
    %v1392 = vsel %vm1267, %v1343, 0
    %1394 = vmatprep.subr.mxu0 0.0
    %1395 = vmatpush1.msra.mxu0 0.0
    %1396 = vmatprep.subr.mxu0 0.0
    %1397 = vmatpush1.msra.mxu0 0.0
    %1398 = vmatprep.subr.mxu0 0.0
    %1399 = vmatpush1.msra.mxu0 0.0
    %1400 = vmatprep.subr.mxu0 0.0
    %1401 = vmatpush1.msra.mxu0 0.0
    %1402 = vmatprep.subr.mxu0 0.0
    %1403 = vmatpush1.msra.mxu0 0.0
    %1404 = vmatprep.subr.mxu0 0.0
    %1405 = vmatpush1.msra.mxu0 0.0
    %1406 = vmatprep.subr.mxu0 0.0
    %1407 = vmatpush1.msra.mxu0 0.0
    %1408 = vmatprep.subr.mxu0 0.0
    %1409 = vmatpush1.msra.mxu0 0.0
    %1410 = vmatprep.subr.mxu0 0.0
    %1411 = vmatpush1.msra.mxu0 0.0
    %1412 = vmatprep.subr.mxu0 0.0
    %1413 = vmatpush1.msra.mxu0 0.0
    %1414 = vmatprep.subr.mxu0 0.0
    %1415 = vmatpush1.msra.mxu0 0.0
    %1416 = vmatprep.subr.mxu0 0.0
    %1417 = vmatpush1.msra.mxu0 0.0
    %1418 = vmatprep.subr.mxu0 0.0
    %1419 = vmatpush1.msra.mxu0 0.0
    %1420 = vmatprep.subr.mxu0 0.0
    %1421 = vmatpush1.msra.mxu0 0.0
    %1422 = vmatprep.subr.mxu0 0.0
    %1423 = vmatpush1.msra.mxu0 %v1392
    %1424 = vmatprep.subr.mxu0 0.0
    %1425 = vmatpush1.msra.mxu0 %v1338
    %1426 = vmatprep.subr.mxu0 0.0
    %1427 = vmatpush2.msra.mxu0 0.0
    %1428 = vmatprep.subr.mxu0 0.0
    %1429 = vmatpush2.msra.mxu0 0.0
    %1430 = vmatprep.subr.mxu0 0.0
    %1431 = vmatpush2.msra.mxu0 0.0
    %1432 = vmatprep.subr.mxu0 0.0
    %1433 = vmatpush2.msra.mxu0 0.0
    %1434 = vmatprep.subr.mxu0 0.0
    %1435 = vmatpush2.msra.mxu0 0.0
    %1436 = vmatprep.subr.mxu0 0.0
    %1437 = vmatpush2.msra.mxu0 0.0
    %1438 = vmatprep.subr.mxu0 0.0
    %1439 = vmatpush2.msra.mxu0 0.0
    %1440 = vmatprep.subr.mxu0 0.0
    %1441 = vmatpush2.msra.mxu0 0.0
    %1442 = vmatprep.subr.mxu0 0.0
    %1443 = vmatpush2.msra.mxu0 0.0
    %1444 = vmatprep.subr.mxu0 0.0
    %1445 = vmatpush2.msra.mxu0 0.0
    %1446 = vmatprep.subr.mxu0 0.0
    %1447 = vmatpush2.msra.mxu0 0.0
    %1448 = vmatprep.subr.mxu0 0.0
    %1449 = vmatpush2.msra.mxu0 0.0
    %1450 = vmatprep.subr.mxu0 0.0
    %1451 = vmatpush2.msra.mxu0 0.0
    %1452 = vmatprep.subr.mxu0 0.0
    %1453 = vmatpush2.msra.mxu0 0.0
    %1454 = vmatprep.subr.mxu0 0.0
    %1455 = vmatpush2.msra.mxu0 0.0
    %1456 = vmatprep.subr.mxu0 0.0
    %1457 = vmatpush2.msra.mxu0 0.0
    %1458 = vmatprep.mubr.f32.mxu0 0.0
    %1459 = vmatmul.mubr.f32.gmra.mxu0 %v1365
    %v1460 = vpop.f32.mrf.mxu0
    %v1461 = vadd.f32 0.0, %v1460
    %v1462 = vpop.f32.mrf.mxu0
    %1463 = vmatprep.mubr.f32.mxu0 0.0
    %1464 = vmatmul.mubr.f32.gmra.mxu0 %v1368
    %v1465 = vpop.f32.mrf.mxu0
    %v1466 = vadd.f32 0.0, %v1465
    %v1467 = vpop.f32.mrf.mxu0
    %1468 = vmatprep.mubr.f32.mxu0 0.0
    %1469 = vmatmul.mubr.f32.gmra.mxu0 %v1371
    %v1470 = vpop.f32.mrf.mxu0
    %v1471 = vadd.f32 0.0, %v1470
    %v1472 = vpop.f32.mrf.mxu0
    %1473 = vmatprep.mubr.f32.mxu0 0.0
    %1474 = vmatmul.mubr.f32.gmra.mxu0 %v1374
    %v1475 = vpop.f32.mrf.mxu0
    %v1476 = vadd.f32 0.0, %v1475
    %v1477 = vpop.f32.mrf.mxu0
    %1478 = vmatprep.mubr.f32.mxu0 0.0
    %1479 = vmatmul.mubr.f32.gmra.mxu0 %v1377
    %v1480 = vpop.f32.mrf.mxu0
    %v1481 = vadd.f32 0.0, %v1480
    %v1482 = vpop.f32.mrf.mxu0
    %1483 = vmatprep.mubr.f32.mxu0 0.0
    %1484 = vmatmul.mubr.f32.gmra.mxu0 %v1380
    %v1485 = vpop.f32.mrf.mxu0
    %v1486 = vadd.f32 0.0, %v1485
    %v1487 = vpop.f32.mrf.mxu0
    %1488 = vmatprep.mubr.f32.mxu0 0.0
    %1489 = vmatmul.mubr.f32.gmra.mxu0 %v1383
    %v1490 = vpop.f32.mrf.mxu0
    %v1491 = vadd.f32 0.0, %v1490
    %v1492 = vpop.f32.mrf.mxu0
    %1493 = vmatprep.mubr.f32.mxu0 0.0
    %1494 = vmatmul.mubr.f32.gmra.mxu0 %v1386
    %v1495 = vpop.f32.mrf.mxu0
    %v1496 = vadd.f32 0.0, %v1495
    %v1497 = vpop.f32.mrf.mxu0
    %1498 = vmatprep.mubr.f32.mxu0 0.0
    %1499 = vmatmul.mubr.f32.gmra.mxu0 %v1389
    %v1500 = vpop.f32.mrf.mxu0
    %v1501 = vadd.f32 0.0, %v1500
    %v1502 = vpop.f32.mrf.mxu0
    %1503 = vdwg.mxu0
    %v1505 = vsel %vm643, %v1346, 0
    %v1508 = vsel %vm643, %v1347, 0
    %v1511 = vsel %vm643, %v1348, 0
    %v1514 = vsel %vm643, %v1349, 0
    %v1517 = vsel %vm643, %v1350, 0
    %v1520 = vsel %vm643, %v1351, 0
    %v1523 = vsel %vm643, %v1352, 0
    %v1526 = vsel %vm643, %v1353, 0
    %v1529 = vsel %vm643, %v1354, 0
    %v1532 = vsel %vm675, %v751, 0
    %1534 = vmatprep.subr.mxu0 0.0
    %1535 = vmatpush1.msra.mxu0 0.0
    %1536 = vmatprep.subr.mxu0 0.0
    %1537 = vmatpush1.msra.mxu0 0.0
    %1538 = vmatprep.subr.mxu0 0.0
    %1539 = vmatpush1.msra.mxu0 0.0
    %1540 = vmatprep.subr.mxu0 0.0
    %1541 = vmatpush1.msra.mxu0 0.0
    %1542 = vmatprep.subr.mxu0 0.0
    %1543 = vmatpush1.msra.mxu0 0.0
    %1544 = vmatprep.subr.mxu0 0.0
    %1545 = vmatpush1.msra.mxu0 0.0
    %1546 = vmatprep.subr.mxu0 0.0
    %1547 = vmatpush1.msra.mxu0 0.0
    %1548 = vmatprep.subr.mxu0 0.0
    %1549 = vmatpush1.msra.mxu0 0.0
    %1550 = vmatprep.subr.mxu0 0.0
    %1551 = vmatpush1.msra.mxu0 0.0
    %1552 = vmatprep.subr.mxu0 0.0
    %1553 = vmatpush1.msra.mxu0 0.0
    %1554 = vmatprep.subr.mxu0 0.0
    %1555 = vmatpush1.msra.mxu0 0.0
    %1556 = vmatprep.subr.mxu0 0.0
    %1557 = vmatpush1.msra.mxu0 0.0
    %1558 = vmatprep.subr.mxu0 0.0
    %1559 = vmatpush1.msra.mxu0 0.0
    %1560 = vmatprep.subr.mxu0 0.0
    %1561 = vmatpush1.msra.mxu0 0.0
    %1562 = vmatprep.subr.mxu0 0.0
    %1563 = vmatpush1.msra.mxu0 %v1532
    %1564 = vmatprep.subr.mxu0 0.0
    %1565 = vmatpush1.msra.mxu0 %v746
    %1566 = vmatprep.subr.mxu0 0.0
    %1567 = vmatpush2.msra.mxu0 0.0
    %1568 = vmatprep.subr.mxu0 0.0
    %1569 = vmatpush2.msra.mxu0 0.0
    %1570 = vmatprep.subr.mxu0 0.0
    %1571 = vmatpush2.msra.mxu0 0.0
    %1572 = vmatprep.subr.mxu0 0.0
    %1573 = vmatpush2.msra.mxu0 0.0
    %1574 = vmatprep.subr.mxu0 0.0
    %1575 = vmatpush2.msra.mxu0 0.0
    %1576 = vmatprep.subr.mxu0 0.0
    %1577 = vmatpush2.msra.mxu0 0.0
    %1578 = vmatprep.subr.mxu0 0.0
    %1579 = vmatpush2.msra.mxu0 0.0
    %1580 = vmatprep.subr.mxu0 0.0
    %1581 = vmatpush2.msra.mxu0 0.0
    %1582 = vmatprep.subr.mxu0 0.0
    %1583 = vmatpush2.msra.mxu0 0.0
    %1584 = vmatprep.subr.mxu0 0.0
    %1585 = vmatpush2.msra.mxu0 0.0
    %1586 = vmatprep.subr.mxu0 0.0
    %1587 = vmatpush2.msra.mxu0 0.0
    %1588 = vmatprep.subr.mxu0 0.0
    %1589 = vmatpush2.msra.mxu0 0.0
    %1590 = vmatprep.subr.mxu0 0.0
    %1591 = vmatpush2.msra.mxu0 0.0
    %1592 = vmatprep.subr.mxu0 0.0
    %1593 = vmatpush2.msra.mxu0 0.0
    %1594 = vmatprep.subr.mxu0 0.0
    %1595 = vmatpush2.msra.mxu0 0.0
    %1596 = vmatprep.subr.mxu0 0.0
    %1597 = vmatpush2.msra.mxu0 0.0
    %1598 = vmatprep.mubr.f32.mxu0 0.0
    %1599 = vmatmul.mubr.f32.gmra.mxu0 %v1505
    %v1600 = vpop.f32.mrf.mxu0
    %v1601 = vadd.f32 %v1461, %v1600
    %v1602 = vpop.f32.mrf.mxu0
    %1603 = vmatprep.mubr.f32.mxu0 0.0
    %1604 = vmatmul.mubr.f32.gmra.mxu0 %v1508
    %v1605 = vpop.f32.mrf.mxu0
    %v1606 = vadd.f32 %v1466, %v1605
    %v1607 = vpop.f32.mrf.mxu0
    %1608 = vmatprep.mubr.f32.mxu0 0.0
    %1609 = vmatmul.mubr.f32.gmra.mxu0 %v1511
    %v1610 = vpop.f32.mrf.mxu0
    %v1611 = vadd.f32 %v1471, %v1610
    %v1612 = vpop.f32.mrf.mxu0
    %1613 = vmatprep.mubr.f32.mxu0 0.0
    %1614 = vmatmul.mubr.f32.gmra.mxu0 %v1514
    %v1615 = vpop.f32.mrf.mxu0
    %v1616 = vadd.f32 %v1476, %v1615
    %v1617 = vpop.f32.mrf.mxu0
    %1618 = vmatprep.mubr.f32.mxu0 0.0
    %1619 = vmatmul.mubr.f32.gmra.mxu0 %v1517
    %v1620 = vpop.f32.mrf.mxu0
    %v1621 = vadd.f32 %v1481, %v1620
    %v1622 = vpop.f32.mrf.mxu0
    %1623 = vmatprep.mubr.f32.mxu0 0.0
    %1624 = vmatmul.mubr.f32.gmra.mxu0 %v1520
    %v1625 = vpop.f32.mrf.mxu0
    %v1626 = vadd.f32 %v1486, %v1625
    %v1627 = vpop.f32.mrf.mxu0
    %1628 = vmatprep.mubr.f32.mxu0 0.0
    %1629 = vmatmul.mubr.f32.gmra.mxu0 %v1523
    %v1630 = vpop.f32.mrf.mxu0
    %v1631 = vadd.f32 %v1491, %v1630
    %v1632 = vpop.f32.mrf.mxu0
    %1633 = vmatprep.mubr.f32.mxu0 0.0
    %1634 = vmatmul.mubr.f32.gmra.mxu0 %v1526
    %v1635 = vpop.f32.mrf.mxu0
    %v1636 = vadd.f32 %v1496, %v1635
    %v1637 = vpop.f32.mrf.mxu0
    %1638 = vmatprep.mubr.f32.mxu0 0.0
    %1639 = vmatmul.mubr.f32.gmra.mxu0 %v1529
    %v1640 = vpop.f32.mrf.mxu0
    %v1641 = vadd.f32 %v1501, %v1640
    %v1642 = vpop.f32.mrf.mxu0
    %1643 = vdwg.mxu0
    %v1644 = vld [vmem:[%s33] sm:$0x1f]
    %v1645 = vld [vmem:[%s37] sm:$0x1]
    %v1647 = vlaneseq
    %v1648 = vshrl.u32 %v1647, 7
    %v1649 = vsub.s32 0, %v1648
    %v1650 = vrot.slane %v1645, %v1649
    %v1653 = vsel %vm148, %v1601, 0
    %v1656 = vsel %vm148, %v1606, 0
    %v1659 = vsel %vm148, %v1611, 0
    %v1662 = vsel %vm148, %v1616, 0
    %v1665 = vsel %vm148, %v1621, 0
    %v1668 = vsel %vm148, %v1626, 0
    %v1671 = vsel %vm148, %v1631, 0
    %v1674 = vsel %vm148, %v1636, 0
    %v1677 = vsel %vm148, %v1641, 0
    %v1680 = vsel %vm200, %v1644, 0
    %1682 = vmatprep.subr.mxu0 0.0
    %1683 = vmatpush1.msra.mxu0 0.0
    %1684 = vmatprep.subr.mxu0 0.0
    %1685 = vmatpush1.msra.mxu0 0.0
    %1686 = vmatprep.subr.mxu0 0.0
    %1687 = vmatpush1.msra.mxu0 0.0
    %1688 = vmatprep.subr.mxu0 0.0
    %1689 = vmatpush1.msra.mxu0 0.0
    %1690 = vmatprep.subr.mxu0 0.0
    %1691 = vmatpush1.msra.mxu0 0.0
    %1692 = vmatprep.subr.mxu0 0.0
    %1693 = vmatpush1.msra.mxu0 0.0
    %1694 = vmatprep.subr.mxu0 0.0
    %1695 = vmatpush1.msra.mxu0 0.0
    %1696 = vmatprep.subr.mxu0 0.0
    %1697 = vmatpush1.msra.mxu0 0.0
    %1698 = vmatprep.subr.mxu0 0.0
    %1699 = vmatpush1.msra.mxu0 0.0
    %1700 = vmatprep.subr.mxu0 0.0
    %1701 = vmatpush1.msra.mxu0 0.0
    %1702 = vmatprep.subr.mxu0 0.0
    %1703 = vmatpush1.msra.mxu0 0.0
    %1704 = vmatprep.subr.mxu0 0.0
    %1705 = vmatpush1.msra.mxu0 0.0
    %1706 = vmatprep.subr.mxu0 0.0
    %1707 = vmatpush1.msra.mxu0 0.0
    %1708 = vmatprep.subr.mxu0 0.0
    %1709 = vmatpush1.msra.mxu0 0.0
    %1710 = vmatprep.subr.mxu0 0.0
    %1711 = vmatpush1.msra.mxu0 0.0
    %1712 = vmatprep.subr.mxu0 0.0
    %1713 = vmatpush1.msra.mxu0 %v1680
    %1714 = vmatprep.subr.mxu0 0.0
    %1715 = vmatpush2.msra.mxu0 0.0
    %1716 = vmatprep.subr.mxu0 0.0
    %1717 = vmatpush2.msra.mxu0 0.0
    %1718 = vmatprep.subr.mxu0 0.0
    %1719 = vmatpush2.msra.mxu0 0.0
    %1720 = vmatprep.subr.mxu0 0.0
    %1721 = vmatpush2.msra.mxu0 0.0
    %1722 = vmatprep.subr.mxu0 0.0
    %1723 = vmatpush2.msra.mxu0 0.0
    %1724 = vmatprep.subr.mxu0 0.0
    %1725 = vmatpush2.msra.mxu0 0.0
    %1726 = vmatprep.subr.mxu0 0.0
    %1727 = vmatpush2.msra.mxu0 0.0
    %1728 = vmatprep.subr.mxu0 0.0
    %1729 = vmatpush2.msra.mxu0 0.0
    %1730 = vmatprep.subr.mxu0 0.0
    %1731 = vmatpush2.msra.mxu0 0.0
    %1732 = vmatprep.subr.mxu0 0.0
    %1733 = vmatpush2.msra.mxu0 0.0
    %1734 = vmatprep.subr.mxu0 0.0
    %1735 = vmatpush2.msra.mxu0 0.0
    %1736 = vmatprep.subr.mxu0 0.0
    %1737 = vmatpush2.msra.mxu0 0.0
    %1738 = vmatprep.subr.mxu0 0.0
    %1739 = vmatpush2.msra.mxu0 0.0
    %1740 = vmatprep.subr.mxu0 0.0
    %1741 = vmatpush2.msra.mxu0 0.0
    %1742 = vmatprep.subr.mxu0 0.0
    %1743 = vmatpush2.msra.mxu0 0.0
    %1744 = vmatprep.subr.mxu0 0.0
    %1745 = vmatpush2.msra.mxu0 0.0
    %1746 = vmatprep.mubr.f32.mxu0 0.0
    %1747 = vmatmul.mubr.f32.gmra.mxu0 %v1653
    %v1748 = vpop.f32.mrf.mxu0
    %v1749 = vadd.f32 %v1650, %v1748
    %v1750 = vpop.f32.mrf.mxu0
    %1751 = vmatprep.mubr.f32.mxu0 0.0
    %1752 = vmatmul.mubr.f32.gmra.mxu0 %v1656
    %v1753 = vpop.f32.mrf.mxu0
    %v1754 = vadd.f32 %v1650, %v1753
    %v1755 = vpop.f32.mrf.mxu0
    %1756 = vmatprep.mubr.f32.mxu0 0.0
    %1757 = vmatmul.mubr.f32.gmra.mxu0 %v1659
    %v1758 = vpop.f32.mrf.mxu0
    %v1759 = vadd.f32 %v1650, %v1758
    %v1760 = vpop.f32.mrf.mxu0
    %1761 = vmatprep.mubr.f32.mxu0 0.0
    %1762 = vmatmul.mubr.f32.gmra.mxu0 %v1662
    %v1763 = vpop.f32.mrf.mxu0
    %v1764 = vadd.f32 %v1650, %v1763
    %v1765 = vpop.f32.mrf.mxu0
    %1766 = vmatprep.mubr.f32.mxu0 0.0
    %1767 = vmatmul.mubr.f32.gmra.mxu0 %v1665
    %v1768 = vpop.f32.mrf.mxu0
    %v1769 = vadd.f32 %v1650, %v1768
    %v1770 = vpop.f32.mrf.mxu0
    %1771 = vmatprep.mubr.f32.mxu0 0.0
    %1772 = vmatmul.mubr.f32.gmra.mxu0 %v1668
    %v1773 = vpop.f32.mrf.mxu0
    %v1774 = vadd.f32 %v1650, %v1773
    %v1775 = vpop.f32.mrf.mxu0
    %1776 = vmatprep.mubr.f32.mxu0 0.0
    %1777 = vmatmul.mubr.f32.gmra.mxu0 %v1671
    %v1778 = vpop.f32.mrf.mxu0
    %v1779 = vadd.f32 %v1650, %v1778
    %v1780 = vpop.f32.mrf.mxu0
    %1781 = vmatprep.mubr.f32.mxu0 0.0
    %1782 = vmatmul.mubr.f32.gmra.mxu0 %v1674
    %v1783 = vpop.f32.mrf.mxu0
    %v1784 = vadd.f32 %v1650, %v1783
    %v1785 = vpop.f32.mrf.mxu0
    %1786 = vmatprep.mubr.f32.mxu0 0.0
    %1787 = vmatmul.mubr.f32.gmra.mxu0 %v1677
    %v1788 = vpop.f32.mrf.mxu0
    %v1789 = vadd.f32 %v1650, %v1788
    %v1790 = vpop.f32.mrf.mxu0
    %1791 = vdwg.mxu0
    %v1792 = vld [vmem:[%s35] sm:$0x1f]
    %v1794 = vsel %vm148, 0.0, 0
    %v1797 = vsel %vm200, %v1792, 0
    %1799 = vmatprep.subr.mxu0 0.0
    %1800 = vmatpush1.msra.mxu0 0.0
    %1801 = vmatprep.subr.mxu0 0.0
    %1802 = vmatpush1.msra.mxu0 0.0
    %1803 = vmatprep.subr.mxu0 0.0
    %1804 = vmatpush1.msra.mxu0 0.0
    %1805 = vmatprep.subr.mxu0 0.0
    %1806 = vmatpush1.msra.mxu0 0.0
    %1807 = vmatprep.subr.mxu0 0.0
    %1808 = vmatpush1.msra.mxu0 0.0
    %1809 = vmatprep.subr.mxu0 0.0
    %1810 = vmatpush1.msra.mxu0 0.0
    %1811 = vmatprep.subr.mxu0 0.0
    %1812 = vmatpush1.msra.mxu0 0.0
    %1813 = vmatprep.subr.mxu0 0.0
    %1814 = vmatpush1.msra.mxu0 0.0
    %1815 = vmatprep.subr.mxu0 0.0
    %1816 = vmatpush1.msra.mxu0 0.0
    %1817 = vmatprep.subr.mxu0 0.0
    %1818 = vmatpush1.msra.mxu0 0.0
    %1819 = vmatprep.subr.mxu0 0.0
    %1820 = vmatpush1.msra.mxu0 0.0
    %1821 = vmatprep.subr.mxu0 0.0
    %1822 = vmatpush1.msra.mxu0 0.0
    %1823 = vmatprep.subr.mxu0 0.0
    %1824 = vmatpush1.msra.mxu0 0.0
    %1825 = vmatprep.subr.mxu0 0.0
    %1826 = vmatpush1.msra.mxu0 0.0
    %1827 = vmatprep.subr.mxu0 0.0
    %1828 = vmatpush1.msra.mxu0 0.0
    %1829 = vmatprep.subr.mxu0 0.0
    %1830 = vmatpush1.msra.mxu0 %v1797
    %1831 = vmatprep.subr.mxu0 0.0
    %1832 = vmatpush2.msra.mxu0 0.0
    %1833 = vmatprep.subr.mxu0 0.0
    %1834 = vmatpush2.msra.mxu0 0.0
    %1835 = vmatprep.subr.mxu0 0.0
    %1836 = vmatpush2.msra.mxu0 0.0
    %1837 = vmatprep.subr.mxu0 0.0
    %1838 = vmatpush2.msra.mxu0 0.0
    %1839 = vmatprep.subr.mxu0 0.0
    %1840 = vmatpush2.msra.mxu0 0.0
    %1841 = vmatprep.subr.mxu0 0.0
    %1842 = vmatpush2.msra.mxu0 0.0
    %1843 = vmatprep.subr.mxu0 0.0
    %1844 = vmatpush2.msra.mxu0 0.0
    %1845 = vmatprep.subr.mxu0 0.0
    %1846 = vmatpush2.msra.mxu0 0.0
    %1847 = vmatprep.subr.mxu0 0.0
    %1848 = vmatpush2.msra.mxu0 0.0
    %1849 = vmatprep.subr.mxu0 0.0
    %1850 = vmatpush2.msra.mxu0 0.0
    %1851 = vmatprep.subr.mxu0 0.0
    %1852 = vmatpush2.msra.mxu0 0.0
    %1853 = vmatprep.subr.mxu0 0.0
    %1854 = vmatpush2.msra.mxu0 0.0
    %1855 = vmatprep.subr.mxu0 0.0
    %1856 = vmatpush2.msra.mxu0 0.0
    %1857 = vmatprep.subr.mxu0 0.0
    %1858 = vmatpush2.msra.mxu0 0.0
    %1859 = vmatprep.subr.mxu0 0.0
    %1860 = vmatpush2.msra.mxu0 0.0
    %1861 = vmatprep.subr.mxu0 0.0
    %1862 = vmatpush2.msra.mxu0 0.0
    %1863 = vmatprep.mubr.f32.mxu0 0.0
    %1864 = vmatmul.mubr.f32.gmra.mxu0 %v1794
    %v1865 = vpop.f32.mrf.mxu0
    %v1866 = vadd.f32 0.0, %v1865
    %v1867 = vpop.f32.mrf.mxu0
    %1868 = vmatprep.mubr.f32.mxu0 0.0
    %1869 = vmatmul.mubr.f32.gmra.mxu0 %v1794
    %v1870 = vpop.f32.mrf.mxu0
    %v1871 = vadd.f32 0.0, %v1870
    %v1872 = vpop.f32.mrf.mxu0
    %1873 = vmatprep.mubr.f32.mxu0 0.0
    %1874 = vmatmul.mubr.f32.gmra.mxu0 %v1794
    %v1875 = vpop.f32.mrf.mxu0
    %v1876 = vadd.f32 0.0, %v1875
    %v1877 = vpop.f32.mrf.mxu0
    %1878 = vdwg.mxu0
    %v1879 = vadd.f32 %v1749, %v1866
    %v1880 = vadd.f32 %v1754, %v1871
    %v1881 = vadd.f32 %v1759, %v1876
    %v1882 = vsub.f32 0.0, %v1879
    %v1883 = vsub.f32 0.0, %v1880
    %v1884 = vsub.f32 0.0, %v1881
    %v1885 = vmul.f32 %v1882, 1.442695
    %v1886 = vpow.pop %v1885
    %v1887 = vmul.f32 %v1883, 1.442695
    %v1888 = vpow.pop %v1887
    %v1889 = vmul.f32 %v1884, 1.442695
    %v1890 = vpow.pop %v1889
    %v1891 = vadd.f32 %v1886, 1.0
    %v1892 = vadd.f32 %v1888, 1.0
    %v1893 = vadd.f32 %v1890, 1.0
    %v1894 = vrcp.pop %v1891
    %v1895 = vmul.f32 1.0, %v1894
    %v1896 = vrcp.pop %v1892
    %v1897 = vmul.f32 1.0, %v1896
    %v1898 = vrcp.pop %v1893
    %v1899 = vmul.f32 1.0, %v1898
    %v1900 = vtanh.pop %v1879
    %v1901 = vtanh.pop %v1880
    %v1902 = vtanh.pop %v1881
    %v1903 = vmul.f32 %v1895, 0.0
    %v1904 = vmul.f32 %v1897, 0.0
    %v1905 = vmul.f32 %v1899, 0.0
    %1909 = vrot.lane.b32.xlu0 %v1900, 118
    %v1910 = vpop.permute.xlu0 %1909
    %1911 = vrot.lane.b32.xlu0 %v1901, 118
    %v1912 = vpop.permute.xlu0 %1911
    %1913 = vrot.lane.b32.xlu0 %v1902, 118
    %v1914 = vpop.permute.xlu0 %1913
    %v1918 = vmul.f32 %v1895, %v1910
    %v1919 = vmul.f32 %v1897, %v1912
    %v1920 = vmul.f32 %v1899, %v1914
    %1924 = vrot.lane.b32.xlu0 %v1918, 5
    %v1925 = vpop.permute.xlu0 %1924
    %1926 = vrot.lane.b32.xlu0 %v1919, 5
    %v1927 = vpop.permute.xlu0 %1926
    %1928 = vrot.lane.b32.xlu0 %v1920, 5
    %v1929 = vpop.permute.xlu0 %1928
    %v1933 = vadd.f32 %v1903, %v1925
    %v1934 = vadd.f32 %v1904, %v1927
    %v1935 = vadd.f32 %v1905, %v1929
    %v1936 = vtanh.pop %v1933
    %v1937 = vtanh.pop %v1934
    %v1938 = vtanh.pop %v1935
    %1942 = vrot.lane.b32.xlu0 %v1936, 10
    %v1943 = vpop.permute.xlu0 %1942
    %1944 = vrot.lane.b32.xlu0 %v1937, 10
    %v1945 = vpop.permute.xlu0 %1944
    %1946 = vrot.lane.b32.xlu0 %v1938, 10
    %v1947 = vpop.permute.xlu0 %1946
    %v1951 = vmul.f32 %v1895, %v1943
    %v1952 = vmul.f32 %v1897, %v1945
    %v1953 = vmul.f32 %v1899, %v1947
    %1957 = vrot.lane.b32.xlu0 %v1951, 113
    %v1958 = vpop.permute.xlu0 %1957
    %1959 = vrot.lane.b32.xlu0 %v1952, 113
    %v1960 = vpop.permute.xlu0 %1959
    %1961 = vrot.lane.b32.xlu0 %v1953, 113
    %v1962 = vpop.permute.xlu0 %1961
    %v1963 = vsel %vm148, %v1958, 0
    %v1965 = vsel %vm148, %v1960, 0
    %v1967 = vsel %vm148, %v1962, 0
    %1969 = vmatprep.subr.mxu0 0.0
    %1970 = vmatpush1.msra.mxu0 0.0
    %1971 = vmatprep.subr.mxu0 0.0
    %1972 = vmatpush1.msra.mxu0 0.0
    %1973 = vmatprep.subr.mxu0 0.0
    %1974 = vmatpush1.msra.mxu0 0.0
    %1975 = vmatprep.subr.mxu0 0.0
    %1976 = vmatpush1.msra.mxu0 0.0
    %1977 = vmatprep.subr.mxu0 0.0
    %1978 = vmatpush1.msra.mxu0 0.0
    %1979 = vmatprep.subr.mxu0 0.0
    %1980 = vmatpush1.msra.mxu0 0.0
    %1981 = vmatprep.subr.mxu0 0.0
    %1982 = vmatpush1.msra.mxu0 0.0
    %1983 = vmatprep.subr.mxu0 0.0
    %1984 = vmatpush1.msra.mxu0 0.0
    %1985 = vmatprep.subr.mxu0 0.0
    %1986 = vmatpush1.msra.mxu0 0.0
    %1987 = vmatprep.subr.mxu0 0.0
    %1988 = vmatpush1.msra.mxu0 0.0
    %1989 = vmatprep.subr.mxu0 0.0
    %1990 = vmatpush1.msra.mxu0 0.0
    %1991 = vmatprep.subr.mxu0 0.0
    %1992 = vmatpush1.msra.mxu0 0.0
    %1993 = vmatprep.subr.mxu0 0.0
    %1994 = vmatpush1.msra.mxu0 0.0
    %1995 = vmatprep.subr.mxu0 0.0
    %1996 = vmatpush1.msra.mxu0 0.0
    %1997 = vmatprep.subr.mxu0 0.0
    %1998 = vmatpush1.msra.mxu0 0.0
    %1999 = vmatprep.subr.mxu0 0.0
    %2000 = vmatpush1.msra.mxu0 %v1797
    %2001 = vmatprep.subr.mxu0 0.0
    %2002 = vmatpush2.msra.mxu0 0.0
    %2003 = vmatprep.subr.mxu0 0.0
    %2004 = vmatpush2.msra.mxu0 0.0
    %2005 = vmatprep.subr.mxu0 0.0
    %2006 = vmatpush2.msra.mxu0 0.0
    %2007 = vmatprep.subr.mxu0 0.0
    %2008 = vmatpush2.msra.mxu0 0.0
    %2009 = vmatprep.subr.mxu0 0.0
    %2010 = vmatpush2.msra.mxu0 0.0
    %2011 = vmatprep.subr.mxu0 0.0
    %2012 = vmatpush2.msra.mxu0 0.0
    %2013 = vmatprep.subr.mxu0 0.0
    %2014 = vmatpush2.msra.mxu0 0.0
    %2015 = vmatprep.subr.mxu0 0.0
    %2016 = vmatpush2.msra.mxu0 0.0
    %2017 = vmatprep.subr.mxu0 0.0
    %2018 = vmatpush2.msra.mxu0 0.0
    %2019 = vmatprep.subr.mxu0 0.0
    %2020 = vmatpush2.msra.mxu0 0.0
    %2021 = vmatprep.subr.mxu0 0.0
    %2022 = vmatpush2.msra.mxu0 0.0
    %2023 = vmatprep.subr.mxu0 0.0
    %2024 = vmatpush2.msra.mxu0 0.0
    %2025 = vmatprep.subr.mxu0 0.0
    %2026 = vmatpush2.msra.mxu0 0.0
    %2027 = vmatprep.subr.mxu0 0.0
    %2028 = vmatpush2.msra.mxu0 0.0
    %2029 = vmatprep.subr.mxu0 0.0
    %2030 = vmatpush2.msra.mxu0 0.0
    %2031 = vmatprep.subr.mxu0 0.0
    %2032 = vmatpush2.msra.mxu0 0.0
    %2033 = vmatprep.mubr.f32.mxu0 0.0
    %2034 = vmatmul.mubr.f32.gmra.mxu0 %v1963
    %v2035 = vpop.f32.mrf.mxu0
    %v2036 = vadd.f32 0.0, %v2035
    %v2037 = vpop.f32.mrf.mxu0
    %2038 = vmatprep.mubr.f32.mxu0 0.0
    %2039 = vmatmul.mubr.f32.gmra.mxu0 %v1965
    %v2040 = vpop.f32.mrf.mxu0
    %v2041 = vadd.f32 0.0, %v2040
    %v2042 = vpop.f32.mrf.mxu0
    %2043 = vmatprep.mubr.f32.mxu0 0.0
    %2044 = vmatmul.mubr.f32.gmra.mxu0 %v1967
    %v2045 = vpop.f32.mrf.mxu0
    %v2046 = vadd.f32 0.0, %v2045
    %v2047 = vpop.f32.mrf.mxu0
    %2048 = vdwg.mxu0
    %v2052 = vrot.slane %v2036, 6
    %v2053 = vrot.slane %v2041, 6
    %v2054 = vsel %vm1267, %v2052, %v2053
    %v2055 = vrot.slane %v2046, 6
    %v2056 = vsel %vm1267, %v2053, %v2055
    %v2060 = vadd.f32 %v1759, %v2052
    %v2061 = vadd.f32 %v1764, %v2054
    %v2062 = vadd.f32 %v1769, %v2056
    %v2063 = vsub.f32 0.0, %v2060
    %v2064 = vsub.f32 0.0, %v2061
    %v2065 = vsub.f32 0.0, %v2062
    %v2066 = vmul.f32 %v2063, 1.442695
    %v2067 = vpow.pop %v2066
    %v2068 = vmul.f32 %v2064, 1.442695
    %v2069 = vpow.pop %v2068
    %v2070 = vmul.f32 %v2065, 1.442695
    %v2071 = vpow.pop %v2070
    %v2072 = vadd.f32 %v2067, 1.0
    %v2073 = vadd.f32 %v2069, 1.0
    %v2074 = vadd.f32 %v2071, 1.0
    %v2075 = vrcp.pop %v2072
    %v2076 = vmul.f32 1.0, %v2075
    %v2077 = vrcp.pop %v2073
    %v2078 = vmul.f32 1.0, %v2077
    %v2079 = vrcp.pop %v2074
    %v2080 = vmul.f32 1.0, %v2079
    %v2081 = vtanh.pop %v2060
    %v2082 = vtanh.pop %v2061
    %v2083 = vtanh.pop %v2062
    %v2087 = vrot.slane %v1933, 6
    %v2088 = vrot.slane %v1934, 6
    %v2089 = vsel %vm1267, %v2087, %v2088
    %v2090 = vrot.slane %v1935, 6
    %v2091 = vsel %vm1267, %v2088, %v2090
    %v2095 = vmul.f32 %v2076, %v2087
    %v2096 = vmul.f32 %v2078, %v2089
    %v2097 = vmul.f32 %v2080, %v2091
    %2101 = vrot.lane.b32.xlu0 %v2081, 118
    %v2102 = vpop.permute.xlu0 %2101
    %2103 = vrot.lane.b32.xlu0 %v2082, 118
    %v2104 = vpop.permute.xlu0 %2103
    %2105 = vrot.lane.b32.xlu0 %v2083, 118
    %v2106 = vpop.permute.xlu0 %2105
    %v2110 = vmul.f32 %v2076, %v2102
    %v2111 = vmul.f32 %v2078, %v2104
    %v2112 = vmul.f32 %v2080, %v2106
    %2116 = vrot.lane.b32.xlu0 %v2110, 5
    %v2117 = vpop.permute.xlu0 %2116
    %2118 = vrot.lane.b32.xlu0 %v2111, 5
    %v2119 = vpop.permute.xlu0 %2118
    %2120 = vrot.lane.b32.xlu0 %v2112, 5
    %v2121 = vpop.permute.xlu0 %2120
    %v2125 = vadd.f32 %v2095, %v2117
    %v2126 = vadd.f32 %v2096, %v2119
    %v2127 = vadd.f32 %v2097, %v2121
    %v2128 = vtanh.pop %v2125
    %v2129 = vtanh.pop %v2126
    %v2130 = vtanh.pop %v2127
    %2134 = vrot.lane.b32.xlu0 %v2128, 10
    %v2135 = vpop.permute.xlu0 %2134
    %2136 = vrot.lane.b32.xlu0 %v2129, 10
    %v2137 = vpop.permute.xlu0 %2136
    %2138 = vrot.lane.b32.xlu0 %v2130, 10
    %v2139 = vpop.permute.xlu0 %2138
    %v2143 = vmul.f32 %v2076, %v2135
    %v2144 = vmul.f32 %v2078, %v2137
    %v2145 = vmul.f32 %v2080, %v2139
    %vm2149 = vcmask 1045504
    %v2150 = vrot.slane %v2143, 2
    %v2151 = vrot.slane %v2144, 2
    %v2152 = vsel %vm2149, %v2150, %v2151
    %v2153 = vrot.slane %v2145, 2
    %v2154 = vsel %vm2149, %v2151, %v2153
    %2155 = vrot.lane.b32.xlu0 %v2152, 113
    %v2156 = vpop.permute.xlu0 %2155
    %2157 = vrot.lane.b32.xlu0 %v2154, 113
    %v2158 = vpop.permute.xlu0 %2157
    %2159 = vrot.lane.b32.xlu0 %v2153, 113
    %v2160 = vpop.permute.xlu0 %2159
    %v2161 = vsel %vm148, %v2156, 0
    %v2163 = vsel %vm148, %v2158, 0
    %v2165 = vsel %vm148, %v2160, 0
    %2167 = vmatprep.subr.mxu0 0.0
    %2168 = vmatpush1.msra.mxu0 0.0
    %2169 = vmatprep.subr.mxu0 0.0
    %2170 = vmatpush1.msra.mxu0 0.0
    %2171 = vmatprep.subr.mxu0 0.0
    %2172 = vmatpush1.msra.mxu0 0.0
    %2173 = vmatprep.subr.mxu0 0.0
    %2174 = vmatpush1.msra.mxu0 0.0
    %2175 = vmatprep.subr.mxu0 0.0
    %2176 = vmatpush1.msra.mxu0 0.0
    %2177 = vmatprep.subr.mxu0 0.0
    %2178 = vmatpush1.msra.mxu0 0.0
    %2179 = vmatprep.subr.mxu0 0.0
    %2180 = vmatpush1.msra.mxu0 0.0
    %2181 = vmatprep.subr.mxu0 0.0
    %2182 = vmatpush1.msra.mxu0 0.0
    %2183 = vmatprep.subr.mxu0 0.0
    %2184 = vmatpush1.msra.mxu0 0.0
    %2185 = vmatprep.subr.mxu0 0.0
    %2186 = vmatpush1.msra.mxu0 0.0
    %2187 = vmatprep.subr.mxu0 0.0
    %2188 = vmatpush1.msra.mxu0 0.0
    %2189 = vmatprep.subr.mxu0 0.0
    %2190 = vmatpush1.msra.mxu0 0.0
    %2191 = vmatprep.subr.mxu0 0.0
    %2192 = vmatpush1.msra.mxu0 0.0
    %2193 = vmatprep.subr.mxu0 0.0
    %2194 = vmatpush1.msra.mxu0 0.0
    %2195 = vmatprep.subr.mxu0 0.0
    %2196 = vmatpush1.msra.mxu0 0.0
    %2197 = vmatprep.subr.mxu0 0.0
    %2198 = vmatpush1.msra.mxu0 %v1797
    %2199 = vmatprep.subr.mxu0 0.0
    %2200 = vmatpush2.msra.mxu0 0.0
    %2201 = vmatprep.subr.mxu0 0.0
    %2202 = vmatpush2.msra.mxu0 0.0
    %2203 = vmatprep.subr.mxu0 0.0
    %2204 = vmatpush2.msra.mxu0 0.0
    %2205 = vmatprep.subr.mxu0 0.0
    %2206 = vmatpush2.msra.mxu0 0.0
    %2207 = vmatprep.subr.mxu0 0.0
    %2208 = vmatpush2.msra.mxu0 0.0
    %2209 = vmatprep.subr.mxu0 0.0
    %2210 = vmatpush2.msra.mxu0 0.0
    %2211 = vmatprep.subr.mxu0 0.0
    %2212 = vmatpush2.msra.mxu0 0.0
    %2213 = vmatprep.subr.mxu0 0.0
    %2214 = vmatpush2.msra.mxu0 0.0
    %2215 = vmatprep.subr.mxu0 0.0
    %2216 = vmatpush2.msra.mxu0 0.0
    %2217 = vmatprep.subr.mxu0 0.0
    %2218 = vmatpush2.msra.mxu0 0.0
    %2219 = vmatprep.subr.mxu0 0.0
    %2220 = vmatpush2.msra.mxu0 0.0
    %2221 = vmatprep.subr.mxu0 0.0
    %2222 = vmatpush2.msra.mxu0 0.0
    %2223 = vmatprep.subr.mxu0 0.0
    %2224 = vmatpush2.msra.mxu0 0.0
    %2225 = vmatprep.subr.mxu0 0.0
    %2226 = vmatpush2.msra.mxu0 0.0
    %2227 = vmatprep.subr.mxu0 0.0
    %2228 = vmatpush2.msra.mxu0 0.0
    %2229 = vmatprep.subr.mxu0 0.0
    %2230 = vmatpush2.msra.mxu0 0.0
    %2231 = vmatprep.mubr.f32.mxu0 0.0
    %2232 = vmatmul.mubr.f32.gmra.mxu0 %v2161
    %v2233 = vpop.f32.mrf.mxu0
    %v2234 = vadd.f32 0.0, %v2233
    %v2235 = vpop.f32.mrf.mxu0
    %2236 = vmatprep.mubr.f32.mxu0 0.0
    %2237 = vmatmul.mubr.f32.gmra.mxu0 %v2163
    %v2238 = vpop.f32.mrf.mxu0
    %v2239 = vadd.f32 0.0, %v2238
    %v2240 = vpop.f32.mrf.mxu0
    %2241 = vmatprep.mubr.f32.mxu0 0.0
    %2242 = vmatmul.mubr.f32.gmra.mxu0 %v2165
    %v2243 = vpop.f32.mrf.mxu0
    %v2244 = vadd.f32 0.0, %v2243
    %v2245 = vpop.f32.mrf.mxu0
    %2246 = vdwg.mxu0
    %v2250 = vrot.slane %v2234, 4
    %v2251 = vrot.slane %v2239, 4
    %v2252 = vsel %vm675, %v2250, %v2251
    %v2253 = vrot.slane %v2244, 4
    %v2254 = vsel %vm675, %v2251, %v2253
    %v2258 = vadd.f32 %v1769, %v2250
    %v2259 = vadd.f32 %v1774, %v2252
    %v2260 = vadd.f32 %v1779, %v2254
    %v2261 = vsub.f32 0.0, %v2258
    %v2262 = vsub.f32 0.0, %v2259
    %v2263 = vsub.f32 0.0, %v2260
    %v2264 = vmul.f32 %v2261, 1.442695
    %v2265 = vpow.pop %v2264
    %v2266 = vmul.f32 %v2262, 1.442695
    %v2267 = vpow.pop %v2266
    %v2268 = vmul.f32 %v2263, 1.442695
    %v2269 = vpow.pop %v2268
    %v2270 = vadd.f32 %v2265, 1.0
    %v2271 = vadd.f32 %v2267, 1.0
    %v2272 = vadd.f32 %v2269, 1.0
    %v2273 = vrcp.pop %v2270
    %v2274 = vmul.f32 1.0, %v2273
    %v2275 = vrcp.pop %v2271
    %v2276 = vmul.f32 1.0, %v2275
    %v2277 = vrcp.pop %v2272
    %v2278 = vmul.f32 1.0, %v2277
    %v2279 = vtanh.pop %v2258
    %v2280 = vtanh.pop %v2259
    %v2281 = vtanh.pop %v2260
    %v2285 = vrot.slane %v2125, 6
    %v2286 = vrot.slane %v2126, 6
    %v2287 = vsel %vm1267, %v2285, %v2286
    %v2288 = vrot.slane %v2127, 6
    %v2289 = vsel %vm1267, %v2286, %v2288
    %v2293 = vmul.f32 %v2274, %v2285
    %v2294 = vmul.f32 %v2276, %v2287
    %v2295 = vmul.f32 %v2278, %v2289
    %2299 = vrot.lane.b32.xlu0 %v2279, 118
    %v2300 = vpop.permute.xlu0 %2299
    %2301 = vrot.lane.b32.xlu0 %v2280, 118
    %v2302 = vpop.permute.xlu0 %2301
    %2303 = vrot.lane.b32.xlu0 %v2281, 118
    %v2304 = vpop.permute.xlu0 %2303
    %v2308 = vmul.f32 %v2274, %v2300
    %v2309 = vmul.f32 %v2276, %v2302
    %v2310 = vmul.f32 %v2278, %v2304
    %2314 = vrot.lane.b32.xlu0 %v2308, 5
    %v2315 = vpop.permute.xlu0 %2314
    %2316 = vrot.lane.b32.xlu0 %v2309, 5
    %v2317 = vpop.permute.xlu0 %2316
    %2318 = vrot.lane.b32.xlu0 %v2310, 5
    %v2319 = vpop.permute.xlu0 %2318
    %v2323 = vadd.f32 %v2293, %v2315
    %v2324 = vadd.f32 %v2294, %v2317
    %v2325 = vadd.f32 %v2295, %v2319
    %v2326 = vtanh.pop %v2323
    %v2327 = vtanh.pop %v2324
    %v2328 = vtanh.pop %v2325
    %2332 = vrot.lane.b32.xlu0 %v2326, 10
    %v2333 = vpop.permute.xlu0 %2332
    %2334 = vrot.lane.b32.xlu0 %v2327, 10
    %v2335 = vpop.permute.xlu0 %2334
    %2336 = vrot.lane.b32.xlu0 %v2328, 10
    %v2337 = vpop.permute.xlu0 %2336
    %v2341 = vmul.f32 %v2274, %v2333
    %v2342 = vmul.f32 %v2276, %v2335
    %v2343 = vmul.f32 %v2278, %v2337
    %v2347 = vrot.slane %v2341, 4
    %v2348 = vrot.slane %v2342, 4
    %v2349 = vsel %vm675, %v2347, %v2348
    %v2350 = vrot.slane %v2343, 4
    %v2351 = vsel %vm675, %v2348, %v2350
    %2352 = vrot.lane.b32.xlu0 %v2349, 113
    %v2353 = vpop.permute.xlu0 %2352
    %2354 = vrot.lane.b32.xlu0 %v2351, 113
    %v2355 = vpop.permute.xlu0 %2354
    %2356 = vrot.lane.b32.xlu0 %v2350, 113
    %v2357 = vpop.permute.xlu0 %2356
    %v2358 = vsel %vm148, %v2353, 0
    %v2360 = vsel %vm148, %v2355, 0
    %v2362 = vsel %vm148, %v2357, 0
    %2364 = vmatprep.subr.mxu0 0.0
    %2365 = vmatpush1.msra.mxu0 0.0
    %2366 = vmatprep.subr.mxu0 0.0
    %2367 = vmatpush1.msra.mxu0 0.0
    %2368 = vmatprep.subr.mxu0 0.0
    %2369 = vmatpush1.msra.mxu0 0.0
    %2370 = vmatprep.subr.mxu0 0.0
    %2371 = vmatpush1.msra.mxu0 0.0
    %2372 = vmatprep.subr.mxu0 0.0
    %2373 = vmatpush1.msra.mxu0 0.0
    %2374 = vmatprep.subr.mxu0 0.0
    %2375 = vmatpush1.msra.mxu0 0.0
    %2376 = vmatprep.subr.mxu0 0.0
    %2377 = vmatpush1.msra.mxu0 0.0
    %2378 = vmatprep.subr.mxu0 0.0
    %2379 = vmatpush1.msra.mxu0 0.0
    %2380 = vmatprep.subr.mxu0 0.0
    %2381 = vmatpush1.msra.mxu0 0.0
    %2382 = vmatprep.subr.mxu0 0.0
    %2383 = vmatpush1.msra.mxu0 0.0
    %2384 = vmatprep.subr.mxu0 0.0
    %2385 = vmatpush1.msra.mxu0 0.0
    %2386 = vmatprep.subr.mxu0 0.0
    %2387 = vmatpush1.msra.mxu0 0.0
    %2388 = vmatprep.subr.mxu0 0.0
    %2389 = vmatpush1.msra.mxu0 0.0
    %2390 = vmatprep.subr.mxu0 0.0
    %2391 = vmatpush1.msra.mxu0 0.0
    %2392 = vmatprep.subr.mxu0 0.0
    %2393 = vmatpush1.msra.mxu0 0.0
    %2394 = vmatprep.subr.mxu0 0.0
    %2395 = vmatpush1.msra.mxu0 %v1797
    %2396 = vmatprep.subr.mxu0 0.0
    %2397 = vmatpush2.msra.mxu0 0.0
    %2398 = vmatprep.subr.mxu0 0.0
    %2399 = vmatpush2.msra.mxu0 0.0
    %2400 = vmatprep.subr.mxu0 0.0
    %2401 = vmatpush2.msra.mxu0 0.0
    %2402 = vmatprep.subr.mxu0 0.0
    %2403 = vmatpush2.msra.mxu0 0.0
    %2404 = vmatprep.subr.mxu0 0.0
    %2405 = vmatpush2.msra.mxu0 0.0
    %2406 = vmatprep.subr.mxu0 0.0
    %2407 = vmatpush2.msra.mxu0 0.0
    %2408 = vmatprep.subr.mxu0 0.0
    %2409 = vmatpush2.msra.mxu0 0.0
    %2410 = vmatprep.subr.mxu0 0.0
    %2411 = vmatpush2.msra.mxu0 0.0
    %2412 = vmatprep.subr.mxu0 0.0
    %2413 = vmatpush2.msra.mxu0 0.0
    %2414 = vmatprep.subr.mxu0 0.0
    %2415 = vmatpush2.msra.mxu0 0.0
    %2416 = vmatprep.subr.mxu0 0.0
    %2417 = vmatpush2.msra.mxu0 0.0
    %2418 = vmatprep.subr.mxu0 0.0
    %2419 = vmatpush2.msra.mxu0 0.0
    %2420 = vmatprep.subr.mxu0 0.0
    %2421 = vmatpush2.msra.mxu0 0.0
    %2422 = vmatprep.subr.mxu0 0.0
    %2423 = vmatpush2.msra.mxu0 0.0
    %2424 = vmatprep.subr.mxu0 0.0
    %2425 = vmatpush2.msra.mxu0 0.0
    %2426 = vmatprep.subr.mxu0 0.0
    %2427 = vmatpush2.msra.mxu0 0.0
    %2428 = vmatprep.mubr.f32.mxu0 0.0
    %2429 = vmatmul.mubr.f32.gmra.mxu0 %v2358
    %v2430 = vpop.f32.mrf.mxu0
    %v2431 = vadd.f32 0.0, %v2430
    %v2432 = vpop.f32.mrf.mxu0
    %2433 = vmatprep.mubr.f32.mxu0 0.0
    %2434 = vmatmul.mubr.f32.gmra.mxu0 %v2360
    %v2435 = vpop.f32.mrf.mxu0
    %v2436 = vadd.f32 0.0, %v2435
    %v2437 = vpop.f32.mrf.mxu0
    %2438 = vmatprep.mubr.f32.mxu0 0.0
    %2439 = vmatmul.mubr.f32.gmra.mxu0 %v2362
    %v2440 = vpop.f32.mrf.mxu0
    %v2441 = vadd.f32 0.0, %v2440
    %v2442 = vpop.f32.mrf.mxu0
    %2443 = vdwg.mxu0
    %v2447 = vrot.slane %v2431, 2
    %v2448 = vrot.slane %v2436, 2
    %v2449 = vsel %vm2149, %v2447, %v2448
    %v2450 = vrot.slane %v2441, 2
    %v2451 = vsel %vm2149, %v2448, %v2450
    %v2455 = vadd.f32 %v1779, %v2447
    %v2456 = vadd.f32 %v1784, %v2449
    %v2457 = vadd.f32 %v1789, %v2451
    %v2458 = vsub.f32 0.0, %v2455
    %v2459 = vsub.f32 0.0, %v2456
    %v2460 = vsub.f32 0.0, %v2457
    %v2461 = vmul.f32 %v2458, 1.442695
    %v2462 = vpow.pop %v2461
    %v2463 = vmul.f32 %v2459, 1.442695
    %v2464 = vpow.pop %v2463
    %v2465 = vmul.f32 %v2460, 1.442695
    %v2466 = vpow.pop %v2465
    %v2467 = vadd.f32 %v2462, 1.0
    %v2468 = vadd.f32 %v2464, 1.0
    %v2469 = vadd.f32 %v2466, 1.0
    %v2470 = vrcp.pop %v2467
    %v2471 = vmul.f32 1.0, %v2470
    %v2472 = vrcp.pop %v2468
    %v2473 = vmul.f32 1.0, %v2472
    %v2474 = vrcp.pop %v2469
    %v2475 = vmul.f32 1.0, %v2474
    %v2476 = vtanh.pop %v2455
    %v2477 = vtanh.pop %v2456
    %v2478 = vtanh.pop %v2457
    %v2482 = vrot.slane %v2323, 6
    %v2483 = vrot.slane %v2324, 6
    %v2484 = vsel %vm1267, %v2482, %v2483
    %v2485 = vrot.slane %v2325, 6
    %v2486 = vsel %vm1267, %v2483, %v2485
    %v2490 = vmul.f32 %v2471, %v2482
    %v2491 = vmul.f32 %v2473, %v2484
    %v2492 = vmul.f32 %v2475, %v2486
    %2496 = vrot.lane.b32.xlu0 %v2476, 118
    %v2497 = vpop.permute.xlu0 %2496
    %2498 = vrot.lane.b32.xlu0 %v2477, 118
    %v2499 = vpop.permute.xlu0 %2498
    %2500 = vrot.lane.b32.xlu0 %v2478, 118
    %v2501 = vpop.permute.xlu0 %2500
    %v2505 = vmul.f32 %v2471, %v2497
    %v2506 = vmul.f32 %v2473, %v2499
    %v2507 = vmul.f32 %v2475, %v2501
    %2511 = vrot.lane.b32.xlu0 %v2505, 5
    %v2512 = vpop.permute.xlu0 %2511
    %2513 = vrot.lane.b32.xlu0 %v2506, 5
    %v2514 = vpop.permute.xlu0 %2513
    %2515 = vrot.lane.b32.xlu0 %v2507, 5
    %v2516 = vpop.permute.xlu0 %2515
    %v2520 = vadd.f32 %v2490, %v2512
    %v2521 = vadd.f32 %v2491, %v2514
    %v2522 = vadd.f32 %v2492, %v2516
    %v2523 = vld [vmem:[%s39] sm:$0x1f]
    %v2524 = vld [vmem:[%s41] sm:$0x1]
    %v2526 = vlaneseq
    %v2527 = vshrl.u32 %v2526, 7
    %v2528 = vsub.s32 0, %v2527
    %v2529 = vrot.slane %v2524, %v2528
    %v2534 = vrot.slane %v2520, 6
    %v2535 = vrot.slane %v2521, 6
    %v2536 = vsel %vm1267, %v2534, %v2535
    %v2537 = vrot.slane %v2522, 6
    %v2538 = vsel %vm1267, %v2535, %v2537
    %2539 = vrot.lane.b32.xlu0 %v2536, 123
    %v2540 = vpop.permute.xlu0 %2539
    %2541 = vrot.lane.b32.xlu0 %v2538, 123
    %v2542 = vpop.permute.xlu0 %2541
    %2543 = vrot.lane.b32.xlu0 %v2537, 123
    %v2544 = vpop.permute.xlu0 %2543
    %v2545 = vsel %vm148, %v2540, 0
    %v2547 = vsel %vm148, %v2542, 0
    %v2549 = vsel %vm148, %v2544, 0
    %v2552 = vsel %vm200, %v2523, 0
    %2554 = vmatprep.subr.mxu0 0.0
    %2555 = vmatpush1.msra.mxu0 0.0
    %2556 = vmatprep.subr.mxu0 0.0
    %2557 = vmatpush1.msra.mxu0 0.0
    %2558 = vmatprep.subr.mxu0 0.0
    %2559 = vmatpush1.msra.mxu0 0.0
    %2560 = vmatprep.subr.mxu0 0.0
    %2561 = vmatpush1.msra.mxu0 0.0
    %2562 = vmatprep.subr.mxu0 0.0
    %2563 = vmatpush1.msra.mxu0 0.0
    %2564 = vmatprep.subr.mxu0 0.0
    %2565 = vmatpush1.msra.mxu0 0.0
    %2566 = vmatprep.subr.mxu0 0.0
    %2567 = vmatpush1.msra.mxu0 0.0
    %2568 = vmatprep.subr.mxu0 0.0
    %2569 = vmatpush1.msra.mxu0 0.0
    %2570 = vmatprep.subr.mxu0 0.0
    %2571 = vmatpush1.msra.mxu0 0.0
    %2572 = vmatprep.subr.mxu0 0.0
    %2573 = vmatpush1.msra.mxu0 0.0
    %2574 = vmatprep.subr.mxu0 0.0
    %2575 = vmatpush1.msra.mxu0 0.0
    %2576 = vmatprep.subr.mxu0 0.0
    %2577 = vmatpush1.msra.mxu0 0.0
    %2578 = vmatprep.subr.mxu0 0.0
    %2579 = vmatpush1.msra.mxu0 0.0
    %2580 = vmatprep.subr.mxu0 0.0
    %2581 = vmatpush1.msra.mxu0 0.0
    %2582 = vmatprep.subr.mxu0 0.0
    %2583 = vmatpush1.msra.mxu0 0.0
    %2584 = vmatprep.subr.mxu0 0.0
    %2585 = vmatpush1.msra.mxu0 %v2552
    %2586 = vmatprep.subr.mxu0 0.0
    %2587 = vmatpush2.msra.mxu0 0.0
    %2588 = vmatprep.subr.mxu0 0.0
    %2589 = vmatpush2.msra.mxu0 0.0
    %2590 = vmatprep.subr.mxu0 0.0
    %2591 = vmatpush2.msra.mxu0 0.0
    %2592 = vmatprep.subr.mxu0 0.0
    %2593 = vmatpush2.msra.mxu0 0.0
    %2594 = vmatprep.subr.mxu0 0.0
    %2595 = vmatpush2.msra.mxu0 0.0
    %2596 = vmatprep.subr.mxu0 0.0
    %2597 = vmatpush2.msra.mxu0 0.0
    %2598 = vmatprep.subr.mxu0 0.0
    %2599 = vmatpush2.msra.mxu0 0.0
    %2600 = vmatprep.subr.mxu0 0.0
    %2601 = vmatpush2.msra.mxu0 0.0
    %2602 = vmatprep.subr.mxu0 0.0
    %2603 = vmatpush2.msra.mxu0 0.0
    %2604 = vmatprep.subr.mxu0 0.0
    %2605 = vmatpush2.msra.mxu0 0.0
    %2606 = vmatprep.subr.mxu0 0.0
    %2607 = vmatpush2.msra.mxu0 0.0
    %2608 = vmatprep.subr.mxu0 0.0
    %2609 = vmatpush2.msra.mxu0 0.0
    %2610 = vmatprep.subr.mxu0 0.0
    %2611 = vmatpush2.msra.mxu0 0.0
    %2612 = vmatprep.subr.mxu0 0.0
    %2613 = vmatpush2.msra.mxu0 0.0
    %2614 = vmatprep.subr.mxu0 0.0
    %2615 = vmatpush2.msra.mxu0 0.0
    %2616 = vmatprep.subr.mxu0 0.0
    %2617 = vmatpush2.msra.mxu0 0.0
    %2618 = vmatprep.mubr.f32.mxu0 0.0
    %2619 = vmatmul.mubr.f32.gmra.mxu0 %v2545
    %v2620 = vpop.f32.mrf.mxu0
    %v2621 = vadd.f32 %v2529, %v2620
    %v2622 = vpop.f32.mrf.mxu0
    %2623 = vmatprep.mubr.f32.mxu0 0.0
    %2624 = vmatmul.mubr.f32.gmra.mxu0 %v2547
    %v2625 = vpop.f32.mrf.mxu0
    %v2626 = vadd.f32 %v2529, %v2625
    %v2627 = vpop.f32.mrf.mxu0
    %2628 = vmatprep.mubr.f32.mxu0 0.0
    %2629 = vmatmul.mubr.f32.gmra.mxu0 %v2549
    %v2630 = vpop.f32.mrf.mxu0
    %v2631 = vadd.f32 %v2529, %v2630
    %v2632 = vpop.f32.mrf.mxu0
    %2633 = vdwg.mxu0
    %v2637 = vcombine.high %v2621, %v2621
    %v2639 = vunpack.c.l.s4 1966171168
    %v2640 = vunpack.c.0.s8 %v2639
    %v2641 = vlaneseq
    %v2642 = vshrl.u32 %v2641, 7
    %v2643 = vsub.s32 %v2640, %v2642
    %v2644 = vrot.slane %v2621, %v2643
    %v2646 = vunpack.c.l.s4 1966171168
    %v2647 = vunpack.c.0.s8 %v2646
    %v2648 = vlaneseq
    %v2649 = vshrl.u32 %v2648, 7
    %v2650 = vsub.s32 %v2647, %v2649
    %v2651 = vrot.slane %v2637, %v2650
    %v2652 = vcombine.high %v2644, %v2644
    %v2653 = vcombine.high %v2651, %v2651
    %v2655 = vunpack.c.l.s4 1966171168
    %v2656 = vunpack.c.0.s8 %v2655
    %v2657 = vlaneseq
    %v2658 = vshrl.u32 %v2657, 7
    %v2659 = vsub.s32 %v2656, %v2658
    %v2660 = vrot.slane %v2644, %v2659
    %v2662 = vunpack.c.l.s4 1966171168
    %v2663 = vunpack.c.0.s8 %v2662
    %v2664 = vlaneseq
    %v2665 = vshrl.u32 %v2664, 7
    %v2666 = vsub.s32 %v2663, %v2665
    %v2667 = vrot.slane %v2651, %v2666
    %v2669 = vunpack.c.l.s4 1966171168
    %v2670 = vunpack.c.0.s8 %v2669
    %v2671 = vlaneseq
    %v2672 = vshrl.u32 %v2671, 7
    %v2673 = vsub.s32 %v2670, %v2672
    %v2674 = vrot.slane %v2652, %v2673
    %v2676 = vunpack.c.l.s4 1966171168
    %v2677 = vunpack.c.0.s8 %v2676
    %v2678 = vlaneseq
    %v2679 = vshrl.u32 %v2678, 7
    %v2680 = vsub.s32 %v2677, %v2679
    %v2681 = vrot.slane %v2653, %v2680
    %v2682 = vcombine.high %v2660, %v2660
    %v2683 = vcombine.high %v2667, %v2667
    %v2684 = vcombine.high %v2674, %v2674
    %v2685 = vcombine.high %v2681, %v2681
    %v2686 = vcombine.high %v2626, %v2626
    %v2688 = vunpack.c.l.s4 1966171168
    %v2689 = vunpack.c.0.s8 %v2688
    %v2690 = vlaneseq
    %v2691 = vshrl.u32 %v2690, 7
    %v2692 = vsub.s32 %v2689, %v2691
    %v2693 = vrot.slane %v2626, %v2692
    %v2695 = vunpack.c.l.s4 1966171168
    %v2696 = vunpack.c.0.s8 %v2695
    %v2697 = vlaneseq
    %v2698 = vshrl.u32 %v2697, 7
    %v2699 = vsub.s32 %v2696, %v2698
    %v2700 = vrot.slane %v2686, %v2699
    %v2701 = vcombine.high %v2693, %v2693
    %v2702 = vcombine.high %v2700, %v2700
    %v2704 = vunpack.c.l.s4 1966171168
    %v2705 = vunpack.c.0.s8 %v2704
    %v2706 = vlaneseq
    %v2707 = vshrl.u32 %v2706, 7
    %v2708 = vsub.s32 %v2705, %v2707
    %v2709 = vrot.slane %v2693, %v2708
    %v2711 = vunpack.c.l.s4 1966171168
    %v2712 = vunpack.c.0.s8 %v2711
    %v2713 = vlaneseq
    %v2714 = vshrl.u32 %v2713, 7
    %v2715 = vsub.s32 %v2712, %v2714
    %v2716 = vrot.slane %v2700, %v2715
    %v2718 = vunpack.c.l.s4 1966171168
    %v2719 = vunpack.c.0.s8 %v2718
    %v2720 = vlaneseq
    %v2721 = vshrl.u32 %v2720, 7
    %v2722 = vsub.s32 %v2719, %v2721
    %v2723 = vrot.slane %v2701, %v2722
    %v2725 = vunpack.c.l.s4 1966171168
    %v2726 = vunpack.c.0.s8 %v2725
    %v2727 = vlaneseq
    %v2728 = vshrl.u32 %v2727, 7
    %v2729 = vsub.s32 %v2726, %v2728
    %v2730 = vrot.slane %v2702, %v2729
    %v2731 = vcombine.high %v2709, %v2709
    %v2732 = vcombine.high %v2716, %v2716
    %v2733 = vcombine.high %v2723, %v2723
    %v2734 = vcombine.high %v2730, %v2730
    %v2736 = vunpack.c.l.s4 1966171168
    %v2737 = vunpack.c.0.s8 %v2736
    %v2738 = vlaneseq
    %v2739 = vshrl.u32 %v2738, 7
    %v2740 = vsub.s32 %v2737, %v2739
    %v2741 = vrot.slane %v2631, %v2740
    %v2742 = vcombine.high %v2741, %v2741
    %v2744 = vunpack.c.l.s4 1966171168
    %v2745 = vunpack.c.0.s8 %v2744
    %v2746 = vlaneseq
    %v2747 = vshrl.u32 %v2746, 7
    %v2748 = vsub.s32 %v2745, %v2747
    %v2749 = vrot.slane %v2741, %v2748
    %v2751 = vunpack.c.l.s4 1966171168
    %v2752 = vunpack.c.0.s8 %v2751
    %v2753 = vlaneseq
    %v2754 = vshrl.u32 %v2753, 7
    %v2755 = vsub.s32 %v2752, %v2754
    %v2756 = vrot.slane %v2742, %v2755
    %v2757 = vlaneseq
    %v2758 = vshrl.u32 %v2757, 7
    %v2759 = vsub.s32 0, %v2758
    %v2760 = vrot.slane %v2660, %v2759
    %v2761 = vlaneseq
    %v2762 = vshrl.u32 %v2761, 7
    %v2763 = vsub.s32 0, %v2762
    %v2764 = vrot.slane %v2674, %v2763
    %v2765 = vlaneseq
    %v2766 = vshrl.u32 %v2765, 7
    %v2767 = vsub.s32 0, %v2766
    %v2768 = vrot.slane %v2682, %v2767
    %v2769 = vlaneseq
    %v2770 = vshrl.u32 %v2769, 7
    %v2771 = vsub.s32 0, %v2770
    %v2772 = vrot.slane %v2684, %v2771
    %v2773 = vlaneseq
    %v2774 = vshrl.u32 %v2773, 7
    %v2775 = vsub.s32 0, %v2774
    %v2776 = vrot.slane %v2667, %v2775
    %v2777 = vlaneseq
    %v2778 = vshrl.u32 %v2777, 7
    %v2779 = vsub.s32 0, %v2778
    %v2780 = vrot.slane %v2681, %v2779
    %v2781 = vlaneseq
    %v2782 = vshrl.u32 %v2781, 7
    %v2783 = vsub.s32 0, %v2782
    %v2784 = vrot.slane %v2683, %v2783
    %v2785 = vlaneseq
    %v2786 = vshrl.u32 %v2785, 7
    %v2787 = vsub.s32 0, %v2786
    %v2788 = vrot.slane %v2685, %v2787
    %v2789 = vlaneseq
    %v2790 = vshrl.u32 %v2789, 7
    %v2791 = vsub.s32 0, %v2790
    %v2792 = vrot.slane %v2709, %v2791
    %v2793 = vlaneseq
    %v2794 = vshrl.u32 %v2793, 7
    %v2795 = vsub.s32 0, %v2794
    %v2796 = vrot.slane %v2723, %v2795
    %v2797 = vlaneseq
    %v2798 = vshrl.u32 %v2797, 7
    %v2799 = vsub.s32 0, %v2798
    %v2800 = vrot.slane %v2731, %v2799
    %v2801 = vlaneseq
    %v2802 = vshrl.u32 %v2801, 7
    %v2803 = vsub.s32 0, %v2802
    %v2804 = vrot.slane %v2733, %v2803
    %v2805 = vlaneseq
    %v2806 = vshrl.u32 %v2805, 7
    %v2807 = vsub.s32 0, %v2806
    %v2808 = vrot.slane %v2716, %v2807
    %v2809 = vlaneseq
    %v2810 = vshrl.u32 %v2809, 7
    %v2811 = vsub.s32 0, %v2810
    %v2812 = vrot.slane %v2730, %v2811
    %v2813 = vlaneseq
    %v2814 = vshrl.u32 %v2813, 7
    %v2815 = vsub.s32 0, %v2814
    %v2816 = vrot.slane %v2732, %v2815
    %v2817 = vlaneseq
    %v2818 = vshrl.u32 %v2817, 7
    %v2819 = vsub.s32 0, %v2818
    %v2820 = vrot.slane %v2734, %v2819
    %v2821 = vlaneseq
    %v2822 = vshrl.u32 %v2821, 7
    %v2823 = vsub.s32 0, %v2822
    %v2824 = vrot.slane %v2749, %v2823
    %v2825 = vlaneseq
    %v2826 = vshrl.u32 %v2825, 7
    %v2827 = vsub.s32 0, %v2826
    %v2828 = vrot.slane %v2756, %v2827
    %2847 = vrot.lane.b32.xlu0 %v2621, 123
    %v2848 = vpop.permute.xlu0 %2847
    %2849 = vrot.lane.b32.xlu0 %v2626, 123
    %v2850 = vpop.permute.xlu0 %2849
    %2851 = vrot.lane.b32.xlu0 %v2631, 123
    %v2852 = vpop.permute.xlu0 %2851
    %v2856 = vmul.f32 %v2760, %v2848
    %v2857 = vmul.f32 %v2760, %v2850
    %v2858 = vmul.f32 %v2760, %v2852
    %v2859 = vmul.f32 %v2764, %v2848
    %v2860 = vmul.f32 %v2764, %v2850
    %v2861 = vmul.f32 %v2764, %v2852
    %v2862 = vmul.f32 %v2768, %v2848
    %v2863 = vmul.f32 %v2768, %v2850
    %v2864 = vmul.f32 %v2768, %v2852
    %v2865 = vmul.f32 %v2772, %v2848
    %v2866 = vmul.f32 %v2772, %v2850
    %v2867 = vmul.f32 %v2772, %v2852
    %v2868 = vmul.f32 %v2776, %v2848
    %v2869 = vmul.f32 %v2776, %v2850
    %v2870 = vmul.f32 %v2776, %v2852
    %v2871 = vmul.f32 %v2780, %v2848
    %v2872 = vmul.f32 %v2780, %v2850
    %v2873 = vmul.f32 %v2780, %v2852
    %v2874 = vmul.f32 %v2784, %v2848
    %v2875 = vmul.f32 %v2784, %v2850
    %v2876 = vmul.f32 %v2784, %v2852
    %v2877 = vmul.f32 %v2788, %v2848
    %v2878 = vmul.f32 %v2788, %v2850
    %v2879 = vmul.f32 %v2788, %v2852
    %v2880 = vmul.f32 %v2792, %v2848
    %v2881 = vmul.f32 %v2792, %v2850
    %v2882 = vmul.f32 %v2792, %v2852
    %v2883 = vmul.f32 %v2796, %v2848
    %v2884 = vmul.f32 %v2796, %v2850
    %v2885 = vmul.f32 %v2796, %v2852
    %v2886 = vmul.f32 %v2800, %v2848
    %v2887 = vmul.f32 %v2800, %v2850
    %v2888 = vmul.f32 %v2800, %v2852
    %v2889 = vmul.f32 %v2804, %v2848
    %v2890 = vmul.f32 %v2804, %v2850
    %v2891 = vmul.f32 %v2804, %v2852
    %v2892 = vmul.f32 %v2808, %v2848
    %v2893 = vmul.f32 %v2808, %v2850
    %v2894 = vmul.f32 %v2808, %v2852
    %v2895 = vmul.f32 %v2812, %v2848
    %v2896 = vmul.f32 %v2812, %v2850
    %v2897 = vmul.f32 %v2812, %v2852
    %v2898 = vmul.f32 %v2816, %v2848
    %v2899 = vmul.f32 %v2816, %v2850
    %v2900 = vmul.f32 %v2816, %v2852
    %v2901 = vmul.f32 %v2820, %v2848
    %v2902 = vmul.f32 %v2820, %v2850
    %v2903 = vmul.f32 %v2820, %v2852
    %v2904 = vmul.f32 %v2824, %v2848
    %v2905 = vmul.f32 %v2824, %v2850
    %v2906 = vmul.f32 %v2824, %v2852
    %v2907 = vmul.f32 %v2828, %v2848
    %v2908 = vmul.f32 %v2828, %v2850
    %v2909 = vmul.f32 %v2828, %v2852
    %v2910 = vld [vmem:[%s9] sm:$0xff]
    %v2911 = vld [vmem:[%s9 + $0x8] sm:$0xff]
    %v2912 = vld [vmem:[%s9 + $0x10] sm:$0x3]
    %v2913 = vld [vmem:[%s9 + $0x18] sm:$0xff]
    %v2914 = vld [vmem:[%s9 + $0x20] sm:$0xff]
    %v2915 = vld [vmem:[%s9 + $0x28] sm:$0x3]
    %v2916 = vld [vmem:[%s9 + $0x30] sm:$0xff]
    %v2917 = vld [vmem:[%s9 + $0x38] sm:$0xff]
    %v2918 = vld [vmem:[%s9 + $0x40] sm:$0x3]
    %v2919 = vld [vmem:[%s9 + $0x48] sm:$0xff]
    %v2920 = vld [vmem:[%s9 + $0x50] sm:$0xff]
    %v2921 = vld [vmem:[%s9 + $0x58] sm:$0x3]
    %v2922 = vld [vmem:[%s9 + $0x60] sm:$0xff]
    %v2923 = vld [vmem:[%s9 + $0x68] sm:$0xff]
    %v2924 = vld [vmem:[%s9 + $0x70] sm:$0x3]
    %v2925 = vld [vmem:[%s9 + $0x78] sm:$0xff]
    %v2926 = vld [vmem:[%s9 + $0x80] sm:$0xff]
    %v2927 = vld [vmem:[%s9 + $0x88] sm:$0x3]
    %v2928 = vld [vmem:[%s9 + $0x90] sm:$0xff]
    %v2929 = vld [vmem:[%s9 + $0x98] sm:$0xff]
    %v2930 = vld [vmem:[%s9 + $0xa0] sm:$0x3]
    %v2931 = vld [vmem:[%s9 + $0xa8] sm:$0xff]
    %v2932 = vld [vmem:[%s9 + $0xb0] sm:$0xff]
    %v2933 = vld [vmem:[%s9 + $0xb8] sm:$0x3]
    %v2934 = vld [vmem:[%s9 + $0xc0] sm:$0xff]
    %v2935 = vld [vmem:[%s9 + $0xc8] sm:$0xff]
    %v2936 = vld [vmem:[%s9 + $0xd0] sm:$0x3]
    %v2937 = vld [vmem:[%s9 + $0xd8] sm:$0xff]
    %v2938 = vld [vmem:[%s9 + $0xe0] sm:$0xff]
    %v2939 = vld [vmem:[%s9 + $0xe8] sm:$0x3]
    %v2940 = vld [vmem:[%s9 + $0xf0] sm:$0xff]
    %v2941 = vld [vmem:[%s9 + $0xf8] sm:$0xff]
    %v2942 = vld [vmem:[%s9 + $0x100] sm:$0x3]
    %v2943 = vld [vmem:[%s9 + $0x108] sm:$0xff]
    %v2944 = vld [vmem:[%s9 + $0x110] sm:$0xff]
    %v2945 = vld [vmem:[%s9 + $0x118] sm:$0x3]
    %v2946 = vld [vmem:[%s9 + $0x120] sm:$0xff]
    %v2947 = vld [vmem:[%s9 + $0x128] sm:$0xff]
    %v2948 = vld [vmem:[%s9 + $0x130] sm:$0x3]
    %v2949 = vld [vmem:[%s9 + $0x138] sm:$0xff]
    %v2950 = vld [vmem:[%s9 + $0x140] sm:$0xff]
    %v2951 = vld [vmem:[%s9 + $0x148] sm:$0x3]
    %v2952 = vld [vmem:[%s9 + $0x150] sm:$0xff]
    %v2953 = vld [vmem:[%s9 + $0x158] sm:$0xff]
    %v2954 = vld [vmem:[%s9 + $0x160] sm:$0x3]
    %v2955 = vld [vmem:[%s9 + $0x168] sm:$0xff]
    %v2956 = vld [vmem:[%s9 + $0x170] sm:$0xff]
    %v2957 = vld [vmem:[%s9 + $0x178] sm:$0x3]
    %v2958 = vld [vmem:[%s9 + $0x180] sm:$0xff]
    %v2959 = vld [vmem:[%s9 + $0x188] sm:$0xff]
    %v2960 = vld [vmem:[%s9 + $0x190] sm:$0x3]
    %v2961 = vld [vmem:[%s9 + $0x198] sm:$0xff]
    %v2962 = vld [vmem:[%s9 + $0x1a0] sm:$0xff]
    %v2963 = vld [vmem:[%s9 + $0x1a8] sm:$0x3]
    %2965 = vset.pattern.permute.xlu0 0
    %2966 = vperm.xlu0 %2965, %v2910
    %v2967 = vpop.permute.xlu0 %2966
    %2970 = vset.pattern.permute.xlu0 0
    %2971 = vperm.xlu0 %2970, %v2911
    %v2972 = vpop.permute.xlu0 %2971
    %2975 = vset.pattern.permute.xlu0 0
    %2976 = vperm.xlu0 %2975, %v2912
    %v2977 = vpop.permute.xlu0 %2976
    %2980 = vset.pattern.permute.xlu0 0
    %2981 = vperm.xlu0 %2980, %v2913
    %v2982 = vpop.permute.xlu0 %2981
    %2985 = vset.pattern.permute.xlu0 0
    %2986 = vperm.xlu0 %2985, %v2914
    %v2987 = vpop.permute.xlu0 %2986
    %2990 = vset.pattern.permute.xlu0 0
    %2991 = vperm.xlu0 %2990, %v2915
    %v2992 = vpop.permute.xlu0 %2991
    %2995 = vset.pattern.permute.xlu0 0
    %2996 = vperm.xlu0 %2995, %v2916
    %v2997 = vpop.permute.xlu0 %2996
    %3000 = vset.pattern.permute.xlu0 0
    %3001 = vperm.xlu0 %3000, %v2917
    %v3002 = vpop.permute.xlu0 %3001
    %3005 = vset.pattern.permute.xlu0 0
    %3006 = vperm.xlu0 %3005, %v2918
    %v3007 = vpop.permute.xlu0 %3006
    %3010 = vset.pattern.permute.xlu0 0
    %3011 = vperm.xlu0 %3010, %v2919
    %v3012 = vpop.permute.xlu0 %3011
    %3015 = vset.pattern.permute.xlu0 0
    %3016 = vperm.xlu0 %3015, %v2920
    %v3017 = vpop.permute.xlu0 %3016
    %3020 = vset.pattern.permute.xlu0 0
    %3021 = vperm.xlu0 %3020, %v2921
    %v3022 = vpop.permute.xlu0 %3021
    %3025 = vset.pattern.permute.xlu0 0
    %3026 = vperm.xlu0 %3025, %v2922
    %v3027 = vpop.permute.xlu0 %3026
    %3030 = vset.pattern.permute.xlu0 0
    %3031 = vperm.xlu0 %3030, %v2923
    %v3032 = vpop.permute.xlu0 %3031
    %3035 = vset.pattern.permute.xlu0 0
    %3036 = vperm.xlu0 %3035, %v2924
    %v3037 = vpop.permute.xlu0 %3036
    %3040 = vset.pattern.permute.xlu0 0
    %3041 = vperm.xlu0 %3040, %v2925
    %v3042 = vpop.permute.xlu0 %3041
    %3045 = vset.pattern.permute.xlu0 0
    %3046 = vperm.xlu0 %3045, %v2926
    %v3047 = vpop.permute.xlu0 %3046
    %3050 = vset.pattern.permute.xlu0 0
    %3051 = vperm.xlu0 %3050, %v2927
    %v3052 = vpop.permute.xlu0 %3051
    %3055 = vset.pattern.permute.xlu0 0
    %3056 = vperm.xlu0 %3055, %v2928
    %v3057 = vpop.permute.xlu0 %3056
    %3060 = vset.pattern.permute.xlu0 0
    %3061 = vperm.xlu0 %3060, %v2929
    %v3062 = vpop.permute.xlu0 %3061
    %3065 = vset.pattern.permute.xlu0 0
    %3066 = vperm.xlu0 %3065, %v2930
    %v3067 = vpop.permute.xlu0 %3066
    %3070 = vset.pattern.permute.xlu0 0
    %3071 = vperm.xlu0 %3070, %v2931
    %v3072 = vpop.permute.xlu0 %3071
    %3075 = vset.pattern.permute.xlu0 0
    %3076 = vperm.xlu0 %3075, %v2932
    %v3077 = vpop.permute.xlu0 %3076
    %3080 = vset.pattern.permute.xlu0 0
    %3081 = vperm.xlu0 %3080, %v2933
    %v3082 = vpop.permute.xlu0 %3081
    %3085 = vset.pattern.permute.xlu0 0
    %3086 = vperm.xlu0 %3085, %v2934
    %v3087 = vpop.permute.xlu0 %3086
    %3090 = vset.pattern.permute.xlu0 0
    %3091 = vperm.xlu0 %3090, %v2935
    %v3092 = vpop.permute.xlu0 %3091
    %3095 = vset.pattern.permute.xlu0 0
    %3096 = vperm.xlu0 %3095, %v2936
    %v3097 = vpop.permute.xlu0 %3096
    %3100 = vset.pattern.permute.xlu0 0
    %3101 = vperm.xlu0 %3100, %v2937
    %v3102 = vpop.permute.xlu0 %3101
    %3105 = vset.pattern.permute.xlu0 0
    %3106 = vperm.xlu0 %3105, %v2938
    %v3107 = vpop.permute.xlu0 %3106
    %3110 = vset.pattern.permute.xlu0 0
    %3111 = vperm.xlu0 %3110, %v2939
    %v3112 = vpop.permute.xlu0 %3111
    %3115 = vset.pattern.permute.xlu0 0
    %3116 = vperm.xlu0 %3115, %v2940
    %v3117 = vpop.permute.xlu0 %3116
    %3120 = vset.pattern.permute.xlu0 0
    %3121 = vperm.xlu0 %3120, %v2941
    %v3122 = vpop.permute.xlu0 %3121
    %3125 = vset.pattern.permute.xlu0 0
    %3126 = vperm.xlu0 %3125, %v2942
    %v3127 = vpop.permute.xlu0 %3126
    %3130 = vset.pattern.permute.xlu0 0
    %3131 = vperm.xlu0 %3130, %v2943
    %v3132 = vpop.permute.xlu0 %3131
    %3135 = vset.pattern.permute.xlu0 0
    %3136 = vperm.xlu0 %3135, %v2944
    %v3137 = vpop.permute.xlu0 %3136
    %3140 = vset.pattern.permute.xlu0 0
    %3141 = vperm.xlu0 %3140, %v2945
    %v3142 = vpop.permute.xlu0 %3141
    %3145 = vset.pattern.permute.xlu0 0
    %3146 = vperm.xlu0 %3145, %v2946
    %v3147 = vpop.permute.xlu0 %3146
    %3150 = vset.pattern.permute.xlu0 0
    %3151 = vperm.xlu0 %3150, %v2947
    %v3152 = vpop.permute.xlu0 %3151
    %3155 = vset.pattern.permute.xlu0 0
    %3156 = vperm.xlu0 %3155, %v2948
    %v3157 = vpop.permute.xlu0 %3156
    %3160 = vset.pattern.permute.xlu0 0
    %3161 = vperm.xlu0 %3160, %v2949
    %v3162 = vpop.permute.xlu0 %3161
    %3165 = vset.pattern.permute.xlu0 0
    %3166 = vperm.xlu0 %3165, %v2950
    %v3167 = vpop.permute.xlu0 %3166
    %3170 = vset.pattern.permute.xlu0 0
    %3171 = vperm.xlu0 %3170, %v2951
    %v3172 = vpop.permute.xlu0 %3171
    %3175 = vset.pattern.permute.xlu0 0
    %3176 = vperm.xlu0 %3175, %v2952
    %v3177 = vpop.permute.xlu0 %3176
    %3180 = vset.pattern.permute.xlu0 0
    %3181 = vperm.xlu0 %3180, %v2953
    %v3182 = vpop.permute.xlu0 %3181
    %3185 = vset.pattern.permute.xlu0 0
    %3186 = vperm.xlu0 %3185, %v2954
    %v3187 = vpop.permute.xlu0 %3186
    %3190 = vset.pattern.permute.xlu0 0
    %3191 = vperm.xlu0 %3190, %v2955
    %v3192 = vpop.permute.xlu0 %3191
    %3195 = vset.pattern.permute.xlu0 0
    %3196 = vperm.xlu0 %3195, %v2956
    %v3197 = vpop.permute.xlu0 %3196
    %3200 = vset.pattern.permute.xlu0 0
    %3201 = vperm.xlu0 %3200, %v2957
    %v3202 = vpop.permute.xlu0 %3201
    %3205 = vset.pattern.permute.xlu0 0
    %3206 = vperm.xlu0 %3205, %v2958
    %v3207 = vpop.permute.xlu0 %3206
    %3210 = vset.pattern.permute.xlu0 0
    %3211 = vperm.xlu0 %3210, %v2959
    %v3212 = vpop.permute.xlu0 %3211
    %3215 = vset.pattern.permute.xlu0 0
    %3216 = vperm.xlu0 %3215, %v2960
    %v3217 = vpop.permute.xlu0 %3216
    %3220 = vset.pattern.permute.xlu0 0
    %3221 = vperm.xlu0 %3220, %v2961
    %v3222 = vpop.permute.xlu0 %3221
    %3225 = vset.pattern.permute.xlu0 0
    %3226 = vperm.xlu0 %3225, %v2962
    %v3227 = vpop.permute.xlu0 %3226
    %3230 = vset.pattern.permute.xlu0 0
    %3231 = vperm.xlu0 %3230, %v2963
    %v3232 = vpop.permute.xlu0 %3231
    %v3234 = vadd.f32 %v2856, %v2967
    %v3235 = vadd.f32 %v2857, %v2972
    %v3236 = vadd.f32 %v2858, %v2977
    %v3237 = vadd.f32 %v2859, %v2982
    %v3238 = vadd.f32 %v2860, %v2987
    %v3239 = vadd.f32 %v2861, %v2992
    %v3240 = vadd.f32 %v2862, %v2997
    %v3241 = vadd.f32 %v2863, %v3002
    %v3242 = vadd.f32 %v2864, %v3007
    %v3243 = vadd.f32 %v2865, %v3012
    %v3244 = vadd.f32 %v2866, %v3017
    %v3245 = vadd.f32 %v2867, %v3022
    %v3246 = vadd.f32 %v2868, %v3027
    %v3247 = vadd.f32 %v2869, %v3032
    %v3248 = vadd.f32 %v2870, %v3037
    %v3249 = vadd.f32 %v2871, %v3042
    %v3250 = vadd.f32 %v2872, %v3047
    %v3251 = vadd.f32 %v2873, %v3052
    %v3252 = vadd.f32 %v2874, %v3057
    %v3253 = vadd.f32 %v2875, %v3062
    %v3254 = vadd.f32 %v2876, %v3067
    %v3255 = vadd.f32 %v2877, %v3072
    %v3256 = vadd.f32 %v2878, %v3077
    %v3257 = vadd.f32 %v2879, %v3082
    %v3258 = vadd.f32 %v2880, %v3087
    %v3259 = vadd.f32 %v2881, %v3092
    %v3260 = vadd.f32 %v2882, %v3097
    %v3261 = vadd.f32 %v2883, %v3102
    %v3262 = vadd.f32 %v2884, %v3107
    %v3263 = vadd.f32 %v2885, %v3112
    %v3264 = vadd.f32 %v2886, %v3117
    %v3265 = vadd.f32 %v2887, %v3122
    %v3266 = vadd.f32 %v2888, %v3127
    %v3267 = vadd.f32 %v2889, %v3132
    %v3268 = vadd.f32 %v2890, %v3137
    %v3269 = vadd.f32 %v2891, %v3142
    %v3270 = vadd.f32 %v2892, %v3147
    %v3271 = vadd.f32 %v2893, %v3152
    %v3272 = vadd.f32 %v2894, %v3157
    %v3273 = vadd.f32 %v2895, %v3162
    %v3274 = vadd.f32 %v2896, %v3167
    %v3275 = vadd.f32 %v2897, %v3172
    %v3276 = vadd.f32 %v2898, %v3177
    %v3277 = vadd.f32 %v2899, %v3182
    %v3278 = vadd.f32 %v2900, %v3187
    %v3279 = vadd.f32 %v2901, %v3192
    %v3280 = vadd.f32 %v2902, %v3197
    %v3281 = vadd.f32 %v2903, %v3202
    %v3282 = vadd.f32 %v2904, %v3207
    %v3283 = vadd.f32 %v2905, %v3212
    %v3284 = vadd.f32 %v2906, %v3217
    %v3285 = vadd.f32 %v2907, %v3222
    %v3286 = vadd.f32 %v2908, %v3227
    %v3287 = vadd.f32 %v2909, %v3232
    %v3288 = vsel %vm148, %v3234, -inf
    %v3289 = vsel %vm148, %v3235, -inf
    %v3290 = vmax.f32 %v3288, %v3289
    %v3291 = vsel %vm768, %v3236, -inf
    %v3292 = vmax.f32 %v3290, %v3291
    %v3293 = vrot.slane %v3292, 4
    %v3294 = vmax.f32 %v3292, %v3293
    %v3295 = vrot.slane %v3294, 2
    %v3296 = vmax.f32 %v3294, %v3295
    %v3297 = vrot.slane %v3296, 1
    %v3298 = vmax.f32 %v3296, %v3297
    %v3299 = vsel %vm148, %v3237, -inf
    %v3300 = vsel %vm148, %v3238, -inf
    %v3301 = vmax.f32 %v3299, %v3300
    %v3302 = vsel %vm768, %v3239, -inf
    %v3303 = vmax.f32 %v3301, %v3302
    %v3304 = vrot.slane %v3303, 4
    %v3305 = vmax.f32 %v3303, %v3304
    %v3306 = vrot.slane %v3305, 2
    %v3307 = vmax.f32 %v3305, %v3306
    %v3308 = vrot.slane %v3307, 1
    %v3309 = vmax.f32 %v3307, %v3308
    %v3310 = vsel %vm148, %v3240, -inf
    %v3311 = vsel %vm148, %v3241, -inf
    %v3312 = vmax.f32 %v3310, %v3311
    %v3313 = vsel %vm768, %v3242, -inf
    %v3314 = vmax.f32 %v3312, %v3313
    %v3315 = vrot.slane %v3314, 4
    %v3316 = vmax.f32 %v3314, %v3315
    %v3317 = vrot.slane %v3316, 2
    %v3318 = vmax.f32 %v3316, %v3317
    %v3319 = vrot.slane %v3318, 1
    %v3320 = vmax.f32 %v3318, %v3319
    %v3321 = vsel %vm148, %v3243, -inf
    %v3322 = vsel %vm148, %v3244, -inf
    %v3323 = vmax.f32 %v3321, %v3322
    %v3324 = vsel %vm768, %v3245, -inf
    %v3325 = vmax.f32 %v3323, %v3324
    %v3326 = vrot.slane %v3325, 4
    %v3327 = vmax.f32 %v3325, %v3326
    %v3328 = vrot.slane %v3327, 2
    %v3329 = vmax.f32 %v3327, %v3328
    %v3330 = vrot.slane %v3329, 1
    %v3331 = vmax.f32 %v3329, %v3330
    %v3332 = vsel %vm148, %v3246, -inf
    %v3333 = vsel %vm148, %v3247, -inf
    %v3334 = vmax.f32 %v3332, %v3333
    %v3335 = vsel %vm768, %v3248, -inf
    %v3336 = vmax.f32 %v3334, %v3335
    %v3337 = vrot.slane %v3336, 4
    %v3338 = vmax.f32 %v3336, %v3337
    %v3339 = vrot.slane %v3338, 2
    %v3340 = vmax.f32 %v3338, %v3339
    %v3341 = vrot.slane %v3340, 1
    %v3342 = vmax.f32 %v3340, %v3341
    %v3343 = vsel %vm148, %v3249, -inf
    %v3344 = vsel %vm148, %v3250, -inf
    %v3345 = vmax.f32 %v3343, %v3344
    %v3346 = vsel %vm768, %v3251, -inf
    %v3347 = vmax.f32 %v3345, %v3346
    %v3348 = vrot.slane %v3347, 4
    %v3349 = vmax.f32 %v3347, %v3348
    %v3350 = vrot.slane %v3349, 2
    %v3351 = vmax.f32 %v3349, %v3350
    %v3352 = vrot.slane %v3351, 1
    %v3353 = vmax.f32 %v3351, %v3352
    %v3354 = vsel %vm148, %v3252, -inf
    %v3355 = vsel %vm148, %v3253, -inf
    %v3356 = vmax.f32 %v3354, %v3355
    %v3357 = vsel %vm768, %v3254, -inf
    %v3358 = vmax.f32 %v3356, %v3357
    %v3359 = vrot.slane %v3358, 4
    %v3360 = vmax.f32 %v3358, %v3359
    %v3361 = vrot.slane %v3360, 2
    %v3362 = vmax.f32 %v3360, %v3361
    %v3363 = vrot.slane %v3362, 1
    %v3364 = vmax.f32 %v3362, %v3363
    %v3365 = vsel %vm148, %v3255, -inf
    %v3366 = vsel %vm148, %v3256, -inf
    %v3367 = vmax.f32 %v3365, %v3366
    %v3368 = vsel %vm768, %v3257, -inf
    %v3369 = vmax.f32 %v3367, %v3368
    %v3370 = vrot.slane %v3369, 4
    %v3371 = vmax.f32 %v3369, %v3370
    %v3372 = vrot.slane %v3371, 2
    %v3373 = vmax.f32 %v3371, %v3372
    %v3374 = vrot.slane %v3373, 1
    %v3375 = vmax.f32 %v3373, %v3374
    %v3376 = vsel %vm148, %v3258, -inf
    %v3377 = vsel %vm148, %v3259, -inf
    %v3378 = vmax.f32 %v3376, %v3377
    %v3379 = vsel %vm768, %v3260, -inf
    %v3380 = vmax.f32 %v3378, %v3379
    %v3381 = vrot.slane %v3380, 4
    %v3382 = vmax.f32 %v3380, %v3381
    %v3383 = vrot.slane %v3382, 2
    %v3384 = vmax.f32 %v3382, %v3383
    %v3385 = vrot.slane %v3384, 1
    %v3386 = vmax.f32 %v3384, %v3385
    %v3387 = vsel %vm148, %v3261, -inf
    %v3388 = vsel %vm148, %v3262, -inf
    %v3389 = vmax.f32 %v3387, %v3388
    %v3390 = vsel %vm768, %v3263, -inf
    %v3391 = vmax.f32 %v3389, %v3390
    %v3392 = vrot.slane %v3391, 4
    %v3393 = vmax.f32 %v3391, %v3392
    %v3394 = vrot.slane %v3393, 2
    %v3395 = vmax.f32 %v3393, %v3394
    %v3396 = vrot.slane %v3395, 1
    %v3397 = vmax.f32 %v3395, %v3396
    %v3398 = vsel %vm148, %v3264, -inf
    %v3399 = vsel %vm148, %v3265, -inf
    %v3400 = vmax.f32 %v3398, %v3399
    %v3401 = vsel %vm768, %v3266, -inf
    %v3402 = vmax.f32 %v3400, %v3401
    %v3403 = vrot.slane %v3402, 4
    %v3404 = vmax.f32 %v3402, %v3403
    %v3405 = vrot.slane %v3404, 2
    %v3406 = vmax.f32 %v3404, %v3405
    %v3407 = vrot.slane %v3406, 1
    %v3408 = vmax.f32 %v3406, %v3407
    %v3409 = vsel %vm148, %v3267, -inf
    %v3410 = vsel %vm148, %v3268, -inf
    %v3411 = vmax.f32 %v3409, %v3410
    %v3412 = vsel %vm768, %v3269, -inf
    %v3413 = vmax.f32 %v3411, %v3412
    %v3414 = vrot.slane %v3413, 4
    %v3415 = vmax.f32 %v3413, %v3414
    %v3416 = vrot.slane %v3415, 2
    %v3417 = vmax.f32 %v3415, %v3416
    %v3418 = vrot.slane %v3417, 1
    %v3419 = vmax.f32 %v3417, %v3418
    %v3420 = vsel %vm148, %v3270, -inf
    %v3421 = vsel %vm148, %v3271, -inf
    %v3422 = vmax.f32 %v3420, %v3421
    %v3423 = vsel %vm768, %v3272, -inf
    %v3424 = vmax.f32 %v3422, %v3423
    %v3425 = vrot.slane %v3424, 4
    %v3426 = vmax.f32 %v3424, %v3425
    %v3427 = vrot.slane %v3426, 2
    %v3428 = vmax.f32 %v3426, %v3427
    %v3429 = vrot.slane %v3428, 1
    %v3430 = vmax.f32 %v3428, %v3429
    %v3431 = vsel %vm148, %v3273, -inf
    %v3432 = vsel %vm148, %v3274, -inf
    %v3433 = vmax.f32 %v3431, %v3432
    %v3434 = vsel %vm768, %v3275, -inf
    %v3435 = vmax.f32 %v3433, %v3434
    %v3436 = vrot.slane %v3435, 4
    %v3437 = vmax.f32 %v3435, %v3436
    %v3438 = vrot.slane %v3437, 2
    %v3439 = vmax.f32 %v3437, %v3438
    %v3440 = vrot.slane %v3439, 1
    %v3441 = vmax.f32 %v3439, %v3440
    %v3442 = vsel %vm148, %v3276, -inf
    %v3443 = vsel %vm148, %v3277, -inf
    %v3444 = vmax.f32 %v3442, %v3443
    %v3445 = vsel %vm768, %v3278, -inf
    %v3446 = vmax.f32 %v3444, %v3445
    %v3447 = vrot.slane %v3446, 4
    %v3448 = vmax.f32 %v3446, %v3447
    %v3449 = vrot.slane %v3448, 2
    %v3450 = vmax.f32 %v3448, %v3449
    %v3451 = vrot.slane %v3450, 1
    %v3452 = vmax.f32 %v3450, %v3451
    %v3453 = vsel %vm148, %v3279, -inf
    %v3454 = vsel %vm148, %v3280, -inf
    %v3455 = vmax.f32 %v3453, %v3454
    %v3456 = vsel %vm768, %v3281, -inf
    %v3457 = vmax.f32 %v3455, %v3456
    %v3458 = vrot.slane %v3457, 4
    %v3459 = vmax.f32 %v3457, %v3458
    %v3460 = vrot.slane %v3459, 2
    %v3461 = vmax.f32 %v3459, %v3460
    %v3462 = vrot.slane %v3461, 1
    %v3463 = vmax.f32 %v3461, %v3462
    %v3464 = vsel %vm148, %v3282, -inf
    %v3465 = vsel %vm148, %v3283, -inf
    %v3466 = vmax.f32 %v3464, %v3465
    %v3467 = vsel %vm768, %v3284, -inf
    %v3468 = vmax.f32 %v3466, %v3467
    %v3469 = vrot.slane %v3468, 4
    %v3470 = vmax.f32 %v3468, %v3469
    %v3471 = vrot.slane %v3470, 2
    %v3472 = vmax.f32 %v3470, %v3471
    %v3473 = vrot.slane %v3472, 1
    %v3474 = vmax.f32 %v3472, %v3473
    %v3475 = vsel %vm148, %v3285, -inf
    %v3476 = vsel %vm148, %v3286, -inf
    %v3477 = vmax.f32 %v3475, %v3476
    %v3478 = vsel %vm768, %v3287, -inf
    %v3479 = vmax.f32 %v3477, %v3478
    %v3480 = vrot.slane %v3479, 4
    %v3481 = vmax.f32 %v3479, %v3480
    %v3482 = vrot.slane %v3481, 2
    %v3483 = vmax.f32 %v3481, %v3482
    %v3484 = vrot.slane %v3483, 1
    %v3485 = vmax.f32 %v3483, %v3484
    %v3486 = vsub.f32 %v3234, %v3298
    %v3487 = vsub.f32 %v3235, %v3298
    %v3488 = vsub.f32 %v3236, %v3298
    %v3489 = vsub.f32 %v3237, %v3309
    %v3490 = vsub.f32 %v3238, %v3309
    %v3491 = vsub.f32 %v3239, %v3309
    %v3492 = vsub.f32 %v3240, %v3320
    %v3493 = vsub.f32 %v3241, %v3320
    %v3494 = vsub.f32 %v3242, %v3320
    %v3495 = vsub.f32 %v3243, %v3331
    %v3496 = vsub.f32 %v3244, %v3331
    %v3497 = vsub.f32 %v3245, %v3331
    %v3498 = vsub.f32 %v3246, %v3342
    %v3499 = vsub.f32 %v3247, %v3342
    %v3500 = vsub.f32 %v3248, %v3342
    %v3501 = vsub.f32 %v3249, %v3353
    %v3502 = vsub.f32 %v3250, %v3353
    %v3503 = vsub.f32 %v3251, %v3353
    %v3504 = vsub.f32 %v3252, %v3364
    %v3505 = vsub.f32 %v3253, %v3364
    %v3506 = vsub.f32 %v3254, %v3364
    %v3507 = vsub.f32 %v3255, %v3375
    %v3508 = vsub.f32 %v3256, %v3375
    %v3509 = vsub.f32 %v3257, %v3375
    %v3510 = vsub.f32 %v3258, %v3386
    %v3511 = vsub.f32 %v3259, %v3386
    %v3512 = vsub.f32 %v3260, %v3386
    %v3513 = vsub.f32 %v3261, %v3397
    %v3514 = vsub.f32 %v3262, %v3397
    %v3515 = vsub.f32 %v3263, %v3397
    %v3516 = vsub.f32 %v3264, %v3408
    %v3517 = vsub.f32 %v3265, %v3408
    %v3518 = vsub.f32 %v3266, %v3408
    %v3519 = vsub.f32 %v3267, %v3419
    %v3520 = vsub.f32 %v3268, %v3419
    %v3521 = vsub.f32 %v3269, %v3419
    %v3522 = vsub.f32 %v3270, %v3430
    %v3523 = vsub.f32 %v3271, %v3430
    %v3524 = vsub.f32 %v3272, %v3430
    %v3525 = vsub.f32 %v3273, %v3441
    %v3526 = vsub.f32 %v3274, %v3441
    %v3527 = vsub.f32 %v3275, %v3441
    %v3528 = vsub.f32 %v3276, %v3452
    %v3529 = vsub.f32 %v3277, %v3452
    %v3530 = vsub.f32 %v3278, %v3452
    %v3531 = vsub.f32 %v3279, %v3463
    %v3532 = vsub.f32 %v3280, %v3463
    %v3533 = vsub.f32 %v3281, %v3463
    %v3534 = vsub.f32 %v3282, %v3474
    %v3535 = vsub.f32 %v3283, %v3474
    %v3536 = vsub.f32 %v3284, %v3474
    %v3537 = vsub.f32 %v3285, %v3485
    %v3538 = vsub.f32 %v3286, %v3485
    %v3539 = vsub.f32 %v3287, %v3485
    %v3540 = vmul.f32 %v3486, 1.442695
    %v3541 = vpow.pop %v3540
    %v3542 = vmul.f32 %v3487, 1.442695
    %v3543 = vpow.pop %v3542
    %v3544 = vmul.f32 %v3488, 1.442695
    %v3545 = vpow.pop %v3544
    %v3546 = vmul.f32 %v3489, 1.442695
    %v3547 = vpow.pop %v3546
    %v3548 = vmul.f32 %v3490, 1.442695
    %v3549 = vpow.pop %v3548
    %v3550 = vmul.f32 %v3491, 1.442695
    %v3551 = vpow.pop %v3550
    %v3552 = vmul.f32 %v3492, 1.442695
    %v3553 = vpow.pop %v3552
    %v3554 = vmul.f32 %v3493, 1.442695
    %v3555 = vpow.pop %v3554
    %v3556 = vmul.f32 %v3494, 1.442695
    %v3557 = vpow.pop %v3556
    %v3558 = vmul.f32 %v3495, 1.442695
    %v3559 = vpow.pop %v3558
    %v3560 = vmul.f32 %v3496, 1.442695
    %v3561 = vpow.pop %v3560
    %v3562 = vmul.f32 %v3497, 1.442695
    %v3563 = vpow.pop %v3562
    %v3564 = vmul.f32 %v3498, 1.442695
    %v3565 = vpow.pop %v3564
    %v3566 = vmul.f32 %v3499, 1.442695
    %v3567 = vpow.pop %v3566
    %v3568 = vmul.f32 %v3500, 1.442695
    %v3569 = vpow.pop %v3568
    %v3570 = vmul.f32 %v3501, 1.442695
    %v3571 = vpow.pop %v3570
    %v3572 = vmul.f32 %v3502, 1.442695
    %v3573 = vpow.pop %v3572
    %v3574 = vmul.f32 %v3503, 1.442695
    %v3575 = vpow.pop %v3574
    %v3576 = vmul.f32 %v3504, 1.442695
    %v3577 = vpow.pop %v3576
    %v3578 = vmul.f32 %v3505, 1.442695
    %v3579 = vpow.pop %v3578
    %v3580 = vmul.f32 %v3506, 1.442695
    %v3581 = vpow.pop %v3580
    %v3582 = vmul.f32 %v3507, 1.442695
    %v3583 = vpow.pop %v3582
    %v3584 = vmul.f32 %v3508, 1.442695
    %v3585 = vpow.pop %v3584
    %v3586 = vmul.f32 %v3509, 1.442695
    %v3587 = vpow.pop %v3586
    %v3588 = vmul.f32 %v3510, 1.442695
    %v3589 = vpow.pop %v3588
    %v3590 = vmul.f32 %v3511, 1.442695
    %v3591 = vpow.pop %v3590
    %v3592 = vmul.f32 %v3512, 1.442695
    %v3593 = vpow.pop %v3592
    %v3594 = vmul.f32 %v3513, 1.442695
    %v3595 = vpow.pop %v3594
    %v3596 = vmul.f32 %v3514, 1.442695
    %v3597 = vpow.pop %v3596
    %v3598 = vmul.f32 %v3515, 1.442695
    %v3599 = vpow.pop %v3598
    %v3600 = vmul.f32 %v3516, 1.442695
    %v3601 = vpow.pop %v3600
    %v3602 = vmul.f32 %v3517, 1.442695
    %v3603 = vpow.pop %v3602
    %v3604 = vmul.f32 %v3518, 1.442695
    %v3605 = vpow.pop %v3604
    %v3606 = vmul.f32 %v3519, 1.442695
    %v3607 = vpow.pop %v3606
    %v3608 = vmul.f32 %v3520, 1.442695
    %v3609 = vpow.pop %v3608
    %v3610 = vmul.f32 %v3521, 1.442695
    %v3611 = vpow.pop %v3610
    %v3612 = vmul.f32 %v3522, 1.442695
    %v3613 = vpow.pop %v3612
    %v3614 = vmul.f32 %v3523, 1.442695
    %v3615 = vpow.pop %v3614
    %v3616 = vmul.f32 %v3524, 1.442695
    %v3617 = vpow.pop %v3616
    %v3618 = vmul.f32 %v3525, 1.442695
    %v3619 = vpow.pop %v3618
    %v3620 = vmul.f32 %v3526, 1.442695
    %v3621 = vpow.pop %v3620
    %v3622 = vmul.f32 %v3527, 1.442695
    %v3623 = vpow.pop %v3622
    %v3624 = vmul.f32 %v3528, 1.442695
    %v3625 = vpow.pop %v3624
    %v3626 = vmul.f32 %v3529, 1.442695
    %v3627 = vpow.pop %v3626
    %v3628 = vmul.f32 %v3530, 1.442695
    %v3629 = vpow.pop %v3628
    %v3630 = vmul.f32 %v3531, 1.442695
    %v3631 = vpow.pop %v3630
    %v3632 = vmul.f32 %v3532, 1.442695
    %v3633 = vpow.pop %v3632
    %v3634 = vmul.f32 %v3533, 1.442695
    %v3635 = vpow.pop %v3634
    %v3636 = vmul.f32 %v3534, 1.442695
    %v3637 = vpow.pop %v3636
    %v3638 = vmul.f32 %v3535, 1.442695
    %v3639 = vpow.pop %v3638
    %v3640 = vmul.f32 %v3536, 1.442695
    %v3641 = vpow.pop %v3640
    %v3642 = vmul.f32 %v3537, 1.442695
    %v3643 = vpow.pop %v3642
    %v3644 = vmul.f32 %v3538, 1.442695
    %v3645 = vpow.pop %v3644
    %v3646 = vmul.f32 %v3539, 1.442695
    %v3647 = vpow.pop %v3646
    %v3648 = vsel %vm148, %v3541, 0.0
    %v3649 = vsel %vm148, %v3543, 0.0
    %v3650 = vadd.f32 %v3648, %v3649
    %v3651 = vsel %vm768, %v3545, 0.0
    %v3652 = vadd.f32 %v3650, %v3651
    %v3653 = vrot.slane %v3652, 4
    %v3654 = vadd.f32 %v3652, %v3653
    %v3655 = vrot.slane %v3654, 2
    %v3656 = vadd.f32 %v3654, %v3655
    %v3657 = vrot.slane %v3656, 1
    %v3658 = vadd.f32 %v3656, %v3657
    %v3659 = vsel %vm148, %v3547, 0.0
    %v3660 = vsel %vm148, %v3549, 0.0
    %v3661 = vadd.f32 %v3659, %v3660
    %v3662 = vsel %vm768, %v3551, 0.0
    %v3663 = vadd.f32 %v3661, %v3662
    %v3664 = vrot.slane %v3663, 4
    %v3665 = vadd.f32 %v3663, %v3664
    %v3666 = vrot.slane %v3665, 2
    %v3667 = vadd.f32 %v3665, %v3666
    %v3668 = vrot.slane %v3667, 1
    %v3669 = vadd.f32 %v3667, %v3668
    %v3670 = vsel %vm148, %v3553, 0.0
    %v3671 = vsel %vm148, %v3555, 0.0
    %v3672 = vadd.f32 %v3670, %v3671
    %v3673 = vsel %vm768, %v3557, 0.0
    %v3674 = vadd.f32 %v3672, %v3673
    %v3675 = vrot.slane %v3674, 4
    %v3676 = vadd.f32 %v3674, %v3675
    %v3677 = vrot.slane %v3676, 2
    %v3678 = vadd.f32 %v3676, %v3677
    %v3679 = vrot.slane %v3678, 1
    %v3680 = vadd.f32 %v3678, %v3679
    %v3681 = vsel %vm148, %v3559, 0.0
    %v3682 = vsel %vm148, %v3561, 0.0
    %v3683 = vadd.f32 %v3681, %v3682
    %v3684 = vsel %vm768, %v3563, 0.0
    %v3685 = vadd.f32 %v3683, %v3684
    %v3686 = vrot.slane %v3685, 4
    %v3687 = vadd.f32 %v3685, %v3686
    %v3688 = vrot.slane %v3687, 2
    %v3689 = vadd.f32 %v3687, %v3688
    %v3690 = vrot.slane %v3689, 1
    %v3691 = vadd.f32 %v3689, %v3690
    %v3692 = vsel %vm148, %v3565, 0.0
    %v3693 = vsel %vm148, %v3567, 0.0
    %v3694 = vadd.f32 %v3692, %v3693
    %v3695 = vsel %vm768, %v3569, 0.0
    %v3696 = vadd.f32 %v3694, %v3695
    %v3697 = vrot.slane %v3696, 4
    %v3698 = vadd.f32 %v3696, %v3697
    %v3699 = vrot.slane %v3698, 2
    %v3700 = vadd.f32 %v3698, %v3699
    %v3701 = vrot.slane %v3700, 1
    %v3702 = vadd.f32 %v3700, %v3701
    %v3703 = vsel %vm148, %v3571, 0.0
    %v3704 = vsel %vm148, %v3573, 0.0
    %v3705 = vadd.f32 %v3703, %v3704
    %v3706 = vsel %vm768, %v3575, 0.0
    %v3707 = vadd.f32 %v3705, %v3706
    %v3708 = vrot.slane %v3707, 4
    %v3709 = vadd.f32 %v3707, %v3708
    %v3710 = vrot.slane %v3709, 2
    %v3711 = vadd.f32 %v3709, %v3710
    %v3712 = vrot.slane %v3711, 1
    %v3713 = vadd.f32 %v3711, %v3712
    %v3714 = vsel %vm148, %v3577, 0.0
    %v3715 = vsel %vm148, %v3579, 0.0
    %v3716 = vadd.f32 %v3714, %v3715
    %v3717 = vsel %vm768, %v3581, 0.0
    %v3718 = vadd.f32 %v3716, %v3717
    %v3719 = vrot.slane %v3718, 4
    %v3720 = vadd.f32 %v3718, %v3719
    %v3721 = vrot.slane %v3720, 2
    %v3722 = vadd.f32 %v3720, %v3721
    %v3723 = vrot.slane %v3722, 1
    %v3724 = vadd.f32 %v3722, %v3723
    %v3725 = vsel %vm148, %v3583, 0.0
    %v3726 = vsel %vm148, %v3585, 0.0
    %v3727 = vadd.f32 %v3725, %v3726
    %v3728 = vsel %vm768, %v3587, 0.0
    %v3729 = vadd.f32 %v3727, %v3728
    %v3730 = vrot.slane %v3729, 4
    %v3731 = vadd.f32 %v3729, %v3730
    %v3732 = vrot.slane %v3731, 2
    %v3733 = vadd.f32 %v3731, %v3732
    %v3734 = vrot.slane %v3733, 1
    %v3735 = vadd.f32 %v3733, %v3734
    %v3736 = vsel %vm148, %v3589, 0.0
    %v3737 = vsel %vm148, %v3591, 0.0
    %v3738 = vadd.f32 %v3736, %v3737
    %v3739 = vsel %vm768, %v3593, 0.0
    %v3740 = vadd.f32 %v3738, %v3739
    %v3741 = vrot.slane %v3740, 4
    %v3742 = vadd.f32 %v3740, %v3741
    %v3743 = vrot.slane %v3742, 2
    %v3744 = vadd.f32 %v3742, %v3743
    %v3745 = vrot.slane %v3744, 1
    %v3746 = vadd.f32 %v3744, %v3745
    %v3747 = vsel %vm148, %v3595, 0.0
    %v3748 = vsel %vm148, %v3597, 0.0
    %v3749 = vadd.f32 %v3747, %v3748
    %v3750 = vsel %vm768, %v3599, 0.0
    %v3751 = vadd.f32 %v3749, %v3750
    %v3752 = vrot.slane %v3751, 4
    %v3753 = vadd.f32 %v3751, %v3752
    %v3754 = vrot.slane %v3753, 2
    %v3755 = vadd.f32 %v3753, %v3754
    %v3756 = vrot.slane %v3755, 1
    %v3757 = vadd.f32 %v3755, %v3756
    %v3758 = vsel %vm148, %v3601, 0.0
    %v3759 = vsel %vm148, %v3603, 0.0
    %v3760 = vadd.f32 %v3758, %v3759
    %v3761 = vsel %vm768, %v3605, 0.0
    %v3762 = vadd.f32 %v3760, %v3761
    %v3763 = vrot.slane %v3762, 4
    %v3764 = vadd.f32 %v3762, %v3763
    %v3765 = vrot.slane %v3764, 2
    %v3766 = vadd.f32 %v3764, %v3765
    %v3767 = vrot.slane %v3766, 1
    %v3768 = vadd.f32 %v3766, %v3767
    %v3769 = vsel %vm148, %v3607, 0.0
    %v3770 = vsel %vm148, %v3609, 0.0
    %v3771 = vadd.f32 %v3769, %v3770
    %v3772 = vsel %vm768, %v3611, 0.0
    %v3773 = vadd.f32 %v3771, %v3772
    %v3774 = vrot.slane %v3773, 4
    %v3775 = vadd.f32 %v3773, %v3774
    %v3776 = vrot.slane %v3775, 2
    %v3777 = vadd.f32 %v3775, %v3776
    %v3778 = vrot.slane %v3777, 1
    %v3779 = vadd.f32 %v3777, %v3778
    %v3780 = vsel %vm148, %v3613, 0.0
    %v3781 = vsel %vm148, %v3615, 0.0
    %v3782 = vadd.f32 %v3780, %v3781
    %v3783 = vsel %vm768, %v3617, 0.0
    %v3784 = vadd.f32 %v3782, %v3783
    %v3785 = vrot.slane %v3784, 4
    %v3786 = vadd.f32 %v3784, %v3785
    %v3787 = vrot.slane %v3786, 2
    %v3788 = vadd.f32 %v3786, %v3787
    %v3789 = vrot.slane %v3788, 1
    %v3790 = vadd.f32 %v3788, %v3789
    %v3791 = vsel %vm148, %v3619, 0.0
    %v3792 = vsel %vm148, %v3621, 0.0
    %v3793 = vadd.f32 %v3791, %v3792
    %v3794 = vsel %vm768, %v3623, 0.0
    %v3795 = vadd.f32 %v3793, %v3794
    %v3796 = vrot.slane %v3795, 4
    %v3797 = vadd.f32 %v3795, %v3796
    %v3798 = vrot.slane %v3797, 2
    %v3799 = vadd.f32 %v3797, %v3798
    %v3800 = vrot.slane %v3799, 1
    %v3801 = vadd.f32 %v3799, %v3800
    %v3802 = vsel %vm148, %v3625, 0.0
    %v3803 = vsel %vm148, %v3627, 0.0
    %v3804 = vadd.f32 %v3802, %v3803
    %v3805 = vsel %vm768, %v3629, 0.0
    %v3806 = vadd.f32 %v3804, %v3805
    %v3807 = vrot.slane %v3806, 4
    %v3808 = vadd.f32 %v3806, %v3807
    %v3809 = vrot.slane %v3808, 2
    %v3810 = vadd.f32 %v3808, %v3809
    %v3811 = vrot.slane %v3810, 1
    %v3812 = vadd.f32 %v3810, %v3811
    %v3813 = vsel %vm148, %v3631, 0.0
    %v3814 = vsel %vm148, %v3633, 0.0
    %v3815 = vadd.f32 %v3813, %v3814
    %v3816 = vsel %vm768, %v3635, 0.0
    %v3817 = vadd.f32 %v3815, %v3816
    %v3818 = vrot.slane %v3817, 4
    %v3819 = vadd.f32 %v3817, %v3818
    %v3820 = vrot.slane %v3819, 2
    %v3821 = vadd.f32 %v3819, %v3820
    %v3822 = vrot.slane %v3821, 1
    %v3823 = vadd.f32 %v3821, %v3822
    %v3824 = vsel %vm148, %v3637, 0.0
    %v3825 = vsel %vm148, %v3639, 0.0
    %v3826 = vadd.f32 %v3824, %v3825
    %v3827 = vsel %vm768, %v3641, 0.0
    %v3828 = vadd.f32 %v3826, %v3827
    %v3829 = vrot.slane %v3828, 4
    %v3830 = vadd.f32 %v3828, %v3829
    %v3831 = vrot.slane %v3830, 2
    %v3832 = vadd.f32 %v3830, %v3831
    %v3833 = vrot.slane %v3832, 1
    %v3834 = vadd.f32 %v3832, %v3833
    %v3835 = vsel %vm148, %v3643, 0.0
    %v3836 = vsel %vm148, %v3645, 0.0
    %v3837 = vadd.f32 %v3835, %v3836
    %v3838 = vsel %vm768, %v3647, 0.0
    %v3839 = vadd.f32 %v3837, %v3838
    %v3840 = vrot.slane %v3839, 4
    %v3841 = vadd.f32 %v3839, %v3840
    %v3842 = vrot.slane %v3841, 2
    %v3843 = vadd.f32 %v3841, %v3842
    %v3844 = vrot.slane %v3843, 1
    %v3845 = vadd.f32 %v3843, %v3844
    %v3846 = vrcp.pop %v3658
    %v3847 = vrcp.pop %v3669
    %v3848 = vrcp.pop %v3680
    %v3849 = vrcp.pop %v3691
    %v3850 = vrcp.pop %v3702
    %v3851 = vrcp.pop %v3713
    %v3852 = vrcp.pop %v3724
    %v3853 = vrcp.pop %v3735
    %v3854 = vrcp.pop %v3746
    %v3855 = vrcp.pop %v3757
    %v3856 = vrcp.pop %v3768
    %v3857 = vrcp.pop %v3779
    %v3858 = vrcp.pop %v3790
    %v3859 = vrcp.pop %v3801
    %v3860 = vrcp.pop %v3812
    %v3861 = vrcp.pop %v3823
    %v3862 = vrcp.pop %v3834
    %v3863 = vrcp.pop %v3845
    %v3864 = vmul.f32 %v3541, %v3846
    %v3865 = vmul.f32 %v3543, %v3846
    %v3866 = vmul.f32 %v3545, %v3846
    %v3867 = vmul.f32 %v3547, %v3847
    %v3868 = vmul.f32 %v3549, %v3847
    %v3869 = vmul.f32 %v3551, %v3847
    %v3870 = vmul.f32 %v3553, %v3848
    %v3871 = vmul.f32 %v3555, %v3848
    %v3872 = vmul.f32 %v3557, %v3848
    %v3873 = vmul.f32 %v3559, %v3849
    %v3874 = vmul.f32 %v3561, %v3849
    %v3875 = vmul.f32 %v3563, %v3849
    %v3876 = vmul.f32 %v3565, %v3850
    %v3877 = vmul.f32 %v3567, %v3850
    %v3878 = vmul.f32 %v3569, %v3850
    %v3879 = vmul.f32 %v3571, %v3851
    %v3880 = vmul.f32 %v3573, %v3851
    %v3881 = vmul.f32 %v3575, %v3851
    %v3882 = vmul.f32 %v3577, %v3852
    %v3883 = vmul.f32 %v3579, %v3852
    %v3884 = vmul.f32 %v3581, %v3852
    %v3885 = vmul.f32 %v3583, %v3853
    %v3886 = vmul.f32 %v3585, %v3853
    %v3887 = vmul.f32 %v3587, %v3853
    %v3888 = vmul.f32 %v3589, %v3854
    %v3889 = vmul.f32 %v3591, %v3854
    %v3890 = vmul.f32 %v3593, %v3854
    %v3891 = vmul.f32 %v3595, %v3855
    %v3892 = vmul.f32 %v3597, %v3855
    %v3893 = vmul.f32 %v3599, %v3855
    %v3894 = vmul.f32 %v3601, %v3856
    %v3895 = vmul.f32 %v3603, %v3856
    %v3896 = vmul.f32 %v3605, %v3856
    %v3897 = vmul.f32 %v3607, %v3857
    %v3898 = vmul.f32 %v3609, %v3857
    %v3899 = vmul.f32 %v3611, %v3857
    %v3900 = vmul.f32 %v3613, %v3858
    %v3901 = vmul.f32 %v3615, %v3858
    %v3902 = vmul.f32 %v3617, %v3858
    %v3903 = vmul.f32 %v3619, %v3859
    %v3904 = vmul.f32 %v3621, %v3859
    %v3905 = vmul.f32 %v3623, %v3859
    %v3906 = vmul.f32 %v3625, %v3860
    %v3907 = vmul.f32 %v3627, %v3860
    %v3908 = vmul.f32 %v3629, %v3860
    %v3909 = vmul.f32 %v3631, %v3861
    %v3910 = vmul.f32 %v3633, %v3861
    %v3911 = vmul.f32 %v3635, %v3861
    %v3912 = vmul.f32 %v3637, %v3862
    %v3913 = vmul.f32 %v3639, %v3862
    %v3914 = vmul.f32 %v3641, %v3862
    %v3915 = vmul.f32 %v3643, %v3863
    %v3916 = vmul.f32 %v3645, %v3863
    %v3917 = vmul.f32 %v3647, %v3863
    %3918 = vrot.lane.b32.xlu0 %v2621, 118
    %v3919 = vpop.permute.xlu0 %3918
    %3920 = vrot.lane.b32.xlu0 %v2626, 118
    %v3921 = vpop.permute.xlu0 %3920
    %3922 = vrot.lane.b32.xlu0 %v2631, 118
    %v3923 = vpop.permute.xlu0 %3922
    %v3927 = vmul.f32 %v3864, %v3919
    %v3928 = vmul.f32 %v3865, %v3921
    %v3929 = vmul.f32 %v3866, %v3923
    %v3930 = vmul.f32 %v3867, %v3919
    %v3931 = vmul.f32 %v3868, %v3921
    %v3932 = vmul.f32 %v3869, %v3923
    %v3933 = vmul.f32 %v3870, %v3919
    %v3934 = vmul.f32 %v3871, %v3921
    %v3935 = vmul.f32 %v3872, %v3923
    %v3936 = vmul.f32 %v3873, %v3919
    %v3937 = vmul.f32 %v3874, %v3921
    %v3938 = vmul.f32 %v3875, %v3923
    %v3939 = vmul.f32 %v3876, %v3919
    %v3940 = vmul.f32 %v3877, %v3921
    %v3941 = vmul.f32 %v3878, %v3923
    %v3942 = vmul.f32 %v3879, %v3919
    %v3943 = vmul.f32 %v3880, %v3921
    %v3944 = vmul.f32 %v3881, %v3923
    %v3945 = vmul.f32 %v3882, %v3919
    %v3946 = vmul.f32 %v3883, %v3921
    %v3947 = vmul.f32 %v3884, %v3923
    %v3948 = vmul.f32 %v3885, %v3919
    %v3949 = vmul.f32 %v3886, %v3921
    %v3950 = vmul.f32 %v3887, %v3923
    %v3951 = vmul.f32 %v3888, %v3919
    %v3952 = vmul.f32 %v3889, %v3921
    %v3953 = vmul.f32 %v3890, %v3923
    %v3954 = vmul.f32 %v3891, %v3919
    %v3955 = vmul.f32 %v3892, %v3921
    %v3956 = vmul.f32 %v3893, %v3923
    %v3957 = vmul.f32 %v3894, %v3919
    %v3958 = vmul.f32 %v3895, %v3921
    %v3959 = vmul.f32 %v3896, %v3923
    %v3960 = vmul.f32 %v3897, %v3919
    %v3961 = vmul.f32 %v3898, %v3921
    %v3962 = vmul.f32 %v3899, %v3923
    %v3963 = vmul.f32 %v3900, %v3919
    %v3964 = vmul.f32 %v3901, %v3921
    %v3965 = vmul.f32 %v3902, %v3923
    %v3966 = vmul.f32 %v3903, %v3919
    %v3967 = vmul.f32 %v3904, %v3921
    %v3968 = vmul.f32 %v3905, %v3923
    %v3969 = vmul.f32 %v3906, %v3919
    %v3970 = vmul.f32 %v3907, %v3921
    %v3971 = vmul.f32 %v3908, %v3923
    %v3972 = vmul.f32 %v3909, %v3919
    %v3973 = vmul.f32 %v3910, %v3921
    %v3974 = vmul.f32 %v3911, %v3923
    %v3975 = vmul.f32 %v3912, %v3919
    %v3976 = vmul.f32 %v3913, %v3921
    %v3977 = vmul.f32 %v3914, %v3923
    %v3978 = vmul.f32 %v3915, %v3919
    %v3979 = vmul.f32 %v3916, %v3921
    %v3980 = vmul.f32 %v3917, %v3923
    %v3981 = vsel %vm148, %v3927, 0.0
    %v3982 = vsel %vm148, %v3928, 0.0
    %v3983 = vadd.f32 %v3981, %v3982
    %v3984 = vsel %vm768, %v3929, 0.0
    %v3985 = vadd.f32 %v3983, %v3984
    %v3986 = vrot.slane %v3985, 4
    %v3987 = vadd.f32 %v3985, %v3986
    %v3988 = vrot.slane %v3987, 2
    %v3989 = vadd.f32 %v3987, %v3988
    %v3990 = vrot.slane %v3989, 1
    %v3991 = vadd.f32 %v3989, %v3990
    %v3992 = vsel %vm148, %v3930, 0.0
    %v3993 = vsel %vm148, %v3931, 0.0
    %v3994 = vadd.f32 %v3992, %v3993
    %v3995 = vsel %vm768, %v3932, 0.0
    %v3996 = vadd.f32 %v3994, %v3995
    %v3997 = vrot.slane %v3996, 4
    %v3998 = vadd.f32 %v3996, %v3997
    %v3999 = vrot.slane %v3998, 2
    %v4000 = vadd.f32 %v3998, %v3999
    %v4001 = vrot.slane %v4000, 1
    %v4002 = vadd.f32 %v4000, %v4001
    %v4003 = vsel %vm148, %v3933, 0.0
    %v4004 = vsel %vm148, %v3934, 0.0
    %v4005 = vadd.f32 %v4003, %v4004
    %v4006 = vsel %vm768, %v3935, 0.0
    %v4007 = vadd.f32 %v4005, %v4006
    %v4008 = vrot.slane %v4007, 4
    %v4009 = vadd.f32 %v4007, %v4008
    %v4010 = vrot.slane %v4009, 2
    %v4011 = vadd.f32 %v4009, %v4010
    %v4012 = vrot.slane %v4011, 1
    %v4013 = vadd.f32 %v4011, %v4012
    %v4014 = vsel %vm148, %v3936, 0.0
    %v4015 = vsel %vm148, %v3937, 0.0
    %v4016 = vadd.f32 %v4014, %v4015
    %v4017 = vsel %vm768, %v3938, 0.0
    %v4018 = vadd.f32 %v4016, %v4017
    %v4019 = vrot.slane %v4018, 4
    %v4020 = vadd.f32 %v4018, %v4019
    %v4021 = vrot.slane %v4020, 2
    %v4022 = vadd.f32 %v4020, %v4021
    %v4023 = vrot.slane %v4022, 1
    %v4024 = vadd.f32 %v4022, %v4023
    %v4025 = vsel %vm148, %v3939, 0.0
    %v4026 = vsel %vm148, %v3940, 0.0
    %v4027 = vadd.f32 %v4025, %v4026
    %v4028 = vsel %vm768, %v3941, 0.0
    %v4029 = vadd.f32 %v4027, %v4028
    %v4030 = vrot.slane %v4029, 4
    %v4031 = vadd.f32 %v4029, %v4030
    %v4032 = vrot.slane %v4031, 2
    %v4033 = vadd.f32 %v4031, %v4032
    %v4034 = vrot.slane %v4033, 1
    %v4035 = vadd.f32 %v4033, %v4034
    %v4036 = vsel %vm148, %v3942, 0.0
    %v4037 = vsel %vm148, %v3943, 0.0
    %v4038 = vadd.f32 %v4036, %v4037
    %v4039 = vsel %vm768, %v3944, 0.0
    %v4040 = vadd.f32 %v4038, %v4039
    %v4041 = vrot.slane %v4040, 4
    %v4042 = vadd.f32 %v4040, %v4041
    %v4043 = vrot.slane %v4042, 2
    %v4044 = vadd.f32 %v4042, %v4043
    %v4045 = vrot.slane %v4044, 1
    %v4046 = vadd.f32 %v4044, %v4045
    %v4047 = vsel %vm148, %v3945, 0.0
    %v4048 = vsel %vm148, %v3946, 0.0
    %v4049 = vadd.f32 %v4047, %v4048
    %v4050 = vsel %vm768, %v3947, 0.0
    %v4051 = vadd.f32 %v4049, %v4050
    %v4052 = vrot.slane %v4051, 4
    %v4053 = vadd.f32 %v4051, %v4052
    %v4054 = vrot.slane %v4053, 2
    %v4055 = vadd.f32 %v4053, %v4054
    %v4056 = vrot.slane %v4055, 1
    %v4057 = vadd.f32 %v4055, %v4056
    %v4058 = vsel %vm148, %v3948, 0.0
    %v4059 = vsel %vm148, %v3949, 0.0
    %v4060 = vadd.f32 %v4058, %v4059
    %v4061 = vsel %vm768, %v3950, 0.0
    %v4062 = vadd.f32 %v4060, %v4061
    %v4063 = vrot.slane %v4062, 4
    %v4064 = vadd.f32 %v4062, %v4063
    %v4065 = vrot.slane %v4064, 2
    %v4066 = vadd.f32 %v4064, %v4065
    %v4067 = vrot.slane %v4066, 1
    %v4068 = vadd.f32 %v4066, %v4067
    %v4069 = vsel %vm148, %v3951, 0.0
    %v4070 = vsel %vm148, %v3952, 0.0
    %v4071 = vadd.f32 %v4069, %v4070
    %v4072 = vsel %vm768, %v3953, 0.0
    %v4073 = vadd.f32 %v4071, %v4072
    %v4074 = vrot.slane %v4073, 4
    %v4075 = vadd.f32 %v4073, %v4074
    %v4076 = vrot.slane %v4075, 2
    %v4077 = vadd.f32 %v4075, %v4076
    %v4078 = vrot.slane %v4077, 1
    %v4079 = vadd.f32 %v4077, %v4078
    %v4080 = vsel %vm148, %v3954, 0.0
    %v4081 = vsel %vm148, %v3955, 0.0
    %v4082 = vadd.f32 %v4080, %v4081
    %v4083 = vsel %vm768, %v3956, 0.0
    %v4084 = vadd.f32 %v4082, %v4083
    %v4085 = vrot.slane %v4084, 4
    %v4086 = vadd.f32 %v4084, %v4085
    %v4087 = vrot.slane %v4086, 2
    %v4088 = vadd.f32 %v4086, %v4087
    %v4089 = vrot.slane %v4088, 1
    %v4090 = vadd.f32 %v4088, %v4089
    %v4091 = vsel %vm148, %v3957, 0.0
    %v4092 = vsel %vm148, %v3958, 0.0
    %v4093 = vadd.f32 %v4091, %v4092
    %v4094 = vsel %vm768, %v3959, 0.0
    %v4095 = vadd.f32 %v4093, %v4094
    %v4096 = vrot.slane %v4095, 4
    %v4097 = vadd.f32 %v4095, %v4096
    %v4098 = vrot.slane %v4097, 2
    %v4099 = vadd.f32 %v4097, %v4098
    %v4100 = vrot.slane %v4099, 1
    %v4101 = vadd.f32 %v4099, %v4100
    %v4102 = vsel %vm148, %v3960, 0.0
    %v4103 = vsel %vm148, %v3961, 0.0
    %v4104 = vadd.f32 %v4102, %v4103
    %v4105 = vsel %vm768, %v3962, 0.0
    %v4106 = vadd.f32 %v4104, %v4105
    %v4107 = vrot.slane %v4106, 4
    %v4108 = vadd.f32 %v4106, %v4107
    %v4109 = vrot.slane %v4108, 2
    %v4110 = vadd.f32 %v4108, %v4109
    %v4111 = vrot.slane %v4110, 1
    %v4112 = vadd.f32 %v4110, %v4111
    %v4113 = vsel %vm148, %v3963, 0.0
    %v4114 = vsel %vm148, %v3964, 0.0
    %v4115 = vadd.f32 %v4113, %v4114
    %v4116 = vsel %vm768, %v3965, 0.0
    %v4117 = vadd.f32 %v4115, %v4116
    %v4118 = vrot.slane %v4117, 4
    %v4119 = vadd.f32 %v4117, %v4118
    %v4120 = vrot.slane %v4119, 2
    %v4121 = vadd.f32 %v4119, %v4120
    %v4122 = vrot.slane %v4121, 1
    %v4123 = vadd.f32 %v4121, %v4122
    %v4124 = vsel %vm148, %v3966, 0.0
    %v4125 = vsel %vm148, %v3967, 0.0
    %v4126 = vadd.f32 %v4124, %v4125
    %v4127 = vsel %vm768, %v3968, 0.0
    %v4128 = vadd.f32 %v4126, %v4127
    %v4129 = vrot.slane %v4128, 4
    %v4130 = vadd.f32 %v4128, %v4129
    %v4131 = vrot.slane %v4130, 2
    %v4132 = vadd.f32 %v4130, %v4131
    %v4133 = vrot.slane %v4132, 1
    %v4134 = vadd.f32 %v4132, %v4133
    %v4135 = vsel %vm148, %v3969, 0.0
    %v4136 = vsel %vm148, %v3970, 0.0
    %v4137 = vadd.f32 %v4135, %v4136
    %v4138 = vsel %vm768, %v3971, 0.0
    %v4139 = vadd.f32 %v4137, %v4138
    %v4140 = vrot.slane %v4139, 4
    %v4141 = vadd.f32 %v4139, %v4140
    %v4142 = vrot.slane %v4141, 2
    %v4143 = vadd.f32 %v4141, %v4142
    %v4144 = vrot.slane %v4143, 1
    %v4145 = vadd.f32 %v4143, %v4144
    %v4146 = vsel %vm148, %v3972, 0.0
    %v4147 = vsel %vm148, %v3973, 0.0
    %v4148 = vadd.f32 %v4146, %v4147
    %v4149 = vsel %vm768, %v3974, 0.0
    %v4150 = vadd.f32 %v4148, %v4149
    %v4151 = vrot.slane %v4150, 4
    %v4152 = vadd.f32 %v4150, %v4151
    %v4153 = vrot.slane %v4152, 2
    %v4154 = vadd.f32 %v4152, %v4153
    %v4155 = vrot.slane %v4154, 1
    %v4156 = vadd.f32 %v4154, %v4155
    %v4157 = vsel %vm148, %v3975, 0.0
    %v4158 = vsel %vm148, %v3976, 0.0
    %v4159 = vadd.f32 %v4157, %v4158
    %v4160 = vsel %vm768, %v3977, 0.0
    %v4161 = vadd.f32 %v4159, %v4160
    %v4162 = vrot.slane %v4161, 4
    %v4163 = vadd.f32 %v4161, %v4162
    %v4164 = vrot.slane %v4163, 2
    %v4165 = vadd.f32 %v4163, %v4164
    %v4166 = vrot.slane %v4165, 1
    %v4167 = vadd.f32 %v4165, %v4166
    %v4168 = vsel %vm148, %v3978, 0.0
    %v4169 = vsel %vm148, %v3979, 0.0
    %v4170 = vadd.f32 %v4168, %v4169
    %v4171 = vsel %vm768, %v3980, 0.0
    %v4172 = vadd.f32 %v4170, %v4171
    %v4173 = vrot.slane %v4172, 4
    %v4174 = vadd.f32 %v4172, %v4173
    %v4175 = vrot.slane %v4174, 2
    %v4176 = vadd.f32 %v4174, %v4175
    %v4177 = vrot.slane %v4176, 1
    %v4178 = vadd.f32 %v4176, %v4177
    %v4179 = vld [vmem:[%s43] sm:$0x1f]
    %v4180 = vld [vmem:[%s45] sm:$0x1]
    %v4182 = vlaneseq
    %v4183 = vshrl.u32 %v4182, 7
    %v4184 = vsub.s32 0, %v4183
    %v4185 = vrot.slane %v4180, %v4184
    %vm4205 = vcmask 1041409
    %v4206 = vsel %vm4205, %v4002, %v3991
    %vm4207 = vcmask 1042434
    %v4208 = vsel %vm4207, %v4013, %v4206
    %vm4209 = vcmask 1043459
    %v4210 = vsel %vm4209, %v4024, %v4208
    %vm4211 = vcmask 1044484
    %v4212 = vsel %vm4211, %v4035, %v4210
    %vm4213 = vcmask 1045509
    %v4214 = vsel %vm4213, %v4046, %v4212
    %vm4215 = vcmask 1046534
    %v4216 = vsel %vm4215, %v4057, %v4214
    %vm4217 = vcmask 1047559
    %v4218 = vsel %vm4217, %v4068, %v4216
    %v4219 = vsel %vm4205, %v4090, %v4079
    %v4220 = vsel %vm4207, %v4101, %v4219
    %v4221 = vsel %vm4209, %v4112, %v4220
    %v4222 = vsel %vm4211, %v4123, %v4221
    %v4223 = vsel %vm4213, %v4134, %v4222
    %v4224 = vsel %vm4215, %v4145, %v4223
    %v4225 = vsel %vm4217, %v4156, %v4224
    %v4226 = vsel %vm4205, %v4178, %v4167
    %v4227 = vsel %vm148, %v4218, 0
    %v4229 = vsel %vm148, %v4225, 0
    %v4231 = vsel %vm148, %v4226, 0
    %v4234 = vsel %vm200, %v4179, 0
    %4236 = vmatprep.subr.mxu0 0.0
    %4237 = vmatpush1.msra.mxu0 0.0
    %4238 = vmatprep.subr.mxu0 0.0
    %4239 = vmatpush1.msra.mxu0 0.0
    %4240 = vmatprep.subr.mxu0 0.0
    %4241 = vmatpush1.msra.mxu0 0.0
    %4242 = vmatprep.subr.mxu0 0.0
    %4243 = vmatpush1.msra.mxu0 0.0
    %4244 = vmatprep.subr.mxu0 0.0
    %4245 = vmatpush1.msra.mxu0 0.0
    %4246 = vmatprep.subr.mxu0 0.0
    %4247 = vmatpush1.msra.mxu0 0.0
    %4248 = vmatprep.subr.mxu0 0.0
    %4249 = vmatpush1.msra.mxu0 0.0
    %4250 = vmatprep.subr.mxu0 0.0
    %4251 = vmatpush1.msra.mxu0 0.0
    %4252 = vmatprep.subr.mxu0 0.0
    %4253 = vmatpush1.msra.mxu0 0.0
    %4254 = vmatprep.subr.mxu0 0.0
    %4255 = vmatpush1.msra.mxu0 0.0
    %4256 = vmatprep.subr.mxu0 0.0
    %4257 = vmatpush1.msra.mxu0 0.0
    %4258 = vmatprep.subr.mxu0 0.0
    %4259 = vmatpush1.msra.mxu0 0.0
    %4260 = vmatprep.subr.mxu0 0.0
    %4261 = vmatpush1.msra.mxu0 0.0
    %4262 = vmatprep.subr.mxu0 0.0
    %4263 = vmatpush1.msra.mxu0 0.0
    %4264 = vmatprep.subr.mxu0 0.0
    %4265 = vmatpush1.msra.mxu0 0.0
    %4266 = vmatprep.subr.mxu0 0.0
    %4267 = vmatpush1.msra.mxu0 %v4234
    %4268 = vmatprep.subr.mxu0 0.0
    %4269 = vmatpush2.msra.mxu0 0.0
    %4270 = vmatprep.subr.mxu0 0.0
    %4271 = vmatpush2.msra.mxu0 0.0
    %4272 = vmatprep.subr.mxu0 0.0
    %4273 = vmatpush2.msra.mxu0 0.0
    %4274 = vmatprep.subr.mxu0 0.0
    %4275 = vmatpush2.msra.mxu0 0.0
    %4276 = vmatprep.subr.mxu0 0.0
    %4277 = vmatpush2.msra.mxu0 0.0
    %4278 = vmatprep.subr.mxu0 0.0
    %4279 = vmatpush2.msra.mxu0 0.0
    %4280 = vmatprep.subr.mxu0 0.0
    %4281 = vmatpush2.msra.mxu0 0.0
    %4282 = vmatprep.subr.mxu0 0.0
    %4283 = vmatpush2.msra.mxu0 0.0
    %4284 = vmatprep.subr.mxu0 0.0
    %4285 = vmatpush2.msra.mxu0 0.0
    %4286 = vmatprep.subr.mxu0 0.0
    %4287 = vmatpush2.msra.mxu0 0.0
    %4288 = vmatprep.subr.mxu0 0.0
    %4289 = vmatpush2.msra.mxu0 0.0
    %4290 = vmatprep.subr.mxu0 0.0
    %4291 = vmatpush2.msra.mxu0 0.0
    %4292 = vmatprep.subr.mxu0 0.0
    %4293 = vmatpush2.msra.mxu0 0.0
    %4294 = vmatprep.subr.mxu0 0.0
    %4295 = vmatpush2.msra.mxu0 0.0
    %4296 = vmatprep.subr.mxu0 0.0
    %4297 = vmatpush2.msra.mxu0 0.0
    %4298 = vmatprep.subr.mxu0 0.0
    %4299 = vmatpush2.msra.mxu0 0.0
    %4300 = vmatprep.mubr.f32.mxu0 0.0
    %4301 = vmatmul.mubr.f32.gmra.mxu0 %v4227
    %v4302 = vpop.f32.mrf.mxu0
    %v4303 = vadd.f32 %v4185, %v4302
    %v4304 = vpop.f32.mrf.mxu0
    %4305 = vmatprep.mubr.f32.mxu0 0.0
    %4306 = vmatmul.mubr.f32.gmra.mxu0 %v4229
    %v4307 = vpop.f32.mrf.mxu0
    %v4308 = vadd.f32 %v4185, %v4307
    %v4309 = vpop.f32.mrf.mxu0
    %4310 = vmatprep.mubr.f32.mxu0 0.0
    %4311 = vmatmul.mubr.f32.gmra.mxu0 %v4231
    %v4312 = vpop.f32.mrf.mxu0
    %v4313 = vadd.f32 %v4185, %v4312
    %v4314 = vpop.f32.mrf.mxu0
    %4315 = vdwg.mxu0
    %v4319 = vrot.slane %v4303, 2
    %v4320 = vrot.slane %v4308, 2
    %v4321 = vsel %vm2149, %v4319, %v4320
    %v4322 = vrot.slane %v4313, 2
    %v4323 = vsel %vm2149, %v4320, %v4322
    %4324 = vrot.lane.b32.xlu0 %v4319, 5
    %v4325 = vpop.permute.xlu0 %4324
    %4326 = vrot.lane.b32.xlu0 %v4321, 5
    %v4327 = vpop.permute.xlu0 %4326
    %4328 = vrot.lane.b32.xlu0 %v4323, 5
    %v4329 = vpop.permute.xlu0 %4328
    %v4333 = vadd.f32 %v2520, %v4325
    %v4334 = vadd.f32 %v2521, %v4327
    %v4335 = vadd.f32 %v2522, %v4329
    %v4336 = vld [vmem:[%s47] sm:$0x1]
    %v4337 = vld [vmem:[%s49] sm:$0x1]
    %4341 = vrot.lane.b32.xlu0 %v4333, 123
    %v4342 = vpop.permute.xlu0 %4341
    %4343 = vrot.lane.b32.xlu0 %v4334, 123
    %v4344 = vpop.permute.xlu0 %4343
    %4345 = vrot.lane.b32.xlu0 %v4335, 123
    %v4346 = vpop.permute.xlu0 %4345
    %vm4350 = vcmask 39942
    %v4351 = vsel %vm4350, %v4342, 0.0
    %4352 = vadd.xlane.f32.xlu0 %v4351
    %v4353 = vpop.xlane.xlu0 %4352
    %v4354 = vsel %vm148, %v4344, 0.0
    %4355 = vadd.xlane.f32.xlu0 %v4354
    %v4356 = vpop.xlane.xlu0 %4355
    %v4357 = vsel %vm148, %v4346, 0.0
    %4358 = vadd.xlane.f32.xlu0 %v4357
    %v4359 = vpop.xlane.xlu0 %4358
    %v4360 = vmul.f32 %v4353, %v156
    %v4361 = vmul.f32 %v4356, %v156
    %v4362 = vmul.f32 %v4359, %v156
    %v4363 = vsub.f32 %v4333, %v4360
    %v4364 = vsub.f32 %v4334, %v4361
    %v4365 = vsub.f32 %v4335, %v4362
    %v4366 = vmul.f32 %v4363, %v4363
    %v4367 = vmul.f32 %v4364, %v4364
    %v4368 = vmul.f32 %v4365, %v4365
    %4372 = vrot.lane.b32.xlu0 %v4366, 123
    %v4373 = vpop.permute.xlu0 %4372
    %4374 = vrot.lane.b32.xlu0 %v4367, 123
    %v4375 = vpop.permute.xlu0 %4374
    %4376 = vrot.lane.b32.xlu0 %v4368, 123
    %v4377 = vpop.permute.xlu0 %4376
    %v4381 = vsel %vm4350, %v4373, 0.0
    %4382 = vadd.xlane.f32.xlu0 %v4381
    %v4383 = vpop.xlane.xlu0 %4382
    %v4384 = vsel %vm148, %v4375, 0.0
    %4385 = vadd.xlane.f32.xlu0 %v4384
    %v4386 = vpop.xlane.xlu0 %4385
    %v4387 = vsel %vm148, %v4377, 0.0
    %4388 = vadd.xlane.f32.xlu0 %v4387
    %v4389 = vpop.xlane.xlu0 %4388
    %v4390 = vmul.f32 %v4383, %v156
    %v4391 = vmul.f32 %v4386, %v156
    %v4392 = vmul.f32 %v4389, %v156
    %v4393 = vadd.f32 %v4390, 1e-05
    %v4394 = vadd.f32 %v4391, 1e-05
    %v4395 = vadd.f32 %v4392, 1e-05
    %v4396 = vrsqrt.pop %v4393
    %v4397 = vrsqrt.pop %v4394
    %v4398 = vrsqrt.pop %v4395
    %v4399 = vmul.f32 %v4363, %v4396
    %v4400 = vmul.f32 %v4364, %v4397
    %v4401 = vmul.f32 %v4365, %v4398
    %v4403 = vlaneseq
    %v4404 = vshrl.u32 %v4403, 7
    %v4405 = vsub.s32 0, %v4404
    %v4406 = vrot.slane %v4336, %v4405
    %4407 = vrot.lane.b32.xlu0 %v4406, 5
    %v4408 = vpop.permute.xlu0 %4407
    %v4410 = vmul.f32 %v4399, %v4408
    %v4411 = vmul.f32 %v4400, %v4408
    %v4412 = vmul.f32 %v4401, %v4408
    %v4414 = vlaneseq
    %v4415 = vshrl.u32 %v4414, 7
    %v4416 = vsub.s32 0, %v4415
    %v4417 = vrot.slane %v4337, %v4416
    %4418 = vrot.lane.b32.xlu0 %v4417, 5
    %v4419 = vpop.permute.xlu0 %4418
    %v4421 = vadd.f32 %v4410, %v4419
    %v4422 = vadd.f32 %v4411, %v4419
    %v4423 = vadd.f32 %v4412, %v4419
    %v4424 = vld [vmem:[%s51] sm:$0x1f]
    %v4425 = vld [vmem:[%s51 + $0x8] sm:$0x1f]
    %v4426 = vld [vmem:[%s51 + $0x10] sm:$0x1f]
    %v4427 = vld [vmem:[%s51 + $0x18] sm:$0x1f]
    %v4428 = vld [vmem:[%s51 + $0x20] sm:$0x1f]
    %v4429 = vld [vmem:[%s51 + $0x28] sm:$0x1f]
    %v4430 = vld [vmem:[%s51 + $0x30] sm:$0x1f]
    %v4431 = vld [vmem:[%s51 + $0x38] sm:$0x1f]
    %v4432 = vld [vmem:[%s51 + $0x40] sm:$0x1f]
    %v4433 = vld [vmem:[%s51 + $0x48] sm:$0x1f]
    %v4434 = vld [vmem:[%s51 + $0x50] sm:$0x1f]
    %v4435 = vld [vmem:[%s51 + $0x58] sm:$0x1f]
    %v4436 = vld [vmem:[%s51 + $0x60] sm:$0x1f]
    %v4437 = vld [vmem:[%s51 + $0x68] sm:$0x1f]
    %v4438 = vld [vmem:[%s51 + $0x70] sm:$0x1f]
    %v4439 = vld [vmem:[%s51 + $0x78] sm:$0x1f]
    %v4440 = vld [vmem:[%s53] sm:$0xff]
    %v4441 = vld [vmem:[%s53 + $0x8] sm:$0xff]
    %v4444 = vlaneseq
    %v4445 = vshrl.u32 %v4444, 7
    %v4446 = vsub.s32 0, %v4445
    %v4447 = vrot.slane %v4440, %v4446
    %v4448 = vlaneseq
    %v4449 = vshrl.u32 %v4448, 7
    %v4450 = vsub.s32 1, %v4449
    %v4451 = vrot.slane %v4440, %v4450
    %v4452 = vlaneseq
    %v4453 = vshrl.u32 %v4452, 7
    %v4454 = vsub.s32 2, %v4453
    %v4455 = vrot.slane %v4440, %v4454
    %v4456 = vlaneseq
    %v4457 = vshrl.u32 %v4456, 7
    %v4458 = vsub.s32 3, %v4457
    %v4459 = vrot.slane %v4440, %v4458
    %v4460 = vlaneseq
    %v4461 = vshrl.u32 %v4460, 7
    %v4462 = vsub.s32 4, %v4461
    %v4463 = vrot.slane %v4440, %v4462
    %v4464 = vlaneseq
    %v4465 = vshrl.u32 %v4464, 7
    %v4466 = vsub.s32 5, %v4465
    %v4467 = vrot.slane %v4440, %v4466
    %v4468 = vlaneseq
    %v4469 = vshrl.u32 %v4468, 7
    %v4470 = vsub.s32 6, %v4469
    %v4471 = vrot.slane %v4440, %v4470
    %v4472 = vlaneseq
    %v4473 = vshrl.u32 %v4472, 7
    %v4474 = vsub.s32 7, %v4473
    %v4475 = vrot.slane %v4440, %v4474
    %v4476 = vlaneseq
    %v4477 = vshrl.u32 %v4476, 7
    %v4478 = vsub.s32 0, %v4477
    %v4479 = vrot.slane %v4441, %v4478
    %v4480 = vlaneseq
    %v4481 = vshrl.u32 %v4480, 7
    %v4482 = vsub.s32 1, %v4481
    %v4483 = vrot.slane %v4441, %v4482
    %v4484 = vlaneseq
    %v4485 = vshrl.u32 %v4484, 7
    %v4486 = vsub.s32 2, %v4485
    %v4487 = vrot.slane %v4441, %v4486
    %v4488 = vlaneseq
    %v4489 = vshrl.u32 %v4488, 7
    %v4490 = vsub.s32 3, %v4489
    %v4491 = vrot.slane %v4441, %v4490
    %v4492 = vlaneseq
    %v4493 = vshrl.u32 %v4492, 7
    %v4494 = vsub.s32 4, %v4493
    %v4495 = vrot.slane %v4441, %v4494
    %v4496 = vlaneseq
    %v4497 = vshrl.u32 %v4496, 7
    %v4498 = vsub.s32 5, %v4497
    %v4499 = vrot.slane %v4441, %v4498
    %v4500 = vlaneseq
    %v4501 = vshrl.u32 %v4500, 7
    %v4502 = vsub.s32 6, %v4501
    %v4503 = vrot.slane %v4441, %v4502
    %v4504 = vlaneseq
    %v4505 = vshrl.u32 %v4504, 7
    %v4506 = vsub.s32 7, %v4505
    %v4507 = vrot.slane %v4441, %v4506
    %v4527 = vrot.slane %v4421, 6
    %v4528 = vrot.slane %v4422, 6
    %v4529 = vsel %vm1267, %v4527, %v4528
    %v4530 = vrot.slane %v4423, 6
    %v4531 = vsel %vm1267, %v4528, %v4530
    %4532 = vrot.lane.b32.xlu0 %v4529, 123
    %v4533 = vpop.permute.xlu0 %4532
    %4534 = vrot.lane.b32.xlu0 %v4531, 123
    %v4535 = vpop.permute.xlu0 %4534
    %4536 = vrot.lane.b32.xlu0 %v4530, 123
    %v4537 = vpop.permute.xlu0 %4536
    %v4538 = vsel %vm148, %v4533, 0
    %v4540 = vsel %vm148, %v4535, 0
    %v4542 = vsel %vm148, %v4537, 0
    %v4545 = vsel %vm200, %v4424, 0
    %v4548 = vsel %vm200, %v4425, 0
    %v4551 = vsel %vm200, %v4426, 0
    %v4554 = vsel %vm200, %v4427, 0
    %v4557 = vsel %vm200, %v4428, 0
    %v4560 = vsel %vm200, %v4429, 0
    %v4563 = vsel %vm200, %v4430, 0
    %v4566 = vsel %vm200, %v4431, 0
    %v4569 = vsel %vm200, %v4432, 0
    %v4572 = vsel %vm200, %v4433, 0
    %v4575 = vsel %vm200, %v4434, 0
    %v4578 = vsel %vm200, %v4435, 0
    %v4581 = vsel %vm200, %v4436, 0
    %v4584 = vsel %vm200, %v4437, 0
    %v4587 = vsel %vm200, %v4438, 0
    %v4590 = vsel %vm200, %v4439, 0
    %4592 = vmatprep.subr.mxu0 0.0
    %4593 = vmatpush1.msra.mxu0 0.0
    %4594 = vmatprep.subr.mxu0 0.0
    %4595 = vmatpush1.msra.mxu0 0.0
    %4596 = vmatprep.subr.mxu0 0.0
    %4597 = vmatpush1.msra.mxu0 0.0
    %4598 = vmatprep.subr.mxu0 0.0
    %4599 = vmatpush1.msra.mxu0 0.0
    %4600 = vmatprep.subr.mxu0 0.0
    %4601 = vmatpush1.msra.mxu0 0.0
    %4602 = vmatprep.subr.mxu0 0.0
    %4603 = vmatpush1.msra.mxu0 0.0
    %4604 = vmatprep.subr.mxu0 0.0
    %4605 = vmatpush1.msra.mxu0 0.0
    %4606 = vmatprep.subr.mxu0 0.0
    %4607 = vmatpush1.msra.mxu0 0.0
    %4608 = vmatprep.subr.mxu0 0.0
    %4609 = vmatpush1.msra.mxu0 0.0
    %4610 = vmatprep.subr.mxu0 0.0
    %4611 = vmatpush1.msra.mxu0 0.0
    %4612 = vmatprep.subr.mxu0 0.0
    %4613 = vmatpush1.msra.mxu0 0.0
    %4614 = vmatprep.subr.mxu0 0.0
    %4615 = vmatpush1.msra.mxu0 0.0
    %4616 = vmatprep.subr.mxu0 0.0
    %4617 = vmatpush1.msra.mxu0 0.0
    %4618 = vmatprep.subr.mxu0 0.0
    %4619 = vmatpush1.msra.mxu0 0.0
    %4620 = vmatprep.subr.mxu0 0.0
    %4621 = vmatpush1.msra.mxu0 0.0
    %4622 = vmatprep.subr.mxu0 %v4548
    %4623 = vmatpush1.msra.mxu0 %v4545
    %4624 = vmatprep.subr.mxu0 0.0
    %4625 = vmatpush2.msra.mxu0 0.0
    %4626 = vmatprep.subr.mxu0 0.0
    %4627 = vmatpush2.msra.mxu0 0.0
    %4628 = vmatprep.subr.mxu0 0.0
    %4629 = vmatpush2.msra.mxu0 0.0
    %4630 = vmatprep.subr.mxu0 0.0
    %4631 = vmatpush2.msra.mxu0 0.0
    %4632 = vmatprep.subr.mxu0 0.0
    %4633 = vmatpush2.msra.mxu0 0.0
    %4634 = vmatprep.subr.mxu0 0.0
    %4635 = vmatpush2.msra.mxu0 0.0
    %4636 = vmatprep.subr.mxu0 0.0
    %4637 = vmatpush2.msra.mxu0 0.0
    %4638 = vmatprep.subr.mxu0 0.0
    %4639 = vmatpush2.msra.mxu0 0.0
    %4640 = vmatprep.subr.mxu0 0.0
    %4641 = vmatpush2.msra.mxu0 0.0
    %4642 = vmatprep.subr.mxu0 0.0
    %4643 = vmatpush2.msra.mxu0 0.0
    %4644 = vmatprep.subr.mxu0 0.0
    %4645 = vmatpush2.msra.mxu0 0.0
    %4646 = vmatprep.subr.mxu0 0.0
    %4647 = vmatpush2.msra.mxu0 0.0
    %4648 = vmatprep.subr.mxu0 0.0
    %4649 = vmatpush2.msra.mxu0 0.0
    %4650 = vmatprep.subr.mxu0 0.0
    %4651 = vmatpush2.msra.mxu0 0.0
    %4652 = vmatprep.subr.mxu0 0.0
    %4653 = vmatpush2.msra.mxu0 0.0
    %4654 = vmatprep.subr.mxu0 0.0
    %4655 = vmatpush2.msra.mxu0 0.0
    %4656 = vmatprep.mubr.f32.mxu0 0.0
    %4657 = vmatmul.mubr.f32.gmra.mxu0 %v4538
    %v4658 = vpop.f32.mrf.mxu0
    %v4659 = vadd.f32 %v4447, %v4658
    %v4660 = vpop.f32.mrf.mxu0
    %v4661 = vadd.f32 %v4451, %v4660
    %4662 = vmatprep.mubr.f32.mxu0 0.0
    %4663 = vmatmul.mubr.f32.gmra.mxu0 %v4540
    %v4664 = vpop.f32.mrf.mxu0
    %v4665 = vadd.f32 %v4447, %v4664
    %v4666 = vpop.f32.mrf.mxu0
    %v4667 = vadd.f32 %v4451, %v4666
    %4668 = vmatprep.mubr.f32.mxu0 0.0
    %4669 = vmatmul.mubr.f32.gmra.mxu0 %v4542
    %v4670 = vpop.f32.mrf.mxu0
    %v4671 = vadd.f32 %v4447, %v4670
    %v4672 = vpop.f32.mrf.mxu0
    %v4673 = vadd.f32 %v4451, %v4672
    %4674 = vdwg.mxu0
    %4675 = vmatprep.subr.mxu0 0.0
    %4676 = vmatpush1.msra.mxu0 0.0
    %4677 = vmatprep.subr.mxu0 0.0
    %4678 = vmatpush1.msra.mxu0 0.0
    %4679 = vmatprep.subr.mxu0 0.0
    %4680 = vmatpush1.msra.mxu0 0.0
    %4681 = vmatprep.subr.mxu0 0.0
    %4682 = vmatpush1.msra.mxu0 0.0
    %4683 = vmatprep.subr.mxu0 0.0
    %4684 = vmatpush1.msra.mxu0 0.0
    %4685 = vmatprep.subr.mxu0 0.0
    %4686 = vmatpush1.msra.mxu0 0.0
    %4687 = vmatprep.subr.mxu0 0.0
    %4688 = vmatpush1.msra.mxu0 0.0
    %4689 = vmatprep.subr.mxu0 0.0
    %4690 = vmatpush1.msra.mxu0 0.0
    %4691 = vmatprep.subr.mxu0 0.0
    %4692 = vmatpush1.msra.mxu0 0.0
    %4693 = vmatprep.subr.mxu0 0.0
    %4694 = vmatpush1.msra.mxu0 0.0
    %4695 = vmatprep.subr.mxu0 0.0
    %4696 = vmatpush1.msra.mxu0 0.0
    %4697 = vmatprep.subr.mxu0 0.0
    %4698 = vmatpush1.msra.mxu0 0.0
    %4699 = vmatprep.subr.mxu0 0.0
    %4700 = vmatpush1.msra.mxu0 0.0
    %4701 = vmatprep.subr.mxu0 0.0
    %4702 = vmatpush1.msra.mxu0 0.0
    %4703 = vmatprep.subr.mxu0 0.0
    %4704 = vmatpush1.msra.mxu0 0.0
    %4705 = vmatprep.subr.mxu0 %v4554
    %4706 = vmatpush1.msra.mxu0 %v4551
    %4707 = vmatprep.subr.mxu0 0.0
    %4708 = vmatpush2.msra.mxu0 0.0
    %4709 = vmatprep.subr.mxu0 0.0
    %4710 = vmatpush2.msra.mxu0 0.0
    %4711 = vmatprep.subr.mxu0 0.0
    %4712 = vmatpush2.msra.mxu0 0.0
    %4713 = vmatprep.subr.mxu0 0.0
    %4714 = vmatpush2.msra.mxu0 0.0
    %4715 = vmatprep.subr.mxu0 0.0
    %4716 = vmatpush2.msra.mxu0 0.0
    %4717 = vmatprep.subr.mxu0 0.0
    %4718 = vmatpush2.msra.mxu0 0.0
    %4719 = vmatprep.subr.mxu0 0.0
    %4720 = vmatpush2.msra.mxu0 0.0
    %4721 = vmatprep.subr.mxu0 0.0
    %4722 = vmatpush2.msra.mxu0 0.0
    %4723 = vmatprep.subr.mxu0 0.0
    %4724 = vmatpush2.msra.mxu0 0.0
    %4725 = vmatprep.subr.mxu0 0.0
    %4726 = vmatpush2.msra.mxu0 0.0
    %4727 = vmatprep.subr.mxu0 0.0
    %4728 = vmatpush2.msra.mxu0 0.0
    %4729 = vmatprep.subr.mxu0 0.0
    %4730 = vmatpush2.msra.mxu0 0.0
    %4731 = vmatprep.subr.mxu0 0.0
    %4732 = vmatpush2.msra.mxu0 0.0
    %4733 = vmatprep.subr.mxu0 0.0
    %4734 = vmatpush2.msra.mxu0 0.0
    %4735 = vmatprep.subr.mxu0 0.0
    %4736 = vmatpush2.msra.mxu0 0.0
    %4737 = vmatprep.subr.mxu0 0.0
    %4738 = vmatpush2.msra.mxu0 0.0
    %4739 = vmatprep.mubr.f32.mxu0 0.0
    %4740 = vmatmul.mubr.f32.gmra.mxu0 %v4538
    %v4741 = vpop.f32.mrf.mxu0
    %v4742 = vadd.f32 %v4455, %v4741
    %v4743 = vpop.f32.mrf.mxu0
    %v4744 = vadd.f32 %v4459, %v4743
    %4745 = vmatprep.mubr.f32.mxu0 0.0
    %4746 = vmatmul.mubr.f32.gmra.mxu0 %v4540
    %v4747 = vpop.f32.mrf.mxu0
    %v4748 = vadd.f32 %v4455, %v4747
    %v4749 = vpop.f32.mrf.mxu0
    %v4750 = vadd.f32 %v4459, %v4749
    %4751 = vmatprep.mubr.f32.mxu0 0.0
    %4752 = vmatmul.mubr.f32.gmra.mxu0 %v4542
    %v4753 = vpop.f32.mrf.mxu0
    %v4754 = vadd.f32 %v4455, %v4753
    %v4755 = vpop.f32.mrf.mxu0
    %v4756 = vadd.f32 %v4459, %v4755
    %4757 = vdwg.mxu0
    %4758 = vmatprep.subr.mxu0 0.0
    %4759 = vmatpush1.msra.mxu0 0.0
    %4760 = vmatprep.subr.mxu0 0.0
    %4761 = vmatpush1.msra.mxu0 0.0
    %4762 = vmatprep.subr.mxu0 0.0
    %4763 = vmatpush1.msra.mxu0 0.0
    %4764 = vmatprep.subr.mxu0 0.0
    %4765 = vmatpush1.msra.mxu0 0.0
    %4766 = vmatprep.subr.mxu0 0.0
    %4767 = vmatpush1.msra.mxu0 0.0
    %4768 = vmatprep.subr.mxu0 0.0
    %4769 = vmatpush1.msra.mxu0 0.0
    %4770 = vmatprep.subr.mxu0 0.0
    %4771 = vmatpush1.msra.mxu0 0.0
    %4772 = vmatprep.subr.mxu0 0.0
    %4773 = vmatpush1.msra.mxu0 0.0
    %4774 = vmatprep.subr.mxu0 0.0
    %4775 = vmatpush1.msra.mxu0 0.0
    %4776 = vmatprep.subr.mxu0 0.0
    %4777 = vmatpush1.msra.mxu0 0.0
    %4778 = vmatprep.subr.mxu0 0.0
    %4779 = vmatpush1.msra.mxu0 0.0
    %4780 = vmatprep.subr.mxu0 0.0
    %4781 = vmatpush1.msra.mxu0 0.0
    %4782 = vmatprep.subr.mxu0 0.0
    %4783 = vmatpush1.msra.mxu0 0.0
    %4784 = vmatprep.subr.mxu0 0.0
    %4785 = vmatpush1.msra.mxu0 0.0
    %4786 = vmatprep.subr.mxu0 0.0
    %4787 = vmatpush1.msra.mxu0 0.0
    %4788 = vmatprep.subr.mxu0 %v4560
    %4789 = vmatpush1.msra.mxu0 %v4557
    %4790 = vmatprep.subr.mxu0 0.0
    %4791 = vmatpush2.msra.mxu0 0.0
    %4792 = vmatprep.subr.mxu0 0.0
    %4793 = vmatpush2.msra.mxu0 0.0
    %4794 = vmatprep.subr.mxu0 0.0
    %4795 = vmatpush2.msra.mxu0 0.0
    %4796 = vmatprep.subr.mxu0 0.0
    %4797 = vmatpush2.msra.mxu0 0.0
    %4798 = vmatprep.subr.mxu0 0.0
    %4799 = vmatpush2.msra.mxu0 0.0
    %4800 = vmatprep.subr.mxu0 0.0
    %4801 = vmatpush2.msra.mxu0 0.0
    %4802 = vmatprep.subr.mxu0 0.0
    %4803 = vmatpush2.msra.mxu0 0.0
    %4804 = vmatprep.subr.mxu0 0.0
    %4805 = vmatpush2.msra.mxu0 0.0
    %4806 = vmatprep.subr.mxu0 0.0
    %4807 = vmatpush2.msra.mxu0 0.0
    %4808 = vmatprep.subr.mxu0 0.0
    %4809 = vmatpush2.msra.mxu0 0.0
    %4810 = vmatprep.subr.mxu0 0.0
    %4811 = vmatpush2.msra.mxu0 0.0
    %4812 = vmatprep.subr.mxu0 0.0
    %4813 = vmatpush2.msra.mxu0 0.0
    %4814 = vmatprep.subr.mxu0 0.0
    %4815 = vmatpush2.msra.mxu0 0.0
    %4816 = vmatprep.subr.mxu0 0.0
    %4817 = vmatpush2.msra.mxu0 0.0
    %4818 = vmatprep.subr.mxu0 0.0
    %4819 = vmatpush2.msra.mxu0 0.0
    %4820 = vmatprep.subr.mxu0 0.0
    %4821 = vmatpush2.msra.mxu0 0.0
    %4822 = vmatprep.mubr.f32.mxu0 0.0
    %4823 = vmatmul.mubr.f32.gmra.mxu0 %v4538
    %v4824 = vpop.f32.mrf.mxu0
    %v4825 = vadd.f32 %v4463, %v4824
    %v4826 = vpop.f32.mrf.mxu0
    %v4827 = vadd.f32 %v4467, %v4826
    %4828 = vmatprep.mubr.f32.mxu0 0.0
    %4829 = vmatmul.mubr.f32.gmra.mxu0 %v4540
    %v4830 = vpop.f32.mrf.mxu0
    %v4831 = vadd.f32 %v4463, %v4830
    %v4832 = vpop.f32.mrf.mxu0
    %v4833 = vadd.f32 %v4467, %v4832
    %4834 = vmatprep.mubr.f32.mxu0 0.0
    %4835 = vmatmul.mubr.f32.gmra.mxu0 %v4542
    %v4836 = vpop.f32.mrf.mxu0
    %v4837 = vadd.f32 %v4463, %v4836
    %v4838 = vpop.f32.mrf.mxu0
    %v4839 = vadd.f32 %v4467, %v4838
    %4840 = vdwg.mxu0
    %4841 = vmatprep.subr.mxu0 0.0
    %4842 = vmatpush1.msra.mxu0 0.0
    %4843 = vmatprep.subr.mxu0 0.0
    %4844 = vmatpush1.msra.mxu0 0.0
    %4845 = vmatprep.subr.mxu0 0.0
    %4846 = vmatpush1.msra.mxu0 0.0
    %4847 = vmatprep.subr.mxu0 0.0
    %4848 = vmatpush1.msra.mxu0 0.0
    %4849 = vmatprep.subr.mxu0 0.0
    %4850 = vmatpush1.msra.mxu0 0.0
    %4851 = vmatprep.subr.mxu0 0.0
    %4852 = vmatpush1.msra.mxu0 0.0
    %4853 = vmatprep.subr.mxu0 0.0
    %4854 = vmatpush1.msra.mxu0 0.0
    %4855 = vmatprep.subr.mxu0 0.0
    %4856 = vmatpush1.msra.mxu0 0.0
    %4857 = vmatprep.subr.mxu0 0.0
    %4858 = vmatpush1.msra.mxu0 0.0
    %4859 = vmatprep.subr.mxu0 0.0
    %4860 = vmatpush1.msra.mxu0 0.0
    %4861 = vmatprep.subr.mxu0 0.0
    %4862 = vmatpush1.msra.mxu0 0.0
    %4863 = vmatprep.subr.mxu0 0.0
    %4864 = vmatpush1.msra.mxu0 0.0
    %4865 = vmatprep.subr.mxu0 0.0
    %4866 = vmatpush1.msra.mxu0 0.0
    %4867 = vmatprep.subr.mxu0 0.0
    %4868 = vmatpush1.msra.mxu0 0.0
    %4869 = vmatprep.subr.mxu0 0.0
    %4870 = vmatpush1.msra.mxu0 0.0
    %4871 = vmatprep.subr.mxu0 %v4566
    %4872 = vmatpush1.msra.mxu0 %v4563
    %4873 = vmatprep.subr.mxu0 0.0
    %4874 = vmatpush2.msra.mxu0 0.0
    %4875 = vmatprep.subr.mxu0 0.0
    %4876 = vmatpush2.msra.mxu0 0.0
    %4877 = vmatprep.subr.mxu0 0.0
    %4878 = vmatpush2.msra.mxu0 0.0
    %4879 = vmatprep.subr.mxu0 0.0
    %4880 = vmatpush2.msra.mxu0 0.0
    %4881 = vmatprep.subr.mxu0 0.0
    %4882 = vmatpush2.msra.mxu0 0.0
    %4883 = vmatprep.subr.mxu0 0.0
    %4884 = vmatpush2.msra.mxu0 0.0
    %4885 = vmatprep.subr.mxu0 0.0
    %4886 = vmatpush2.msra.mxu0 0.0
    %4887 = vmatprep.subr.mxu0 0.0
    %4888 = vmatpush2.msra.mxu0 0.0
    %4889 = vmatprep.subr.mxu0 0.0
    %4890 = vmatpush2.msra.mxu0 0.0
    %4891 = vmatprep.subr.mxu0 0.0
    %4892 = vmatpush2.msra.mxu0 0.0
    %4893 = vmatprep.subr.mxu0 0.0
    %4894 = vmatpush2.msra.mxu0 0.0
    %4895 = vmatprep.subr.mxu0 0.0
    %4896 = vmatpush2.msra.mxu0 0.0
    %4897 = vmatprep.subr.mxu0 0.0
    %4898 = vmatpush2.msra.mxu0 0.0
    %4899 = vmatprep.subr.mxu0 0.0
    %4900 = vmatpush2.msra.mxu0 0.0
    %4901 = vmatprep.subr.mxu0 0.0
    %4902 = vmatpush2.msra.mxu0 0.0
    %4903 = vmatprep.subr.mxu0 0.0
    %4904 = vmatpush2.msra.mxu0 0.0
    %4905 = vmatprep.mubr.f32.mxu0 0.0
    %4906 = vmatmul.mubr.f32.gmra.mxu0 %v4538
    %v4907 = vpop.f32.mrf.mxu0
    %v4908 = vadd.f32 %v4471, %v4907
    %v4909 = vpop.f32.mrf.mxu0
    %v4910 = vadd.f32 %v4475, %v4909
    %4911 = vmatprep.mubr.f32.mxu0 0.0
    %4912 = vmatmul.mubr.f32.gmra.mxu0 %v4540
    %v4913 = vpop.f32.mrf.mxu0
    %v4914 = vadd.f32 %v4471, %v4913
    %v4915 = vpop.f32.mrf.mxu0
    %v4916 = vadd.f32 %v4475, %v4915
    %4917 = vmatprep.mubr.f32.mxu0 0.0
    %4918 = vmatmul.mubr.f32.gmra.mxu0 %v4542
    %v4919 = vpop.f32.mrf.mxu0
    %v4920 = vadd.f32 %v4471, %v4919
    %v4921 = vpop.f32.mrf.mxu0
    %v4922 = vadd.f32 %v4475, %v4921
    %4923 = vdwg.mxu0
    %4924 = vmatprep.subr.mxu0 0.0
    %4925 = vmatpush1.msra.mxu0 0.0
    %4926 = vmatprep.subr.mxu0 0.0
    %4927 = vmatpush1.msra.mxu0 0.0
    %4928 = vmatprep.subr.mxu0 0.0
    %4929 = vmatpush1.msra.mxu0 0.0
    %4930 = vmatprep.subr.mxu0 0.0
    %4931 = vmatpush1.msra.mxu0 0.0
    %4932 = vmatprep.subr.mxu0 0.0
    %4933 = vmatpush1.msra.mxu0 0.0
    %4934 = vmatprep.subr.mxu0 0.0
    %4935 = vmatpush1.msra.mxu0 0.0
    %4936 = vmatprep.subr.mxu0 0.0
    %4937 = vmatpush1.msra.mxu0 0.0
    %4938 = vmatprep.subr.mxu0 0.0
    %4939 = vmatpush1.msra.mxu0 0.0
    %4940 = vmatprep.subr.mxu0 0.0
    %4941 = vmatpush1.msra.mxu0 0.0
    %4942 = vmatprep.subr.mxu0 0.0
    %4943 = vmatpush1.msra.mxu0 0.0
    %4944 = vmatprep.subr.mxu0 0.0
    %4945 = vmatpush1.msra.mxu0 0.0
    %4946 = vmatprep.subr.mxu0 0.0
    %4947 = vmatpush1.msra.mxu0 0.0
    %4948 = vmatprep.subr.mxu0 0.0
    %4949 = vmatpush1.msra.mxu0 0.0
    %4950 = vmatprep.subr.mxu0 0.0
    %4951 = vmatpush1.msra.mxu0 0.0
    %4952 = vmatprep.subr.mxu0 0.0
    %4953 = vmatpush1.msra.mxu0 0.0
    %4954 = vmatprep.subr.mxu0 %v4572
    %4955 = vmatpush1.msra.mxu0 %v4569
    %4956 = vmatprep.subr.mxu0 0.0
    %4957 = vmatpush2.msra.mxu0 0.0
    %4958 = vmatprep.subr.mxu0 0.0
    %4959 = vmatpush2.msra.mxu0 0.0
    %4960 = vmatprep.subr.mxu0 0.0
    %4961 = vmatpush2.msra.mxu0 0.0
    %4962 = vmatprep.subr.mxu0 0.0
    %4963 = vmatpush2.msra.mxu0 0.0
    %4964 = vmatprep.subr.mxu0 0.0
    %4965 = vmatpush2.msra.mxu0 0.0
    %4966 = vmatprep.subr.mxu0 0.0
    %4967 = vmatpush2.msra.mxu0 0.0
    %4968 = vmatprep.subr.mxu0 0.0
    %4969 = vmatpush2.msra.mxu0 0.0
    %4970 = vmatprep.subr.mxu0 0.0
    %4971 = vmatpush2.msra.mxu0 0.0
    %4972 = vmatprep.subr.mxu0 0.0
    %4973 = vmatpush2.msra.mxu0 0.0
    %4974 = vmatprep.subr.mxu0 0.0
    %4975 = vmatpush2.msra.mxu0 0.0
    %4976 = vmatprep.subr.mxu0 0.0
    %4977 = vmatpush2.msra.mxu0 0.0
    %4978 = vmatprep.subr.mxu0 0.0
    %4979 = vmatpush2.msra.mxu0 0.0
    %4980 = vmatprep.subr.mxu0 0.0
    %4981 = vmatpush2.msra.mxu0 0.0
    %4982 = vmatprep.subr.mxu0 0.0
    %4983 = vmatpush2.msra.mxu0 0.0
    %4984 = vmatprep.subr.mxu0 0.0
    %4985 = vmatpush2.msra.mxu0 0.0
    %4986 = vmatprep.subr.mxu0 0.0
    %4987 = vmatpush2.msra.mxu0 0.0
    %4988 = vmatprep.mubr.f32.mxu0 0.0
    %4989 = vmatmul.mubr.f32.gmra.mxu0 %v4538
    %v4990 = vpop.f32.mrf.mxu0
    %v4991 = vadd.f32 %v4479, %v4990
    %v4992 = vpop.f32.mrf.mxu0
    %v4993 = vadd.f32 %v4483, %v4992
    %4994 = vmatprep.mubr.f32.mxu0 0.0
    %4995 = vmatmul.mubr.f32.gmra.mxu0 %v4540
    %v4996 = vpop.f32.mrf.mxu0
    %v4997 = vadd.f32 %v4479, %v4996
    %v4998 = vpop.f32.mrf.mxu0
    %v4999 = vadd.f32 %v4483, %v4998
    %5000 = vmatprep.mubr.f32.mxu0 0.0
    %5001 = vmatmul.mubr.f32.gmra.mxu0 %v4542
    %v5002 = vpop.f32.mrf.mxu0
    %v5003 = vadd.f32 %v4479, %v5002
    %v5004 = vpop.f32.mrf.mxu0
    %v5005 = vadd.f32 %v4483, %v5004
    %5006 = vdwg.mxu0
    %5007 = vmatprep.subr.mxu0 0.0
    %5008 = vmatpush1.msra.mxu0 0.0
    %5009 = vmatprep.subr.mxu0 0.0
    %5010 = vmatpush1.msra.mxu0 0.0
    %5011 = vmatprep.subr.mxu0 0.0
    %5012 = vmatpush1.msra.mxu0 0.0
    %5013 = vmatprep.subr.mxu0 0.0
    %5014 = vmatpush1.msra.mxu0 0.0
    %5015 = vmatprep.subr.mxu0 0.0
    %5016 = vmatpush1.msra.mxu0 0.0
    %5017 = vmatprep.subr.mxu0 0.0
    %5018 = vmatpush1.msra.mxu0 0.0
    %5019 = vmatprep.subr.mxu0 0.0
    %5020 = vmatpush1.msra.mxu0 0.0
    %5021 = vmatprep.subr.mxu0 0.0
    %5022 = vmatpush1.msra.mxu0 0.0
    %5023 = vmatprep.subr.mxu0 0.0
    %5024 = vmatpush1.msra.mxu0 0.0
    %5025 = vmatprep.subr.mxu0 0.0
    %5026 = vmatpush1.msra.mxu0 0.0
    %5027 = vmatprep.subr.mxu0 0.0
    %5028 = vmatpush1.msra.mxu0 0.0
    %5029 = vmatprep.subr.mxu0 0.0
    %5030 = vmatpush1.msra.mxu0 0.0
    %5031 = vmatprep.subr.mxu0 0.0
    %5032 = vmatpush1.msra.mxu0 0.0
    %5033 = vmatprep.subr.mxu0 0.0
    %5034 = vmatpush1.msra.mxu0 0.0
    %5035 = vmatprep.subr.mxu0 0.0
    %5036 = vmatpush1.msra.mxu0 0.0
    %5037 = vmatprep.subr.mxu0 %v4578
    %5038 = vmatpush1.msra.mxu0 %v4575
    %5039 = vmatprep.subr.mxu0 0.0
    %5040 = vmatpush2.msra.mxu0 0.0
    %5041 = vmatprep.subr.mxu0 0.0
    %5042 = vmatpush2.msra.mxu0 0.0
    %5043 = vmatprep.subr.mxu0 0.0
    %5044 = vmatpush2.msra.mxu0 0.0
    %5045 = vmatprep.subr.mxu0 0.0
    %5046 = vmatpush2.msra.mxu0 0.0
    %5047 = vmatprep.subr.mxu0 0.0
    %5048 = vmatpush2.msra.mxu0 0.0
    %5049 = vmatprep.subr.mxu0 0.0
    %5050 = vmatpush2.msra.mxu0 0.0
    %5051 = vmatprep.subr.mxu0 0.0
    %5052 = vmatpush2.msra.mxu0 0.0
    %5053 = vmatprep.subr.mxu0 0.0
    %5054 = vmatpush2.msra.mxu0 0.0
    %5055 = vmatprep.subr.mxu0 0.0
    %5056 = vmatpush2.msra.mxu0 0.0
    %5057 = vmatprep.subr.mxu0 0.0
    %5058 = vmatpush2.msra.mxu0 0.0
    %5059 = vmatprep.subr.mxu0 0.0
    %5060 = vmatpush2.msra.mxu0 0.0
    %5061 = vmatprep.subr.mxu0 0.0
    %5062 = vmatpush2.msra.mxu0 0.0
    %5063 = vmatprep.subr.mxu0 0.0
    %5064 = vmatpush2.msra.mxu0 0.0
    %5065 = vmatprep.subr.mxu0 0.0
    %5066 = vmatpush2.msra.mxu0 0.0
    %5067 = vmatprep.subr.mxu0 0.0
    %5068 = vmatpush2.msra.mxu0 0.0
    %5069 = vmatprep.subr.mxu0 0.0
    %5070 = vmatpush2.msra.mxu0 0.0
    %5071 = vmatprep.mubr.f32.mxu0 0.0
    %5072 = vmatmul.mubr.f32.gmra.mxu0 %v4538
    %v5073 = vpop.f32.mrf.mxu0
    %v5074 = vadd.f32 %v4487, %v5073
    %v5075 = vpop.f32.mrf.mxu0
    %v5076 = vadd.f32 %v4491, %v5075
    %5077 = vmatprep.mubr.f32.mxu0 0.0
    %5078 = vmatmul.mubr.f32.gmra.mxu0 %v4540
    %v5079 = vpop.f32.mrf.mxu0
    %v5080 = vadd.f32 %v4487, %v5079
    %v5081 = vpop.f32.mrf.mxu0
    %v5082 = vadd.f32 %v4491, %v5081
    %5083 = vmatprep.mubr.f32.mxu0 0.0
    %5084 = vmatmul.mubr.f32.gmra.mxu0 %v4542
    %v5085 = vpop.f32.mrf.mxu0
    %v5086 = vadd.f32 %v4487, %v5085
    %v5087 = vpop.f32.mrf.mxu0
    %v5088 = vadd.f32 %v4491, %v5087
    %5089 = vdwg.mxu0
    %5090 = vmatprep.subr.mxu0 0.0
    %5091 = vmatpush1.msra.mxu0 0.0
    %5092 = vmatprep.subr.mxu0 0.0
    %5093 = vmatpush1.msra.mxu0 0.0
    %5094 = vmatprep.subr.mxu0 0.0
    %5095 = vmatpush1.msra.mxu0 0.0
    %5096 = vmatprep.subr.mxu0 0.0
    %5097 = vmatpush1.msra.mxu0 0.0
    %5098 = vmatprep.subr.mxu0 0.0
    %5099 = vmatpush1.msra.mxu0 0.0
    %5100 = vmatprep.subr.mxu0 0.0
    %5101 = vmatpush1.msra.mxu0 0.0
    %5102 = vmatprep.subr.mxu0 0.0
    %5103 = vmatpush1.msra.mxu0 0.0
    %5104 = vmatprep.subr.mxu0 0.0
    %5105 = vmatpush1.msra.mxu0 0.0
    %5106 = vmatprep.subr.mxu0 0.0
    %5107 = vmatpush1.msra.mxu0 0.0
    %5108 = vmatprep.subr.mxu0 0.0
    %5109 = vmatpush1.msra.mxu0 0.0
    %5110 = vmatprep.subr.mxu0 0.0
    %5111 = vmatpush1.msra.mxu0 0.0
    %5112 = vmatprep.subr.mxu0 0.0
    %5113 = vmatpush1.msra.mxu0 0.0
    %5114 = vmatprep.subr.mxu0 0.0
    %5115 = vmatpush1.msra.mxu0 0.0
    %5116 = vmatprep.subr.mxu0 0.0
    %5117 = vmatpush1.msra.mxu0 0.0
    %5118 = vmatprep.subr.mxu0 0.0
    %5119 = vmatpush1.msra.mxu0 0.0
    %5120 = vmatprep.subr.mxu0 %v4584
    %5121 = vmatpush1.msra.mxu0 %v4581
    %5122 = vmatprep.subr.mxu0 0.0
    %5123 = vmatpush2.msra.mxu0 0.0
    %5124 = vmatprep.subr.mxu0 0.0
    %5125 = vmatpush2.msra.mxu0 0.0
    %5126 = vmatprep.subr.mxu0 0.0
    %5127 = vmatpush2.msra.mxu0 0.0
    %5128 = vmatprep.subr.mxu0 0.0
    %5129 = vmatpush2.msra.mxu0 0.0
    %5130 = vmatprep.subr.mxu0 0.0
    %5131 = vmatpush2.msra.mxu0 0.0
    %5132 = vmatprep.subr.mxu0 0.0
    %5133 = vmatpush2.msra.mxu0 0.0
    %5134 = vmatprep.subr.mxu0 0.0
    %5135 = vmatpush2.msra.mxu0 0.0
    %5136 = vmatprep.subr.mxu0 0.0
    %5137 = vmatpush2.msra.mxu0 0.0
    %5138 = vmatprep.subr.mxu0 0.0
    %5139 = vmatpush2.msra.mxu0 0.0
    %5140 = vmatprep.subr.mxu0 0.0
    %5141 = vmatpush2.msra.mxu0 0.0
    %5142 = vmatprep.subr.mxu0 0.0
    %5143 = vmatpush2.msra.mxu0 0.0
    %5144 = vmatprep.subr.mxu0 0.0
    %5145 = vmatpush2.msra.mxu0 0.0
    %5146 = vmatprep.subr.mxu0 0.0
    %5147 = vmatpush2.msra.mxu0 0.0
    %5148 = vmatprep.subr.mxu0 0.0
    %5149 = vmatpush2.msra.mxu0 0.0
    %5150 = vmatprep.subr.mxu0 0.0
    %5151 = vmatpush2.msra.mxu0 0.0
    %5152 = vmatprep.subr.mxu0 0.0
    %5153 = vmatpush2.msra.mxu0 0.0
    %5154 = vmatprep.mubr.f32.mxu0 0.0
    %5155 = vmatmul.mubr.f32.gmra.mxu0 %v4538
    %v5156 = vpop.f32.mrf.mxu0
    %v5157 = vadd.f32 %v4495, %v5156
    %v5158 = vpop.f32.mrf.mxu0
    %v5159 = vadd.f32 %v4499, %v5158
    %5160 = vmatprep.mubr.f32.mxu0 0.0
    %5161 = vmatmul.mubr.f32.gmra.mxu0 %v4540
    %v5162 = vpop.f32.mrf.mxu0
    %v5163 = vadd.f32 %v4495, %v5162
    %v5164 = vpop.f32.mrf.mxu0
    %v5165 = vadd.f32 %v4499, %v5164
    %5166 = vmatprep.mubr.f32.mxu0 0.0
    %5167 = vmatmul.mubr.f32.gmra.mxu0 %v4542
    %v5168 = vpop.f32.mrf.mxu0
    %v5169 = vadd.f32 %v4495, %v5168
    %v5170 = vpop.f32.mrf.mxu0
    %v5171 = vadd.f32 %v4499, %v5170
    %5172 = vdwg.mxu0
    %5173 = vmatprep.subr.mxu0 0.0
    %5174 = vmatpush1.msra.mxu0 0.0
    %5175 = vmatprep.subr.mxu0 0.0
    %5176 = vmatpush1.msra.mxu0 0.0
    %5177 = vmatprep.subr.mxu0 0.0
    %5178 = vmatpush1.msra.mxu0 0.0
    %5179 = vmatprep.subr.mxu0 0.0
    %5180 = vmatpush1.msra.mxu0 0.0
    %5181 = vmatprep.subr.mxu0 0.0
    %5182 = vmatpush1.msra.mxu0 0.0
    %5183 = vmatprep.subr.mxu0 0.0
    %5184 = vmatpush1.msra.mxu0 0.0
    %5185 = vmatprep.subr.mxu0 0.0
    %5186 = vmatpush1.msra.mxu0 0.0
    %5187 = vmatprep.subr.mxu0 0.0
    %5188 = vmatpush1.msra.mxu0 0.0
    %5189 = vmatprep.subr.mxu0 0.0
    %5190 = vmatpush1.msra.mxu0 0.0
    %5191 = vmatprep.subr.mxu0 0.0
    %5192 = vmatpush1.msra.mxu0 0.0
    %5193 = vmatprep.subr.mxu0 0.0
    %5194 = vmatpush1.msra.mxu0 0.0
    %5195 = vmatprep.subr.mxu0 0.0
    %5196 = vmatpush1.msra.mxu0 0.0
    %5197 = vmatprep.subr.mxu0 0.0
    %5198 = vmatpush1.msra.mxu0 0.0
    %5199 = vmatprep.subr.mxu0 0.0
    %5200 = vmatpush1.msra.mxu0 0.0
    %5201 = vmatprep.subr.mxu0 0.0
    %5202 = vmatpush1.msra.mxu0 0.0
    %5203 = vmatprep.subr.mxu0 %v4590
    %5204 = vmatpush1.msra.mxu0 %v4587
    %5205 = vmatprep.subr.mxu0 0.0
    %5206 = vmatpush2.msra.mxu0 0.0
    %5207 = vmatprep.subr.mxu0 0.0
    %5208 = vmatpush2.msra.mxu0 0.0
    %5209 = vmatprep.subr.mxu0 0.0
    %5210 = vmatpush2.msra.mxu0 0.0
    %5211 = vmatprep.subr.mxu0 0.0
    %5212 = vmatpush2.msra.mxu0 0.0
    %5213 = vmatprep.subr.mxu0 0.0
    %5214 = vmatpush2.msra.mxu0 0.0
    %5215 = vmatprep.subr.mxu0 0.0
    %5216 = vmatpush2.msra.mxu0 0.0
    %5217 = vmatprep.subr.mxu0 0.0
    %5218 = vmatpush2.msra.mxu0 0.0
    %5219 = vmatprep.subr.mxu0 0.0
    %5220 = vmatpush2.msra.mxu0 0.0
    %5221 = vmatprep.subr.mxu0 0.0
    %5222 = vmatpush2.msra.mxu0 0.0
    %5223 = vmatprep.subr.mxu0 0.0
    %5224 = vmatpush2.msra.mxu0 0.0
    %5225 = vmatprep.subr.mxu0 0.0
    %5226 = vmatpush2.msra.mxu0 0.0
    %5227 = vmatprep.subr.mxu0 0.0
    %5228 = vmatpush2.msra.mxu0 0.0
    %5229 = vmatprep.subr.mxu0 0.0
    %5230 = vmatpush2.msra.mxu0 0.0
    %5231 = vmatprep.subr.mxu0 0.0
    %5232 = vmatpush2.msra.mxu0 0.0
    %5233 = vmatprep.subr.mxu0 0.0
    %5234 = vmatpush2.msra.mxu0 0.0
    %5235 = vmatprep.subr.mxu0 0.0
    %5236 = vmatpush2.msra.mxu0 0.0
    %5237 = vmatprep.mubr.f32.mxu0 0.0
    %5238 = vmatmul.mubr.f32.gmra.mxu0 %v4538
    %v5239 = vpop.f32.mrf.mxu0
    %v5240 = vadd.f32 %v4503, %v5239
    %v5241 = vpop.f32.mrf.mxu0
    %v5242 = vadd.f32 %v4507, %v5241
    %5243 = vmatprep.mubr.f32.mxu0 0.0
    %5244 = vmatmul.mubr.f32.gmra.mxu0 %v4540
    %v5245 = vpop.f32.mrf.mxu0
    %v5246 = vadd.f32 %v4503, %v5245
    %v5247 = vpop.f32.mrf.mxu0
    %v5248 = vadd.f32 %v4507, %v5247
    %5249 = vmatprep.mubr.f32.mxu0 0.0
    %5250 = vmatmul.mubr.f32.gmra.mxu0 %v4542
    %v5251 = vpop.f32.mrf.mxu0
    %v5252 = vadd.f32 %v4503, %v5251
    %v5253 = vpop.f32.mrf.mxu0
    %v5254 = vadd.f32 %v4507, %v5253
    %5255 = vdwg.mxu0
    %v5256 = vmax.f32 %v4659, 0.0
    %v5257 = vmax.f32 %v4661, 0.0
    %v5258 = vmax.f32 %v4742, 0.0
    %v5259 = vmax.f32 %v4744, 0.0
    %v5260 = vmax.f32 %v4825, 0.0
    %v5261 = vmax.f32 %v4827, 0.0
    %v5262 = vmax.f32 %v4908, 0.0
    %v5263 = vmax.f32 %v4910, 0.0
    %v5264 = vmax.f32 %v4991, 0.0
    %v5265 = vmax.f32 %v4993, 0.0
    %v5266 = vmax.f32 %v5074, 0.0
    %v5267 = vmax.f32 %v5076, 0.0
    %v5268 = vmax.f32 %v5157, 0.0
    %v5269 = vmax.f32 %v5159, 0.0
    %v5270 = vmax.f32 %v5240, 0.0
    %v5271 = vmax.f32 %v5242, 0.0
    %v5272 = vmax.f32 %v4665, 0.0
    %v5273 = vmax.f32 %v4667, 0.0
    %v5274 = vmax.f32 %v4748, 0.0
    %v5275 = vmax.f32 %v4750, 0.0
    %v5276 = vmax.f32 %v4831, 0.0
    %v5277 = vmax.f32 %v4833, 0.0
    %v5278 = vmax.f32 %v4914, 0.0
    %v5279 = vmax.f32 %v4916, 0.0
    %v5280 = vmax.f32 %v4997, 0.0
    %v5281 = vmax.f32 %v4999, 0.0
    %v5282 = vmax.f32 %v5080, 0.0
    %v5283 = vmax.f32 %v5082, 0.0
    %v5284 = vmax.f32 %v5163, 0.0
    %v5285 = vmax.f32 %v5165, 0.0
    %v5286 = vmax.f32 %v5246, 0.0
    %v5287 = vmax.f32 %v5248, 0.0
    %v5288 = vmax.f32 %v4671, 0.0
    %v5289 = vmax.f32 %v4673, 0.0
    %v5290 = vmax.f32 %v4754, 0.0
    %v5291 = vmax.f32 %v4756, 0.0
    %v5292 = vmax.f32 %v4837, 0.0
    %v5293 = vmax.f32 %v4839, 0.0
    %v5294 = vmax.f32 %v4920, 0.0
    %v5295 = vmax.f32 %v4922, 0.0
    %v5296 = vmax.f32 %v5003, 0.0
    %v5297 = vmax.f32 %v5005, 0.0
    %v5298 = vmax.f32 %v5086, 0.0
    %v5299 = vmax.f32 %v5088, 0.0
    %v5300 = vmax.f32 %v5169, 0.0
    %v5301 = vmax.f32 %v5171, 0.0
    %v5302 = vmax.f32 %v5252, 0.0
    %v5303 = vmax.f32 %v5254, 0.0
    %v5304 = vld [vmem:[%s55] sm:$0x1f]
    %v5305 = vld [vmem:[%s55 + $0x8] sm:$0x1f]
    %v5306 = vld [vmem:[%s55 + $0x10] sm:$0x1f]
    %v5307 = vld [vmem:[%s55 + $0x18] sm:$0x1f]
    %v5308 = vld [vmem:[%s55 + $0x20] sm:$0x1f]
    %v5309 = vld [vmem:[%s55 + $0x28] sm:$0x1f]
    %v5310 = vld [vmem:[%s55 + $0x30] sm:$0x1f]
    %v5311 = vld [vmem:[%s55 + $0x38] sm:$0x1f]
    %v5312 = vld [vmem:[%s55 + $0x40] sm:$0x1f]
    %v5313 = vld [vmem:[%s55 + $0x48] sm:$0x1f]
    %v5314 = vld [vmem:[%s55 + $0x50] sm:$0x1f]
    %v5315 = vld [vmem:[%s55 + $0x58] sm:$0x1f]
    %v5316 = vld [vmem:[%s55 + $0x60] sm:$0x1f]
    %v5317 = vld [vmem:[%s55 + $0x68] sm:$0x1f]
    %v5318 = vld [vmem:[%s55 + $0x70] sm:$0x1f]
    %v5319 = vld [vmem:[%s55 + $0x78] sm:$0x1f]
    %v5320 = vld [vmem:[%s57] sm:$0x1]
    %v5322 = vlaneseq
    %v5323 = vshrl.u32 %v5322, 7
    %v5324 = vsub.s32 0, %v5323
    %v5325 = vrot.slane %v5320, %v5324
    %5327 = vmatprep.subr.mxu0 0.0
    %5328 = vmatpush1.xpose.msra.mxu0 0.0
    %5329 = vmatprep.subr.mxu0 0.0
    %5330 = vmatpush1.xpose.msra.mxu0 0.0
    %5331 = vmatprep.subr.mxu0 0.0
    %5332 = vmatpush1.xpose.msra.mxu0 0.0
    %5333 = vmatprep.subr.mxu0 0.0
    %5334 = vmatpush1.xpose.msra.mxu0 0.0
    %5335 = vmatprep.subr.mxu0 0.0
    %5336 = vmatpush1.xpose.msra.mxu0 0.0
    %5337 = vmatprep.subr.mxu0 0.0
    %5338 = vmatpush1.xpose.msra.mxu0 0.0
    %5339 = vmatprep.subr.mxu0 0.0
    %5340 = vmatpush1.xpose.msra.mxu0 0.0
    %5341 = vmatprep.subr.mxu0 0.0
    %5342 = vmatpush1.xpose.msra.mxu0 0.0
    %5343 = vmatprep.subr.mxu0 0.0
    %5344 = vmatpush1.xpose.msra.mxu0 0.0
    %5345 = vmatprep.subr.mxu0 0.0
    %5346 = vmatpush1.xpose.msra.mxu0 0.0
    %5347 = vmatprep.subr.mxu0 0.0
    %5348 = vmatpush1.xpose.msra.mxu0 0.0
    %5349 = vmatprep.subr.mxu0 0.0
    %5350 = vmatpush1.xpose.msra.mxu0 0.0
    %5351 = vmatprep.subr.mxu0 0.0
    %5352 = vmatpush1.xpose.msra.mxu0 0.0
    %5353 = vmatprep.subr.mxu0 0.0
    %5354 = vmatpush1.xpose.msra.mxu0 0.0
    %5355 = vmatprep.subr.mxu0 0.0
    %5356 = vmatpush1.xpose.msra.mxu0 0.0
    %5357 = vmatprep.subr.mxu0 %v5305
    %5358 = vmatpush1.xpose.msra.mxu0 %v5304
    %5359 = vmatprep.subr.mxu0 0.0
    %5360 = vmatpush2.xpose.msra.mxu0 0.0
    %5361 = vmatprep.subr.mxu0 0.0
    %5362 = vmatpush2.xpose.msra.mxu0 0.0
    %5363 = vmatprep.subr.mxu0 0.0
    %5364 = vmatpush2.xpose.msra.mxu0 0.0
    %5365 = vmatprep.subr.mxu0 0.0
    %5366 = vmatpush2.xpose.msra.mxu0 0.0
    %5367 = vmatprep.subr.mxu0 0.0
    %5368 = vmatpush2.xpose.msra.mxu0 0.0
    %5369 = vmatprep.subr.mxu0 0.0
    %5370 = vmatpush2.xpose.msra.mxu0 0.0
    %5371 = vmatprep.subr.mxu0 0.0
    %5372 = vmatpush2.xpose.msra.mxu0 0.0
    %5373 = vmatprep.subr.mxu0 0.0
    %5374 = vmatpush2.xpose.msra.mxu0 0.0
    %5375 = vmatprep.subr.mxu0 0.0
    %5376 = vmatpush2.xpose.msra.mxu0 0.0
    %5377 = vmatprep.subr.mxu0 0.0
    %5378 = vmatpush2.xpose.msra.mxu0 0.0
    %5379 = vmatprep.subr.mxu0 0.0
    %5380 = vmatpush2.xpose.msra.mxu0 0.0
    %5381 = vmatprep.subr.mxu0 0.0
    %5382 = vmatpush2.xpose.msra.mxu0 0.0
    %5383 = vmatprep.subr.mxu0 0.0
    %5384 = vmatpush2.xpose.msra.mxu0 0.0
    %5385 = vmatprep.subr.mxu0 0.0
    %5386 = vmatpush2.xpose.msra.mxu0 0.0
    %5387 = vmatprep.subr.mxu0 0.0
    %5388 = vmatpush2.xpose.msra.mxu0 0.0
    %5389 = vmatprep.subr.mxu0 0.0
    %5390 = vmatpush2.xpose.msra.mxu0 0.0
    %5391 = vmatprep.mubr.f32.mxu0 %v5257
    %5392 = vmatmul.mubr.f32.gmra.mxu0 %v5256
    %v5393 = vpop.f32.mrf.mxu0
    %v5394 = vadd.f32 %v5325, %v5393
    %v5395 = vpop.f32.mrf.mxu0
    %5396 = vmatprep.mubr.f32.mxu0 %v5273
    %5397 = vmatmul.mubr.f32.gmra.mxu0 %v5272
    %v5398 = vpop.f32.mrf.mxu0
    %v5399 = vadd.f32 %v5325, %v5398
    %v5400 = vpop.f32.mrf.mxu0
    %5401 = vmatprep.mubr.f32.mxu0 %v5289
    %5402 = vmatmul.mubr.f32.gmra.mxu0 %v5288
    %v5403 = vpop.f32.mrf.mxu0
    %v5404 = vadd.f32 %v5325, %v5403
    %v5405 = vpop.f32.mrf.mxu0
    %5406 = vdwg.mxu0
    %5407 = vmatprep.subr.mxu0 0.0
    %5408 = vmatpush1.xpose.msra.mxu0 0.0
    %5409 = vmatprep.subr.mxu0 0.0
    %5410 = vmatpush1.xpose.msra.mxu0 0.0
    %5411 = vmatprep.subr.mxu0 0.0
    %5412 = vmatpush1.xpose.msra.mxu0 0.0
    %5413 = vmatprep.subr.mxu0 0.0
    %5414 = vmatpush1.xpose.msra.mxu0 0.0
    %5415 = vmatprep.subr.mxu0 0.0
    %5416 = vmatpush1.xpose.msra.mxu0 0.0
    %5417 = vmatprep.subr.mxu0 0.0
    %5418 = vmatpush1.xpose.msra.mxu0 0.0
    %5419 = vmatprep.subr.mxu0 0.0
    %5420 = vmatpush1.xpose.msra.mxu0 0.0
    %5421 = vmatprep.subr.mxu0 0.0
    %5422 = vmatpush1.xpose.msra.mxu0 0.0
    %5423 = vmatprep.subr.mxu0 0.0
    %5424 = vmatpush1.xpose.msra.mxu0 0.0
    %5425 = vmatprep.subr.mxu0 0.0
    %5426 = vmatpush1.xpose.msra.mxu0 0.0
    %5427 = vmatprep.subr.mxu0 0.0
    %5428 = vmatpush1.xpose.msra.mxu0 0.0
    %5429 = vmatprep.subr.mxu0 0.0
    %5430 = vmatpush1.xpose.msra.mxu0 0.0
    %5431 = vmatprep.subr.mxu0 0.0
    %5432 = vmatpush1.xpose.msra.mxu0 0.0
    %5433 = vmatprep.subr.mxu0 0.0
    %5434 = vmatpush1.xpose.msra.mxu0 0.0
    %5435 = vmatprep.subr.mxu0 0.0
    %5436 = vmatpush1.xpose.msra.mxu0 0.0
    %5437 = vmatprep.subr.mxu0 %v5307
    %5438 = vmatpush1.xpose.msra.mxu0 %v5306
    %5439 = vmatprep.subr.mxu0 0.0
    %5440 = vmatpush2.xpose.msra.mxu0 0.0
    %5441 = vmatprep.subr.mxu0 0.0
    %5442 = vmatpush2.xpose.msra.mxu0 0.0
    %5443 = vmatprep.subr.mxu0 0.0
    %5444 = vmatpush2.xpose.msra.mxu0 0.0
    %5445 = vmatprep.subr.mxu0 0.0
    %5446 = vmatpush2.xpose.msra.mxu0 0.0
    %5447 = vmatprep.subr.mxu0 0.0
    %5448 = vmatpush2.xpose.msra.mxu0 0.0
    %5449 = vmatprep.subr.mxu0 0.0
    %5450 = vmatpush2.xpose.msra.mxu0 0.0
    %5451 = vmatprep.subr.mxu0 0.0
    %5452 = vmatpush2.xpose.msra.mxu0 0.0
    %5453 = vmatprep.subr.mxu0 0.0
    %5454 = vmatpush2.xpose.msra.mxu0 0.0
    %5455 = vmatprep.subr.mxu0 0.0
    %5456 = vmatpush2.xpose.msra.mxu0 0.0
    %5457 = vmatprep.subr.mxu0 0.0
    %5458 = vmatpush2.xpose.msra.mxu0 0.0
    %5459 = vmatprep.subr.mxu0 0.0
    %5460 = vmatpush2.xpose.msra.mxu0 0.0
    %5461 = vmatprep.subr.mxu0 0.0
    %5462 = vmatpush2.xpose.msra.mxu0 0.0
    %5463 = vmatprep.subr.mxu0 0.0
    %5464 = vmatpush2.xpose.msra.mxu0 0.0
    %5465 = vmatprep.subr.mxu0 0.0
    %5466 = vmatpush2.xpose.msra.mxu0 0.0
    %5467 = vmatprep.subr.mxu0 0.0
    %5468 = vmatpush2.xpose.msra.mxu0 0.0
    %5469 = vmatprep.subr.mxu0 0.0
    %5470 = vmatpush2.xpose.msra.mxu0 0.0
    %5471 = vmatprep.mubr.f32.mxu0 %v5259
    %5472 = vmatmul.mubr.f32.gmra.mxu0 %v5258
    %v5473 = vpop.f32.mrf.mxu0
    %v5474 = vadd.f32 %v5394, %v5473
    %v5475 = vpop.f32.mrf.mxu0
    %5476 = vmatprep.mubr.f32.mxu0 %v5275
    %5477 = vmatmul.mubr.f32.gmra.mxu0 %v5274
    %v5478 = vpop.f32.mrf.mxu0
    %v5479 = vadd.f32 %v5399, %v5478
    %v5480 = vpop.f32.mrf.mxu0
    %5481 = vmatprep.mubr.f32.mxu0 %v5291
    %5482 = vmatmul.mubr.f32.gmra.mxu0 %v5290
    %v5483 = vpop.f32.mrf.mxu0
    %v5484 = vadd.f32 %v5404, %v5483
    %v5485 = vpop.f32.mrf.mxu0
    %5486 = vdwg.mxu0
    %5487 = vmatprep.subr.mxu0 0.0
    %5488 = vmatpush1.xpose.msra.mxu0 0.0
    %5489 = vmatprep.subr.mxu0 0.0
    %5490 = vmatpush1.xpose.msra.mxu0 0.0
    %5491 = vmatprep.subr.mxu0 0.0
    %5492 = vmatpush1.xpose.msra.mxu0 0.0
    %5493 = vmatprep.subr.mxu0 0.0
    %5494 = vmatpush1.xpose.msra.mxu0 0.0
    %5495 = vmatprep.subr.mxu0 0.0
    %5496 = vmatpush1.xpose.msra.mxu0 0.0
    %5497 = vmatprep.subr.mxu0 0.0
    %5498 = vmatpush1.xpose.msra.mxu0 0.0
    %5499 = vmatprep.subr.mxu0 0.0
    %5500 = vmatpush1.xpose.msra.mxu0 0.0
    %5501 = vmatprep.subr.mxu0 0.0
    %5502 = vmatpush1.xpose.msra.mxu0 0.0
    %5503 = vmatprep.subr.mxu0 0.0
    %5504 = vmatpush1.xpose.msra.mxu0 0.0
    %5505 = vmatprep.subr.mxu0 0.0
    %5506 = vmatpush1.xpose.msra.mxu0 0.0
    %5507 = vmatprep.subr.mxu0 0.0
    %5508 = vmatpush1.xpose.msra.mxu0 0.0
    %5509 = vmatprep.subr.mxu0 0.0
    %5510 = vmatpush1.xpose.msra.mxu0 0.0
    %5511 = vmatprep.subr.mxu0 0.0
    %5512 = vmatpush1.xpose.msra.mxu0 0.0
    %5513 = vmatprep.subr.mxu0 0.0
    %5514 = vmatpush1.xpose.msra.mxu0 0.0
    %5515 = vmatprep.subr.mxu0 0.0
    %5516 = vmatpush1.xpose.msra.mxu0 0.0
    %5517 = vmatprep.subr.mxu0 %v5309
    %5518 = vmatpush1.xpose.msra.mxu0 %v5308
    %5519 = vmatprep.subr.mxu0 0.0
    %5520 = vmatpush2.xpose.msra.mxu0 0.0
    %5521 = vmatprep.subr.mxu0 0.0
    %5522 = vmatpush2.xpose.msra.mxu0 0.0
    %5523 = vmatprep.subr.mxu0 0.0
    %5524 = vmatpush2.xpose.msra.mxu0 0.0
    %5525 = vmatprep.subr.mxu0 0.0
    %5526 = vmatpush2.xpose.msra.mxu0 0.0
    %5527 = vmatprep.subr.mxu0 0.0
    %5528 = vmatpush2.xpose.msra.mxu0 0.0
    %5529 = vmatprep.subr.mxu0 0.0
    %5530 = vmatpush2.xpose.msra.mxu0 0.0
    %5531 = vmatprep.subr.mxu0 0.0
    %5532 = vmatpush2.xpose.msra.mxu0 0.0
    %5533 = vmatprep.subr.mxu0 0.0
    %5534 = vmatpush2.xpose.msra.mxu0 0.0
    %5535 = vmatprep.subr.mxu0 0.0
    %5536 = vmatpush2.xpose.msra.mxu0 0.0
    %5537 = vmatprep.subr.mxu0 0.0
    %5538 = vmatpush2.xpose.msra.mxu0 0.0
    %5539 = vmatprep.subr.mxu0 0.0
    %5540 = vmatpush2.xpose.msra.mxu0 0.0
    %5541 = vmatprep.subr.mxu0 0.0
    %5542 = vmatpush2.xpose.msra.mxu0 0.0
    %5543 = vmatprep.subr.mxu0 0.0
    %5544 = vmatpush2.xpose.msra.mxu0 0.0
    %5545 = vmatprep.subr.mxu0 0.0
    %5546 = vmatpush2.xpose.msra.mxu0 0.0
    %5547 = vmatprep.subr.mxu0 0.0
    %5548 = vmatpush2.xpose.msra.mxu0 0.0
    %5549 = vmatprep.subr.mxu0 0.0
    %5550 = vmatpush2.xpose.msra.mxu0 0.0
    %5551 = vmatprep.mubr.f32.mxu0 %v5261
    %5552 = vmatmul.mubr.f32.gmra.mxu0 %v5260
    %v5553 = vpop.f32.mrf.mxu0
    %v5554 = vadd.f32 %v5474, %v5553
    %v5555 = vpop.f32.mrf.mxu0
    %5556 = vmatprep.mubr.f32.mxu0 %v5277
    %5557 = vmatmul.mubr.f32.gmra.mxu0 %v5276
    %v5558 = vpop.f32.mrf.mxu0
    %v5559 = vadd.f32 %v5479, %v5558
    %v5560 = vpop.f32.mrf.mxu0
    %5561 = vmatprep.mubr.f32.mxu0 %v5293
    %5562 = vmatmul.mubr.f32.gmra.mxu0 %v5292
    %v5563 = vpop.f32.mrf.mxu0
    %v5564 = vadd.f32 %v5484, %v5563
    %v5565 = vpop.f32.mrf.mxu0
    %5566 = vdwg.mxu0
    %5567 = vmatprep.subr.mxu0 0.0
    %5568 = vmatpush1.xpose.msra.mxu0 0.0
    %5569 = vmatprep.subr.mxu0 0.0
    %5570 = vmatpush1.xpose.msra.mxu0 0.0
    %5571 = vmatprep.subr.mxu0 0.0
    %5572 = vmatpush1.xpose.msra.mxu0 0.0
    %5573 = vmatprep.subr.mxu0 0.0
    %5574 = vmatpush1.xpose.msra.mxu0 0.0
    %5575 = vmatprep.subr.mxu0 0.0
    %5576 = vmatpush1.xpose.msra.mxu0 0.0
    %5577 = vmatprep.subr.mxu0 0.0
    %5578 = vmatpush1.xpose.msra.mxu0 0.0
    %5579 = vmatprep.subr.mxu0 0.0
    %5580 = vmatpush1.xpose.msra.mxu0 0.0
    %5581 = vmatprep.subr.mxu0 0.0
    %5582 = vmatpush1.xpose.msra.mxu0 0.0
    %5583 = vmatprep.subr.mxu0 0.0
    %5584 = vmatpush1.xpose.msra.mxu0 0.0
    %5585 = vmatprep.subr.mxu0 0.0
    %5586 = vmatpush1.xpose.msra.mxu0 0.0
    %5587 = vmatprep.subr.mxu0 0.0
    %5588 = vmatpush1.xpose.msra.mxu0 0.0
    %5589 = vmatprep.subr.mxu0 0.0
    %5590 = vmatpush1.xpose.msra.mxu0 0.0
    %5591 = vmatprep.subr.mxu0 0.0
    %5592 = vmatpush1.xpose.msra.mxu0 0.0
    %5593 = vmatprep.subr.mxu0 0.0
    %5594 = vmatpush1.xpose.msra.mxu0 0.0
    %5595 = vmatprep.subr.mxu0 0.0
    %5596 = vmatpush1.xpose.msra.mxu0 0.0
    %5597 = vmatprep.subr.mxu0 %v5311
    %5598 = vmatpush1.xpose.msra.mxu0 %v5310
    %5599 = vmatprep.subr.mxu0 0.0
    %5600 = vmatpush2.xpose.msra.mxu0 0.0
    %5601 = vmatprep.subr.mxu0 0.0
    %5602 = vmatpush2.xpose.msra.mxu0 0.0
    %5603 = vmatprep.subr.mxu0 0.0
    %5604 = vmatpush2.xpose.msra.mxu0 0.0
    %5605 = vmatprep.subr.mxu0 0.0
    %5606 = vmatpush2.xpose.msra.mxu0 0.0
    %5607 = vmatprep.subr.mxu0 0.0
    %5608 = vmatpush2.xpose.msra.mxu0 0.0
    %5609 = vmatprep.subr.mxu0 0.0
    %5610 = vmatpush2.xpose.msra.mxu0 0.0
    %5611 = vmatprep.subr.mxu0 0.0
    %5612 = vmatpush2.xpose.msra.mxu0 0.0
    %5613 = vmatprep.subr.mxu0 0.0
    %5614 = vmatpush2.xpose.msra.mxu0 0.0
    %5615 = vmatprep.subr.mxu0 0.0
    %5616 = vmatpush2.xpose.msra.mxu0 0.0
    %5617 = vmatprep.subr.mxu0 0.0
    %5618 = vmatpush2.xpose.msra.mxu0 0.0
    %5619 = vmatprep.subr.mxu0 0.0
    %5620 = vmatpush2.xpose.msra.mxu0 0.0
    %5621 = vmatprep.subr.mxu0 0.0
    %5622 = vmatpush2.xpose.msra.mxu0 0.0
    %5623 = vmatprep.subr.mxu0 0.0
    %5624 = vmatpush2.xpose.msra.mxu0 0.0
    %5625 = vmatprep.subr.mxu0 0.0
    %5626 = vmatpush2.xpose.msra.mxu0 0.0
    %5627 = vmatprep.subr.mxu0 0.0
    %5628 = vmatpush2.xpose.msra.mxu0 0.0
    %5629 = vmatprep.subr.mxu0 0.0
    %5630 = vmatpush2.xpose.msra.mxu0 0.0
    %5631 = vmatprep.mubr.f32.mxu0 %v5263
    %5632 = vmatmul.mubr.f32.gmra.mxu0 %v5262
    %v5633 = vpop.f32.mrf.mxu0
    %v5634 = vadd.f32 %v5554, %v5633
    %v5635 = vpop.f32.mrf.mxu0
    %5636 = vmatprep.mubr.f32.mxu0 %v5279
    %5637 = vmatmul.mubr.f32.gmra.mxu0 %v5278
    %v5638 = vpop.f32.mrf.mxu0
    %v5639 = vadd.f32 %v5559, %v5638
    %v5640 = vpop.f32.mrf.mxu0
    %5641 = vmatprep.mubr.f32.mxu0 %v5295
    %5642 = vmatmul.mubr.f32.gmra.mxu0 %v5294
    %v5643 = vpop.f32.mrf.mxu0
    %v5644 = vadd.f32 %v5564, %v5643
    %v5645 = vpop.f32.mrf.mxu0
    %5646 = vdwg.mxu0
    %5647 = vmatprep.subr.mxu0 0.0
    %5648 = vmatpush1.xpose.msra.mxu0 0.0
    %5649 = vmatprep.subr.mxu0 0.0
    %5650 = vmatpush1.xpose.msra.mxu0 0.0
    %5651 = vmatprep.subr.mxu0 0.0
    %5652 = vmatpush1.xpose.msra.mxu0 0.0
    %5653 = vmatprep.subr.mxu0 0.0
    %5654 = vmatpush1.xpose.msra.mxu0 0.0
    %5655 = vmatprep.subr.mxu0 0.0
    %5656 = vmatpush1.xpose.msra.mxu0 0.0
    %5657 = vmatprep.subr.mxu0 0.0
    %5658 = vmatpush1.xpose.msra.mxu0 0.0
    %5659 = vmatprep.subr.mxu0 0.0
    %5660 = vmatpush1.xpose.msra.mxu0 0.0
    %5661 = vmatprep.subr.mxu0 0.0
    %5662 = vmatpush1.xpose.msra.mxu0 0.0
    %5663 = vmatprep.subr.mxu0 0.0
    %5664 = vmatpush1.xpose.msra.mxu0 0.0
    %5665 = vmatprep.subr.mxu0 0.0
    %5666 = vmatpush1.xpose.msra.mxu0 0.0
    %5667 = vmatprep.subr.mxu0 0.0
    %5668 = vmatpush1.xpose.msra.mxu0 0.0
    %5669 = vmatprep.subr.mxu0 0.0
    %5670 = vmatpush1.xpose.msra.mxu0 0.0
    %5671 = vmatprep.subr.mxu0 0.0
    %5672 = vmatpush1.xpose.msra.mxu0 0.0
    %5673 = vmatprep.subr.mxu0 0.0
    %5674 = vmatpush1.xpose.msra.mxu0 0.0
    %5675 = vmatprep.subr.mxu0 0.0
    %5676 = vmatpush1.xpose.msra.mxu0 0.0
    %5677 = vmatprep.subr.mxu0 %v5313
    %5678 = vmatpush1.xpose.msra.mxu0 %v5312
    %5679 = vmatprep.subr.mxu0 0.0
    %5680 = vmatpush2.xpose.msra.mxu0 0.0
    %5681 = vmatprep.subr.mxu0 0.0
    %5682 = vmatpush2.xpose.msra.mxu0 0.0
    %5683 = vmatprep.subr.mxu0 0.0
    %5684 = vmatpush2.xpose.msra.mxu0 0.0
    %5685 = vmatprep.subr.mxu0 0.0
    %5686 = vmatpush2.xpose.msra.mxu0 0.0
    %5687 = vmatprep.subr.mxu0 0.0
    %5688 = vmatpush2.xpose.msra.mxu0 0.0
    %5689 = vmatprep.subr.mxu0 0.0
    %5690 = vmatpush2.xpose.msra.mxu0 0.0
    %5691 = vmatprep.subr.mxu0 0.0
    %5692 = vmatpush2.xpose.msra.mxu0 0.0
    %5693 = vmatprep.subr.mxu0 0.0
    %5694 = vmatpush2.xpose.msra.mxu0 0.0
    %5695 = vmatprep.subr.mxu0 0.0
    %5696 = vmatpush2.xpose.msra.mxu0 0.0
    %5697 = vmatprep.subr.mxu0 0.0
    %5698 = vmatpush2.xpose.msra.mxu0 0.0
    %5699 = vmatprep.subr.mxu0 0.0
    %5700 = vmatpush2.xpose.msra.mxu0 0.0
    %5701 = vmatprep.subr.mxu0 0.0
    %5702 = vmatpush2.xpose.msra.mxu0 0.0
    %5703 = vmatprep.subr.mxu0 0.0
    %5704 = vmatpush2.xpose.msra.mxu0 0.0
    %5705 = vmatprep.subr.mxu0 0.0
    %5706 = vmatpush2.xpose.msra.mxu0 0.0
    %5707 = vmatprep.subr.mxu0 0.0
    %5708 = vmatpush2.xpose.msra.mxu0 0.0
    %5709 = vmatprep.subr.mxu0 0.0
    %5710 = vmatpush2.xpose.msra.mxu0 0.0
    %5711 = vmatprep.mubr.f32.mxu0 %v5265
    %5712 = vmatmul.mubr.f32.gmra.mxu0 %v5264
    %v5713 = vpop.f32.mrf.mxu0
    %v5714 = vadd.f32 %v5634, %v5713
    %v5715 = vpop.f32.mrf.mxu0
    %5716 = vmatprep.mubr.f32.mxu0 %v5281
    %5717 = vmatmul.mubr.f32.gmra.mxu0 %v5280
    %v5718 = vpop.f32.mrf.mxu0
    %v5719 = vadd.f32 %v5639, %v5718
    %v5720 = vpop.f32.mrf.mxu0
    %5721 = vmatprep.mubr.f32.mxu0 %v5297
    %5722 = vmatmul.mubr.f32.gmra.mxu0 %v5296
    %v5723 = vpop.f32.mrf.mxu0
    %v5724 = vadd.f32 %v5644, %v5723
    %v5725 = vpop.f32.mrf.mxu0
    %5726 = vdwg.mxu0
    %5727 = vmatprep.subr.mxu0 0.0
    %5728 = vmatpush1.xpose.msra.mxu0 0.0
    %5729 = vmatprep.subr.mxu0 0.0
    %5730 = vmatpush1.xpose.msra.mxu0 0.0
    %5731 = vmatprep.subr.mxu0 0.0
    %5732 = vmatpush1.xpose.msra.mxu0 0.0
    %5733 = vmatprep.subr.mxu0 0.0
    %5734 = vmatpush1.xpose.msra.mxu0 0.0
    %5735 = vmatprep.subr.mxu0 0.0
    %5736 = vmatpush1.xpose.msra.mxu0 0.0
    %5737 = vmatprep.subr.mxu0 0.0
    %5738 = vmatpush1.xpose.msra.mxu0 0.0
    %5739 = vmatprep.subr.mxu0 0.0
    %5740 = vmatpush1.xpose.msra.mxu0 0.0
    %5741 = vmatprep.subr.mxu0 0.0
    %5742 = vmatpush1.xpose.msra.mxu0 0.0
    %5743 = vmatprep.subr.mxu0 0.0
    %5744 = vmatpush1.xpose.msra.mxu0 0.0
    %5745 = vmatprep.subr.mxu0 0.0
    %5746 = vmatpush1.xpose.msra.mxu0 0.0
    %5747 = vmatprep.subr.mxu0 0.0
    %5748 = vmatpush1.xpose.msra.mxu0 0.0
    %5749 = vmatprep.subr.mxu0 0.0
    %5750 = vmatpush1.xpose.msra.mxu0 0.0
    %5751 = vmatprep.subr.mxu0 0.0
    %5752 = vmatpush1.xpose.msra.mxu0 0.0
    %5753 = vmatprep.subr.mxu0 0.0
    %5754 = vmatpush1.xpose.msra.mxu0 0.0
    %5755 = vmatprep.subr.mxu0 0.0
    %5756 = vmatpush1.xpose.msra.mxu0 0.0
    %5757 = vmatprep.subr.mxu0 %v5315
    %5758 = vmatpush1.xpose.msra.mxu0 %v5314
    %5759 = vmatprep.subr.mxu0 0.0
    %5760 = vmatpush2.xpose.msra.mxu0 0.0
    %5761 = vmatprep.subr.mxu0 0.0
    %5762 = vmatpush2.xpose.msra.mxu0 0.0
    %5763 = vmatprep.subr.mxu0 0.0
    %5764 = vmatpush2.xpose.msra.mxu0 0.0
    %5765 = vmatprep.subr.mxu0 0.0
    %5766 = vmatpush2.xpose.msra.mxu0 0.0
    %5767 = vmatprep.subr.mxu0 0.0
    %5768 = vmatpush2.xpose.msra.mxu0 0.0
    %5769 = vmatprep.subr.mxu0 0.0
    %5770 = vmatpush2.xpose.msra.mxu0 0.0
    %5771 = vmatprep.subr.mxu0 0.0
    %5772 = vmatpush2.xpose.msra.mxu0 0.0
    %5773 = vmatprep.subr.mxu0 0.0
    %5774 = vmatpush2.xpose.msra.mxu0 0.0
    %5775 = vmatprep.subr.mxu0 0.0
    %5776 = vmatpush2.xpose.msra.mxu0 0.0
    %5777 = vmatprep.subr.mxu0 0.0
    %5778 = vmatpush2.xpose.msra.mxu0 0.0
    %5779 = vmatprep.subr.mxu0 0.0
    %5780 = vmatpush2.xpose.msra.mxu0 0.0
    %5781 = vmatprep.subr.mxu0 0.0
    %5782 = vmatpush2.xpose.msra.mxu0 0.0
    %5783 = vmatprep.subr.mxu0 0.0
    %5784 = vmatpush2.xpose.msra.mxu0 0.0
    %5785 = vmatprep.subr.mxu0 0.0
    %5786 = vmatpush2.xpose.msra.mxu0 0.0
    %5787 = vmatprep.subr.mxu0 0.0
    %5788 = vmatpush2.xpose.msra.mxu0 0.0
    %5789 = vmatprep.subr.mxu0 0.0
    %5790 = vmatpush2.xpose.msra.mxu0 0.0
    %5791 = vmatprep.mubr.f32.mxu0 %v5267
    %5792 = vmatmul.mubr.f32.gmra.mxu0 %v5266
    %v5793 = vpop.f32.mrf.mxu0
    %v5794 = vadd.f32 %v5714, %v5793
    %v5795 = vpop.f32.mrf.mxu0
    %5796 = vmatprep.mubr.f32.mxu0 %v5283
    %5797 = vmatmul.mubr.f32.gmra.mxu0 %v5282
    %v5798 = vpop.f32.mrf.mxu0
    %v5799 = vadd.f32 %v5719, %v5798
    %v5800 = vpop.f32.mrf.mxu0
    %5801 = vmatprep.mubr.f32.mxu0 %v5299
    %5802 = vmatmul.mubr.f32.gmra.mxu0 %v5298
    %v5803 = vpop.f32.mrf.mxu0
    %v5804 = vadd.f32 %v5724, %v5803
    %v5805 = vpop.f32.mrf.mxu0
    %5806 = vdwg.mxu0
    %5807 = vmatprep.subr.mxu0 0.0
    %5808 = vmatpush1.xpose.msra.mxu0 0.0
    %5809 = vmatprep.subr.mxu0 0.0
    %5810 = vmatpush1.xpose.msra.mxu0 0.0
    %5811 = vmatprep.subr.mxu0 0.0
    %5812 = vmatpush1.xpose.msra.mxu0 0.0
    %5813 = vmatprep.subr.mxu0 0.0
    %5814 = vmatpush1.xpose.msra.mxu0 0.0
    %5815 = vmatprep.subr.mxu0 0.0
    %5816 = vmatpush1.xpose.msra.mxu0 0.0
    %5817 = vmatprep.subr.mxu0 0.0
    %5818 = vmatpush1.xpose.msra.mxu0 0.0
    %5819 = vmatprep.subr.mxu0 0.0
    %5820 = vmatpush1.xpose.msra.mxu0 0.0
    %5821 = vmatprep.subr.mxu0 0.0
    %5822 = vmatpush1.xpose.msra.mxu0 0.0
    %5823 = vmatprep.subr.mxu0 0.0
    %5824 = vmatpush1.xpose.msra.mxu0 0.0
    %5825 = vmatprep.subr.mxu0 0.0
    %5826 = vmatpush1.xpose.msra.mxu0 0.0
    %5827 = vmatprep.subr.mxu0 0.0
    %5828 = vmatpush1.xpose.msra.mxu0 0.0
    %5829 = vmatprep.subr.mxu0 0.0
    %5830 = vmatpush1.xpose.msra.mxu0 0.0
    %5831 = vmatprep.subr.mxu0 0.0
    %5832 = vmatpush1.xpose.msra.mxu0 0.0
    %5833 = vmatprep.subr.mxu0 0.0
    %5834 = vmatpush1.xpose.msra.mxu0 0.0
    %5835 = vmatprep.subr.mxu0 0.0
    %5836 = vmatpush1.xpose.msra.mxu0 0.0
    %5837 = vmatprep.subr.mxu0 %v5317
    %5838 = vmatpush1.xpose.msra.mxu0 %v5316
    %5839 = vmatprep.subr.mxu0 0.0
    %5840 = vmatpush2.xpose.msra.mxu0 0.0
    %5841 = vmatprep.subr.mxu0 0.0
    %5842 = vmatpush2.xpose.msra.mxu0 0.0
    %5843 = vmatprep.subr.mxu0 0.0
    %5844 = vmatpush2.xpose.msra.mxu0 0.0
    %5845 = vmatprep.subr.mxu0 0.0
    %5846 = vmatpush2.xpose.msra.mxu0 0.0
    %5847 = vmatprep.subr.mxu0 0.0
    %5848 = vmatpush2.xpose.msra.mxu0 0.0
    %5849 = vmatprep.subr.mxu0 0.0
    %5850 = vmatpush2.xpose.msra.mxu0 0.0
    %5851 = vmatprep.subr.mxu0 0.0
    %5852 = vmatpush2.xpose.msra.mxu0 0.0
    %5853 = vmatprep.subr.mxu0 0.0
    %5854 = vmatpush2.xpose.msra.mxu0 0.0
    %5855 = vmatprep.subr.mxu0 0.0
    %5856 = vmatpush2.xpose.msra.mxu0 0.0
    %5857 = vmatprep.subr.mxu0 0.0
    %5858 = vmatpush2.xpose.msra.mxu0 0.0
    %5859 = vmatprep.subr.mxu0 0.0
    %5860 = vmatpush2.xpose.msra.mxu0 0.0
    %5861 = vmatprep.subr.mxu0 0.0
    %5862 = vmatpush2.xpose.msra.mxu0 0.0
    %5863 = vmatprep.subr.mxu0 0.0
    %5864 = vmatpush2.xpose.msra.mxu0 0.0
    %5865 = vmatprep.subr.mxu0 0.0
    %5866 = vmatpush2.xpose.msra.mxu0 0.0
    %5867 = vmatprep.subr.mxu0 0.0
    %5868 = vmatpush2.xpose.msra.mxu0 0.0
    %5869 = vmatprep.subr.mxu0 0.0
    %5870 = vmatpush2.xpose.msra.mxu0 0.0
    %5871 = vmatprep.mubr.f32.mxu0 %v5269
    %5872 = vmatmul.mubr.f32.gmra.mxu0 %v5268
    %v5873 = vpop.f32.mrf.mxu0
    %v5874 = vadd.f32 %v5794, %v5873
    %v5875 = vpop.f32.mrf.mxu0
    %5876 = vmatprep.mubr.f32.mxu0 %v5285
    %5877 = vmatmul.mubr.f32.gmra.mxu0 %v5284
    %v5878 = vpop.f32.mrf.mxu0
    %v5879 = vadd.f32 %v5799, %v5878
    %v5880 = vpop.f32.mrf.mxu0
    %5881 = vmatprep.mubr.f32.mxu0 %v5301
    %5882 = vmatmul.mubr.f32.gmra.mxu0 %v5300
    %v5883 = vpop.f32.mrf.mxu0
    %v5884 = vadd.f32 %v5804, %v5883
    %v5885 = vpop.f32.mrf.mxu0
    %5886 = vdwg.mxu0
    %5887 = vmatprep.subr.mxu0 0.0
    %5888 = vmatpush1.xpose.msra.mxu0 0.0
    %5889 = vmatprep.subr.mxu0 0.0
    %5890 = vmatpush1.xpose.msra.mxu0 0.0
    %5891 = vmatprep.subr.mxu0 0.0
    %5892 = vmatpush1.xpose.msra.mxu0 0.0
    %5893 = vmatprep.subr.mxu0 0.0
    %5894 = vmatpush1.xpose.msra.mxu0 0.0
    %5895 = vmatprep.subr.mxu0 0.0
    %5896 = vmatpush1.xpose.msra.mxu0 0.0
    %5897 = vmatprep.subr.mxu0 0.0
    %5898 = vmatpush1.xpose.msra.mxu0 0.0
    %5899 = vmatprep.subr.mxu0 0.0
    %5900 = vmatpush1.xpose.msra.mxu0 0.0
    %5901 = vmatprep.subr.mxu0 0.0
    %5902 = vmatpush1.xpose.msra.mxu0 0.0
    %5903 = vmatprep.subr.mxu0 0.0
    %5904 = vmatpush1.xpose.msra.mxu0 0.0
    %5905 = vmatprep.subr.mxu0 0.0
    %5906 = vmatpush1.xpose.msra.mxu0 0.0
    %5907 = vmatprep.subr.mxu0 0.0
    %5908 = vmatpush1.xpose.msra.mxu0 0.0
    %5909 = vmatprep.subr.mxu0 0.0
    %5910 = vmatpush1.xpose.msra.mxu0 0.0
    %5911 = vmatprep.subr.mxu0 0.0
    %5912 = vmatpush1.xpose.msra.mxu0 0.0
    %5913 = vmatprep.subr.mxu0 0.0
    %5914 = vmatpush1.xpose.msra.mxu0 0.0
    %5915 = vmatprep.subr.mxu0 0.0
    %5916 = vmatpush1.xpose.msra.mxu0 0.0
    %5917 = vmatprep.subr.mxu0 %v5319
    %5918 = vmatpush1.xpose.msra.mxu0 %v5318
    %5919 = vmatprep.subr.mxu0 0.0
    %5920 = vmatpush2.xpose.msra.mxu0 0.0
    %5921 = vmatprep.subr.mxu0 0.0
    %5922 = vmatpush2.xpose.msra.mxu0 0.0
    %5923 = vmatprep.subr.mxu0 0.0
    %5924 = vmatpush2.xpose.msra.mxu0 0.0
    %5925 = vmatprep.subr.mxu0 0.0
    %5926 = vmatpush2.xpose.msra.mxu0 0.0
    %5927 = vmatprep.subr.mxu0 0.0
    %5928 = vmatpush2.xpose.msra.mxu0 0.0
    %5929 = vmatprep.subr.mxu0 0.0
    %5930 = vmatpush2.xpose.msra.mxu0 0.0
    %5931 = vmatprep.subr.mxu0 0.0
    %5932 = vmatpush2.xpose.msra.mxu0 0.0
    %5933 = vmatprep.subr.mxu0 0.0
    %5934 = vmatpush2.xpose.msra.mxu0 0.0
    %5935 = vmatprep.subr.mxu0 0.0
    %5936 = vmatpush2.xpose.msra.mxu0 0.0
    %5937 = vmatprep.subr.mxu0 0.0
    %5938 = vmatpush2.xpose.msra.mxu0 0.0
    %5939 = vmatprep.subr.mxu0 0.0
    %5940 = vmatpush2.xpose.msra.mxu0 0.0
    %5941 = vmatprep.subr.mxu0 0.0
    %5942 = vmatpush2.xpose.msra.mxu0 0.0
    %5943 = vmatprep.subr.mxu0 0.0
    %5944 = vmatpush2.xpose.msra.mxu0 0.0
    %5945 = vmatprep.subr.mxu0 0.0
    %5946 = vmatpush2.xpose.msra.mxu0 0.0
    %5947 = vmatprep.subr.mxu0 0.0
    %5948 = vmatpush2.xpose.msra.mxu0 0.0
    %5949 = vmatprep.subr.mxu0 0.0
    %5950 = vmatpush2.xpose.msra.mxu0 0.0
    %5951 = vmatprep.mubr.f32.mxu0 %v5271
    %5952 = vmatmul.mubr.f32.gmra.mxu0 %v5270
    %v5953 = vpop.f32.mrf.mxu0
    %v5954 = vadd.f32 %v5874, %v5953
    %v5955 = vpop.f32.mrf.mxu0
    %5956 = vmatprep.mubr.f32.mxu0 %v5287
    %5957 = vmatmul.mubr.f32.gmra.mxu0 %v5286
    %v5958 = vpop.f32.mrf.mxu0
    %v5959 = vadd.f32 %v5879, %v5958
    %v5960 = vpop.f32.mrf.mxu0
    %5961 = vmatprep.mubr.f32.mxu0 %v5303
    %5962 = vmatmul.mubr.f32.gmra.mxu0 %v5302
    %v5963 = vpop.f32.mrf.mxu0
    %v5964 = vadd.f32 %v5884, %v5963
    %v5965 = vpop.f32.mrf.mxu0
    %5966 = vdwg.mxu0
    %v5970 = vrot.slane %v5954, 2
    %v5971 = vrot.slane %v5959, 2
    %v5972 = vsel %vm2149, %v5970, %v5971
    %v5973 = vrot.slane %v5964, 2
    %v5974 = vsel %vm2149, %v5971, %v5973
    %5975 = vrot.lane.b32.xlu0 %v5970, 5
    %v5976 = vpop.permute.xlu0 %5975
    %5977 = vrot.lane.b32.xlu0 %v5972, 5
    %v5978 = vpop.permute.xlu0 %5977
    %5979 = vrot.lane.b32.xlu0 %v5974, 5
    %v5980 = vpop.permute.xlu0 %5979
    %v5984 = vadd.f32 %v4421, %v5976
    %v5985 = vadd.f32 %v4422, %v5978
    %v5986 = vadd.f32 %v4423, %v5980
    %v5987 = vld [vmem:[%s59] sm:$0x1]
    %v5988 = vld [vmem:[%s61] sm:$0x1]
    %5992 = vrot.lane.b32.xlu0 %v5984, 123
    %v5993 = vpop.permute.xlu0 %5992
    %5994 = vrot.lane.b32.xlu0 %v5985, 123
    %v5995 = vpop.permute.xlu0 %5994
    %5996 = vrot.lane.b32.xlu0 %v5986, 123
    %v5997 = vpop.permute.xlu0 %5996
    %v6001 = vsel %vm4350, %v5993, 0.0
    %6002 = vadd.xlane.f32.xlu0 %v6001
    %v6003 = vpop.xlane.xlu0 %6002
    %v6004 = vsel %vm148, %v5995, 0.0
    %6005 = vadd.xlane.f32.xlu0 %v6004
    %v6006 = vpop.xlane.xlu0 %6005
    %v6007 = vsel %vm148, %v5997, 0.0
    %6008 = vadd.xlane.f32.xlu0 %v6007
    %v6009 = vpop.xlane.xlu0 %6008
    %v6010 = vmul.f32 %v6003, %v156
    %v6011 = vmul.f32 %v6006, %v156
    %v6012 = vmul.f32 %v6009, %v156
    %v6013 = vsub.f32 %v5984, %v6010
    %v6014 = vsub.f32 %v5985, %v6011
    %v6015 = vsub.f32 %v5986, %v6012
    %v6016 = vmul.f32 %v6013, %v6013
    %v6017 = vmul.f32 %v6014, %v6014
    %v6018 = vmul.f32 %v6015, %v6015
    %6022 = vrot.lane.b32.xlu0 %v6016, 123
    %v6023 = vpop.permute.xlu0 %6022
    %6024 = vrot.lane.b32.xlu0 %v6017, 123
    %v6025 = vpop.permute.xlu0 %6024
    %6026 = vrot.lane.b32.xlu0 %v6018, 123
    %v6027 = vpop.permute.xlu0 %6026
    %v6031 = vsel %vm4350, %v6023, 0.0
    %6032 = vadd.xlane.f32.xlu0 %v6031
    %v6033 = vpop.xlane.xlu0 %6032
    %v6034 = vsel %vm148, %v6025, 0.0
    %6035 = vadd.xlane.f32.xlu0 %v6034
    %v6036 = vpop.xlane.xlu0 %6035
    %v6037 = vsel %vm148, %v6027, 0.0
    %6038 = vadd.xlane.f32.xlu0 %v6037
    %v6039 = vpop.xlane.xlu0 %6038
    %v6040 = vmul.f32 %v6033, %v156
    %v6041 = vmul.f32 %v6036, %v156
    %v6042 = vmul.f32 %v6039, %v156
    %v6043 = vadd.f32 %v6040, 1e-05
    %v6044 = vadd.f32 %v6041, 1e-05
    %v6045 = vadd.f32 %v6042, 1e-05
    %v6046 = vrsqrt.pop %v6043
    %v6047 = vrsqrt.pop %v6044
    %v6048 = vrsqrt.pop %v6045
    %v6049 = vmul.f32 %v6013, %v6046
    %v6050 = vmul.f32 %v6014, %v6047
    %v6051 = vmul.f32 %v6015, %v6048
    %v6053 = vlaneseq
    %v6054 = vshrl.u32 %v6053, 7
    %v6055 = vsub.s32 0, %v6054
    %v6056 = vrot.slane %v5987, %v6055
    %6057 = vrot.lane.b32.xlu0 %v6056, 5
    %v6058 = vpop.permute.xlu0 %6057
    %v6060 = vmul.f32 %v6049, %v6058
    %v6061 = vmul.f32 %v6050, %v6058
    %v6062 = vmul.f32 %v6051, %v6058
    %v6064 = vlaneseq
    %v6065 = vshrl.u32 %v6064, 7
    %v6066 = vsub.s32 0, %v6065
    %v6067 = vrot.slane %v5988, %v6066
    %6068 = vrot.lane.b32.xlu0 %v6067, 5
    %v6069 = vpop.permute.xlu0 %6068
    %v6071 = vadd.f32 %v6060, %v6069
    %v6072 = vadd.f32 %v6061, %v6069
    %v6073 = vadd.f32 %v6062, %v6069
    %v6074 = vld [vmem:[%s11] sm:$0x3f]
    %v6078 = vrot.slane %v6071, 6
    %v6079 = vrot.slane %v6072, 6
    %v6080 = vsel %vm1267, %v6078, %v6079
    %v6081 = vrot.slane %v6073, 6
    %v6082 = vsel %vm1267, %v6079, %v6081
    %6083 = vrot.lane.b32.xlu0 %v6080, 123
    %v6084 = vpop.permute.xlu0 %6083
    %6085 = vrot.lane.b32.xlu0 %v6082, 123
    %v6086 = vpop.permute.xlu0 %6085
    %6087 = vrot.lane.b32.xlu0 %v6081, 123
    %v6088 = vpop.permute.xlu0 %6087
    %vm6091 = vcmask 146432
    %v6093 = vsel %vm6091, %v6074, 0
    %v6095 = vsel %vm1267, %v6088, 0
    %6097 = vmatprep.subr.mxu0 0.0
    %6098 = vmatpush1.msra.mxu0 0.0
    %6099 = vmatprep.subr.mxu0 0.0
    %6100 = vmatpush1.msra.mxu0 0.0
    %6101 = vmatprep.subr.mxu0 0.0
    %6102 = vmatpush1.msra.mxu0 0.0
    %6103 = vmatprep.subr.mxu0 0.0
    %6104 = vmatpush1.msra.mxu0 0.0
    %6105 = vmatprep.subr.mxu0 0.0
    %6106 = vmatpush1.msra.mxu0 0.0
    %6107 = vmatprep.subr.mxu0 0.0
    %6108 = vmatpush1.msra.mxu0 0.0
    %6109 = vmatprep.subr.mxu0 0.0
    %6110 = vmatpush1.msra.mxu0 0.0
    %6111 = vmatprep.subr.mxu0 0.0
    %6112 = vmatpush1.msra.mxu0 0.0
    %6113 = vmatprep.subr.mxu0 0.0
    %6114 = vmatpush1.msra.mxu0 0.0
    %6115 = vmatprep.subr.mxu0 0.0
    %6116 = vmatpush1.msra.mxu0 0.0
    %6117 = vmatprep.subr.mxu0 0.0
    %6118 = vmatpush1.msra.mxu0 0.0
    %6119 = vmatprep.subr.mxu0 0.0
    %6120 = vmatpush1.msra.mxu0 0.0
    %6121 = vmatprep.subr.mxu0 0.0
    %6122 = vmatpush1.msra.mxu0 0.0
    %6123 = vmatprep.subr.mxu0 0.0
    %6124 = vmatpush1.msra.mxu0 %v6095
    %6125 = vmatprep.subr.mxu0 0.0
    %6126 = vmatpush1.msra.mxu0 %v6086
    %6127 = vmatprep.subr.mxu0 0.0
    %6128 = vmatpush1.msra.mxu0 %v6084
    %6129 = vmatprep.subr.mxu0 0.0
    %6130 = vmatpush2.msra.mxu0 0.0
    %6131 = vmatprep.subr.mxu0 0.0
    %6132 = vmatpush2.msra.mxu0 0.0
    %6133 = vmatprep.subr.mxu0 0.0
    %6134 = vmatpush2.msra.mxu0 0.0
    %6135 = vmatprep.subr.mxu0 0.0
    %6136 = vmatpush2.msra.mxu0 0.0
    %6137 = vmatprep.subr.mxu0 0.0
    %6138 = vmatpush2.msra.mxu0 0.0
    %6139 = vmatprep.subr.mxu0 0.0
    %6140 = vmatpush2.msra.mxu0 0.0
    %6141 = vmatprep.subr.mxu0 0.0
    %6142 = vmatpush2.msra.mxu0 0.0
    %6143 = vmatprep.subr.mxu0 0.0
    %6144 = vmatpush2.msra.mxu0 0.0
    %6145 = vmatprep.subr.mxu0 0.0
    %6146 = vmatpush2.msra.mxu0 0.0
    %6147 = vmatprep.subr.mxu0 0.0
    %6148 = vmatpush2.msra.mxu0 0.0
    %6149 = vmatprep.subr.mxu0 0.0
    %6150 = vmatpush2.msra.mxu0 0.0
    %6151 = vmatprep.subr.mxu0 0.0
    %6152 = vmatpush2.msra.mxu0 0.0
    %6153 = vmatprep.subr.mxu0 0.0
    %6154 = vmatpush2.msra.mxu0 0.0
    %6155 = vmatprep.subr.mxu0 0.0
    %6156 = vmatpush2.msra.mxu0 0.0
    %6157 = vmatprep.subr.mxu0 0.0
    %6158 = vmatpush2.msra.mxu0 0.0
    %6159 = vmatprep.subr.mxu0 0.0
    %6160 = vmatpush2.msra.mxu0 0.0
    %6161 = vmatprep.mubr.f32.mxu0 0.0
    %6162 = vmatmul.mubr.f32.gmra.mxu0 %v6093
    %v6163 = vpop.f32.mrf.mxu0
    %v6164 = vadd.f32 0.0, %v6163
    %v6165 = vpop.f32.mrf.mxu0
    %6166 = vdwg.mxu0
    %6167 = vst.msk [vmem:[#allocation2] sm:$0x3] %vm768, %v6164
    %vm6168 = vcmask 37892
    %6169 = vst.msk [vmem:[#allocation2 - $0x2] sm:$0x30] %vm6168, %v6164
    %vm6170 = vcmask 35842
    %6171 = vst.msk [vmem:[#allocation4 - $0x2] sm:$0xc] %vm6170, %v6164
    %6172 = vst.msk [vmem:[#allocation4 - $0x2] sm:$0x30] %vm6168, %v6164
    // Predicated region
    $region126: #{metapath_attention_forward.1} parent=1 // pred_check
      _
    $region127: #{metapath_attention_forward.1} parent=1 // pred_check_branch
      %6174 = sbr.rel (0) target = $region129
    $region128: #{metapath_attention_forward.1} parent=1 // pred_region
      %s6176 = ssub.s32 64, 64
      %6177 = vsyncadd [#allocation3], %s6176
      %s6179 = sshll.u32 [#allocation2], 4
      %s6180 = int_to_ptr.vmem [resolvable:$true] %s6179
      %6182 = dma.vmem_to_hbm [thread:$0]  %s6180, 64, %s63, [#allocation3]
    $region129: #{metapath_attention_forward.1} parent=1 // pred_fallthru
      _
    // Predicated region
    $region130: #{metapath_attention_forward.1} parent=1 // pred_check
      _
    $region131: #{metapath_attention_forward.1} parent=1 // pred_check_branch
      %6184 = sbr.rel (0) target = $region133
    $region132: #{metapath_attention_forward.1} parent=1 // pred_region
      %s6186 = ssub.s32 64, 64
      %6187 = vsyncadd [#allocation5], %s6186
      %s6189 = sshll.u32 [#allocation4], 4
      %s6190 = int_to_ptr.vmem [resolvable:$true] %s6189
      %6192 = dma.vmem_to_hbm [thread:$0]  %s6190, 64, %s65, [#allocation5]
    $region133: #{metapath_attention_forward.1} parent=1 // pred_fallthru
      _
    // Predicated region
    $region134: #{metapath_attention_forward.1} parent=1 // pred_check
      _
    $region135: #{metapath_attention_forward.1} parent=1 // pred_check_branch
      %6194 = sbr.rel (0) target = $region137
    $region136: #{metapath_attention_forward.1} parent=1 // pred_region
      %6195 = dma.done [#allocation3], 64
    $region137: #{metapath_attention_forward.1} parent=1 // pred_fallthru
      _
    // Predicated region
    $region138: #{metapath_attention_forward.1} parent=1 // pred_check
      _
    $region139: #{metapath_attention_forward.1} parent=1 // pred_check_branch
      %6197 = sbr.rel (0) target = $region141
    $region140: #{metapath_attention_forward.1} parent=1 // pred_region
      %6198 = dma.done [#allocation5], 64
    $region141: #{metapath_attention_forward.1} parent=1 // pred_fallthru
      _
    %6199 = vsyncpa [#allocation3], 1
    %6200 = vsyncpa [#allocation5], 1

</llo_original>
